<compile_context>
chip_gen: v7x
topology: tpu7x:2x2x1
jax: 0.10.0
libtpu: 0.0.40
codegen_flags: <defaults>
</compile_context>

<pallas_src>
import numpy as np
import jax
import jax.numpy as jnp
from jax.experimental import pallas as pl
from jax.experimental.pallas import tpu as pltpu

NEG = float(np.finfo(np.float32).min)  # stands in for -inf padding_value (h is tanh-bounded)


def char_rnn_kernel(x_ref, wih_ref, whh_ref, b_ref, mask_ref, wbig_ref, bbig_ref,
                    out_ref, hseq_ref, preact_ref):
    # x_ref:      (T, Bp, HHp)      layer-0 input = embeddings zero-padded to HHp lanes
    # wih_ref:    (L, HHp, 4*HHp)   input->gates weights (transposed, gate-block padded)
    # whh_ref:    (L, HHp, 4*HHp)   hidden->gates weights (transposed, gate-block padded)
    # b_ref:      (L, 1, 4*HHp)     b_ih + b_hh (gate-block padded)
    # mask_ref:   (T, Bp, 1)        1.0 for valid timestep, 0.0 for padding
    # wbig_ref:   (HHp, Op)         block-diag [[W_out^T, 0], [0, W_out^T]] zero-padded
    # bbig_ref:   (1, Op)           [b_out, b_out, 0...]
    # out_ref:    (Bp, Op)
    # hseq_ref:   (T, Bp, HHp)      scratch: current layer's input/output sequence
    # preact_ref: (T, Bp, 4*HHp)    scratch: hoisted input projection for all timesteps
    T, B, HH = hseq_ref.shape
    L = wih_ref.shape[0]
    G = 4 * HH

    hseq_ref[...] = x_ref[...]

    run_max = None
    for l in range(L):                      # static unroll over the LSTM layers
        wih = wih_ref[l]                    # (HHp, 4*HHp)
        whh = whh_ref[l]                    # (HHp, 4*HHp)
        b = b_ref[l]                        # (1, 4*HHp)
        last = (l == L - 1)

        # Hoisted input projection: one big MXU matmul for all T timesteps.
        x2d = hseq_ref[...].reshape(T * B, HH)
        preact_ref[...] = (jnp.dot(x2d, wih, preferred_element_type=jnp.float32)
                           + b).reshape(T, B, G)

        h = jnp.zeros((B, HH), jnp.float32)
        c = jnp.zeros((B, HH), jnp.float32)
        if last:
            run_max = jnp.full((B, HH), NEG, jnp.float32)

        for t in range(T):                  # static unroll of the serial recurrence
            gates = preact_ref[t] + jnp.dot(h, whh, preferred_element_type=jnp.float32)
            # PyTorch LSTM gate order: i, f, g, o (each a full 128-lane tile here)
            i_g = jax.nn.sigmoid(gates[:, 0 * HH:1 * HH])
            f_g = jax.nn.sigmoid(gates[:, 1 * HH:2 * HH])
            g_g = jnp.tanh(gates[:, 2 * HH:3 * HH])
            o_g = jax.nn.sigmoid(gates[:, 3 * HH:4 * HH])
            c = f_g * c + i_g * g_g
            h = o_g * jnp.tanh(c)
            if last:
                # Fused pad_packed_sequence(padding_value=-inf) + max over time.
                valid = mask_ref[t] > 0.5               # (Bp, 1)
                run_max = jnp.maximum(run_max, jnp.where(valid, h, NEG))
            else:
                hseq_ref[t] = h                          # input sequence for next layer

    # dropout(p=0.2) is identity in eval mode.
    # h2o on the (2B, hidden)-viewed features via the block-diagonal weight.
    out_ref[...] = (jnp.dot(run_max, wbig_ref[...],
                            preferred_element_type=jnp.float32) + bbig_ref[...])


def prepare_kernel_params(raw):
    """Pad/transpose raw PyTorch-style params into tile-aligned kernel params."""
    L = len(raw["w_ih"])
    HH = raw["w_hh"][0].shape[1]            # real 2*hidden_size
    H = raw["w_out"].shape[1]
    O = raw["w_out"].shape[0]
    HH_pad = ((HH + 127) // 128) * 128      # lane-align the hidden/gate feature dim
    O_pad = 128                             # lane-dense output store

    wih_p = np.zeros((L, HH_pad, 4 * HH_pad), np.float32)
    whh_p = np.zeros((L, HH_pad, 4 * HH_pad), np.float32)
    b_p = np.zeros((L, 1, 4 * HH_pad), np.float32)
    for l in range(L):
        w_ih = np.asarray(raw["w_ih"][l])   # (4*HH, in_l)
        w_hh = np.asarray(raw["w_hh"][l])   # (4*HH, HH)
        bias = np.asarray(raw["b_ih"][l]) + np.asarray(raw["b_hh"][l])
        in_l = w_ih.shape[1]
        for g in range(4):
            wih_p[l, :in_l, g * HH_pad:g * HH_pad + HH] = w_ih[g * HH:(g + 1) * HH, :].T
            whh_p[l, :HH, g * HH_pad:g * HH_pad + HH] = w_hh[g * HH:(g + 1) * HH, :].T
            b_p[l, 0, g * HH_pad:g * HH_pad + HH] = bias[g * HH:(g + 1) * HH]

    w_out_t = np.asarray(raw["w_out"]).T    # (H, O)
    wbig = np.zeros((HH_pad, O_pad), np.float32)
    wbig[:H, :O] = w_out_t
    wbig[H:2 * H, O:2 * O] = w_out_t
    bbig = np.zeros((1, O_pad), np.float32)
    bbig[0, :O] = np.asarray(raw["b_out"])
    bbig[0, O:2 * O] = np.asarray(raw["b_out"])

    return dict(wih=jnp.asarray(wih_p), whh=jnp.asarray(whh_p), b=jnp.asarray(b_p),
                wbig=jnp.asarray(wbig), bbig=jnp.asarray(bbig))


def char_rnn_forward(tokens, lengths, raw, kparams):
    # NOTE: like pack_padded_sequence, lengths must be >= 1 and padding strictly trailing.
    T, B = tokens.shape
    HH_pad = kparams["wih"].shape[1]
    O_pad = kparams["wbig"].shape[1]
    O = raw["w_out"].shape[0]
    E = raw["emb"].shape[1]
    B_pad = ((B + 7) // 8) * 8              # full f32 sublane tiles in the recurrence

    # Glue: embedding gather (XLA), zero-pad batch and feature dims, build validity mask.
    encoded = jnp.take(raw["emb"], tokens, axis=0).astype(jnp.float32)   # (T, B, E)
    x = jnp.zeros((T, B_pad, HH_pad), jnp.float32)
    x = x.at[:, :B, :E].set(encoded)
    mask = (jnp.arange(T)[:, None] < lengths[None, :]).astype(jnp.float32)  # (T, B)
    mask_p = jnp.zeros((T, B_pad, 1), jnp.float32)
    mask_p = mask_p.at[:, :B, 0].set(mask)

    vmem = pl.BlockSpec(memory_space=pltpu.MemorySpace.VMEM)
    out = pl.pallas_call(
        char_rnn_kernel,
        out_shape=jax.ShapeDtypeStruct((B_pad, O_pad), jnp.float32),
        in_specs=[vmem] * 7,
        out_specs=vmem,
        scratch_shapes=[pltpu.VMEM((T, B_pad, HH_pad), jnp.float32),
                        pltpu.VMEM((T, B_pad, 4 * HH_pad), jnp.float32)],
        # For large batch on v7x: add grid=(B_pad//block_b,) with batch-blocked
        # BlockSpecs and dimension_semantics=("parallel",) to use both TensorCores.
    )(x, kparams["wih"], kparams["whh"], kparams["b"], mask_p,
      kparams["wbig"], kparams["bbig"])

    # Slice off batch/lane padding; the module's .view(-1, hidden_size):
    # (B, 2*O) -> (2B, O) is a pure row-major reshape.
    out_real = out[:B, :2 * O]
    return out_real.reshape(2 * B, O)


def init_params(key, vocab, E, H, O, L=4, pad_idx=0):
    """Raw PyTorch-style parameters."""
    HH = 2 * H
    ks = jax.random.split(key, 3 + 4 * L)
    emb = 0.1 * jax.random.normal(ks[0], (vocab, E), jnp.float32)
    emb = emb.at[pad_idx].set(0.0)          # padding_idx row is zero
    w_out = 0.1 * jax.random.normal(ks[1], (O, H), jnp.float32)
    b_out = 0.1 * jax.random.normal(ks[2], (O,), jnp.float32)

    w_ih, w_hh, b_ih, b_hh = [], [], [], []
    idx = 3
    for l in range(L):
        in_l = E if l == 0 else HH
        w_ih.append(0.1 * jax.random.normal(ks[idx], (4 * HH, in_l), jnp.float32)); idx += 1
        w_hh.append(0.1 * jax.random.normal(ks[idx], (4 * HH, HH), jnp.float32)); idx += 1
        b_ih.append(0.1 * jax.random.normal(ks[idx], (4 * HH,), jnp.float32)); idx += 1
        b_hh.append(0.1 * jax.random.normal(ks[idx], (4 * HH,), jnp.float32)); idx += 1
    return dict(emb=emb, w_ih=w_ih, w_hh=w_hh, b_ih=b_ih, b_hh=b_hh,
                w_out=w_out, b_out=b_out)


def reference_forward(tokens, lengths, raw):
    # Pure-JAX reference with identical semantics (for the correctness check).
    emb, w_out, b_out = raw["emb"], raw["w_out"], raw["b_out"]
    T, B = tokens.shape
    L = len(raw["w_ih"])
    HH = raw["w_hh"][0].shape[1]
    H = w_out.shape[1]
    x_seq = jnp.take(emb, tokens, axis=0)
    for l in range(L):
        wih, whh = raw["w_ih"][l], raw["w_hh"][l]
        bias = raw["b_ih"][l] + raw["b_hh"][l]
        h = jnp.zeros((B, HH), jnp.float32)
        c = jnp.zeros((B, HH), jnp.float32)
        outs = []
        for t in range(T):
            gates = x_seq[t] @ wih.T + h @ whh.T + bias
            i_g = jax.nn.sigmoid(gates[:, :HH])
            f_g = jax.nn.sigmoid(gates[:, HH:2 * HH])
            g_g = jnp.tanh(gates[:, 2 * HH:3 * HH])
            o_g = jax.nn.sigmoid(gates[:, 3 * HH:])
            c = f_g * c + i_g * g_g
            h = o_g * jnp.tanh(c)
            outs.append(h)
        x_seq = jnp.stack(outs)
    mask = jnp.arange(T)[:, None] < lengths[None, :]
    maxed = jnp.where(mask[:, :, None], x_seq, -jnp.inf).max(axis=0)   # (B, HH)
    feat = maxed.reshape(2 * B, H)
    return feat @ w_out.T + b_out


if __name__ == "__main__":
    # Model hyper-params (small, consistent with the module's __init__):
    V, E, H, O, L = 16, 8, 16, 5, 4      # vocab, embedding, hidden_size, output, num_layers
    T, B = 8, 4                          # seq length, batch

    key = jax.random.PRNGKey(0)
    pkey, tkey = jax.random.split(key)
    raw = init_params(pkey, V, E, H, O, L, pad_idx=0)
    kparams = prepare_kernel_params(raw)

    # pack_padded_sequence requires lengths sorted descending and >= 1.
    lengths = jnp.array([8, 7, 5, 3], dtype=jnp.int32)
    tokens = jax.random.randint(tkey, (T, B), 1, V, dtype=jnp.int32)
    valid = jnp.arange(T)[:, None] < lengths[None, :]
    tokens = jnp.where(valid, tokens, 0)  # pad positions use pad_idx = 0

    out = char_rnn_forward(tokens, lengths, raw, kparams)
    out = jax.block_until_ready(out)      # (2*B, O) = (8, 5)

    ref = reference_forward(tokens, lengths, raw)
    np.testing.assert_allclose(np.asarray(out), np.asarray(ref), atol=1e-4, rtol=1e-4)
    print("KERNEL_OK")
</pallas_src>

<mosaic_0001>
module attributes {stable_mosaic.version = 11 : i64} {
  func.func @char_rnn_kernel(%arg0: memref<8x8x128xf32, #tpu.memory_space<vmem>>, %arg1: memref<4x128x512xf32, #tpu.memory_space<vmem>>, %arg2: memref<4x128x512xf32, #tpu.memory_space<vmem>>, %arg3: memref<4x1x512xf32, #tpu.memory_space<vmem>>, %arg4: memref<8x8x1xf32, #tpu.memory_space<vmem>>, %arg5: memref<128x128xf32, #tpu.memory_space<vmem>>, %arg6: memref<1x128xf32, #tpu.memory_space<vmem>>, %arg7: memref<8x128xf32, #tpu.memory_space<vmem>>, %arg8: memref<8x8x128xf32, #tpu.memory_space<vmem>>, %arg9: memref<8x8x512xf32, #tpu.memory_space<vmem>>) attributes {dimension_semantics = [], scalar_prefetch = 0 : i64, scratch_operands = 2 : i64, tpu.core_type = #tpu.core_type<tc>} {
    %c0 = arith.constant 0 : index
    %c0_0 = arith.constant 0 : index
    %c0_1 = arith.constant 0 : index
    %0 = vector.load %arg0[%c0, %c0_0, %c0_1] : memref<8x8x128xf32, #tpu.memory_space<vmem>>, vector<8x8x128xf32>
    %c0_2 = arith.constant 0 : index
    %c0_3 = arith.constant 0 : index
    %c0_4 = arith.constant 0 : index
    %1 = vector.load %arg8[%c0_2, %c0_3, %c0_4] : memref<8x8x128xf32, #tpu.memory_space<vmem>>, vector<8x8x128xf32>
    tpu.vector_store %arg8[%c0_2, %c0_3, %c0_4], %0 {strides = array<i32>} : memref<8x8x128xf32, #tpu.memory_space<vmem>>, vector<8x8x128xf32>,
    %c0_5 = arith.constant 0 : index
    %c0_6 = arith.constant 0 : index
    %c0_7 = arith.constant 0 : index
    %2 = vector.load %arg1[%c0_5, %c0_6, %c0_7] : memref<4x128x512xf32, #tpu.memory_space<vmem>>, vector<1x128x512xf32>
    %3 = vector.shape_cast %2 : vector<1x128x512xf32> to vector<128x512xf32>
    %c0_8 = arith.constant 0 : index
    %c0_9 = arith.constant 0 : index
    %c0_10 = arith.constant 0 : index
    %4 = vector.load %arg2[%c0_8, %c0_9, %c0_10] : memref<4x128x512xf32, #tpu.memory_space<vmem>>, vector<1x128x512xf32>
    %5 = vector.shape_cast %4 : vector<1x128x512xf32> to vector<128x512xf32>
    %c0_11 = arith.constant 0 : index
    %c0_12 = arith.constant 0 : index
    %c0_13 = arith.constant 0 : index
    %6 = vector.load %arg3[%c0_11, %c0_12, %c0_13] : memref<4x1x512xf32, #tpu.memory_space<vmem>>, vector<1x1x512xf32>
    %7 = vector.shape_cast %6 : vector<1x1x512xf32> to vector<1x512xf32>
    %c0_14 = arith.constant 0 : index
    %c0_15 = arith.constant 0 : index
    %c0_16 = arith.constant 0 : index
    %8 = vector.load %arg8[%c0_14, %c0_15, %c0_16] : memref<8x8x128xf32, #tpu.memory_space<vmem>>, vector<8x8x128xf32>
    %9 = vector.shape_cast %8 : vector<8x8x128xf32> to vector<64x128xf32>
    %cst = arith.constant dense<0.000000e+00> : vector<64x512xf32>
    %10 = tpu.matmul %9, %3, %cst {dimension_numbers = #tpu.dot_dimension_numbers<[1], [0], [0], [1], [0, 0, 1, 1], [], []>} : vector<64x128xf32>, vector<128x512xf32>, vector<64x512xf32> -> vector<64x512xf32>
    %11 = vector.broadcast %7 : vector<1x512xf32> to vector<64x512xf32>
    %12 = arith.addf %10, %11 : vector<64x512xf32>
    %13 = vector.shape_cast %12 : vector<64x512xf32> to vector<8x8x512xf32>
    %c0_17 = arith.constant 0 : index
    %c0_18 = arith.constant 0 : index
    %c0_19 = arith.constant 0 : index
    %14 = vector.load %arg9[%c0_17, %c0_18, %c0_19] : memref<8x8x512xf32, #tpu.memory_space<vmem>>, vector<8x8x512xf32>
    tpu.vector_store %arg9[%c0_17, %c0_18, %c0_19], %13 {strides = array<i32>} : memref<8x8x512xf32, #tpu.memory_space<vmem>>, vector<8x8x512xf32>,
    %cst_20 = arith.constant 0.000000e+00 : f32
    %15 = vector.broadcast %cst_20 : f32 to vector<8x128xf32>
    %cst_21 = arith.constant 0.000000e+00 : f32
    %16 = vector.broadcast %cst_21 : f32 to vector<8x128xf32>
    %c0_22 = arith.constant 0 : index
    %c0_23 = arith.constant 0 : index
    %c0_24 = arith.constant 0 : index
    %17 = vector.load %arg9[%c0_22, %c0_23, %c0_24] : memref<8x8x512xf32, #tpu.memory_space<vmem>>, vector<1x8x512xf32>
    %18 = vector.shape_cast %17 : vector<1x8x512xf32> to vector<8x512xf32>
    %cst_25 = arith.constant dense<0.000000e+00> : vector<8x512xf32>
    %19 = tpu.matmul %15, %5, %cst_25 {dimension_numbers = #tpu.dot_dimension_numbers<[1], [0], [0], [1], [0, 0, 1, 1], [], []>} : vector<8x128xf32>, vector<128x512xf32>, vector<8x512xf32> -> vector<8x512xf32>
    %20 = arith.addf %18, %19 : vector<8x512xf32>
    %21 = vector.extract_strided_slice %20 {offsets = [0, 0], sizes = [8, 128], strides = [1, 1]} : vector<8x512xf32> to vector<8x128xf32>
    %22 = arith.negf %21 : vector<8x128xf32>
    %23 = math.exp %22 : vector<8x128xf32>
    %cst_26 = arith.constant 1.000000e+00 : f32
    %24 = vector.broadcast %cst_26 : f32 to vector<8x128xf32>
    %25 = arith.addf %24, %23 : vector<8x128xf32>
    %26 = arith.divf %24, %25 : vector<8x128xf32>
    %27 = vector.extract_strided_slice %20 {offsets = [0, 128], sizes = [8, 128], strides = [1, 1]} : vector<8x512xf32> to vector<8x128xf32>
    %28 = arith.negf %27 : vector<8x128xf32>
    %29 = math.exp %28 : vector<8x128xf32>
    %cst_27 = arith.constant 1.000000e+00 : f32
    %30 = vector.broadcast %cst_27 : f32 to vector<8x128xf32>
    %31 = arith.addf %30, %29 : vector<8x128xf32>
    %32 = arith.divf %30, %31 : vector<8x128xf32>
    %33 = vector.extract_strided_slice %20 {offsets = [0, 256], sizes = [8, 128], strides = [1, 1]} : vector<8x512xf32> to vector<8x128xf32>
    %34 = math.tanh %33 : vector<8x128xf32>
    %35 = vector.extract_strided_slice %20 {offsets = [0, 384], sizes = [8, 128], strides = [1, 1]} : vector<8x512xf32> to vector<8x128xf32>
    %36 = arith.negf %35 : vector<8x128xf32>
    %37 = math.exp %36 : vector<8x128xf32>
    %cst_28 = arith.constant 1.000000e+00 : f32
    %38 = vector.broadcast %cst_28 : f32 to vector<8x128xf32>
    %39 = arith.addf %38, %37 : vector<8x128xf32>
    %40 = arith.divf %38, %39 : vector<8x128xf32>
    %41 = arith.mulf %32, %16 : vector<8x128xf32>
    %42 = arith.mulf %26, %34 : vector<8x128xf32>
    %43 = arith.addf %41, %42 : vector<8x128xf32>
    %44 = math.tanh %43 : vector<8x128xf32>
    %45 = arith.mulf %40, %44 : vector<8x128xf32>
    %c0_29 = arith.constant 0 : index
    %c0_30 = arith.constant 0 : index
    %c0_31 = arith.constant 0 : index
    %46 = vector.load %arg8[%c0_29, %c0_30, %c0_31] : memref<8x8x128xf32, #tpu.memory_space<vmem>>, vector<1x8x128xf32>
    %47 = vector.shape_cast %46 : vector<1x8x128xf32> to vector<8x128xf32>
    %48 = vector.shape_cast %45 : vector<8x128xf32> to vector<1x8x128xf32>
    tpu.vector_store %arg8[%c0_29, %c0_30, %c0_31], %48 {strides = array<i32>} : memref<8x8x128xf32, #tpu.memory_space<vmem>>, vector<1x8x128xf32>,
    %c1 = arith.constant 1 : index
    %c0_32 = arith.constant 0 : index
    %c0_33 = arith.constant 0 : index
    %49 = vector.load %arg9[%c1, %c0_32, %c0_33] : memref<8x8x512xf32, #tpu.memory_space<vmem>>, vector<1x8x512xf32>
    %50 = vector.shape_cast %49 : vector<1x8x512xf32> to vector<8x512xf32>
    %cst_34 = arith.constant dense<0.000000e+00> : vector<8x512xf32>
    %51 = tpu.matmul %45, %5, %cst_34 {dimension_numbers = #tpu.dot_dimension_numbers<[1], [0], [0], [1], [0, 0, 1, 1], [], []>} : vector<8x128xf32>, vector<128x512xf32>, vector<8x512xf32> -> vector<8x512xf32>
    %52 = arith.addf %50, %51 : vector<8x512xf32>
    %53 = vector.extract_strided_slice %52 {offsets = [0, 0], sizes = [8, 128], strides = [1, 1]} : vector<8x512xf32> to vector<8x128xf32>
    %54 = arith.negf %53 : vector<8x128xf32>
    %55 = math.exp %54 : vector<8x128xf32>
    %cst_35 = arith.constant 1.000000e+00 : f32
    %56 = vector.broadcast %cst_35 : f32 to vector<8x128xf32>
    %57 = arith.addf %56, %55 : vector<8x128xf32>
    %58 = arith.divf %56, %57 : vector<8x128xf32>
    %59 = vector.extract_strided_slice %52 {offsets = [0, 128], sizes = [8, 128], strides = [1, 1]} : vector<8x512xf32> to vector<8x128xf32>
    %60 = arith.negf %59 : vector<8x128xf32>
    %61 = math.exp %60 : vector<8x128xf32>
    %cst_36 = arith.constant 1.000000e+00 : f32
    %62 = vector.broadcast %cst_36 : f32 to vector<8x128xf32>
    %63 = arith.addf %62, %61 : vector<8x128xf32>
    %64 = arith.divf %62, %63 : vector<8x128xf32>
    %65 = vector.extract_strided_slice %52 {offsets = [0, 256], sizes = [8, 128], strides = [1, 1]} : vector<8x512xf32> to vector<8x128xf32>
    %66 = math.tanh %65 : vector<8x128xf32>
    %67 = vector.extract_strided_slice %52 {offsets = [0, 384], sizes = [8, 128], strides = [1, 1]} : vector<8x512xf32> to vector<8x128xf32>
    %68 = arith.negf %67 : vector<8x128xf32>
    %69 = math.exp %68 : vector<8x128xf32>
    %cst_37 = arith.constant 1.000000e+00 : f32
    %70 = vector.broadcast %cst_37 : f32 to vector<8x128xf32>
    %71 = arith.addf %70, %69 : vector<8x128xf32>
    %72 = arith.divf %70, %71 : vector<8x128xf32>
    %73 = arith.mulf %64, %43 : vector<8x128xf32>
    %74 = arith.mulf %58, %66 : vector<8x128xf32>
    %75 = arith.addf %73, %74 : vector<8x128xf32>
    %76 = math.tanh %75 : vector<8x128xf32>
    %77 = arith.mulf %72, %76 : vector<8x128xf32>
    %c1_38 = arith.constant 1 : index
    %c0_39 = arith.constant 0 : index
    %c0_40 = arith.constant 0 : index
    %78 = vector.load %arg8[%c1_38, %c0_39, %c0_40] : memref<8x8x128xf32, #tpu.memory_space<vmem>>, vector<1x8x128xf32>
    %79 = vector.shape_cast %78 : vector<1x8x128xf32> to vector<8x128xf32>
    %80 = vector.shape_cast %77 : vector<8x128xf32> to vector<1x8x128xf32>
    tpu.vector_store %arg8[%c1_38, %c0_39, %c0_40], %80 {strides = array<i32>} : memref<8x8x128xf32, #tpu.memory_space<vmem>>, vector<1x8x128xf32>,
    %c2 = arith.constant 2 : index
    %c0_41 = arith.constant 0 : index
    %c0_42 = arith.constant 0 : index
    %81 = vector.load %arg9[%c2, %c0_41, %c0_42] : memref<8x8x512xf32, #tpu.memory_space<vmem>>, vector<1x8x512xf32>
    %82 = vector.shape_cast %81 : vector<1x8x512xf32> to vector<8x512xf32>
    %cst_43 = arith.constant dense<0.000000e+00> : vector<8x512xf32>
    %83 = tpu.matmul %77, %5, %cst_43 {dimension_numbers = #tpu.dot_dimension_numbers<[1], [0], [0], [1], [0, 0, 1, 1], [], []>} : vector<8x128xf32>, vector<128x512xf32>, vector<8x512xf32> -> vector<8x512xf32>
    %84 = arith.addf %82, %83 : vector<8x512xf32>
    %85 = vector.extract_strided_slice %84 {offsets = [0, 0], sizes = [8, 128], strides = [1, 1]} : vector<8x512xf32> to vector<8x128xf32>
    %86 = arith.negf %85 : vector<8x128xf32>
    %87 = math.exp %86 : vector<8x128xf32>
    %cst_44 = arith.constant 1.000000e+00 : f32
    %88 = vector.broadcast %cst_44 : f32 to vector<8x128xf32>
    %89 = arith.addf %88, %87 : vector<8x128xf32>
    %90 = arith.divf %88, %89 : vector<8x128xf32>
    %91 = vector.extract_strided_slice %84 {offsets = [0, 128], sizes = [8, 128], strides = [1, 1]} : vector<8x512xf32> to vector<8x128xf32>
    %92 = arith.negf %91 : vector<8x128xf32>
    %93 = math.exp %92 : vector<8x128xf32>
    %cst_45 = arith.constant 1.000000e+00 : f32
    %94 = vector.broadcast %cst_45 : f32 to vector<8x128xf32>
    %95 = arith.addf %94, %93 : vector<8x128xf32>
    %96 = arith.divf %94, %95 : vector<8x128xf32>
    %97 = vector.extract_strided_slice %84 {offsets = [0, 256], sizes = [8, 128], strides = [1, 1]} : vector<8x512xf32> to vector<8x128xf32>
    %98 = math.tanh %97 : vector<8x128xf32>
    %99 = vector.extract_strided_slice %84 {offsets = [0, 384], sizes = [8, 128], strides = [1, 1]} : vector<8x512xf32> to vector<8x128xf32>
    %100 = arith.negf %99 : vector<8x128xf32>
    %101 = math.exp %100 : vector<8x128xf32>
    %cst_46 = arith.constant 1.000000e+00 : f32
    %102 = vector.broadcast %cst_46 : f32 to vector<8x128xf32>
    %103 = arith.addf %102, %101 : vector<8x128xf32>
    %104 = arith.divf %102, %103 : vector<8x128xf32>
    %105 = arith.mulf %96, %75 : vector<8x128xf32>
    %106 = arith.mulf %90, %98 : vector<8x128xf32>
    %107 = arith.addf %105, %106 : vector<8x128xf32>
    %108 = math.tanh %107 : vector<8x128xf32>
    %109 = arith.mulf %104, %108 : vector<8x128xf32>
    %c2_47 = arith.constant 2 : index
    %c0_48 = arith.constant 0 : index
    %c0_49 = arith.constant 0 : index
    %110 = vector.load %arg8[%c2_47, %c0_48, %c0_49] : memref<8x8x128xf32, #tpu.memory_space<vmem>>, vector<1x8x128xf32>
    %111 = vector.shape_cast %110 : vector<1x8x128xf32> to vector<8x128xf32>
    %112 = vector.shape_cast %109 : vector<8x128xf32> to vector<1x8x128xf32>
    tpu.vector_store %arg8[%c2_47, %c0_48, %c0_49], %112 {strides = array<i32>} : memref<8x8x128xf32, #tpu.memory_space<vmem>>, vector<1x8x128xf32>,
    %c3 = arith.constant 3 : index
    %c0_50 = arith.constant 0 : index
    %c0_51 = arith.constant 0 : index
    %113 = vector.load %arg9[%c3, %c0_50, %c0_51] : memref<8x8x512xf32, #tpu.memory_space<vmem>>, vector<1x8x512xf32>
    %114 = vector.shape_cast %113 : vector<1x8x512xf32> to vector<8x512xf32>
    %cst_52 = arith.constant dense<0.000000e+00> : vector<8x512xf32>
    %115 = tpu.matmul %109, %5, %cst_52 {dimension_numbers = #tpu.dot_dimension_numbers<[1], [0], [0], [1], [0, 0, 1, 1], [], []>} : vector<8x128xf32>, vector<128x512xf32>, vector<8x512xf32> -> vector<8x512xf32>
    %116 = arith.addf %114, %115 : vector<8x512xf32>
    %117 = vector.extract_strided_slice %116 {offsets = [0, 0], sizes = [8, 128], strides = [1, 1]} : vector<8x512xf32> to vector<8x128xf32>
    %118 = arith.negf %117 : vector<8x128xf32>
    %119 = math.exp %118 : vector<8x128xf32>
    %cst_53 = arith.constant 1.000000e+00 : f32
    %120 = vector.broadcast %cst_53 : f32 to vector<8x128xf32>
    %121 = arith.addf %120, %119 : vector<8x128xf32>
    %122 = arith.divf %120, %121 : vector<8x128xf32>
    %123 = vector.extract_strided_slice %116 {offsets = [0, 128], sizes = [8, 128], strides = [1, 1]} : vector<8x512xf32> to vector<8x128xf32>
    %124 = arith.negf %123 : vector<8x128xf32>
    %125 = math.exp %124 : vector<8x128xf32>
    %cst_54 = arith.constant 1.000000e+00 : f32
    %126 = vector.broadcast %cst_54 : f32 to vector<8x128xf32>
    %127 = arith.addf %126, %125 : vector<8x128xf32>
    %128 = arith.divf %126, %127 : vector<8x128xf32>
    %129 = vector.extract_strided_slice %116 {offsets = [0, 256], sizes = [8, 128], strides = [1, 1]} : vector<8x512xf32> to vector<8x128xf32>
    %130 = math.tanh %129 : vector<8x128xf32>
    %131 = vector.extract_strided_slice %116 {offsets = [0, 384], sizes = [8, 128], strides = [1, 1]} : vector<8x512xf32> to vector<8x128xf32>
    %132 = arith.negf %131 : vector<8x128xf32>
    %133 = math.exp %132 : vector<8x128xf32>
    %cst_55 = arith.constant 1.000000e+00 : f32
    %134 = vector.broadcast %cst_55 : f32 to vector<8x128xf32>
    %135 = arith.addf %134, %133 : vector<8x128xf32>
    %136 = arith.divf %134, %135 : vector<8x128xf32>
    %137 = arith.mulf %128, %107 : vector<8x128xf32>
    %138 = arith.mulf %122, %130 : vector<8x128xf32>
    %139 = arith.addf %137, %138 : vector<8x128xf32>
    %140 = math.tanh %139 : vector<8x128xf32>
    %141 = arith.mulf %136, %140 : vector<8x128xf32>
    %c3_56 = arith.constant 3 : index
    %c0_57 = arith.constant 0 : index
    %c0_58 = arith.constant 0 : index
    %142 = vector.load %arg8[%c3_56, %c0_57, %c0_58] : memref<8x8x128xf32, #tpu.memory_space<vmem>>, vector<1x8x128xf32>
    %143 = vector.shape_cast %142 : vector<1x8x128xf32> to vector<8x128xf32>
    %144 = vector.shape_cast %141 : vector<8x128xf32> to vector<1x8x128xf32>
    tpu.vector_store %arg8[%c3_56, %c0_57, %c0_58], %144 {strides = array<i32>} : memref<8x8x128xf32, #tpu.memory_space<vmem>>, vector<1x8x128xf32>,
    %c4 = arith.constant 4 : index
    %c0_59 = arith.constant 0 : index
    %c0_60 = arith.constant 0 : index
    %145 = vector.load %arg9[%c4, %c0_59, %c0_60] : memref<8x8x512xf32, #tpu.memory_space<vmem>>, vector<1x8x512xf32>
    %146 = vector.shape_cast %145 : vector<1x8x512xf32> to vector<8x512xf32>
    %cst_61 = arith.constant dense<0.000000e+00> : vector<8x512xf32>
    %147 = tpu.matmul %141, %5, %cst_61 {dimension_numbers = #tpu.dot_dimension_numbers<[1], [0], [0], [1], [0, 0, 1, 1], [], []>} : vector<8x128xf32>, vector<128x512xf32>, vector<8x512xf32> -> vector<8x512xf32>
    %148 = arith.addf %146, %147 : vector<8x512xf32>
    %149 = vector.extract_strided_slice %148 {offsets = [0, 0], sizes = [8, 128], strides = [1, 1]} : vector<8x512xf32> to vector<8x128xf32>
    %150 = arith.negf %149 : vector<8x128xf32>
    %151 = math.exp %150 : vector<8x128xf32>
    %cst_62 = arith.constant 1.000000e+00 : f32
    %152 = vector.broadcast %cst_62 : f32 to vector<8x128xf32>
    %153 = arith.addf %152, %151 : vector<8x128xf32>
    %154 = arith.divf %152, %153 : vector<8x128xf32>
    %155 = vector.extract_strided_slice %148 {offsets = [0, 128], sizes = [8, 128], strides = [1, 1]} : vector<8x512xf32> to vector<8x128xf32>
    %156 = arith.negf %155 : vector<8x128xf32>
    %157 = math.exp %156 : vector<8x128xf32>
    %cst_63 = arith.constant 1.000000e+00 : f32
    %158 = vector.broadcast %cst_63 : f32 to vector<8x128xf32>
    %159 = arith.addf %158, %157 : vector<8x128xf32>
    %160 = arith.divf %158, %159 : vector<8x128xf32>
    %161 = vector.extract_strided_slice %148 {offsets = [0, 256], sizes = [8, 128], strides = [1, 1]} : vector<8x512xf32> to vector<8x128xf32>
    %162 = math.tanh %161 : vector<8x128xf32>
    %163 = vector.extract_strided_slice %148 {offsets = [0, 384], sizes = [8, 128], strides = [1, 1]} : vector<8x512xf32> to vector<8x128xf32>
    %164 = arith.negf %163 : vector<8x128xf32>
    %165 = math.exp %164 : vector<8x128xf32>
    %cst_64 = arith.constant 1.000000e+00 : f32
    %166 = vector.broadcast %cst_64 : f32 to vector<8x128xf32>
    %167 = arith.addf %166, %165 : vector<8x128xf32>
    %168 = arith.divf %166, %167 : vector<8x128xf32>
    %169 = arith.mulf %160, %139 : vector<8x128xf32>
    %170 = arith.mulf %154, %162 : vector<8x128xf32>
    %171 = arith.addf %169, %170 : vector<8x128xf32>
    %172 = math.tanh %171 : vector<8x128xf32>
    %173 = arith.mulf %168, %172 : vector<8x128xf32>
    %c4_65 = arith.constant 4 : index
    %c0_66 = arith.constant 0 : index
    %c0_67 = arith.constant 0 : index
    %174 = vector.load %arg8[%c4_65, %c0_66, %c0_67] : memref<8x8x128xf32, #tpu.memory_space<vmem>>, vector<1x8x128xf32>
    %175 = vector.shape_cast %174 : vector<1x8x128xf32> to vector<8x128xf32>
    %176 = vector.shape_cast %173 : vector<8x128xf32> to vector<1x8x128xf32>
    tpu.vector_store %arg8[%c4_65, %c0_66, %c0_67], %176 {strides = array<i32>} : memref<8x8x128xf32, #tpu.memory_space<vmem>>, vector<1x8x128xf32>,
    %c5 = arith.constant 5 : index
    %c0_68 = arith.constant 0 : index
    %c0_69 = arith.constant 0 : index
    %177 = vector.load %arg9[%c5, %c0_68, %c0_69] : memref<8x8x512xf32, #tpu.memory_space<vmem>>, vector<1x8x512xf32>
    %178 = vector.shape_cast %177 : vector<1x8x512xf32> to vector<8x512xf32>
    %cst_70 = arith.constant dense<0.000000e+00> : vector<8x512xf32>
    %179 = tpu.matmul %173, %5, %cst_70 {dimension_numbers = #tpu.dot_dimension_numbers<[1], [0], [0], [1], [0, 0, 1, 1], [], []>} : vector<8x128xf32>, vector<128x512xf32>, vector<8x512xf32> -> vector<8x512xf32>
    %180 = arith.addf %178, %179 : vector<8x512xf32>
    %181 = vector.extract_strided_slice %180 {offsets = [0, 0], sizes = [8, 128], strides = [1, 1]} : vector<8x512xf32> to vector<8x128xf32>
    %182 = arith.negf %181 : vector<8x128xf32>
    %183 = math.exp %182 : vector<8x128xf32>
    %cst_71 = arith.constant 1.000000e+00 : f32
    %184 = vector.broadcast %cst_71 : f32 to vector<8x128xf32>
    %185 = arith.addf %184, %183 : vector<8x128xf32>
    %186 = arith.divf %184, %185 : vector<8x128xf32>
    %187 = vector.extract_strided_slice %180 {offsets = [0, 128], sizes = [8, 128], strides = [1, 1]} : vector<8x512xf32> to vector<8x128xf32>
    %188 = arith.negf %187 : vector<8x128xf32>
    %189 = math.exp %188 : vector<8x128xf32>
    %cst_72 = arith.constant 1.000000e+00 : f32
    %190 = vector.broadcast %cst_72 : f32 to vector<8x128xf32>
    %191 = arith.addf %190, %189 : vector<8x128xf32>
    %192 = arith.divf %190, %191 : vector<8x128xf32>
    %193 = vector.extract_strided_slice %180 {offsets = [0, 256], sizes = [8, 128], strides = [1, 1]} : vector<8x512xf32> to vector<8x128xf32>
    %194 = math.tanh %193 : vector<8x128xf32>
    %195 = vector.extract_strided_slice %180 {offsets = [0, 384], sizes = [8, 128], strides = [1, 1]} : vector<8x512xf32> to vector<8x128xf32>
    %196 = arith.negf %195 : vector<8x128xf32>
    %197 = math.exp %196 : vector<8x128xf32>
    %cst_73 = arith.constant 1.000000e+00 : f32
    %198 = vector.broadcast %cst_73 : f32 to vector<8x128xf32>
    %199 = arith.addf %198, %197 : vector<8x128xf32>
    %200 = arith.divf %198, %199 : vector<8x128xf32>
    %201 = arith.mulf %192, %171 : vector<8x128xf32>
    %202 = arith.mulf %186, %194 : vector<8x128xf32>
    %203 = arith.addf %201, %202 : vector<8x128xf32>
    %204 = math.tanh %203 : vector<8x128xf32>
    %205 = arith.mulf %200, %204 : vector<8x128xf32>
    %c5_74 = arith.constant 5 : index
    %c0_75 = arith.constant 0 : index
    %c0_76 = arith.constant 0 : index
    %206 = vector.load %arg8[%c5_74, %c0_75, %c0_76] : memref<8x8x128xf32, #tpu.memory_space<vmem>>, vector<1x8x128xf32>
    %207 = vector.shape_cast %206 : vector<1x8x128xf32> to vector<8x128xf32>
    %208 = vector.shape_cast %205 : vector<8x128xf32> to vector<1x8x128xf32>
    tpu.vector_store %arg8[%c5_74, %c0_75, %c0_76], %208 {strides = array<i32>} : memref<8x8x128xf32, #tpu.memory_space<vmem>>, vector<1x8x128xf32>,
    %c6 = arith.constant 6 : index
    %c0_77 = arith.constant 0 : index
    %c0_78 = arith.constant 0 : index
    %209 = vector.load %arg9[%c6, %c0_77, %c0_78] : memref<8x8x512xf32, #tpu.memory_space<vmem>>, vector<1x8x512xf32>
    %210 = vector.shape_cast %209 : vector<1x8x512xf32> to vector<8x512xf32>
    %cst_79 = arith.constant dense<0.000000e+00> : vector<8x512xf32>
    %211 = tpu.matmul %205, %5, %cst_79 {dimension_numbers = #tpu.dot_dimension_numbers<[1], [0], [0], [1], [0, 0, 1, 1], [], []>} : vector<8x128xf32>, vector<128x512xf32>, vector<8x512xf32> -> vector<8x512xf32>
    %212 = arith.addf %210, %211 : vector<8x512xf32>
    %213 = vector.extract_strided_slice %212 {offsets = [0, 0], sizes = [8, 128], strides = [1, 1]} : vector<8x512xf32> to vector<8x128xf32>
    %214 = arith.negf %213 : vector<8x128xf32>
    %215 = math.exp %214 : vector<8x128xf32>
    %cst_80 = arith.constant 1.000000e+00 : f32
    %216 = vector.broadcast %cst_80 : f32 to vector<8x128xf32>
    %217 = arith.addf %216, %215 : vector<8x128xf32>
    %218 = arith.divf %216, %217 : vector<8x128xf32>
    %219 = vector.extract_strided_slice %212 {offsets = [0, 128], sizes = [8, 128], strides = [1, 1]} : vector<8x512xf32> to vector<8x128xf32>
    %220 = arith.negf %219 : vector<8x128xf32>
    %221 = math.exp %220 : vector<8x128xf32>
    %cst_81 = arith.constant 1.000000e+00 : f32
    %222 = vector.broadcast %cst_81 : f32 to vector<8x128xf32>
    %223 = arith.addf %222, %221 : vector<8x128xf32>
    %224 = arith.divf %222, %223 : vector<8x128xf32>
    %225 = vector.extract_strided_slice %212 {offsets = [0, 256], sizes = [8, 128], strides = [1, 1]} : vector<8x512xf32> to vector<8x128xf32>
    %226 = math.tanh %225 : vector<8x128xf32>
    %227 = vector.extract_strided_slice %212 {offsets = [0, 384], sizes = [8, 128], strides = [1, 1]} : vector<8x512xf32> to vector<8x128xf32>
    %228 = arith.negf %227 : vector<8x128xf32>
    %229 = math.exp %228 : vector<8x128xf32>
    %cst_82 = arith.constant 1.000000e+00 : f32
    %230 = vector.broadcast %cst_82 : f32 to vector<8x128xf32>
    %231 = arith.addf %230, %229 : vector<8x128xf32>
    %232 = arith.divf %230, %231 : vector<8x128xf32>
    %233 = arith.mulf %224, %203 : vector<8x128xf32>
    %234 = arith.mulf %218, %226 : vector<8x128xf32>
    %235 = arith.addf %233, %234 : vector<8x128xf32>
    %236 = math.tanh %235 : vector<8x128xf32>
    %237 = arith.mulf %232, %236 : vector<8x128xf32>
    %c6_83 = arith.constant 6 : index
    %c0_84 = arith.constant 0 : index
    %c0_85 = arith.constant 0 : index
    %238 = vector.load %arg8[%c6_83, %c0_84, %c0_85] : memref<8x8x128xf32, #tpu.memory_space<vmem>>, vector<1x8x128xf32>
    %239 = vector.shape_cast %238 : vector<1x8x128xf32> to vector<8x128xf32>
    %240 = vector.shape_cast %237 : vector<8x128xf32> to vector<1x8x128xf32>
    tpu.vector_store %arg8[%c6_83, %c0_84, %c0_85], %240 {strides = array<i32>} : memref<8x8x128xf32, #tpu.memory_space<vmem>>, vector<1x8x128xf32>,
    %c7 = arith.constant 7 : index
    %c0_86 = arith.constant 0 : index
    %c0_87 = arith.constant 0 : index
    %241 = vector.load %arg9[%c7, %c0_86, %c0_87] : memref<8x8x512xf32, #tpu.memory_space<vmem>>, vector<1x8x512xf32>
    %242 = vector.shape_cast %241 : vector<1x8x512xf32> to vector<8x512xf32>
    %cst_88 = arith.constant dense<0.000000e+00> : vector<8x512xf32>
    %243 = tpu.matmul %237, %5, %cst_88 {dimension_numbers = #tpu.dot_dimension_numbers<[1], [0], [0], [1], [0, 0, 1, 1], [], []>} : vector<8x128xf32>, vector<128x512xf32>, vector<8x512xf32> -> vector<8x512xf32>
    %244 = arith.addf %242, %243 : vector<8x512xf32>
    %245 = vector.extract_strided_slice %244 {offsets = [0, 0], sizes = [8, 128], strides = [1, 1]} : vector<8x512xf32> to vector<8x128xf32>
    %246 = arith.negf %245 : vector<8x128xf32>
    %247 = math.exp %246 : vector<8x128xf32>
    %cst_89 = arith.constant 1.000000e+00 : f32
    %248 = vector.broadcast %cst_89 : f32 to vector<8x128xf32>
    %249 = arith.addf %248, %247 : vector<8x128xf32>
    %250 = arith.divf %248, %249 : vector<8x128xf32>
    %251 = vector.extract_strided_slice %244 {offsets = [0, 128], sizes = [8, 128], strides = [1, 1]} : vector<8x512xf32> to vector<8x128xf32>
    %252 = arith.negf %251 : vector<8x128xf32>
    %253 = math.exp %252 : vector<8x128xf32>
    %cst_90 = arith.constant 1.000000e+00 : f32
    %254 = vector.broadcast %cst_90 : f32 to vector<8x128xf32>
    %255 = arith.addf %254, %253 : vector<8x128xf32>
    %256 = arith.divf %254, %255 : vector<8x128xf32>
    %257 = vector.extract_strided_slice %244 {offsets = [0, 256], sizes = [8, 128], strides = [1, 1]} : vector<8x512xf32> to vector<8x128xf32>
    %258 = math.tanh %257 : vector<8x128xf32>
    %259 = vector.extract_strided_slice %244 {offsets = [0, 384], sizes = [8, 128], strides = [1, 1]} : vector<8x512xf32> to vector<8x128xf32>
    %260 = arith.negf %259 : vector<8x128xf32>
    %261 = math.exp %260 : vector<8x128xf32>
    %cst_91 = arith.constant 1.000000e+00 : f32
    %262 = vector.broadcast %cst_91 : f32 to vector<8x128xf32>
    %263 = arith.addf %262, %261 : vector<8x128xf32>
    %264 = arith.divf %262, %263 : vector<8x128xf32>
    %265 = arith.mulf %256, %235 : vector<8x128xf32>
    %266 = arith.mulf %250, %258 : vector<8x128xf32>
    %267 = arith.addf %265, %266 : vector<8x128xf32>
    %268 = math.tanh %267 : vector<8x128xf32>
    %269 = arith.mulf %264, %268 : vector<8x128xf32>
    %c7_92 = arith.constant 7 : index
    %c0_93 = arith.constant 0 : index
    %c0_94 = arith.constant 0 : index
    %270 = vector.load %arg8[%c7_92, %c0_93, %c0_94] : memref<8x8x128xf32, #tpu.memory_space<vmem>>, vector<1x8x128xf32>
    %271 = vector.shape_cast %270 : vector<1x8x128xf32> to vector<8x128xf32>
    %272 = vector.shape_cast %269 : vector<8x128xf32> to vector<1x8x128xf32>
    tpu.vector_store %arg8[%c7_92, %c0_93, %c0_94], %272 {strides = array<i32>} : memref<8x8x128xf32, #tpu.memory_space<vmem>>, vector<1x8x128xf32>,
    %c1_95 = arith.constant 1 : index
    %c0_96 = arith.constant 0 : index
    %c0_97 = arith.constant 0 : index
    %273 = vector.load %arg1[%c1_95, %c0_96, %c0_97] : memref<4x128x512xf32, #tpu.memory_space<vmem>>, vector<1x128x512xf32>
    %274 = vector.shape_cast %273 : vector<1x128x512xf32> to vector<128x512xf32>
    %c1_98 = arith.constant 1 : index
    %c0_99 = arith.constant 0 : index
    %c0_100 = arith.constant 0 : index
    %275 = vector.load %arg2[%c1_98, %c0_99, %c0_100] : memref<4x128x512xf32, #tpu.memory_space<vmem>>, vector<1x128x512xf32>
    %276 = vector.shape_cast %275 : vector<1x128x512xf32> to vector<128x512xf32>
    %c1_101 = arith.constant 1 : index
    %c0_102 = arith.constant 0 : index
    %c0_103 = arith.constant 0 : index
    %277 = vector.load %arg3[%c1_101, %c0_102, %c0_103] : memref<4x1x512xf32, #tpu.memory_space<vmem>>, vector<1x1x512xf32>
    %278 = vector.shape_cast %277 : vector<1x1x512xf32> to vector<1x512xf32>
    %c0_104 = arith.constant 0 : index
    %c0_105 = arith.constant 0 : index
    %c0_106 = arith.constant 0 : index
    %279 = vector.load %arg8[%c0_104, %c0_105, %c0_106] : memref<8x8x128xf32, #tpu.memory_space<vmem>>, vector<8x8x128xf32>
    %280 = vector.shape_cast %279 : vector<8x8x128xf32> to vector<64x128xf32>
    %cst_107 = arith.constant dense<0.000000e+00> : vector<64x512xf32>
    %281 = tpu.matmul %280, %274, %cst_107 {dimension_numbers = #tpu.dot_dimension_numbers<[1], [0], [0], [1], [0, 0, 1, 1], [], []>} : vector<64x128xf32>, vector<128x512xf32>, vector<64x512xf32> -> vector<64x512xf32>
    %282 = vector.broadcast %278 : vector<1x512xf32> to vector<64x512xf32>
    %283 = arith.addf %281, %282 : vector<64x512xf32>
    %284 = vector.shape_cast %283 : vector<64x512xf32> to vector<8x8x512xf32>
    %c0_108 = arith.constant 0 : index
    %c0_109 = arith.constant 0 : index
    %c0_110 = arith.constant 0 : index
    %285 = vector.load %arg9[%c0_108, %c0_109, %c0_110] : memref<8x8x512xf32, #tpu.memory_space<vmem>>, vector<8x8x512xf32>
    tpu.vector_store %arg9[%c0_108, %c0_109, %c0_110], %284 {strides = array<i32>} : memref<8x8x512xf32, #tpu.memory_space<vmem>>, vector<8x8x512xf32>,
    %cst_111 = arith.constant 0.000000e+00 : f32
    %286 = vector.broadcast %cst_111 : f32 to vector<8x128xf32>
    %cst_112 = arith.constant 0.000000e+00 : f32
    %287 = vector.broadcast %cst_112 : f32 to vector<8x128xf32>
    %c0_113 = arith.constant 0 : index
    %c0_114 = arith.constant 0 : index
    %c0_115 = arith.constant 0 : index
    %288 = vector.load %arg9[%c0_113, %c0_114, %c0_115] : memref<8x8x512xf32, #tpu.memory_space<vmem>>, vector<1x8x512xf32>
    %289 = vector.shape_cast %288 : vector<1x8x512xf32> to vector<8x512xf32>
    %cst_116 = arith.constant dense<0.000000e+00> : vector<8x512xf32>
    %290 = tpu.matmul %286, %276, %cst_116 {dimension_numbers = #tpu.dot_dimension_numbers<[1], [0], [0], [1], [0, 0, 1, 1], [], []>} : vector<8x128xf32>, vector<128x512xf32>, vector<8x512xf32> -> vector<8x512xf32>
    %291 = arith.addf %289, %290 : vector<8x512xf32>
    %292 = vector.extract_strided_slice %291 {offsets = [0, 0], sizes = [8, 128], strides = [1, 1]} : vector<8x512xf32> to vector<8x128xf32>
    %293 = arith.negf %292 : vector<8x128xf32>
    %294 = math.exp %293 : vector<8x128xf32>
    %cst_117 = arith.constant 1.000000e+00 : f32
    %295 = vector.broadcast %cst_117 : f32 to vector<8x128xf32>
    %296 = arith.addf %295, %294 : vector<8x128xf32>
    %297 = arith.divf %295, %296 : vector<8x128xf32>
    %298 = vector.extract_strided_slice %291 {offsets = [0, 128], sizes = [8, 128], strides = [1, 1]} : vector<8x512xf32> to vector<8x128xf32>
    %299 = arith.negf %298 : vector<8x128xf32>
    %300 = math.exp %299 : vector<8x128xf32>
    %cst_118 = arith.constant 1.000000e+00 : f32
    %301 = vector.broadcast %cst_118 : f32 to vector<8x128xf32>
    %302 = arith.addf %301, %300 : vector<8x128xf32>
    %303 = arith.divf %301, %302 : vector<8x128xf32>
    %304 = vector.extract_strided_slice %291 {offsets = [0, 256], sizes = [8, 128], strides = [1, 1]} : vector<8x512xf32> to vector<8x128xf32>
    %305 = math.tanh %304 : vector<8x128xf32>
    %306 = vector.extract_strided_slice %291 {offsets = [0, 384], sizes = [8, 128], strides = [1, 1]} : vector<8x512xf32> to vector<8x128xf32>
    %307 = arith.negf %306 : vector<8x128xf32>
    %308 = math.exp %307 : vector<8x128xf32>
    %cst_119 = arith.constant 1.000000e+00 : f32
    %309 = vector.broadcast %cst_119 : f32 to vector<8x128xf32>
    %310 = arith.addf %309, %308 : vector<8x128xf32>
    %311 = arith.divf %309, %310 : vector<8x128xf32>
    %312 = arith.mulf %303, %287 : vector<8x128xf32>
    %313 = arith.mulf %297, %305 : vector<8x128xf32>
    %314 = arith.addf %312, %313 : vector<8x128xf32>
    %315 = math.tanh %314 : vector<8x128xf32>
    %316 = arith.mulf %311, %315 : vector<8x128xf32>
    %c0_120 = arith.constant 0 : index
    %c0_121 = arith.constant 0 : index
    %c0_122 = arith.constant 0 : index
    %317 = vector.load %arg8[%c0_120, %c0_121, %c0_122] : memref<8x8x128xf32, #tpu.memory_space<vmem>>, vector<1x8x128xf32>
    %318 = vector.shape_cast %317 : vector<1x8x128xf32> to vector<8x128xf32>
    %319 = vector.shape_cast %316 : vector<8x128xf32> to vector<1x8x128xf32>
    tpu.vector_store %arg8[%c0_120, %c0_121, %c0_122], %319 {strides = array<i32>} : memref<8x8x128xf32, #tpu.memory_space<vmem>>, vector<1x8x128xf32>,
    %c1_123 = arith.constant 1 : index
    %c0_124 = arith.constant 0 : index
    %c0_125 = arith.constant 0 : index
    %320 = vector.load %arg9[%c1_123, %c0_124, %c0_125] : memref<8x8x512xf32, #tpu.memory_space<vmem>>, vector<1x8x512xf32>
    %321 = vector.shape_cast %320 : vector<1x8x512xf32> to vector<8x512xf32>
    %cst_126 = arith.constant dense<0.000000e+00> : vector<8x512xf32>
    %322 = tpu.matmul %316, %276, %cst_126 {dimension_numbers = #tpu.dot_dimension_numbers<[1], [0], [0], [1], [0, 0, 1, 1], [], []>} : vector<8x128xf32>, vector<128x512xf32>, vector<8x512xf32> -> vector<8x512xf32>
    %323 = arith.addf %321, %322 : vector<8x512xf32>
    %324 = vector.extract_strided_slice %323 {offsets = [0, 0], sizes = [8, 128], strides = [1, 1]} : vector<8x512xf32> to vector<8x128xf32>
    %325 = arith.negf %324 : vector<8x128xf32>
    %326 = math.exp %325 : vector<8x128xf32>
    %cst_127 = arith.constant 1.000000e+00 : f32
    %327 = vector.broadcast %cst_127 : f32 to vector<8x128xf32>
    %328 = arith.addf %327, %326 : vector<8x128xf32>
    %329 = arith.divf %327, %328 : vector<8x128xf32>
    %330 = vector.extract_strided_slice %323 {offsets = [0, 128], sizes = [8, 128], strides = [1, 1]} : vector<8x512xf32> to vector<8x128xf32>
    %331 = arith.negf %330 : vector<8x128xf32>
    %332 = math.exp %331 : vector<8x128xf32>
    %cst_128 = arith.constant 1.000000e+00 : f32
    %333 = vector.broadcast %cst_128 : f32 to vector<8x128xf32>
    %334 = arith.addf %333, %332 : vector<8x128xf32>
    %335 = arith.divf %333, %334 : vector<8x128xf32>
    %336 = vector.extract_strided_slice %323 {offsets = [0, 256], sizes = [8, 128], strides = [1, 1]} : vector<8x512xf32> to vector<8x128xf32>
    %337 = math.tanh %336 : vector<8x128xf32>
    %338 = vector.extract_strided_slice %323 {offsets = [0, 384], sizes = [8, 128], strides = [1, 1]} : vector<8x512xf32> to vector<8x128xf32>
    %339 = arith.negf %338 : vector<8x128xf32>
    %340 = math.exp %339 : vector<8x128xf32>
    %cst_129 = arith.constant 1.000000e+00 : f32
    %341 = vector.broadcast %cst_129 : f32 to vector<8x128xf32>
    %342 = arith.addf %341, %340 : vector<8x128xf32>
    %343 = arith.divf %341, %342 : vector<8x128xf32>
    %344 = arith.mulf %335, %314 : vector<8x128xf32>
    %345 = arith.mulf %329, %337 : vector<8x128xf32>
    %346 = arith.addf %344, %345 : vector<8x128xf32>
    %347 = math.tanh %346 : vector<8x128xf32>
    %348 = arith.mulf %343, %347 : vector<8x128xf32>
    %c1_130 = arith.constant 1 : index
    %c0_131 = arith.constant 0 : index
    %c0_132 = arith.constant 0 : index
    %349 = vector.load %arg8[%c1_130, %c0_131, %c0_132] : memref<8x8x128xf32, #tpu.memory_space<vmem>>, vector<1x8x128xf32>
    %350 = vector.shape_cast %349 : vector<1x8x128xf32> to vector<8x128xf32>
    %351 = vector.shape_cast %348 : vector<8x128xf32> to vector<1x8x128xf32>
    tpu.vector_store %arg8[%c1_130, %c0_131, %c0_132], %351 {strides = array<i32>} : memref<8x8x128xf32, #tpu.memory_space<vmem>>, vector<1x8x128xf32>,
    %c2_133 = arith.constant 2 : index
    %c0_134 = arith.constant 0 : index
    %c0_135 = arith.constant 0 : index
    %352 = vector.load %arg9[%c2_133, %c0_134, %c0_135] : memref<8x8x512xf32, #tpu.memory_space<vmem>>, vector<1x8x512xf32>
    %353 = vector.shape_cast %352 : vector<1x8x512xf32> to vector<8x512xf32>
    %cst_136 = arith.constant dense<0.000000e+00> : vector<8x512xf32>
    %354 = tpu.matmul %348, %276, %cst_136 {dimension_numbers = #tpu.dot_dimension_numbers<[1], [0], [0], [1], [0, 0, 1, 1], [], []>} : vector<8x128xf32>, vector<128x512xf32>, vector<8x512xf32> -> vector<8x512xf32>
    %355 = arith.addf %353, %354 : vector<8x512xf32>
    %356 = vector.extract_strided_slice %355 {offsets = [0, 0], sizes = [8, 128], strides = [1, 1]} : vector<8x512xf32> to vector<8x128xf32>
    %357 = arith.negf %356 : vector<8x128xf32>
    %358 = math.exp %357 : vector<8x128xf32>
    %cst_137 = arith.constant 1.000000e+00 : f32
    %359 = vector.broadcast %cst_137 : f32 to vector<8x128xf32>
    %360 = arith.addf %359, %358 : vector<8x128xf32>
    %361 = arith.divf %359, %360 : vector<8x128xf32>
    %362 = vector.extract_strided_slice %355 {offsets = [0, 128], sizes = [8, 128], strides = [1, 1]} : vector<8x512xf32> to vector<8x128xf32>
    %363 = arith.negf %362 : vector<8x128xf32>
    %364 = math.exp %363 : vector<8x128xf32>
    %cst_138 = arith.constant 1.000000e+00 : f32
    %365 = vector.broadcast %cst_138 : f32 to vector<8x128xf32>
    %366 = arith.addf %365, %364 : vector<8x128xf32>
    %367 = arith.divf %365, %366 : vector<8x128xf32>
    %368 = vector.extract_strided_slice %355 {offsets = [0, 256], sizes = [8, 128], strides = [1, 1]} : vector<8x512xf32> to vector<8x128xf32>
    %369 = math.tanh %368 : vector<8x128xf32>
    %370 = vector.extract_strided_slice %355 {offsets = [0, 384], sizes = [8, 128], strides = [1, 1]} : vector<8x512xf32> to vector<8x128xf32>
    %371 = arith.negf %370 : vector<8x128xf32>
    %372 = math.exp %371 : vector<8x128xf32>
    %cst_139 = arith.constant 1.000000e+00 : f32
    %373 = vector.broadcast %cst_139 : f32 to vector<8x128xf32>
    %374 = arith.addf %373, %372 : vector<8x128xf32>
    %375 = arith.divf %373, %374 : vector<8x128xf32>
    %376 = arith.mulf %367, %346 : vector<8x128xf32>
    %377 = arith.mulf %361, %369 : vector<8x128xf32>
    %378 = arith.addf %376, %377 : vector<8x128xf32>
    %379 = math.tanh %378 : vector<8x128xf32>
    %380 = arith.mulf %375, %379 : vector<8x128xf32>
    %c2_140 = arith.constant 2 : index
    %c0_141 = arith.constant 0 : index
    %c0_142 = arith.constant 0 : index
    %381 = vector.load %arg8[%c2_140, %c0_141, %c0_142] : memref<8x8x128xf32, #tpu.memory_space<vmem>>, vector<1x8x128xf32>
    %382 = vector.shape_cast %381 : vector<1x8x128xf32> to vector<8x128xf32>
    %383 = vector.shape_cast %380 : vector<8x128xf32> to vector<1x8x128xf32>
    tpu.vector_store %arg8[%c2_140, %c0_141, %c0_142], %383 {strides = array<i32>} : memref<8x8x128xf32, #tpu.memory_space<vmem>>, vector<1x8x128xf32>,
    %c3_143 = arith.constant 3 : index
    %c0_144 = arith.constant 0 : index
    %c0_145 = arith.constant 0 : index
    %384 = vector.load %arg9[%c3_143, %c0_144, %c0_145] : memref<8x8x512xf32, #tpu.memory_space<vmem>>, vector<1x8x512xf32>
    %385 = vector.shape_cast %384 : vector<1x8x512xf32> to vector<8x512xf32>
    %cst_146 = arith.constant dense<0.000000e+00> : vector<8x512xf32>
    %386 = tpu.matmul %380, %276, %cst_146 {dimension_numbers = #tpu.dot_dimension_numbers<[1], [0], [0], [1], [0, 0, 1, 1], [], []>} : vector<8x128xf32>, vector<128x512xf32>, vector<8x512xf32> -> vector<8x512xf32>
    %387 = arith.addf %385, %386 : vector<8x512xf32>
    %388 = vector.extract_strided_slice %387 {offsets = [0, 0], sizes = [8, 128], strides = [1, 1]} : vector<8x512xf32> to vector<8x128xf32>
    %389 = arith.negf %388 : vector<8x128xf32>
    %390 = math.exp %389 : vector<8x128xf32>
    %cst_147 = arith.constant 1.000000e+00 : f32
    %391 = vector.broadcast %cst_147 : f32 to vector<8x128xf32>
    %392 = arith.addf %391, %390 : vector<8x128xf32>
    %393 = arith.divf %391, %392 : vector<8x128xf32>
    %394 = vector.extract_strided_slice %387 {offsets = [0, 128], sizes = [8, 128], strides = [1, 1]} : vector<8x512xf32> to vector<8x128xf32>
    %395 = arith.negf %394 : vector<8x128xf32>
    %396 = math.exp %395 : vector<8x128xf32>
    %cst_148 = arith.constant 1.000000e+00 : f32
    %397 = vector.broadcast %cst_148 : f32 to vector<8x128xf32>
    %398 = arith.addf %397, %396 : vector<8x128xf32>
    %399 = arith.divf %397, %398 : vector<8x128xf32>
    %400 = vector.extract_strided_slice %387 {offsets = [0, 256], sizes = [8, 128], strides = [1, 1]} : vector<8x512xf32> to vector<8x128xf32>
    %401 = math.tanh %400 : vector<8x128xf32>
    %402 = vector.extract_strided_slice %387 {offsets = [0, 384], sizes = [8, 128], strides = [1, 1]} : vector<8x512xf32> to vector<8x128xf32>
    %403 = arith.negf %402 : vector<8x128xf32>
    %404 = math.exp %403 : vector<8x128xf32>
    %cst_149 = arith.constant 1.000000e+00 : f32
    %405 = vector.broadcast %cst_149 : f32 to vector<8x128xf32>
    %406 = arith.addf %405, %404 : vector<8x128xf32>
    %407 = arith.divf %405, %406 : vector<8x128xf32>
    %408 = arith.mulf %399, %378 : vector<8x128xf32>
    %409 = arith.mulf %393, %401 : vector<8x128xf32>
    %410 = arith.addf %408, %409 : vector<8x128xf32>
    %411 = math.tanh %410 : vector<8x128xf32>
    %412 = arith.mulf %407, %411 : vector<8x128xf32>
    %c3_150 = arith.constant 3 : index
    %c0_151 = arith.constant 0 : index
    %c0_152 = arith.constant 0 : index
    %413 = vector.load %arg8[%c3_150, %c0_151, %c0_152] : memref<8x8x128xf32, #tpu.memory_space<vmem>>, vector<1x8x128xf32>
    %414 = vector.shape_cast %413 : vector<1x8x128xf32> to vector<8x128xf32>
    %415 = vector.shape_cast %412 : vector<8x128xf32> to vector<1x8x128xf32>
    tpu.vector_store %arg8[%c3_150, %c0_151, %c0_152], %415 {strides = array<i32>} : memref<8x8x128xf32, #tpu.memory_space<vmem>>, vector<1x8x128xf32>,
    %c4_153 = arith.constant 4 : index
    %c0_154 = arith.constant 0 : index
    %c0_155 = arith.constant 0 : index
    %416 = vector.load %arg9[%c4_153, %c0_154, %c0_155] : memref<8x8x512xf32, #tpu.memory_space<vmem>>, vector<1x8x512xf32>
    %417 = vector.shape_cast %416 : vector<1x8x512xf32> to vector<8x512xf32>
    %cst_156 = arith.constant dense<0.000000e+00> : vector<8x512xf32>
    %418 = tpu.matmul %412, %276, %cst_156 {dimension_numbers = #tpu.dot_dimension_numbers<[1], [0], [0], [1], [0, 0, 1, 1], [], []>} : vector<8x128xf32>, vector<128x512xf32>, vector<8x512xf32> -> vector<8x512xf32>
    %419 = arith.addf %417, %418 : vector<8x512xf32>
    %420 = vector.extract_strided_slice %419 {offsets = [0, 0], sizes = [8, 128], strides = [1, 1]} : vector<8x512xf32> to vector<8x128xf32>
    %421 = arith.negf %420 : vector<8x128xf32>
    %422 = math.exp %421 : vector<8x128xf32>
    %cst_157 = arith.constant 1.000000e+00 : f32
    %423 = vector.broadcast %cst_157 : f32 to vector<8x128xf32>
    %424 = arith.addf %423, %422 : vector<8x128xf32>
    %425 = arith.divf %423, %424 : vector<8x128xf32>
    %426 = vector.extract_strided_slice %419 {offsets = [0, 128], sizes = [8, 128], strides = [1, 1]} : vector<8x512xf32> to vector<8x128xf32>
    %427 = arith.negf %426 : vector<8x128xf32>
    %428 = math.exp %427 : vector<8x128xf32>
    %cst_158 = arith.constant 1.000000e+00 : f32
    %429 = vector.broadcast %cst_158 : f32 to vector<8x128xf32>
    %430 = arith.addf %429, %428 : vector<8x128xf32>
    %431 = arith.divf %429, %430 : vector<8x128xf32>
    %432 = vector.extract_strided_slice %419 {offsets = [0, 256], sizes = [8, 128], strides = [1, 1]} : vector<8x512xf32> to vector<8x128xf32>
    %433 = math.tanh %432 : vector<8x128xf32>
    %434 = vector.extract_strided_slice %419 {offsets = [0, 384], sizes = [8, 128], strides = [1, 1]} : vector<8x512xf32> to vector<8x128xf32>
    %435 = arith.negf %434 : vector<8x128xf32>
    %436 = math.exp %435 : vector<8x128xf32>
    %cst_159 = arith.constant 1.000000e+00 : f32
    %437 = vector.broadcast %cst_159 : f32 to vector<8x128xf32>
    %438 = arith.addf %437, %436 : vector<8x128xf32>
    %439 = arith.divf %437, %438 : vector<8x128xf32>
    %440 = arith.mulf %431, %410 : vector<8x128xf32>
    %441 = arith.mulf %425, %433 : vector<8x128xf32>
    %442 = arith.addf %440, %441 : vector<8x128xf32>
    %443 = math.tanh %442 : vector<8x128xf32>
    %444 = arith.mulf %439, %443 : vector<8x128xf32>
    %c4_160 = arith.constant 4 : index
    %c0_161 = arith.constant 0 : index
    %c0_162 = arith.constant 0 : index
    %445 = vector.load %arg8[%c4_160, %c0_161, %c0_162] : memref<8x8x128xf32, #tpu.memory_space<vmem>>, vector<1x8x128xf32>
    %446 = vector.shape_cast %445 : vector<1x8x128xf32> to vector<8x128xf32>
    %447 = vector.shape_cast %444 : vector<8x128xf32> to vector<1x8x128xf32>
    tpu.vector_store %arg8[%c4_160, %c0_161, %c0_162], %447 {strides = array<i32>} : memref<8x8x128xf32, #tpu.memory_space<vmem>>, vector<1x8x128xf32>,
    %c5_163 = arith.constant 5 : index
    %c0_164 = arith.constant 0 : index
    %c0_165 = arith.constant 0 : index
    %448 = vector.load %arg9[%c5_163, %c0_164, %c0_165] : memref<8x8x512xf32, #tpu.memory_space<vmem>>, vector<1x8x512xf32>
    %449 = vector.shape_cast %448 : vector<1x8x512xf32> to vector<8x512xf32>
    %cst_166 = arith.constant dense<0.000000e+00> : vector<8x512xf32>
    %450 = tpu.matmul %444, %276, %cst_166 {dimension_numbers = #tpu.dot_dimension_numbers<[1], [0], [0], [1], [0, 0, 1, 1], [], []>} : vector<8x128xf32>, vector<128x512xf32>, vector<8x512xf32> -> vector<8x512xf32>
    %451 = arith.addf %449, %450 : vector<8x512xf32>
    %452 = vector.extract_strided_slice %451 {offsets = [0, 0], sizes = [8, 128], strides = [1, 1]} : vector<8x512xf32> to vector<8x128xf32>
    %453 = arith.negf %452 : vector<8x128xf32>
    %454 = math.exp %453 : vector<8x128xf32>
    %cst_167 = arith.constant 1.000000e+00 : f32
    %455 = vector.broadcast %cst_167 : f32 to vector<8x128xf32>
    %456 = arith.addf %455, %454 : vector<8x128xf32>
    %457 = arith.divf %455, %456 : vector<8x128xf32>
    %458 = vector.extract_strided_slice %451 {offsets = [0, 128], sizes = [8, 128], strides = [1, 1]} : vector<8x512xf32> to vector<8x128xf32>
    %459 = arith.negf %458 : vector<8x128xf32>
    %460 = math.exp %459 : vector<8x128xf32>
    %cst_168 = arith.constant 1.000000e+00 : f32
    %461 = vector.broadcast %cst_168 : f32 to vector<8x128xf32>
    %462 = arith.addf %461, %460 : vector<8x128xf32>
    %463 = arith.divf %461, %462 : vector<8x128xf32>
    %464 = vector.extract_strided_slice %451 {offsets = [0, 256], sizes = [8, 128], strides = [1, 1]} : vector<8x512xf32> to vector<8x128xf32>
    %465 = math.tanh %464 : vector<8x128xf32>
    %466 = vector.extract_strided_slice %451 {offsets = [0, 384], sizes = [8, 128], strides = [1, 1]} : vector<8x512xf32> to vector<8x128xf32>
    %467 = arith.negf %466 : vector<8x128xf32>
    %468 = math.exp %467 : vector<8x128xf32>
    %cst_169 = arith.constant 1.000000e+00 : f32
    %469 = vector.broadcast %cst_169 : f32 to vector<8x128xf32>
    %470 = arith.addf %469, %468 : vector<8x128xf32>
    %471 = arith.divf %469, %470 : vector<8x128xf32>
    %472 = arith.mulf %463, %442 : vector<8x128xf32>
    %473 = arith.mulf %457, %465 : vector<8x128xf32>
    %474 = arith.addf %472, %473 : vector<8x128xf32>
    %475 = math.tanh %474 : vector<8x128xf32>
    %476 = arith.mulf %471, %475 : vector<8x128xf32>
    %c5_170 = arith.constant 5 : index
    %c0_171 = arith.constant 0 : index
    %c0_172 = arith.constant 0 : index
    %477 = vector.load %arg8[%c5_170, %c0_171, %c0_172] : memref<8x8x128xf32, #tpu.memory_space<vmem>>, vector<1x8x128xf32>
    %478 = vector.shape_cast %477 : vector<1x8x128xf32> to vector<8x128xf32>
    %479 = vector.shape_cast %476 : vector<8x128xf32> to vector<1x8x128xf32>
    tpu.vector_store %arg8[%c5_170, %c0_171, %c0_172], %479 {strides = array<i32>} : memref<8x8x128xf32, #tpu.memory_space<vmem>>, vector<1x8x128xf32>,
    %c6_173 = arith.constant 6 : index
    %c0_174 = arith.constant 0 : index
    %c0_175 = arith.constant 0 : index
    %480 = vector.load %arg9[%c6_173, %c0_174, %c0_175] : memref<8x8x512xf32, #tpu.memory_space<vmem>>, vector<1x8x512xf32>
    %481 = vector.shape_cast %480 : vector<1x8x512xf32> to vector<8x512xf32>
    %cst_176 = arith.constant dense<0.000000e+00> : vector<8x512xf32>
    %482 = tpu.matmul %476, %276, %cst_176 {dimension_numbers = #tpu.dot_dimension_numbers<[1], [0], [0], [1], [0, 0, 1, 1], [], []>} : vector<8x128xf32>, vector<128x512xf32>, vector<8x512xf32> -> vector<8x512xf32>
    %483 = arith.addf %481, %482 : vector<8x512xf32>
    %484 = vector.extract_strided_slice %483 {offsets = [0, 0], sizes = [8, 128], strides = [1, 1]} : vector<8x512xf32> to vector<8x128xf32>
    %485 = arith.negf %484 : vector<8x128xf32>
    %486 = math.exp %485 : vector<8x128xf32>
    %cst_177 = arith.constant 1.000000e+00 : f32
    %487 = vector.broadcast %cst_177 : f32 to vector<8x128xf32>
    %488 = arith.addf %487, %486 : vector<8x128xf32>
    %489 = arith.divf %487, %488 : vector<8x128xf32>
    %490 = vector.extract_strided_slice %483 {offsets = [0, 128], sizes = [8, 128], strides = [1, 1]} : vector<8x512xf32> to vector<8x128xf32>
    %491 = arith.negf %490 : vector<8x128xf32>
    %492 = math.exp %491 : vector<8x128xf32>
    %cst_178 = arith.constant 1.000000e+00 : f32
    %493 = vector.broadcast %cst_178 : f32 to vector<8x128xf32>
    %494 = arith.addf %493, %492 : vector<8x128xf32>
    %495 = arith.divf %493, %494 : vector<8x128xf32>
    %496 = vector.extract_strided_slice %483 {offsets = [0, 256], sizes = [8, 128], strides = [1, 1]} : vector<8x512xf32> to vector<8x128xf32>
    %497 = math.tanh %496 : vector<8x128xf32>
    %498 = vector.extract_strided_slice %483 {offsets = [0, 384], sizes = [8, 128], strides = [1, 1]} : vector<8x512xf32> to vector<8x128xf32>
    %499 = arith.negf %498 : vector<8x128xf32>
    %500 = math.exp %499 : vector<8x128xf32>
    %cst_179 = arith.constant 1.000000e+00 : f32
    %501 = vector.broadcast %cst_179 : f32 to vector<8x128xf32>
    %502 = arith.addf %501, %500 : vector<8x128xf32>
    %503 = arith.divf %501, %502 : vector<8x128xf32>
    %504 = arith.mulf %495, %474 : vector<8x128xf32>
    %505 = arith.mulf %489, %497 : vector<8x128xf32>
    %506 = arith.addf %504, %505 : vector<8x128xf32>
    %507 = math.tanh %506 : vector<8x128xf32>
    %508 = arith.mulf %503, %507 : vector<8x128xf32>
    %c6_180 = arith.constant 6 : index
    %c0_181 = arith.constant 0 : index
    %c0_182 = arith.constant 0 : index
    %509 = vector.load %arg8[%c6_180, %c0_181, %c0_182] : memref<8x8x128xf32, #tpu.memory_space<vmem>>, vector<1x8x128xf32>
    %510 = vector.shape_cast %509 : vector<1x8x128xf32> to vector<8x128xf32>
    %511 = vector.shape_cast %508 : vector<8x128xf32> to vector<1x8x128xf32>
    tpu.vector_store %arg8[%c6_180, %c0_181, %c0_182], %511 {strides = array<i32>} : memref<8x8x128xf32, #tpu.memory_space<vmem>>, vector<1x8x128xf32>,
    %c7_183 = arith.constant 7 : index
    %c0_184 = arith.constant 0 : index
    %c0_185 = arith.constant 0 : index
    %512 = vector.load %arg9[%c7_183, %c0_184, %c0_185] : memref<8x8x512xf32, #tpu.memory_space<vmem>>, vector<1x8x512xf32>
    %513 = vector.shape_cast %512 : vector<1x8x512xf32> to vector<8x512xf32>
    %cst_186 = arith.constant dense<0.000000e+00> : vector<8x512xf32>
    %514 = tpu.matmul %508, %276, %cst_186 {dimension_numbers = #tpu.dot_dimension_numbers<[1], [0], [0], [1], [0, 0, 1, 1], [], []>} : vector<8x128xf32>, vector<128x512xf32>, vector<8x512xf32> -> vector<8x512xf32>
    %515 = arith.addf %513, %514 : vector<8x512xf32>
    %516 = vector.extract_strided_slice %515 {offsets = [0, 0], sizes = [8, 128], strides = [1, 1]} : vector<8x512xf32> to vector<8x128xf32>
    %517 = arith.negf %516 : vector<8x128xf32>
    %518 = math.exp %517 : vector<8x128xf32>
    %cst_187 = arith.constant 1.000000e+00 : f32
    %519 = vector.broadcast %cst_187 : f32 to vector<8x128xf32>
    %520 = arith.addf %519, %518 : vector<8x128xf32>
    %521 = arith.divf %519, %520 : vector<8x128xf32>
    %522 = vector.extract_strided_slice %515 {offsets = [0, 128], sizes = [8, 128], strides = [1, 1]} : vector<8x512xf32> to vector<8x128xf32>
    %523 = arith.negf %522 : vector<8x128xf32>
    %524 = math.exp %523 : vector<8x128xf32>
    %cst_188 = arith.constant 1.000000e+00 : f32
    %525 = vector.broadcast %cst_188 : f32 to vector<8x128xf32>
    %526 = arith.addf %525, %524 : vector<8x128xf32>
    %527 = arith.divf %525, %526 : vector<8x128xf32>
    %528 = vector.extract_strided_slice %515 {offsets = [0, 256], sizes = [8, 128], strides = [1, 1]} : vector<8x512xf32> to vector<8x128xf32>
    %529 = math.tanh %528 : vector<8x128xf32>
    %530 = vector.extract_strided_slice %515 {offsets = [0, 384], sizes = [8, 128], strides = [1, 1]} : vector<8x512xf32> to vector<8x128xf32>
    %531 = arith.negf %530 : vector<8x128xf32>
    %532 = math.exp %531 : vector<8x128xf32>
    %cst_189 = arith.constant 1.000000e+00 : f32
    %533 = vector.broadcast %cst_189 : f32 to vector<8x128xf32>
    %534 = arith.addf %533, %532 : vector<8x128xf32>
    %535 = arith.divf %533, %534 : vector<8x128xf32>
    %536 = arith.mulf %527, %506 : vector<8x128xf32>
    %537 = arith.mulf %521, %529 : vector<8x128xf32>
    %538 = arith.addf %536, %537 : vector<8x128xf32>
    %539 = math.tanh %538 : vector<8x128xf32>
    %540 = arith.mulf %535, %539 : vector<8x128xf32>
    %c7_190 = arith.constant 7 : index
    %c0_191 = arith.constant 0 : index
    %c0_192 = arith.constant 0 : index
    %541 = vector.load %arg8[%c7_190, %c0_191, %c0_192] : memref<8x8x128xf32, #tpu.memory_space<vmem>>, vector<1x8x128xf32>
    %542 = vector.shape_cast %541 : vector<1x8x128xf32> to vector<8x128xf32>
    %543 = vector.shape_cast %540 : vector<8x128xf32> to vector<1x8x128xf32>
    tpu.vector_store %arg8[%c7_190, %c0_191, %c0_192], %543 {strides = array<i32>} : memref<8x8x128xf32, #tpu.memory_space<vmem>>, vector<1x8x128xf32>,
    %c2_193 = arith.constant 2 : index
    %c0_194 = arith.constant 0 : index
    %c0_195 = arith.constant 0 : index
    %544 = vector.load %arg1[%c2_193, %c0_194, %c0_195] : memref<4x128x512xf32, #tpu.memory_space<vmem>>, vector<1x128x512xf32>
    %545 = vector.shape_cast %544 : vector<1x128x512xf32> to vector<128x512xf32>
    %c2_196 = arith.constant 2 : index
    %c0_197 = arith.constant 0 : index
    %c0_198 = arith.constant 0 : index
    %546 = vector.load %arg2[%c2_196, %c0_197, %c0_198] : memref<4x128x512xf32, #tpu.memory_space<vmem>>, vector<1x128x512xf32>
    %547 = vector.shape_cast %546 : vector<1x128x512xf32> to vector<128x512xf32>
    %c2_199 = arith.constant 2 : index
    %c0_200 = arith.constant 0 : index
    %c0_201 = arith.constant 0 : index
    %548 = vector.load %arg3[%c2_199, %c0_200, %c0_201] : memref<4x1x512xf32, #tpu.memory_space<vmem>>, vector<1x1x512xf32>
    %549 = vector.shape_cast %548 : vector<1x1x512xf32> to vector<1x512xf32>
    %c0_202 = arith.constant 0 : index
    %c0_203 = arith.constant 0 : index
    %c0_204 = arith.constant 0 : index
    %550 = vector.load %arg8[%c0_202, %c0_203, %c0_204] : memref<8x8x128xf32, #tpu.memory_space<vmem>>, vector<8x8x128xf32>
    %551 = vector.shape_cast %550 : vector<8x8x128xf32> to vector<64x128xf32>
    %cst_205 = arith.constant dense<0.000000e+00> : vector<64x512xf32>
    %552 = tpu.matmul %551, %545, %cst_205 {dimension_numbers = #tpu.dot_dimension_numbers<[1], [0], [0], [1], [0, 0, 1, 1], [], []>} : vector<64x128xf32>, vector<128x512xf32>, vector<64x512xf32> -> vector<64x512xf32>
    %553 = vector.broadcast %549 : vector<1x512xf32> to vector<64x512xf32>
    %554 = arith.addf %552, %553 : vector<64x512xf32>
    %555 = vector.shape_cast %554 : vector<64x512xf32> to vector<8x8x512xf32>
    %c0_206 = arith.constant 0 : index
    %c0_207 = arith.constant 0 : index
    %c0_208 = arith.constant 0 : index
    %556 = vector.load %arg9[%c0_206, %c0_207, %c0_208] : memref<8x8x512xf32, #tpu.memory_space<vmem>>, vector<8x8x512xf32>
    tpu.vector_store %arg9[%c0_206, %c0_207, %c0_208], %555 {strides = array<i32>} : memref<8x8x512xf32, #tpu.memory_space<vmem>>, vector<8x8x512xf32>,
    %cst_209 = arith.constant 0.000000e+00 : f32
    %557 = vector.broadcast %cst_209 : f32 to vector<8x128xf32>
    %cst_210 = arith.constant 0.000000e+00 : f32
    %558 = vector.broadcast %cst_210 : f32 to vector<8x128xf32>
    %c0_211 = arith.constant 0 : index
    %c0_212 = arith.constant 0 : index
    %c0_213 = arith.constant 0 : index
    %559 = vector.load %arg9[%c0_211, %c0_212, %c0_213] : memref<8x8x512xf32, #tpu.memory_space<vmem>>, vector<1x8x512xf32>
    %560 = vector.shape_cast %559 : vector<1x8x512xf32> to vector<8x512xf32>
    %cst_214 = arith.constant dense<0.000000e+00> : vector<8x512xf32>
    %561 = tpu.matmul %557, %547, %cst_214 {dimension_numbers = #tpu.dot_dimension_numbers<[1], [0], [0], [1], [0, 0, 1, 1], [], []>} : vector<8x128xf32>, vector<128x512xf32>, vector<8x512xf32> -> vector<8x512xf32>
    %562 = arith.addf %560, %561 : vector<8x512xf32>
    %563 = vector.extract_strided_slice %562 {offsets = [0, 0], sizes = [8, 128], strides = [1, 1]} : vector<8x512xf32> to vector<8x128xf32>
    %564 = arith.negf %563 : vector<8x128xf32>
    %565 = math.exp %564 : vector<8x128xf32>
    %cst_215 = arith.constant 1.000000e+00 : f32
    %566 = vector.broadcast %cst_215 : f32 to vector<8x128xf32>
    %567 = arith.addf %566, %565 : vector<8x128xf32>
    %568 = arith.divf %566, %567 : vector<8x128xf32>
    %569 = vector.extract_strided_slice %562 {offsets = [0, 128], sizes = [8, 128], strides = [1, 1]} : vector<8x512xf32> to vector<8x128xf32>
    %570 = arith.negf %569 : vector<8x128xf32>
    %571 = math.exp %570 : vector<8x128xf32>
    %cst_216 = arith.constant 1.000000e+00 : f32
    %572 = vector.broadcast %cst_216 : f32 to vector<8x128xf32>
    %573 = arith.addf %572, %571 : vector<8x128xf32>
    %574 = arith.divf %572, %573 : vector<8x128xf32>
    %575 = vector.extract_strided_slice %562 {offsets = [0, 256], sizes = [8, 128], strides = [1, 1]} : vector<8x512xf32> to vector<8x128xf32>
    %576 = math.tanh %575 : vector<8x128xf32>
    %577 = vector.extract_strided_slice %562 {offsets = [0, 384], sizes = [8, 128], strides = [1, 1]} : vector<8x512xf32> to vector<8x128xf32>
    %578 = arith.negf %577 : vector<8x128xf32>
    %579 = math.exp %578 : vector<8x128xf32>
    %cst_217 = arith.constant 1.000000e+00 : f32
    %580 = vector.broadcast %cst_217 : f32 to vector<8x128xf32>
    %581 = arith.addf %580, %579 : vector<8x128xf32>
    %582 = arith.divf %580, %581 : vector<8x128xf32>
    %583 = arith.mulf %574, %558 : vector<8x128xf32>
    %584 = arith.mulf %568, %576 : vector<8x128xf32>
    %585 = arith.addf %583, %584 : vector<8x128xf32>
    %586 = math.tanh %585 : vector<8x128xf32>
    %587 = arith.mulf %582, %586 : vector<8x128xf32>
    %c0_218 = arith.constant 0 : index
    %c0_219 = arith.constant 0 : index
    %c0_220 = arith.constant 0 : index
    %588 = vector.load %arg8[%c0_218, %c0_219, %c0_220] : memref<8x8x128xf32, #tpu.memory_space<vmem>>, vector<1x8x128xf32>
    %589 = vector.shape_cast %588 : vector<1x8x128xf32> to vector<8x128xf32>
    %590 = vector.shape_cast %587 : vector<8x128xf32> to vector<1x8x128xf32>
    tpu.vector_store %arg8[%c0_218, %c0_219, %c0_220], %590 {strides = array<i32>} : memref<8x8x128xf32, #tpu.memory_space<vmem>>, vector<1x8x128xf32>,
    %c1_221 = arith.constant 1 : index
    %c0_222 = arith.constant 0 : index
    %c0_223 = arith.constant 0 : index
    %591 = vector.load %arg9[%c1_221, %c0_222, %c0_223] : memref<8x8x512xf32, #tpu.memory_space<vmem>>, vector<1x8x512xf32>
    %592 = vector.shape_cast %591 : vector<1x8x512xf32> to vector<8x512xf32>
    %cst_224 = arith.constant dense<0.000000e+00> : vector<8x512xf32>
    %593 = tpu.matmul %587, %547, %cst_224 {dimension_numbers = #tpu.dot_dimension_numbers<[1], [0], [0], [1], [0, 0, 1, 1], [], []>} : vector<8x128xf32>, vector<128x512xf32>, vector<8x512xf32> -> vector<8x512xf32>
    %594 = arith.addf %592, %593 : vector<8x512xf32>
    %595 = vector.extract_strided_slice %594 {offsets = [0, 0], sizes = [8, 128], strides = [1, 1]} : vector<8x512xf32> to vector<8x128xf32>
    %596 = arith.negf %595 : vector<8x128xf32>
    %597 = math.exp %596 : vector<8x128xf32>
    %cst_225 = arith.constant 1.000000e+00 : f32
    %598 = vector.broadcast %cst_225 : f32 to vector<8x128xf32>
    %599 = arith.addf %598, %597 : vector<8x128xf32>
    %600 = arith.divf %598, %599 : vector<8x128xf32>
    %601 = vector.extract_strided_slice %594 {offsets = [0, 128], sizes = [8, 128], strides = [1, 1]} : vector<8x512xf32> to vector<8x128xf32>
    %602 = arith.negf %601 : vector<8x128xf32>
    %603 = math.exp %602 : vector<8x128xf32>
    %cst_226 = arith.constant 1.000000e+00 : f32
    %604 = vector.broadcast %cst_226 : f32 to vector<8x128xf32>
    %605 = arith.addf %604, %603 : vector<8x128xf32>
    %606 = arith.divf %604, %605 : vector<8x128xf32>
    %607 = vector.extract_strided_slice %594 {offsets = [0, 256], sizes = [8, 128], strides = [1, 1]} : vector<8x512xf32> to vector<8x128xf32>
    %608 = math.tanh %607 : vector<8x128xf32>
    %609 = vector.extract_strided_slice %594 {offsets = [0, 384], sizes = [8, 128], strides = [1, 1]} : vector<8x512xf32> to vector<8x128xf32>
    %610 = arith.negf %609 : vector<8x128xf32>
    %611 = math.exp %610 : vector<8x128xf32>
    %cst_227 = arith.constant 1.000000e+00 : f32
    %612 = vector.broadcast %cst_227 : f32 to vector<8x128xf32>
    %613 = arith.addf %612, %611 : vector<8x128xf32>
    %614 = arith.divf %612, %613 : vector<8x128xf32>
    %615 = arith.mulf %606, %585 : vector<8x128xf32>
    %616 = arith.mulf %600, %608 : vector<8x128xf32>
    %617 = arith.addf %615, %616 : vector<8x128xf32>
    %618 = math.tanh %617 : vector<8x128xf32>
    %619 = arith.mulf %614, %618 : vector<8x128xf32>
    %c1_228 = arith.constant 1 : index
    %c0_229 = arith.constant 0 : index
    %c0_230 = arith.constant 0 : index
    %620 = vector.load %arg8[%c1_228, %c0_229, %c0_230] : memref<8x8x128xf32, #tpu.memory_space<vmem>>, vector<1x8x128xf32>
    %621 = vector.shape_cast %620 : vector<1x8x128xf32> to vector<8x128xf32>
    %622 = vector.shape_cast %619 : vector<8x128xf32> to vector<1x8x128xf32>
    tpu.vector_store %arg8[%c1_228, %c0_229, %c0_230], %622 {strides = array<i32>} : memref<8x8x128xf32, #tpu.memory_space<vmem>>, vector<1x8x128xf32>,
    %c2_231 = arith.constant 2 : index
    %c0_232 = arith.constant 0 : index
    %c0_233 = arith.constant 0 : index
    %623 = vector.load %arg9[%c2_231, %c0_232, %c0_233] : memref<8x8x512xf32, #tpu.memory_space<vmem>>, vector<1x8x512xf32>
    %624 = vector.shape_cast %623 : vector<1x8x512xf32> to vector<8x512xf32>
    %cst_234 = arith.constant dense<0.000000e+00> : vector<8x512xf32>
    %625 = tpu.matmul %619, %547, %cst_234 {dimension_numbers = #tpu.dot_dimension_numbers<[1], [0], [0], [1], [0, 0, 1, 1], [], []>} : vector<8x128xf32>, vector<128x512xf32>, vector<8x512xf32> -> vector<8x512xf32>
    %626 = arith.addf %624, %625 : vector<8x512xf32>
    %627 = vector.extract_strided_slice %626 {offsets = [0, 0], sizes = [8, 128], strides = [1, 1]} : vector<8x512xf32> to vector<8x128xf32>
    %628 = arith.negf %627 : vector<8x128xf32>
    %629 = math.exp %628 : vector<8x128xf32>
    %cst_235 = arith.constant 1.000000e+00 : f32
    %630 = vector.broadcast %cst_235 : f32 to vector<8x128xf32>
    %631 = arith.addf %630, %629 : vector<8x128xf32>
    %632 = arith.divf %630, %631 : vector<8x128xf32>
    %633 = vector.extract_strided_slice %626 {offsets = [0, 128], sizes = [8, 128], strides = [1, 1]} : vector<8x512xf32> to vector<8x128xf32>
    %634 = arith.negf %633 : vector<8x128xf32>
    %635 = math.exp %634 : vector<8x128xf32>
    %cst_236 = arith.constant 1.000000e+00 : f32
    %636 = vector.broadcast %cst_236 : f32 to vector<8x128xf32>
    %637 = arith.addf %636, %635 : vector<8x128xf32>
    %638 = arith.divf %636, %637 : vector<8x128xf32>
    %639 = vector.extract_strided_slice %626 {offsets = [0, 256], sizes = [8, 128], strides = [1, 1]} : vector<8x512xf32> to vector<8x128xf32>
    %640 = math.tanh %639 : vector<8x128xf32>
    %641 = vector.extract_strided_slice %626 {offsets = [0, 384], sizes = [8, 128], strides = [1, 1]} : vector<8x512xf32> to vector<8x128xf32>
    %642 = arith.negf %641 : vector<8x128xf32>
    %643 = math.exp %642 : vector<8x128xf32>
    %cst_237 = arith.constant 1.000000e+00 : f32
    %644 = vector.broadcast %cst_237 : f32 to vector<8x128xf32>
    %645 = arith.addf %644, %643 : vector<8x128xf32>
    %646 = arith.divf %644, %645 : vector<8x128xf32>
    %647 = arith.mulf %638, %617 : vector<8x128xf32>
    %648 = arith.mulf %632, %640 : vector<8x128xf32>
    %649 = arith.addf %647, %648 : vector<8x128xf32>
    %650 = math.tanh %649 : vector<8x128xf32>
    %651 = arith.mulf %646, %650 : vector<8x128xf32>
    %c2_238 = arith.constant 2 : index
    %c0_239 = arith.constant 0 : index
    %c0_240 = arith.constant 0 : index
    %652 = vector.load %arg8[%c2_238, %c0_239, %c0_240] : memref<8x8x128xf32, #tpu.memory_space<vmem>>, vector<1x8x128xf32>
    %653 = vector.shape_cast %652 : vector<1x8x128xf32> to vector<8x128xf32>
    %654 = vector.shape_cast %651 : vector<8x128xf32> to vector<1x8x128xf32>
    tpu.vector_store %arg8[%c2_238, %c0_239, %c0_240], %654 {strides = array<i32>} : memref<8x8x128xf32, #tpu.memory_space<vmem>>, vector<1x8x128xf32>,
    %c3_241 = arith.constant 3 : index
    %c0_242 = arith.constant 0 : index
    %c0_243 = arith.constant 0 : index
    %655 = vector.load %arg9[%c3_241, %c0_242, %c0_243] : memref<8x8x512xf32, #tpu.memory_space<vmem>>, vector<1x8x512xf32>
    %656 = vector.shape_cast %655 : vector<1x8x512xf32> to vector<8x512xf32>
    %cst_244 = arith.constant dense<0.000000e+00> : vector<8x512xf32>
    %657 = tpu.matmul %651, %547, %cst_244 {dimension_numbers = #tpu.dot_dimension_numbers<[1], [0], [0], [1], [0, 0, 1, 1], [], []>} : vector<8x128xf32>, vector<128x512xf32>, vector<8x512xf32> -> vector<8x512xf32>
    %658 = arith.addf %656, %657 : vector<8x512xf32>
    %659 = vector.extract_strided_slice %658 {offsets = [0, 0], sizes = [8, 128], strides = [1, 1]} : vector<8x512xf32> to vector<8x128xf32>
    %660 = arith.negf %659 : vector<8x128xf32>
    %661 = math.exp %660 : vector<8x128xf32>
    %cst_245 = arith.constant 1.000000e+00 : f32
    %662 = vector.broadcast %cst_245 : f32 to vector<8x128xf32>
    %663 = arith.addf %662, %661 : vector<8x128xf32>
    %664 = arith.divf %662, %663 : vector<8x128xf32>
    %665 = vector.extract_strided_slice %658 {offsets = [0, 128], sizes = [8, 128], strides = [1, 1]} : vector<8x512xf32> to vector<8x128xf32>
    %666 = arith.negf %665 : vector<8x128xf32>
    %667 = math.exp %666 : vector<8x128xf32>
    %cst_246 = arith.constant 1.000000e+00 : f32
    %668 = vector.broadcast %cst_246 : f32 to vector<8x128xf32>
    %669 = arith.addf %668, %667 : vector<8x128xf32>
    %670 = arith.divf %668, %669 : vector<8x128xf32>
    %671 = vector.extract_strided_slice %658 {offsets = [0, 256], sizes = [8, 128], strides = [1, 1]} : vector<8x512xf32> to vector<8x128xf32>
    %672 = math.tanh %671 : vector<8x128xf32>
    %673 = vector.extract_strided_slice %658 {offsets = [0, 384], sizes = [8, 128], strides = [1, 1]} : vector<8x512xf32> to vector<8x128xf32>
    %674 = arith.negf %673 : vector<8x128xf32>
    %675 = math.exp %674 : vector<8x128xf32>
    %cst_247 = arith.constant 1.000000e+00 : f32
    %676 = vector.broadcast %cst_247 : f32 to vector<8x128xf32>
    %677 = arith.addf %676, %675 : vector<8x128xf32>
    %678 = arith.divf %676, %677 : vector<8x128xf32>
    %679 = arith.mulf %670, %649 : vector<8x128xf32>
    %680 = arith.mulf %664, %672 : vector<8x128xf32>
    %681 = arith.addf %679, %680 : vector<8x128xf32>
    %682 = math.tanh %681 : vector<8x128xf32>
    %683 = arith.mulf %678, %682 : vector<8x128xf32>
    %c3_248 = arith.constant 3 : index
    %c0_249 = arith.constant 0 : index
    %c0_250 = arith.constant 0 : index
    %684 = vector.load %arg8[%c3_248, %c0_249, %c0_250] : memref<8x8x128xf32, #tpu.memory_space<vmem>>, vector<1x8x128xf32>
    %685 = vector.shape_cast %684 : vector<1x8x128xf32> to vector<8x128xf32>
    %686 = vector.shape_cast %683 : vector<8x128xf32> to vector<1x8x128xf32>
    tpu.vector_store %arg8[%c3_248, %c0_249, %c0_250], %686 {strides = array<i32>} : memref<8x8x128xf32, #tpu.memory_space<vmem>>, vector<1x8x128xf32>,
    %c4_251 = arith.constant 4 : index
    %c0_252 = arith.constant 0 : index
    %c0_253 = arith.constant 0 : index
    %687 = vector.load %arg9[%c4_251, %c0_252, %c0_253] : memref<8x8x512xf32, #tpu.memory_space<vmem>>, vector<1x8x512xf32>
    %688 = vector.shape_cast %687 : vector<1x8x512xf32> to vector<8x512xf32>
    %cst_254 = arith.constant dense<0.000000e+00> : vector<8x512xf32>
    %689 = tpu.matmul %683, %547, %cst_254 {dimension_numbers = #tpu.dot_dimension_numbers<[1], [0], [0], [1], [0, 0, 1, 1], [], []>} : vector<8x128xf32>, vector<128x512xf32>, vector<8x512xf32> -> vector<8x512xf32>
    %690 = arith.addf %688, %689 : vector<8x512xf32>
    %691 = vector.extract_strided_slice %690 {offsets = [0, 0], sizes = [8, 128], strides = [1, 1]} : vector<8x512xf32> to vector<8x128xf32>
    %692 = arith.negf %691 : vector<8x128xf32>
    %693 = math.exp %692 : vector<8x128xf32>
    %cst_255 = arith.constant 1.000000e+00 : f32
    %694 = vector.broadcast %cst_255 : f32 to vector<8x128xf32>
    %695 = arith.addf %694, %693 : vector<8x128xf32>
    %696 = arith.divf %694, %695 : vector<8x128xf32>
    %697 = vector.extract_strided_slice %690 {offsets = [0, 128], sizes = [8, 128], strides = [1, 1]} : vector<8x512xf32> to vector<8x128xf32>
    %698 = arith.negf %697 : vector<8x128xf32>
    %699 = math.exp %698 : vector<8x128xf32>
    %cst_256 = arith.constant 1.000000e+00 : f32
    %700 = vector.broadcast %cst_256 : f32 to vector<8x128xf32>
    %701 = arith.addf %700, %699 : vector<8x128xf32>
    %702 = arith.divf %700, %701 : vector<8x128xf32>
    %703 = vector.extract_strided_slice %690 {offsets = [0, 256], sizes = [8, 128], strides = [1, 1]} : vector<8x512xf32> to vector<8x128xf32>
    %704 = math.tanh %703 : vector<8x128xf32>
    %705 = vector.extract_strided_slice %690 {offsets = [0, 384], sizes = [8, 128], strides = [1, 1]} : vector<8x512xf32> to vector<8x128xf32>
    %706 = arith.negf %705 : vector<8x128xf32>
    %707 = math.exp %706 : vector<8x128xf32>
    %cst_257 = arith.constant 1.000000e+00 : f32
    %708 = vector.broadcast %cst_257 : f32 to vector<8x128xf32>
    %709 = arith.addf %708, %707 : vector<8x128xf32>
    %710 = arith.divf %708, %709 : vector<8x128xf32>
    %711 = arith.mulf %702, %681 : vector<8x128xf32>
    %712 = arith.mulf %696, %704 : vector<8x128xf32>
    %713 = arith.addf %711, %712 : vector<8x128xf32>
    %714 = math.tanh %713 : vector<8x128xf32>
    %715 = arith.mulf %710, %714 : vector<8x128xf32>
    %c4_258 = arith.constant 4 : index
    %c0_259 = arith.constant 0 : index
    %c0_260 = arith.constant 0 : index
    %716 = vector.load %arg8[%c4_258, %c0_259, %c0_260] : memref<8x8x128xf32, #tpu.memory_space<vmem>>, vector<1x8x128xf32>
    %717 = vector.shape_cast %716 : vector<1x8x128xf32> to vector<8x128xf32>
    %718 = vector.shape_cast %715 : vector<8x128xf32> to vector<1x8x128xf32>
    tpu.vector_store %arg8[%c4_258, %c0_259, %c0_260], %718 {strides = array<i32>} : memref<8x8x128xf32, #tpu.memory_space<vmem>>, vector<1x8x128xf32>,
    %c5_261 = arith.constant 5 : index
    %c0_262 = arith.constant 0 : index
    %c0_263 = arith.constant 0 : index
    %719 = vector.load %arg9[%c5_261, %c0_262, %c0_263] : memref<8x8x512xf32, #tpu.memory_space<vmem>>, vector<1x8x512xf32>
    %720 = vector.shape_cast %719 : vector<1x8x512xf32> to vector<8x512xf32>
    %cst_264 = arith.constant dense<0.000000e+00> : vector<8x512xf32>
    %721 = tpu.matmul %715, %547, %cst_264 {dimension_numbers = #tpu.dot_dimension_numbers<[1], [0], [0], [1], [0, 0, 1, 1], [], []>} : vector<8x128xf32>, vector<128x512xf32>, vector<8x512xf32> -> vector<8x512xf32>
    %722 = arith.addf %720, %721 : vector<8x512xf32>
    %723 = vector.extract_strided_slice %722 {offsets = [0, 0], sizes = [8, 128], strides = [1, 1]} : vector<8x512xf32> to vector<8x128xf32>
    %724 = arith.negf %723 : vector<8x128xf32>
    %725 = math.exp %724 : vector<8x128xf32>
    %cst_265 = arith.constant 1.000000e+00 : f32
    %726 = vector.broadcast %cst_265 : f32 to vector<8x128xf32>
    %727 = arith.addf %726, %725 : vector<8x128xf32>
    %728 = arith.divf %726, %727 : vector<8x128xf32>
    %729 = vector.extract_strided_slice %722 {offsets = [0, 128], sizes = [8, 128], strides = [1, 1]} : vector<8x512xf32> to vector<8x128xf32>
    %730 = arith.negf %729 : vector<8x128xf32>
    %731 = math.exp %730 : vector<8x128xf32>
    %cst_266 = arith.constant 1.000000e+00 : f32
    %732 = vector.broadcast %cst_266 : f32 to vector<8x128xf32>
    %733 = arith.addf %732, %731 : vector<8x128xf32>
    %734 = arith.divf %732, %733 : vector<8x128xf32>
    %735 = vector.extract_strided_slice %722 {offsets = [0, 256], sizes = [8, 128], strides = [1, 1]} : vector<8x512xf32> to vector<8x128xf32>
    %736 = math.tanh %735 : vector<8x128xf32>
    %737 = vector.extract_strided_slice %722 {offsets = [0, 384], sizes = [8, 128], strides = [1, 1]} : vector<8x512xf32> to vector<8x128xf32>
    %738 = arith.negf %737 : vector<8x128xf32>
    %739 = math.exp %738 : vector<8x128xf32>
    %cst_267 = arith.constant 1.000000e+00 : f32
    %740 = vector.broadcast %cst_267 : f32 to vector<8x128xf32>
    %741 = arith.addf %740, %739 : vector<8x128xf32>
    %742 = arith.divf %740, %741 : vector<8x128xf32>
    %743 = arith.mulf %734, %713 : vector<8x128xf32>
    %744 = arith.mulf %728, %736 : vector<8x128xf32>
    %745 = arith.addf %743, %744 : vector<8x128xf32>
    %746 = math.tanh %745 : vector<8x128xf32>
    %747 = arith.mulf %742, %746 : vector<8x128xf32>
    %c5_268 = arith.constant 5 : index
    %c0_269 = arith.constant 0 : index
    %c0_270 = arith.constant 0 : index
    %748 = vector.load %arg8[%c5_268, %c0_269, %c0_270] : memref<8x8x128xf32, #tpu.memory_space<vmem>>, vector<1x8x128xf32>
    %749 = vector.shape_cast %748 : vector<1x8x128xf32> to vector<8x128xf32>
    %750 = vector.shape_cast %747 : vector<8x128xf32> to vector<1x8x128xf32>
    tpu.vector_store %arg8[%c5_268, %c0_269, %c0_270], %750 {strides = array<i32>} : memref<8x8x128xf32, #tpu.memory_space<vmem>>, vector<1x8x128xf32>,
    %c6_271 = arith.constant 6 : index
    %c0_272 = arith.constant 0 : index
    %c0_273 = arith.constant 0 : index
    %751 = vector.load %arg9[%c6_271, %c0_272, %c0_273] : memref<8x8x512xf32, #tpu.memory_space<vmem>>, vector<1x8x512xf32>
    %752 = vector.shape_cast %751 : vector<1x8x512xf32> to vector<8x512xf32>
    %cst_274 = arith.constant dense<0.000000e+00> : vector<8x512xf32>
    %753 = tpu.matmul %747, %547, %cst_274 {dimension_numbers = #tpu.dot_dimension_numbers<[1], [0], [0], [1], [0, 0, 1, 1], [], []>} : vector<8x128xf32>, vector<128x512xf32>, vector<8x512xf32> -> vector<8x512xf32>
    %754 = arith.addf %752, %753 : vector<8x512xf32>
    %755 = vector.extract_strided_slice %754 {offsets = [0, 0], sizes = [8, 128], strides = [1, 1]} : vector<8x512xf32> to vector<8x128xf32>
    %756 = arith.negf %755 : vector<8x128xf32>
    %757 = math.exp %756 : vector<8x128xf32>
    %cst_275 = arith.constant 1.000000e+00 : f32
    %758 = vector.broadcast %cst_275 : f32 to vector<8x128xf32>
    %759 = arith.addf %758, %757 : vector<8x128xf32>
    %760 = arith.divf %758, %759 : vector<8x128xf32>
    %761 = vector.extract_strided_slice %754 {offsets = [0, 128], sizes = [8, 128], strides = [1, 1]} : vector<8x512xf32> to vector<8x128xf32>
    %762 = arith.negf %761 : vector<8x128xf32>
    %763 = math.exp %762 : vector<8x128xf32>
    %cst_276 = arith.constant 1.000000e+00 : f32
    %764 = vector.broadcast %cst_276 : f32 to vector<8x128xf32>
    %765 = arith.addf %764, %763 : vector<8x128xf32>
    %766 = arith.divf %764, %765 : vector<8x128xf32>
    %767 = vector.extract_strided_slice %754 {offsets = [0, 256], sizes = [8, 128], strides = [1, 1]} : vector<8x512xf32> to vector<8x128xf32>
    %768 = math.tanh %767 : vector<8x128xf32>
    %769 = vector.extract_strided_slice %754 {offsets = [0, 384], sizes = [8, 128], strides = [1, 1]} : vector<8x512xf32> to vector<8x128xf32>
    %770 = arith.negf %769 : vector<8x128xf32>
    %771 = math.exp %770 : vector<8x128xf32>
    %cst_277 = arith.constant 1.000000e+00 : f32
    %772 = vector.broadcast %cst_277 : f32 to vector<8x128xf32>
    %773 = arith.addf %772, %771 : vector<8x128xf32>
    %774 = arith.divf %772, %773 : vector<8x128xf32>
    %775 = arith.mulf %766, %745 : vector<8x128xf32>
    %776 = arith.mulf %760, %768 : vector<8x128xf32>
    %777 = arith.addf %775, %776 : vector<8x128xf32>
    %778 = math.tanh %777 : vector<8x128xf32>
    %779 = arith.mulf %774, %778 : vector<8x128xf32>
    %c6_278 = arith.constant 6 : index
    %c0_279 = arith.constant 0 : index
    %c0_280 = arith.constant 0 : index
    %780 = vector.load %arg8[%c6_278, %c0_279, %c0_280] : memref<8x8x128xf32, #tpu.memory_space<vmem>>, vector<1x8x128xf32>
    %781 = vector.shape_cast %780 : vector<1x8x128xf32> to vector<8x128xf32>
    %782 = vector.shape_cast %779 : vector<8x128xf32> to vector<1x8x128xf32>
    tpu.vector_store %arg8[%c6_278, %c0_279, %c0_280], %782 {strides = array<i32>} : memref<8x8x128xf32, #tpu.memory_space<vmem>>, vector<1x8x128xf32>,
    %c7_281 = arith.constant 7 : index
    %c0_282 = arith.constant 0 : index
    %c0_283 = arith.constant 0 : index
    %783 = vector.load %arg9[%c7_281, %c0_282, %c0_283] : memref<8x8x512xf32, #tpu.memory_space<vmem>>, vector<1x8x512xf32>
    %784 = vector.shape_cast %783 : vector<1x8x512xf32> to vector<8x512xf32>
    %cst_284 = arith.constant dense<0.000000e+00> : vector<8x512xf32>
    %785 = tpu.matmul %779, %547, %cst_284 {dimension_numbers = #tpu.dot_dimension_numbers<[1], [0], [0], [1], [0, 0, 1, 1], [], []>} : vector<8x128xf32>, vector<128x512xf32>, vector<8x512xf32> -> vector<8x512xf32>
    %786 = arith.addf %784, %785 : vector<8x512xf32>
    %787 = vector.extract_strided_slice %786 {offsets = [0, 0], sizes = [8, 128], strides = [1, 1]} : vector<8x512xf32> to vector<8x128xf32>
    %788 = arith.negf %787 : vector<8x128xf32>
    %789 = math.exp %788 : vector<8x128xf32>
    %cst_285 = arith.constant 1.000000e+00 : f32
    %790 = vector.broadcast %cst_285 : f32 to vector<8x128xf32>
    %791 = arith.addf %790, %789 : vector<8x128xf32>
    %792 = arith.divf %790, %791 : vector<8x128xf32>
    %793 = vector.extract_strided_slice %786 {offsets = [0, 128], sizes = [8, 128], strides = [1, 1]} : vector<8x512xf32> to vector<8x128xf32>
    %794 = arith.negf %793 : vector<8x128xf32>
    %795 = math.exp %794 : vector<8x128xf32>
    %cst_286 = arith.constant 1.000000e+00 : f32
    %796 = vector.broadcast %cst_286 : f32 to vector<8x128xf32>
    %797 = arith.addf %796, %795 : vector<8x128xf32>
    %798 = arith.divf %796, %797 : vector<8x128xf32>
    %799 = vector.extract_strided_slice %786 {offsets = [0, 256], sizes = [8, 128], strides = [1, 1]} : vector<8x512xf32> to vector<8x128xf32>
    %800 = math.tanh %799 : vector<8x128xf32>
    %801 = vector.extract_strided_slice %786 {offsets = [0, 384], sizes = [8, 128], strides = [1, 1]} : vector<8x512xf32> to vector<8x128xf32>
    %802 = arith.negf %801 : vector<8x128xf32>
    %803 = math.exp %802 : vector<8x128xf32>
    %cst_287 = arith.constant 1.000000e+00 : f32
    %804 = vector.broadcast %cst_287 : f32 to vector<8x128xf32>
    %805 = arith.addf %804, %803 : vector<8x128xf32>
    %806 = arith.divf %804, %805 : vector<8x128xf32>
    %807 = arith.mulf %798, %777 : vector<8x128xf32>
    %808 = arith.mulf %792, %800 : vector<8x128xf32>
    %809 = arith.addf %807, %808 : vector<8x128xf32>
    %810 = math.tanh %809 : vector<8x128xf32>
    %811 = arith.mulf %806, %810 : vector<8x128xf32>
    %c7_288 = arith.constant 7 : index
    %c0_289 = arith.constant 0 : index
    %c0_290 = arith.constant 0 : index
    %812 = vector.load %arg8[%c7_288, %c0_289, %c0_290] : memref<8x8x128xf32, #tpu.memory_space<vmem>>, vector<1x8x128xf32>
    %813 = vector.shape_cast %812 : vector<1x8x128xf32> to vector<8x128xf32>
    %814 = vector.shape_cast %811 : vector<8x128xf32> to vector<1x8x128xf32>
    tpu.vector_store %arg8[%c7_288, %c0_289, %c0_290], %814 {strides = array<i32>} : memref<8x8x128xf32, #tpu.memory_space<vmem>>, vector<1x8x128xf32>,
    %c3_291 = arith.constant 3 : index
    %c0_292 = arith.constant 0 : index
    %c0_293 = arith.constant 0 : index
    %815 = vector.load %arg1[%c3_291, %c0_292, %c0_293] : memref<4x128x512xf32, #tpu.memory_space<vmem>>, vector<1x128x512xf32>
    %816 = vector.shape_cast %815 : vector<1x128x512xf32> to vector<128x512xf32>
    %c3_294 = arith.constant 3 : index
    %c0_295 = arith.constant 0 : index
    %c0_296 = arith.constant 0 : index
    %817 = vector.load %arg2[%c3_294, %c0_295, %c0_296] : memref<4x128x512xf32, #tpu.memory_space<vmem>>, vector<1x128x512xf32>
    %818 = vector.shape_cast %817 : vector<1x128x512xf32> to vector<128x512xf32>
    %c3_297 = arith.constant 3 : index
    %c0_298 = arith.constant 0 : index
    %c0_299 = arith.constant 0 : index
    %819 = vector.load %arg3[%c3_297, %c0_298, %c0_299] : memref<4x1x512xf32, #tpu.memory_space<vmem>>, vector<1x1x512xf32>
    %820 = vector.shape_cast %819 : vector<1x1x512xf32> to vector<1x512xf32>
    %c0_300 = arith.constant 0 : index
    %c0_301 = arith.constant 0 : index
    %c0_302 = arith.constant 0 : index
    %821 = vector.load %arg8[%c0_300, %c0_301, %c0_302] : memref<8x8x128xf32, #tpu.memory_space<vmem>>, vector<8x8x128xf32>
    %822 = vector.shape_cast %821 : vector<8x8x128xf32> to vector<64x128xf32>
    %cst_303 = arith.constant dense<0.000000e+00> : vector<64x512xf32>
    %823 = tpu.matmul %822, %816, %cst_303 {dimension_numbers = #tpu.dot_dimension_numbers<[1], [0], [0], [1], [0, 0, 1, 1], [], []>} : vector<64x128xf32>, vector<128x512xf32>, vector<64x512xf32> -> vector<64x512xf32>
    %824 = vector.broadcast %820 : vector<1x512xf32> to vector<64x512xf32>
    %825 = arith.addf %823, %824 : vector<64x512xf32>
    %826 = vector.shape_cast %825 : vector<64x512xf32> to vector<8x8x512xf32>
    %c0_304 = arith.constant 0 : index
    %c0_305 = arith.constant 0 : index
    %c0_306 = arith.constant 0 : index
    %827 = vector.load %arg9[%c0_304, %c0_305, %c0_306] : memref<8x8x512xf32, #tpu.memory_space<vmem>>, vector<8x8x512xf32>
    tpu.vector_store %arg9[%c0_304, %c0_305, %c0_306], %826 {strides = array<i32>} : memref<8x8x512xf32, #tpu.memory_space<vmem>>, vector<8x8x512xf32>,
    %cst_307 = arith.constant 0.000000e+00 : f32
    %828 = vector.broadcast %cst_307 : f32 to vector<8x128xf32>
    %cst_308 = arith.constant 0.000000e+00 : f32
    %829 = vector.broadcast %cst_308 : f32 to vector<8x128xf32>
    %cst_309 = arith.constant -3.40282347E+38 : f32
    %830 = vector.broadcast %cst_309 : f32 to vector<8x128xf32>
    %c0_310 = arith.constant 0 : index
    %c0_311 = arith.constant 0 : index
    %c0_312 = arith.constant 0 : index
    %831 = vector.load %arg9[%c0_310, %c0_311, %c0_312] : memref<8x8x512xf32, #tpu.memory_space<vmem>>, vector<1x8x512xf32>
    %832 = vector.shape_cast %831 : vector<1x8x512xf32> to vector<8x512xf32>
    %cst_313 = arith.constant dense<0.000000e+00> : vector<8x512xf32>
    %833 = tpu.matmul %828, %818, %cst_313 {dimension_numbers = #tpu.dot_dimension_numbers<[1], [0], [0], [1], [0, 0, 1, 1], [], []>} : vector<8x128xf32>, vector<128x512xf32>, vector<8x512xf32> -> vector<8x512xf32>
    %834 = arith.addf %832, %833 : vector<8x512xf32>
    %835 = vector.extract_strided_slice %834 {offsets = [0, 0], sizes = [8, 128], strides = [1, 1]} : vector<8x512xf32> to vector<8x128xf32>
    %836 = arith.negf %835 : vector<8x128xf32>
    %837 = math.exp %836 : vector<8x128xf32>
    %cst_314 = arith.constant 1.000000e+00 : f32
    %838 = vector.broadcast %cst_314 : f32 to vector<8x128xf32>
    %839 = arith.addf %838, %837 : vector<8x128xf32>
    %840 = arith.divf %838, %839 : vector<8x128xf32>
    %841 = vector.extract_strided_slice %834 {offsets = [0, 128], sizes = [8, 128], strides = [1, 1]} : vector<8x512xf32> to vector<8x128xf32>
    %842 = arith.negf %841 : vector<8x128xf32>
    %843 = math.exp %842 : vector<8x128xf32>
    %cst_315 = arith.constant 1.000000e+00 : f32
    %844 = vector.broadcast %cst_315 : f32 to vector<8x128xf32>
    %845 = arith.addf %844, %843 : vector<8x128xf32>
    %846 = arith.divf %844, %845 : vector<8x128xf32>
    %847 = vector.extract_strided_slice %834 {offsets = [0, 256], sizes = [8, 128], strides = [1, 1]} : vector<8x512xf32> to vector<8x128xf32>
    %848 = math.tanh %847 : vector<8x128xf32>
    %849 = vector.extract_strided_slice %834 {offsets = [0, 384], sizes = [8, 128], strides = [1, 1]} : vector<8x512xf32> to vector<8x128xf32>
    %850 = arith.negf %849 : vector<8x128xf32>
    %851 = math.exp %850 : vector<8x128xf32>
    %cst_316 = arith.constant 1.000000e+00 : f32
    %852 = vector.broadcast %cst_316 : f32 to vector<8x128xf32>
    %853 = arith.addf %852, %851 : vector<8x128xf32>
    %854 = arith.divf %852, %853 : vector<8x128xf32>
    %855 = arith.mulf %846, %829 : vector<8x128xf32>
    %856 = arith.mulf %840, %848 : vector<8x128xf32>
    %857 = arith.addf %855, %856 : vector<8x128xf32>
    %858 = math.tanh %857 : vector<8x128xf32>
    %859 = arith.mulf %854, %858 : vector<8x128xf32>
    %c0_317 = arith.constant 0 : index
    %c0_318 = arith.constant 0 : index
    %c0_319 = arith.constant 0 : index
    %860 = vector.load %arg4[%c0_317, %c0_318, %c0_319] : memref<8x8x1xf32, #tpu.memory_space<vmem>>, vector<1x8x1xf32>
    %861 = vector.shape_cast %860 : vector<1x8x1xf32> to vector<8x1xf32>
    %cst_320 = arith.constant 5.000000e-01 : f32
    %862 = vector.broadcast %cst_320 : f32 to vector<8x1xf32>
    %863 = arith.cmpf ogt, %861, %862 : vector<8x1xf32>
    %cst_321 = arith.constant -3.40282347E+38 : f32
    %864 = vector.shape_cast %863 : vector<8x1xi1> to vector<8x1xi1>
    %865 = vector.broadcast %864 : vector<8x1xi1> to vector<8x128xi1>
    %866 = vector.broadcast %cst_321 : f32 to vector<8x128xf32>
    %867 = arith.select %865, %859, %866 : vector<8x128xi1>, vector<8x128xf32>
    %868 = arith.maximumf %830, %867 : vector<8x128xf32>
    %c1_322 = arith.constant 1 : index
    %c0_323 = arith.constant 0 : index
    %c0_324 = arith.constant 0 : index
    %869 = vector.load %arg9[%c1_322, %c0_323, %c0_324] : memref<8x8x512xf32, #tpu.memory_space<vmem>>, vector<1x8x512xf32>
    %870 = vector.shape_cast %869 : vector<1x8x512xf32> to vector<8x512xf32>
    %cst_325 = arith.constant dense<0.000000e+00> : vector<8x512xf32>
    %871 = tpu.matmul %859, %818, %cst_325 {dimension_numbers = #tpu.dot_dimension_numbers<[1], [0], [0], [1], [0, 0, 1, 1], [], []>} : vector<8x128xf32>, vector<128x512xf32>, vector<8x512xf32> -> vector<8x512xf32>
    %872 = arith.addf %870, %871 : vector<8x512xf32>
    %873 = vector.extract_strided_slice %872 {offsets = [0, 0], sizes = [8, 128], strides = [1, 1]} : vector<8x512xf32> to vector<8x128xf32>
    %874 = arith.negf %873 : vector<8x128xf32>
    %875 = math.exp %874 : vector<8x128xf32>
    %cst_326 = arith.constant 1.000000e+00 : f32
    %876 = vector.broadcast %cst_326 : f32 to vector<8x128xf32>
    %877 = arith.addf %876, %875 : vector<8x128xf32>
    %878 = arith.divf %876, %877 : vector<8x128xf32>
    %879 = vector.extract_strided_slice %872 {offsets = [0, 128], sizes = [8, 128], strides = [1, 1]} : vector<8x512xf32> to vector<8x128xf32>
    %880 = arith.negf %879 : vector<8x128xf32>
    %881 = math.exp %880 : vector<8x128xf32>
    %cst_327 = arith.constant 1.000000e+00 : f32
    %882 = vector.broadcast %cst_327 : f32 to vector<8x128xf32>
    %883 = arith.addf %882, %881 : vector<8x128xf32>
    %884 = arith.divf %882, %883 : vector<8x128xf32>
    %885 = vector.extract_strided_slice %872 {offsets = [0, 256], sizes = [8, 128], strides = [1, 1]} : vector<8x512xf32> to vector<8x128xf32>
    %886 = math.tanh %885 : vector<8x128xf32>
    %887 = vector.extract_strided_slice %872 {offsets = [0, 384], sizes = [8, 128], strides = [1, 1]} : vector<8x512xf32> to vector<8x128xf32>
    %888 = arith.negf %887 : vector<8x128xf32>
    %889 = math.exp %888 : vector<8x128xf32>
    %cst_328 = arith.constant 1.000000e+00 : f32
    %890 = vector.broadcast %cst_328 : f32 to vector<8x128xf32>
    %891 = arith.addf %890, %889 : vector<8x128xf32>
    %892 = arith.divf %890, %891 : vector<8x128xf32>
    %893 = arith.mulf %884, %857 : vector<8x128xf32>
    %894 = arith.mulf %878, %886 : vector<8x128xf32>
    %895 = arith.addf %893, %894 : vector<8x128xf32>
    %896 = math.tanh %895 : vector<8x128xf32>
    %897 = arith.mulf %892, %896 : vector<8x128xf32>
    %c1_329 = arith.constant 1 : index
    %c0_330 = arith.constant 0 : index
    %c0_331 = arith.constant 0 : index
    %898 = vector.load %arg4[%c1_329, %c0_330, %c0_331] : memref<8x8x1xf32, #tpu.memory_space<vmem>>, vector<1x8x1xf32>
    %899 = vector.shape_cast %898 : vector<1x8x1xf32> to vector<8x1xf32>
    %cst_332 = arith.constant 5.000000e-01 : f32
    %900 = vector.broadcast %cst_332 : f32 to vector<8x1xf32>
    %901 = arith.cmpf ogt, %899, %900 : vector<8x1xf32>
    %cst_333 = arith.constant -3.40282347E+38 : f32
    %902 = vector.shape_cast %901 : vector<8x1xi1> to vector<8x1xi1>
    %903 = vector.broadcast %902 : vector<8x1xi1> to vector<8x128xi1>
    %904 = vector.broadcast %cst_333 : f32 to vector<8x128xf32>
    %905 = arith.select %903, %897, %904 : vector<8x128xi1>, vector<8x128xf32>
    %906 = arith.maximumf %868, %905 : vector<8x128xf32>
    %c2_334 = arith.constant 2 : index
    %c0_335 = arith.constant 0 : index
    %c0_336 = arith.constant 0 : index
    %907 = vector.load %arg9[%c2_334, %c0_335, %c0_336] : memref<8x8x512xf32, #tpu.memory_space<vmem>>, vector<1x8x512xf32>
    %908 = vector.shape_cast %907 : vector<1x8x512xf32> to vector<8x512xf32>
    %cst_337 = arith.constant dense<0.000000e+00> : vector<8x512xf32>
    %909 = tpu.matmul %897, %818, %cst_337 {dimension_numbers = #tpu.dot_dimension_numbers<[1], [0], [0], [1], [0, 0, 1, 1], [], []>} : vector<8x128xf32>, vector<128x512xf32>, vector<8x512xf32> -> vector<8x512xf32>
    %910 = arith.addf %908, %909 : vector<8x512xf32>
    %911 = vector.extract_strided_slice %910 {offsets = [0, 0], sizes = [8, 128], strides = [1, 1]} : vector<8x512xf32> to vector<8x128xf32>
    %912 = arith.negf %911 : vector<8x128xf32>
    %913 = math.exp %912 : vector<8x128xf32>
    %cst_338 = arith.constant 1.000000e+00 : f32
    %914 = vector.broadcast %cst_338 : f32 to vector<8x128xf32>
    %915 = arith.addf %914, %913 : vector<8x128xf32>
    %916 = arith.divf %914, %915 : vector<8x128xf32>
    %917 = vector.extract_strided_slice %910 {offsets = [0, 128], sizes = [8, 128], strides = [1, 1]} : vector<8x512xf32> to vector<8x128xf32>
    %918 = arith.negf %917 : vector<8x128xf32>
    %919 = math.exp %918 : vector<8x128xf32>
    %cst_339 = arith.constant 1.000000e+00 : f32
    %920 = vector.broadcast %cst_339 : f32 to vector<8x128xf32>
    %921 = arith.addf %920, %919 : vector<8x128xf32>
    %922 = arith.divf %920, %921 : vector<8x128xf32>
    %923 = vector.extract_strided_slice %910 {offsets = [0, 256], sizes = [8, 128], strides = [1, 1]} : vector<8x512xf32> to vector<8x128xf32>
    %924 = math.tanh %923 : vector<8x128xf32>
    %925 = vector.extract_strided_slice %910 {offsets = [0, 384], sizes = [8, 128], strides = [1, 1]} : vector<8x512xf32> to vector<8x128xf32>
    %926 = arith.negf %925 : vector<8x128xf32>
    %927 = math.exp %926 : vector<8x128xf32>
    %cst_340 = arith.constant 1.000000e+00 : f32
    %928 = vector.broadcast %cst_340 : f32 to vector<8x128xf32>
    %929 = arith.addf %928, %927 : vector<8x128xf32>
    %930 = arith.divf %928, %929 : vector<8x128xf32>
    %931 = arith.mulf %922, %895 : vector<8x128xf32>
    %932 = arith.mulf %916, %924 : vector<8x128xf32>
    %933 = arith.addf %931, %932 : vector<8x128xf32>
    %934 = math.tanh %933 : vector<8x128xf32>
    %935 = arith.mulf %930, %934 : vector<8x128xf32>
    %c2_341 = arith.constant 2 : index
    %c0_342 = arith.constant 0 : index
    %c0_343 = arith.constant 0 : index
    %936 = vector.load %arg4[%c2_341, %c0_342, %c0_343] : memref<8x8x1xf32, #tpu.memory_space<vmem>>, vector<1x8x1xf32>
    %937 = vector.shape_cast %936 : vector<1x8x1xf32> to vector<8x1xf32>
    %cst_344 = arith.constant 5.000000e-01 : f32
    %938 = vector.broadcast %cst_344 : f32 to vector<8x1xf32>
    %939 = arith.cmpf ogt, %937, %938 : vector<8x1xf32>
    %cst_345 = arith.constant -3.40282347E+38 : f32
    %940 = vector.shape_cast %939 : vector<8x1xi1> to vector<8x1xi1>
    %941 = vector.broadcast %940 : vector<8x1xi1> to vector<8x128xi1>
    %942 = vector.broadcast %cst_345 : f32 to vector<8x128xf32>
    %943 = arith.select %941, %935, %942 : vector<8x128xi1>, vector<8x128xf32>
    %944 = arith.maximumf %906, %943 : vector<8x128xf32>
    %c3_346 = arith.constant 3 : index
    %c0_347 = arith.constant 0 : index
    %c0_348 = arith.constant 0 : index
    %945 = vector.load %arg9[%c3_346, %c0_347, %c0_348] : memref<8x8x512xf32, #tpu.memory_space<vmem>>, vector<1x8x512xf32>
    %946 = vector.shape_cast %945 : vector<1x8x512xf32> to vector<8x512xf32>
    %cst_349 = arith.constant dense<0.000000e+00> : vector<8x512xf32>
    %947 = tpu.matmul %935, %818, %cst_349 {dimension_numbers = #tpu.dot_dimension_numbers<[1], [0], [0], [1], [0, 0, 1, 1], [], []>} : vector<8x128xf32>, vector<128x512xf32>, vector<8x512xf32> -> vector<8x512xf32>
    %948 = arith.addf %946, %947 : vector<8x512xf32>
    %949 = vector.extract_strided_slice %948 {offsets = [0, 0], sizes = [8, 128], strides = [1, 1]} : vector<8x512xf32> to vector<8x128xf32>
    %950 = arith.negf %949 : vector<8x128xf32>
    %951 = math.exp %950 : vector<8x128xf32>
    %cst_350 = arith.constant 1.000000e+00 : f32
    %952 = vector.broadcast %cst_350 : f32 to vector<8x128xf32>
    %953 = arith.addf %952, %951 : vector<8x128xf32>
    %954 = arith.divf %952, %953 : vector<8x128xf32>
    %955 = vector.extract_strided_slice %948 {offsets = [0, 128], sizes = [8, 128], strides = [1, 1]} : vector<8x512xf32> to vector<8x128xf32>
    %956 = arith.negf %955 : vector<8x128xf32>
    %957 = math.exp %956 : vector<8x128xf32>
    %cst_351 = arith.constant 1.000000e+00 : f32
    %958 = vector.broadcast %cst_351 : f32 to vector<8x128xf32>
    %959 = arith.addf %958, %957 : vector<8x128xf32>
    %960 = arith.divf %958, %959 : vector<8x128xf32>
    %961 = vector.extract_strided_slice %948 {offsets = [0, 256], sizes = [8, 128], strides = [1, 1]} : vector<8x512xf32> to vector<8x128xf32>
    %962 = math.tanh %961 : vector<8x128xf32>
    %963 = vector.extract_strided_slice %948 {offsets = [0, 384], sizes = [8, 128], strides = [1, 1]} : vector<8x512xf32> to vector<8x128xf32>
    %964 = arith.negf %963 : vector<8x128xf32>
    %965 = math.exp %964 : vector<8x128xf32>
    %cst_352 = arith.constant 1.000000e+00 : f32
    %966 = vector.broadcast %cst_352 : f32 to vector<8x128xf32>
    %967 = arith.addf %966, %965 : vector<8x128xf32>
    %968 = arith.divf %966, %967 : vector<8x128xf32>
    %969 = arith.mulf %960, %933 : vector<8x128xf32>
    %970 = arith.mulf %954, %962 : vector<8x128xf32>
    %971 = arith.addf %969, %970 : vector<8x128xf32>
    %972 = math.tanh %971 : vector<8x128xf32>
    %973 = arith.mulf %968, %972 : vector<8x128xf32>
    %c3_353 = arith.constant 3 : index
    %c0_354 = arith.constant 0 : index
    %c0_355 = arith.constant 0 : index
    %974 = vector.load %arg4[%c3_353, %c0_354, %c0_355] : memref<8x8x1xf32, #tpu.memory_space<vmem>>, vector<1x8x1xf32>
    %975 = vector.shape_cast %974 : vector<1x8x1xf32> to vector<8x1xf32>
    %cst_356 = arith.constant 5.000000e-01 : f32
    %976 = vector.broadcast %cst_356 : f32 to vector<8x1xf32>
    %977 = arith.cmpf ogt, %975, %976 : vector<8x1xf32>
    %cst_357 = arith.constant -3.40282347E+38 : f32
    %978 = vector.shape_cast %977 : vector<8x1xi1> to vector<8x1xi1>
    %979 = vector.broadcast %978 : vector<8x1xi1> to vector<8x128xi1>
    %980 = vector.broadcast %cst_357 : f32 to vector<8x128xf32>
    %981 = arith.select %979, %973, %980 : vector<8x128xi1>, vector<8x128xf32>
    %982 = arith.maximumf %944, %981 : vector<8x128xf32>
    %c4_358 = arith.constant 4 : index
    %c0_359 = arith.constant 0 : index
    %c0_360 = arith.constant 0 : index
    %983 = vector.load %arg9[%c4_358, %c0_359, %c0_360] : memref<8x8x512xf32, #tpu.memory_space<vmem>>, vector<1x8x512xf32>
    %984 = vector.shape_cast %983 : vector<1x8x512xf32> to vector<8x512xf32>
    %cst_361 = arith.constant dense<0.000000e+00> : vector<8x512xf32>
    %985 = tpu.matmul %973, %818, %cst_361 {dimension_numbers = #tpu.dot_dimension_numbers<[1], [0], [0], [1], [0, 0, 1, 1], [], []>} : vector<8x128xf32>, vector<128x512xf32>, vector<8x512xf32> -> vector<8x512xf32>
    %986 = arith.addf %984, %985 : vector<8x512xf32>
    %987 = vector.extract_strided_slice %986 {offsets = [0, 0], sizes = [8, 128], strides = [1, 1]} : vector<8x512xf32> to vector<8x128xf32>
    %988 = arith.negf %987 : vector<8x128xf32>
    %989 = math.exp %988 : vector<8x128xf32>
    %cst_362 = arith.constant 1.000000e+00 : f32
    %990 = vector.broadcast %cst_362 : f32 to vector<8x128xf32>
    %991 = arith.addf %990, %989 : vector<8x128xf32>
    %992 = arith.divf %990, %991 : vector<8x128xf32>
    %993 = vector.extract_strided_slice %986 {offsets = [0, 128], sizes = [8, 128], strides = [1, 1]} : vector<8x512xf32> to vector<8x128xf32>
    %994 = arith.negf %993 : vector<8x128xf32>
    %995 = math.exp %994 : vector<8x128xf32>
    %cst_363 = arith.constant 1.000000e+00 : f32
    %996 = vector.broadcast %cst_363 : f32 to vector<8x128xf32>
    %997 = arith.addf %996, %995 : vector<8x128xf32>
    %998 = arith.divf %996, %997 : vector<8x128xf32>
    %999 = vector.extract_strided_slice %986 {offsets = [0, 256], sizes = [8, 128], strides = [1, 1]} : vector<8x512xf32> to vector<8x128xf32>
    %1000 = math.tanh %999 : vector<8x128xf32>
    %1001 = vector.extract_strided_slice %986 {offsets = [0, 384], sizes = [8, 128], strides = [1, 1]} : vector<8x512xf32> to vector<8x128xf32>
    %1002 = arith.negf %1001 : vector<8x128xf32>
    %1003 = math.exp %1002 : vector<8x128xf32>
    %cst_364 = arith.constant 1.000000e+00 : f32
    %1004 = vector.broadcast %cst_364 : f32 to vector<8x128xf32>
    %1005 = arith.addf %1004, %1003 : vector<8x128xf32>
    %1006 = arith.divf %1004, %1005 : vector<8x128xf32>
    %1007 = arith.mulf %998, %971 : vector<8x128xf32>
    %1008 = arith.mulf %992, %1000 : vector<8x128xf32>
    %1009 = arith.addf %1007, %1008 : vector<8x128xf32>
    %1010 = math.tanh %1009 : vector<8x128xf32>
    %1011 = arith.mulf %1006, %1010 : vector<8x128xf32>
    %c4_365 = arith.constant 4 : index
    %c0_366 = arith.constant 0 : index
    %c0_367 = arith.constant 0 : index
    %1012 = vector.load %arg4[%c4_365, %c0_366, %c0_367] : memref<8x8x1xf32, #tpu.memory_space<vmem>>, vector<1x8x1xf32>
    %1013 = vector.shape_cast %1012 : vector<1x8x1xf32> to vector<8x1xf32>
    %cst_368 = arith.constant 5.000000e-01 : f32
    %1014 = vector.broadcast %cst_368 : f32 to vector<8x1xf32>
    %1015 = arith.cmpf ogt, %1013, %1014 : vector<8x1xf32>
    %cst_369 = arith.constant -3.40282347E+38 : f32
    %1016 = vector.shape_cast %1015 : vector<8x1xi1> to vector<8x1xi1>
    %1017 = vector.broadcast %1016 : vector<8x1xi1> to vector<8x128xi1>
    %1018 = vector.broadcast %cst_369 : f32 to vector<8x128xf32>
    %1019 = arith.select %1017, %1011, %1018 : vector<8x128xi1>, vector<8x128xf32>
    %1020 = arith.maximumf %982, %1019 : vector<8x128xf32>
    %c5_370 = arith.constant 5 : index
    %c0_371 = arith.constant 0 : index
    %c0_372 = arith.constant 0 : index
    %1021 = vector.load %arg9[%c5_370, %c0_371, %c0_372] : memref<8x8x512xf32, #tpu.memory_space<vmem>>, vector<1x8x512xf32>
    %1022 = vector.shape_cast %1021 : vector<1x8x512xf32> to vector<8x512xf32>
    %cst_373 = arith.constant dense<0.000000e+00> : vector<8x512xf32>
    %1023 = tpu.matmul %1011, %818, %cst_373 {dimension_numbers = #tpu.dot_dimension_numbers<[1], [0], [0], [1], [0, 0, 1, 1], [], []>} : vector<8x128xf32>, vector<128x512xf32>, vector<8x512xf32> -> vector<8x512xf32>
    %1024 = arith.addf %1022, %1023 : vector<8x512xf32>
    %1025 = vector.extract_strided_slice %1024 {offsets = [0, 0], sizes = [8, 128], strides = [1, 1]} : vector<8x512xf32> to vector<8x128xf32>
    %1026 = arith.negf %1025 : vector<8x128xf32>
    %1027 = math.exp %1026 : vector<8x128xf32>
    %cst_374 = arith.constant 1.000000e+00 : f32
    %1028 = vector.broadcast %cst_374 : f32 to vector<8x128xf32>
    %1029 = arith.addf %1028, %1027 : vector<8x128xf32>
    %1030 = arith.divf %1028, %1029 : vector<8x128xf32>
    %1031 = vector.extract_strided_slice %1024 {offsets = [0, 128], sizes = [8, 128], strides = [1, 1]} : vector<8x512xf32> to vector<8x128xf32>
    %1032 = arith.negf %1031 : vector<8x128xf32>
    %1033 = math.exp %1032 : vector<8x128xf32>
    %cst_375 = arith.constant 1.000000e+00 : f32
    %1034 = vector.broadcast %cst_375 : f32 to vector<8x128xf32>
    %1035 = arith.addf %1034, %1033 : vector<8x128xf32>
    %1036 = arith.divf %1034, %1035 : vector<8x128xf32>
    %1037 = vector.extract_strided_slice %1024 {offsets = [0, 256], sizes = [8, 128], strides = [1, 1]} : vector<8x512xf32> to vector<8x128xf32>
    %1038 = math.tanh %1037 : vector<8x128xf32>
    %1039 = vector.extract_strided_slice %1024 {offsets = [0, 384], sizes = [8, 128], strides = [1, 1]} : vector<8x512xf32> to vector<8x128xf32>
    %1040 = arith.negf %1039 : vector<8x128xf32>
    %1041 = math.exp %1040 : vector<8x128xf32>
    %cst_376 = arith.constant 1.000000e+00 : f32
    %1042 = vector.broadcast %cst_376 : f32 to vector<8x128xf32>
    %1043 = arith.addf %1042, %1041 : vector<8x128xf32>
    %1044 = arith.divf %1042, %1043 : vector<8x128xf32>
    %1045 = arith.mulf %1036, %1009 : vector<8x128xf32>
    %1046 = arith.mulf %1030, %1038 : vector<8x128xf32>
    %1047 = arith.addf %1045, %1046 : vector<8x128xf32>
    %1048 = math.tanh %1047 : vector<8x128xf32>
    %1049 = arith.mulf %1044, %1048 : vector<8x128xf32>
    %c5_377 = arith.constant 5 : index
    %c0_378 = arith.constant 0 : index
    %c0_379 = arith.constant 0 : index
    %1050 = vector.load %arg4[%c5_377, %c0_378, %c0_379] : memref<8x8x1xf32, #tpu.memory_space<vmem>>, vector<1x8x1xf32>
    %1051 = vector.shape_cast %1050 : vector<1x8x1xf32> to vector<8x1xf32>
    %cst_380 = arith.constant 5.000000e-01 : f32
    %1052 = vector.broadcast %cst_380 : f32 to vector<8x1xf32>
    %1053 = arith.cmpf ogt, %1051, %1052 : vector<8x1xf32>
    %cst_381 = arith.constant -3.40282347E+38 : f32
    %1054 = vector.shape_cast %1053 : vector<8x1xi1> to vector<8x1xi1>
    %1055 = vector.broadcast %1054 : vector<8x1xi1> to vector<8x128xi1>
    %1056 = vector.broadcast %cst_381 : f32 to vector<8x128xf32>
    %1057 = arith.select %1055, %1049, %1056 : vector<8x128xi1>, vector<8x128xf32>
    %1058 = arith.maximumf %1020, %1057 : vector<8x128xf32>
    %c6_382 = arith.constant 6 : index
    %c0_383 = arith.constant 0 : index
    %c0_384 = arith.constant 0 : index
    %1059 = vector.load %arg9[%c6_382, %c0_383, %c0_384] : memref<8x8x512xf32, #tpu.memory_space<vmem>>, vector<1x8x512xf32>
    %1060 = vector.shape_cast %1059 : vector<1x8x512xf32> to vector<8x512xf32>
    %cst_385 = arith.constant dense<0.000000e+00> : vector<8x512xf32>
    %1061 = tpu.matmul %1049, %818, %cst_385 {dimension_numbers = #tpu.dot_dimension_numbers<[1], [0], [0], [1], [0, 0, 1, 1], [], []>} : vector<8x128xf32>, vector<128x512xf32>, vector<8x512xf32> -> vector<8x512xf32>
    %1062 = arith.addf %1060, %1061 : vector<8x512xf32>
    %1063 = vector.extract_strided_slice %1062 {offsets = [0, 0], sizes = [8, 128], strides = [1, 1]} : vector<8x512xf32> to vector<8x128xf32>
    %1064 = arith.negf %1063 : vector<8x128xf32>
    %1065 = math.exp %1064 : vector<8x128xf32>
    %cst_386 = arith.constant 1.000000e+00 : f32
    %1066 = vector.broadcast %cst_386 : f32 to vector<8x128xf32>
    %1067 = arith.addf %1066, %1065 : vector<8x128xf32>
    %1068 = arith.divf %1066, %1067 : vector<8x128xf32>
    %1069 = vector.extract_strided_slice %1062 {offsets = [0, 128], sizes = [8, 128], strides = [1, 1]} : vector<8x512xf32> to vector<8x128xf32>
    %1070 = arith.negf %1069 : vector<8x128xf32>
    %1071 = math.exp %1070 : vector<8x128xf32>
    %cst_387 = arith.constant 1.000000e+00 : f32
    %1072 = vector.broadcast %cst_387 : f32 to vector<8x128xf32>
    %1073 = arith.addf %1072, %1071 : vector<8x128xf32>
    %1074 = arith.divf %1072, %1073 : vector<8x128xf32>
    %1075 = vector.extract_strided_slice %1062 {offsets = [0, 256], sizes = [8, 128], strides = [1, 1]} : vector<8x512xf32> to vector<8x128xf32>
    %1076 = math.tanh %1075 : vector<8x128xf32>
    %1077 = vector.extract_strided_slice %1062 {offsets = [0, 384], sizes = [8, 128], strides = [1, 1]} : vector<8x512xf32> to vector<8x128xf32>
    %1078 = arith.negf %1077 : vector<8x128xf32>
    %1079 = math.exp %1078 : vector<8x128xf32>
    %cst_388 = arith.constant 1.000000e+00 : f32
    %1080 = vector.broadcast %cst_388 : f32 to vector<8x128xf32>
    %1081 = arith.addf %1080, %1079 : vector<8x128xf32>
    %1082 = arith.divf %1080, %1081 : vector<8x128xf32>
    %1083 = arith.mulf %1074, %1047 : vector<8x128xf32>
    %1084 = arith.mulf %1068, %1076 : vector<8x128xf32>
    %1085 = arith.addf %1083, %1084 : vector<8x128xf32>
    %1086 = math.tanh %1085 : vector<8x128xf32>
    %1087 = arith.mulf %1082, %1086 : vector<8x128xf32>
    %c6_389 = arith.constant 6 : index
    %c0_390 = arith.constant 0 : index
    %c0_391 = arith.constant 0 : index
    %1088 = vector.load %arg4[%c6_389, %c0_390, %c0_391] : memref<8x8x1xf32, #tpu.memory_space<vmem>>, vector<1x8x1xf32>
    %1089 = vector.shape_cast %1088 : vector<1x8x1xf32> to vector<8x1xf32>
    %cst_392 = arith.constant 5.000000e-01 : f32
    %1090 = vector.broadcast %cst_392 : f32 to vector<8x1xf32>
    %1091 = arith.cmpf ogt, %1089, %1090 : vector<8x1xf32>
    %cst_393 = arith.constant -3.40282347E+38 : f32
    %1092 = vector.shape_cast %1091 : vector<8x1xi1> to vector<8x1xi1>
    %1093 = vector.broadcast %1092 : vector<8x1xi1> to vector<8x128xi1>
    %1094 = vector.broadcast %cst_393 : f32 to vector<8x128xf32>
    %1095 = arith.select %1093, %1087, %1094 : vector<8x128xi1>, vector<8x128xf32>
    %1096 = arith.maximumf %1058, %1095 : vector<8x128xf32>
    %c7_394 = arith.constant 7 : index
    %c0_395 = arith.constant 0 : index
    %c0_396 = arith.constant 0 : index
    %1097 = vector.load %arg9[%c7_394, %c0_395, %c0_396] : memref<8x8x512xf32, #tpu.memory_space<vmem>>, vector<1x8x512xf32>
    %1098 = vector.shape_cast %1097 : vector<1x8x512xf32> to vector<8x512xf32>
    %cst_397 = arith.constant dense<0.000000e+00> : vector<8x512xf32>
    %1099 = tpu.matmul %1087, %818, %cst_397 {dimension_numbers = #tpu.dot_dimension_numbers<[1], [0], [0], [1], [0, 0, 1, 1], [], []>} : vector<8x128xf32>, vector<128x512xf32>, vector<8x512xf32> -> vector<8x512xf32>
    %1100 = arith.addf %1098, %1099 : vector<8x512xf32>
    %1101 = vector.extract_strided_slice %1100 {offsets = [0, 0], sizes = [8, 128], strides = [1, 1]} : vector<8x512xf32> to vector<8x128xf32>
    %1102 = arith.negf %1101 : vector<8x128xf32>
    %1103 = math.exp %1102 : vector<8x128xf32>
    %cst_398 = arith.constant 1.000000e+00 : f32
    %1104 = vector.broadcast %cst_398 : f32 to vector<8x128xf32>
    %1105 = arith.addf %1104, %1103 : vector<8x128xf32>
    %1106 = arith.divf %1104, %1105 : vector<8x128xf32>
    %1107 = vector.extract_strided_slice %1100 {offsets = [0, 128], sizes = [8, 128], strides = [1, 1]} : vector<8x512xf32> to vector<8x128xf32>
    %1108 = arith.negf %1107 : vector<8x128xf32>
    %1109 = math.exp %1108 : vector<8x128xf32>
    %cst_399 = arith.constant 1.000000e+00 : f32
    %1110 = vector.broadcast %cst_399 : f32 to vector<8x128xf32>
    %1111 = arith.addf %1110, %1109 : vector<8x128xf32>
    %1112 = arith.divf %1110, %1111 : vector<8x128xf32>
    %1113 = vector.extract_strided_slice %1100 {offsets = [0, 256], sizes = [8, 128], strides = [1, 1]} : vector<8x512xf32> to vector<8x128xf32>
    %1114 = math.tanh %1113 : vector<8x128xf32>
    %1115 = vector.extract_strided_slice %1100 {offsets = [0, 384], sizes = [8, 128], strides = [1, 1]} : vector<8x512xf32> to vector<8x128xf32>
    %1116 = arith.negf %1115 : vector<8x128xf32>
    %1117 = math.exp %1116 : vector<8x128xf32>
    %cst_400 = arith.constant 1.000000e+00 : f32
    %1118 = vector.broadcast %cst_400 : f32 to vector<8x128xf32>
    %1119 = arith.addf %1118, %1117 : vector<8x128xf32>
    %1120 = arith.divf %1118, %1119 : vector<8x128xf32>
    %1121 = arith.mulf %1112, %1085 : vector<8x128xf32>
    %1122 = arith.mulf %1106, %1114 : vector<8x128xf32>
    %1123 = arith.addf %1121, %1122 : vector<8x128xf32>
    %1124 = math.tanh %1123 : vector<8x128xf32>
    %1125 = arith.mulf %1120, %1124 : vector<8x128xf32>
    %c7_401 = arith.constant 7 : index
    %c0_402 = arith.constant 0 : index
    %c0_403 = arith.constant 0 : index
    %1126 = vector.load %arg4[%c7_401, %c0_402, %c0_403] : memref<8x8x1xf32, #tpu.memory_space<vmem>>, vector<1x8x1xf32>
    %1127 = vector.shape_cast %1126 : vector<1x8x1xf32> to vector<8x1xf32>
    %cst_404 = arith.constant 5.000000e-01 : f32
    %1128 = vector.broadcast %cst_404 : f32 to vector<8x1xf32>
    %1129 = arith.cmpf ogt, %1127, %1128 : vector<8x1xf32>
    %cst_405 = arith.constant -3.40282347E+38 : f32
    %1130 = vector.shape_cast %1129 : vector<8x1xi1> to vector<8x1xi1>
    %1131 = vector.broadcast %1130 : vector<8x1xi1> to vector<8x128xi1>
    %1132 = vector.broadcast %cst_405 : f32 to vector<8x128xf32>
    %1133 = arith.select %1131, %1125, %1132 : vector<8x128xi1>, vector<8x128xf32>
    %1134 = arith.maximumf %1096, %1133 : vector<8x128xf32>
    %c0_406 = arith.constant 0 : index
    %c0_407 = arith.constant 0 : index
    %1135 = vector.load %arg5[%c0_406, %c0_407] : memref<128x128xf32, #tpu.memory_space<vmem>>, vector<128x128xf32>
    %cst_408 = arith.constant dense<0.000000e+00> : vector<8x128xf32>
    %1136 = tpu.matmul %1134, %1135, %cst_408 {dimension_numbers = #tpu.dot_dimension_numbers<[1], [0], [0], [1], [0, 0, 1, 1], [], []>} : vector<8x128xf32>, vector<128x128xf32>, vector<8x128xf32> -> vector<8x128xf32>
    %c0_409 = arith.constant 0 : index
    %c0_410 = arith.constant 0 : index
    %1137 = vector.load %arg6[%c0_409, %c0_410] : memref<1x128xf32, #tpu.memory_space<vmem>>, vector<1x128xf32>
    %1138 = vector.broadcast %1137 : vector<1x128xf32> to vector<8x128xf32>
    %1139 = arith.addf %1136, %1138 : vector<8x128xf32>
    %c0_411 = arith.constant 0 : index
    %c0_412 = arith.constant 0 : index
    %1140 = vector.load %arg7[%c0_411, %c0_412] : memref<8x128xf32, #tpu.memory_space<vmem>>, vector<8x128xf32>
    tpu.vector_store %arg7[%c0_411, %c0_412], %1139 {strides = array<i32>} : memref<8x128xf32, #tpu.memory_space<vmem>>, vector<8x128xf32>,
    return
  }
}

</mosaic_0001>

<llo_original>
// kernel: tpu_custom_call.1
$region0: #{tpu_custom_call.1}
  #allocation0 [shape = 'u32[]', space=smem, size = 0x4, offset = 0x4, fixed_abs, tag = 'smem constant byte address 0x4 - core index']
  #allocation1 [shape = 'u32[144,128]{1,0:T(1,128)}', space=vmem, size = 0x12000, scoped, tag = 'internal scratch']
  #allocation2 [shape = 'f32[8,8,128]{2,1,0:T(8,128)}', space=vmem, size = 0x8000, scoped, tag = 'scratch operand']
  #allocation3 [shape = 'f32[8,8,512]{2,1,0:T(8,128)}', space=vmem, size = 0x20000, scoped, tag = 'scratch operand']
  %s0 = inlined_call_operand.vmem [shape: f32[8,8,128], index: 0, kind: input, shape index: {}]
  %s1 = inlined_call_operand.hbm [shape: f32[4,128,512], index: 1, kind: input, shape index: {}]
  %s2 = inlined_call_operand.hbm [shape: f32[4,128,512], index: 2, kind: input, shape index: {}]
  %s3 = inlined_call_operand.vmem [shape: f32[4,1,512], index: 3, kind: input, shape index: {}]
  %s4 = inlined_call_operand.vmem [shape: f32[8,8,1], index: 4, kind: input, shape index: {}]
  %s5 = inlined_call_operand.hbm [shape: f32[128,128], index: 5, kind: input, shape index: {}]
  %s6 = inlined_call_operand.vmem [shape: f32[1,128], index: 6, kind: input, shape index: {}]
  %s7 = inlined_call_operand.hbm [shape: f32[8,128], index: 7, kind: output, shape index: {}]
  %s8 = sld [smem:[#allocation0]]
  $region50: #{tpu_custom_call.1} parent=0
    _
  %s10 = ssub.s32 1, %s8
  %s11 = scalar_select 0, %s10, %s8
  $region1: #{tpu_custom_call.1} parent=0
    #allocation4 [shape = 'u8[1048576]{0}', space=vmem, size = 0x100000, scoped, tag = 'input window, operand 1, single buffered']
    #allocation5 [shape = 's32[1]{0}', space=sflag, size = 0x4, scoped, tag = 'scoped memory for tpu_custom_call.1']
    #allocation6 [shape = 's32[1]{0}', space=sflag, size = 0x4, scoped, tag = 'scoped memory for tpu_custom_call.1']
    #allocation7 [shape = 'u8[1048576]{0}', space=vmem, size = 0x100000, scoped, tag = 'input window, operand 2, single buffered']
    #allocation8 [shape = 's32[1]{0}', space=sflag, size = 0x4, scoped, tag = 'scoped memory for tpu_custom_call.1']
    #allocation9 [shape = 'u8[65536]{0}', space=vmem, size = 0x10000, scoped, tag = 'input window, operand 5, single buffered']
    #allocation10 [shape = 'u8[4096]{0}', space=vmem, size = 0x1000, scoped, tag = 'output window, operand 0, single buffered']
    %12 = vsyncpa [#allocation5], 0
    %13 = vsyncpa [#allocation8], 0
    %14 = vsyncpa [#allocation6], 0
    // Predicated region
    $region2: #{tpu_custom_call.1} parent=1 // pred_check
      _
    $region3: #{tpu_custom_call.1} parent=1 // pred_check_branch
      %16 = sbr.rel (0) target = $region5
    $region4: #{tpu_custom_call.1} parent=1 // pred_region
      _
    $region5: #{tpu_custom_call.1} parent=1 // pred_fallthru
      _
    // Predicated region
    $region6: #{tpu_custom_call.1} parent=1 // pred_check
      _
    $region7: #{tpu_custom_call.1} parent=1 // pred_check_branch
      %18 = sbr.rel (0) target = $region9
    $region8: #{tpu_custom_call.1} parent=1 // pred_region
      %s20 = ssub.s32 32768, 32768
      %21 = vsyncadd [#allocation5], %s20
      %s22 = sshll.u32 [#allocation4], 4
      %s23 = int_to_ptr.vmem [resolvable:$true] %s22
      %28 = dma.hbm_to_vmem [thread:$0]  %s1, 32768, %s23, [#allocation5], 512, 512, 32
    $region9: #{tpu_custom_call.1} parent=1 // pred_fallthru
      _
    // Predicated region
    $region10: #{tpu_custom_call.1} parent=1 // pred_check
      _
    $region11: #{tpu_custom_call.1} parent=1 // pred_check_branch
      %30 = sbr.rel (0) target = $region13
    $region12: #{tpu_custom_call.1} parent=1 // pred_region
      %s32 = ssub.s32 32768, 32768
      %33 = vsyncadd [#allocation8], %s32
      %s34 = sshll.u32 [#allocation7], 4
      %s35 = int_to_ptr.vmem [resolvable:$true] %s34
      %40 = dma.hbm_to_vmem [thread:$0]  %s2, 32768, %s35, [#allocation8], 512, 512, 32
    $region13: #{tpu_custom_call.1} parent=1 // pred_fallthru
      _
    // Predicated region
    $region14: #{tpu_custom_call.1} parent=1 // pred_check
      _
    $region15: #{tpu_custom_call.1} parent=1 // pred_check_branch
      %42 = sbr.rel (0) target = $region17
    $region16: #{tpu_custom_call.1} parent=1 // pred_region
      _
    $region17: #{tpu_custom_call.1} parent=1 // pred_fallthru
      _
    // Predicated region
    $region18: #{tpu_custom_call.1} parent=1 // pred_check
      _
    $region19: #{tpu_custom_call.1} parent=1 // pred_check_branch
      %44 = sbr.rel (0) target = $region21
    $region20: #{tpu_custom_call.1} parent=1 // pred_region
      _
    $region21: #{tpu_custom_call.1} parent=1 // pred_fallthru
      _
    // Predicated region
    $region22: #{tpu_custom_call.1} parent=1 // pred_check
      _
    $region23: #{tpu_custom_call.1} parent=1 // pred_check_branch
      %46 = sbr.rel (0) target = $region25
    $region24: #{tpu_custom_call.1} parent=1 // pred_region
      %s48 = ssub.s32 2048, 2048
      %49 = vsyncadd [#allocation8], %s48
      %s50 = sshll.u32 [#allocation9], 4
      %s51 = int_to_ptr.vmem [resolvable:$true] %s50
      %56 = dma.hbm_to_vmem [thread:$0]  %s5, 2048, %s51, [#allocation8], 128, 128, 8
    $region25: #{tpu_custom_call.1} parent=1 // pred_fallthru
      _
    // Predicated region
    $region26: #{tpu_custom_call.1} parent=1 // pred_check
      _
    $region27: #{tpu_custom_call.1} parent=1 // pred_check_branch
      %58 = sbr.rel (0) target = $region29
    $region28: #{tpu_custom_call.1} parent=1 // pred_region
      _
    $region29: #{tpu_custom_call.1} parent=1 // pred_fallthru
      _
    // Predicated region
    $region30: #{tpu_custom_call.1} parent=1 // pred_check
      _
    $region31: #{tpu_custom_call.1} parent=1 // pred_check_branch
      %60 = sbr.rel (0) target = $region33
    $region32: #{tpu_custom_call.1} parent=1 // pred_region
      %61 = dma.done [#allocation5], 32768
    $region33: #{tpu_custom_call.1} parent=1 // pred_fallthru
      _
    // Predicated region
    $region34: #{tpu_custom_call.1} parent=1 // pred_check
      _
    $region35: #{tpu_custom_call.1} parent=1 // pred_check_branch
      %63 = sbr.rel (0) target = $region37
    $region36: #{tpu_custom_call.1} parent=1 // pred_region
      %64 = dma.done [#allocation8], 32768
    $region37: #{tpu_custom_call.1} parent=1 // pred_fallthru
      _
    // Predicated region
    $region38: #{tpu_custom_call.1} parent=1 // pred_check
      _
    $region39: #{tpu_custom_call.1} parent=1 // pred_check_branch
      %66 = sbr.rel (0) target = $region41
    $region40: #{tpu_custom_call.1} parent=1 // pred_region
      %67 = dma.done [#allocation8], 2048
    $region41: #{tpu_custom_call.1} parent=1 // pred_fallthru
      _
    %v68 = vld [vmem:[%s0] sm:$0xff]
    %v69 = vld [vmem:[%s0 + $0x8] sm:$0xff]
    %v70 = vld [vmem:[%s0 + $0x10] sm:$0xff]
    %v71 = vld [vmem:[%s0 + $0x18] sm:$0xff]
    %v72 = vld [vmem:[%s0 + $0x20] sm:$0xff]
    %v73 = vld [vmem:[%s0 + $0x28] sm:$0xff]
    %v74 = vld [vmem:[%s0 + $0x30] sm:$0xff]
    %v75 = vld [vmem:[%s0 + $0x38] sm:$0xff]
    %76 = vst [vmem:[#allocation2] sm:$0xff] %v68
    %77 = vst [vmem:[#allocation2 + $0x8] sm:$0xff] %v69
    %78 = vst [vmem:[#allocation2 + $0x10] sm:$0xff] %v70
    %79 = vst [vmem:[#allocation2 + $0x18] sm:$0xff] %v71
    %80 = vst [vmem:[#allocation2 + $0x20] sm:$0xff] %v72
    %81 = vst [vmem:[#allocation2 + $0x28] sm:$0xff] %v73
    %82 = vst [vmem:[#allocation2 + $0x30] sm:$0xff] %v74
    %83 = vst [vmem:[#allocation2 + $0x38] sm:$0xff] %v75
    %v84 = vld [vmem:[#allocation4] sm:$0xff]
    %v85 = vld [vmem:[#allocation4 + $0x8] sm:$0xff]
    %v86 = vld [vmem:[#allocation4 + $0x10] sm:$0xff]
    %v87 = vld [vmem:[#allocation4 + $0x18] sm:$0xff]
    %v88 = vld [vmem:[#allocation4 + $0x20] sm:$0xff]
    %v89 = vld [vmem:[#allocation4 + $0x28] sm:$0xff]
    %v90 = vld [vmem:[#allocation4 + $0x30] sm:$0xff]
    %v91 = vld [vmem:[#allocation4 + $0x38] sm:$0xff]
    %v92 = vld [vmem:[#allocation4 + $0x40] sm:$0xff]
    %v93 = vld [vmem:[#allocation4 + $0x48] sm:$0xff]
    %v94 = vld [vmem:[#allocation4 + $0x50] sm:$0xff]
    %v95 = vld [vmem:[#allocation4 + $0x58] sm:$0xff]
    %v96 = vld [vmem:[#allocation4 + $0x60] sm:$0xff]
    %v97 = vld [vmem:[#allocation4 + $0x68] sm:$0xff]
    %v98 = vld [vmem:[#allocation4 + $0x70] sm:$0xff]
    %v99 = vld [vmem:[#allocation4 + $0x78] sm:$0xff]
    %v100 = vld [vmem:[#allocation4 + $0x80] sm:$0xff]
    %v101 = vld [vmem:[#allocation4 + $0x88] sm:$0xff]
    %v102 = vld [vmem:[#allocation4 + $0x90] sm:$0xff]
    %v103 = vld [vmem:[#allocation4 + $0x98] sm:$0xff]
    %v104 = vld [vmem:[#allocation4 + $0xa0] sm:$0xff]
    %v105 = vld [vmem:[#allocation4 + $0xa8] sm:$0xff]
    %v106 = vld [vmem:[#allocation4 + $0xb0] sm:$0xff]
    %v107 = vld [vmem:[#allocation4 + $0xb8] sm:$0xff]
    %v108 = vld [vmem:[#allocation4 + $0xc0] sm:$0xff]
    %v109 = vld [vmem:[#allocation4 + $0xc8] sm:$0xff]
    %v110 = vld [vmem:[#allocation4 + $0xd0] sm:$0xff]
    %v111 = vld [vmem:[#allocation4 + $0xd8] sm:$0xff]
    %v112 = vld [vmem:[#allocation4 + $0xe0] sm:$0xff]
    %v113 = vld [vmem:[#allocation4 + $0xe8] sm:$0xff]
    %v114 = vld [vmem:[#allocation4 + $0xf0] sm:$0xff]
    %v115 = vld [vmem:[#allocation4 + $0xf8] sm:$0xff]
    %v116 = vld [vmem:[#allocation4 + $0x100] sm:$0xff]
    %v117 = vld [vmem:[#allocation4 + $0x108] sm:$0xff]
    %v118 = vld [vmem:[#allocation4 + $0x110] sm:$0xff]
    %v119 = vld [vmem:[#allocation4 + $0x118] sm:$0xff]
    %v120 = vld [vmem:[#allocation4 + $0x120] sm:$0xff]
    %v121 = vld [vmem:[#allocation4 + $0x128] sm:$0xff]
    %v122 = vld [vmem:[#allocation4 + $0x130] sm:$0xff]
    %v123 = vld [vmem:[#allocation4 + $0x138] sm:$0xff]
    %v124 = vld [vmem:[#allocation4 + $0x140] sm:$0xff]
    %v125 = vld [vmem:[#allocation4 + $0x148] sm:$0xff]
    %v126 = vld [vmem:[#allocation4 + $0x150] sm:$0xff]
    %v127 = vld [vmem:[#allocation4 + $0x158] sm:$0xff]
    %v128 = vld [vmem:[#allocation4 + $0x160] sm:$0xff]
    %v129 = vld [vmem:[#allocation4 + $0x168] sm:$0xff]
    %v130 = vld [vmem:[#allocation4 + $0x170] sm:$0xff]
    %v131 = vld [vmem:[#allocation4 + $0x178] sm:$0xff]
    %v132 = vld [vmem:[#allocation4 + $0x180] sm:$0xff]
    %v133 = vld [vmem:[#allocation4 + $0x188] sm:$0xff]
    %v134 = vld [vmem:[#allocation4 + $0x190] sm:$0xff]
    %v135 = vld [vmem:[#allocation4 + $0x198] sm:$0xff]
    %v136 = vld [vmem:[#allocation4 + $0x1a0] sm:$0xff]
    %v137 = vld [vmem:[#allocation4 + $0x1a8] sm:$0xff]
    %v138 = vld [vmem:[#allocation4 + $0x1b0] sm:$0xff]
    %v139 = vld [vmem:[#allocation4 + $0x1b8] sm:$0xff]
    %v140 = vld [vmem:[#allocation4 + $0x1c0] sm:$0xff]
    %v141 = vld [vmem:[#allocation4 + $0x1c8] sm:$0xff]
    %v142 = vld [vmem:[#allocation4 + $0x1d0] sm:$0xff]
    %v143 = vld [vmem:[#allocation4 + $0x1d8] sm:$0xff]
    %v144 = vld [vmem:[#allocation4 + $0x1e0] sm:$0xff]
    %v145 = vld [vmem:[#allocation4 + $0x1e8] sm:$0xff]
    %v146 = vld [vmem:[#allocation4 + $0x1f0] sm:$0xff]
    %v147 = vld [vmem:[#allocation4 + $0x1f8] sm:$0xff]
    %v148 = vld [vmem:[#allocation7] sm:$0xff]
    %v149 = vld [vmem:[#allocation7 + $0x8] sm:$0xff]
    %v150 = vld [vmem:[#allocation7 + $0x10] sm:$0xff]
    %v151 = vld [vmem:[#allocation7 + $0x18] sm:$0xff]
    %v152 = vld [vmem:[#allocation7 + $0x20] sm:$0xff]
    %v153 = vld [vmem:[#allocation7 + $0x28] sm:$0xff]
    %v154 = vld [vmem:[#allocation7 + $0x30] sm:$0xff]
    %v155 = vld [vmem:[#allocation7 + $0x38] sm:$0xff]
    %v156 = vld [vmem:[#allocation7 + $0x40] sm:$0xff]
    %v157 = vld [vmem:[#allocation7 + $0x48] sm:$0xff]
    %v158 = vld [vmem:[#allocation7 + $0x50] sm:$0xff]
    %v159 = vld [vmem:[#allocation7 + $0x58] sm:$0xff]
    %v160 = vld [vmem:[#allocation7 + $0x60] sm:$0xff]
    %v161 = vld [vmem:[#allocation7 + $0x68] sm:$0xff]
    %v162 = vld [vmem:[#allocation7 + $0x70] sm:$0xff]
    %v163 = vld [vmem:[#allocation7 + $0x78] sm:$0xff]
    %v164 = vld [vmem:[#allocation7 + $0x80] sm:$0xff]
    %v165 = vld [vmem:[#allocation7 + $0x88] sm:$0xff]
    %v166 = vld [vmem:[#allocation7 + $0x90] sm:$0xff]
    %v167 = vld [vmem:[#allocation7 + $0x98] sm:$0xff]
    %v168 = vld [vmem:[#allocation7 + $0xa0] sm:$0xff]
    %v169 = vld [vmem:[#allocation7 + $0xa8] sm:$0xff]
    %v170 = vld [vmem:[#allocation7 + $0xb0] sm:$0xff]
    %v171 = vld [vmem:[#allocation7 + $0xb8] sm:$0xff]
    %v172 = vld [vmem:[#allocation7 + $0xc0] sm:$0xff]
    %v173 = vld [vmem:[#allocation7 + $0xc8] sm:$0xff]
    %v174 = vld [vmem:[#allocation7 + $0xd0] sm:$0xff]
    %v175 = vld [vmem:[#allocation7 + $0xd8] sm:$0xff]
    %v176 = vld [vmem:[#allocation7 + $0xe0] sm:$0xff]
    %v177 = vld [vmem:[#allocation7 + $0xe8] sm:$0xff]
    %v178 = vld [vmem:[#allocation7 + $0xf0] sm:$0xff]
    %v179 = vld [vmem:[#allocation7 + $0xf8] sm:$0xff]
    %v180 = vld [vmem:[#allocation7 + $0x100] sm:$0xff]
    %v181 = vld [vmem:[#allocation7 + $0x108] sm:$0xff]
    %v182 = vld [vmem:[#allocation7 + $0x110] sm:$0xff]
    %v183 = vld [vmem:[#allocation7 + $0x118] sm:$0xff]
    %v184 = vld [vmem:[#allocation7 + $0x120] sm:$0xff]
    %v185 = vld [vmem:[#allocation7 + $0x128] sm:$0xff]
    %v186 = vld [vmem:[#allocation7 + $0x130] sm:$0xff]
    %v187 = vld [vmem:[#allocation7 + $0x138] sm:$0xff]
    %v188 = vld [vmem:[#allocation7 + $0x140] sm:$0xff]
    %v189 = vld [vmem:[#allocation7 + $0x148] sm:$0xff]
    %v190 = vld [vmem:[#allocation7 + $0x150] sm:$0xff]
    %v191 = vld [vmem:[#allocation7 + $0x158] sm:$0xff]
    %v192 = vld [vmem:[#allocation7 + $0x160] sm:$0xff]
    %v193 = vld [vmem:[#allocation7 + $0x168] sm:$0xff]
    %v194 = vld [vmem:[#allocation7 + $0x170] sm:$0xff]
    %v195 = vld [vmem:[#allocation7 + $0x178] sm:$0xff]
    %v196 = vld [vmem:[#allocation7 + $0x180] sm:$0xff]
    %v197 = vld [vmem:[#allocation7 + $0x188] sm:$0xff]
    %v198 = vld [vmem:[#allocation7 + $0x190] sm:$0xff]
    %v199 = vld [vmem:[#allocation7 + $0x198] sm:$0xff]
    %v200 = vld [vmem:[#allocation7 + $0x1a0] sm:$0xff]
    %v201 = vld [vmem:[#allocation7 + $0x1a8] sm:$0xff]
    %v202 = vld [vmem:[#allocation7 + $0x1b0] sm:$0xff]
    %v203 = vld [vmem:[#allocation7 + $0x1b8] sm:$0xff]
    %v204 = vld [vmem:[#allocation7 + $0x1c0] sm:$0xff]
    %v205 = vld [vmem:[#allocation7 + $0x1c8] sm:$0xff]
    %v206 = vld [vmem:[#allocation7 + $0x1d0] sm:$0xff]
    %v207 = vld [vmem:[#allocation7 + $0x1d8] sm:$0xff]
    %v208 = vld [vmem:[#allocation7 + $0x1e0] sm:$0xff]
    %v209 = vld [vmem:[#allocation7 + $0x1e8] sm:$0xff]
    %v210 = vld [vmem:[#allocation7 + $0x1f0] sm:$0xff]
    %v211 = vld [vmem:[#allocation7 + $0x1f8] sm:$0xff]
    %v212 = vld [vmem:[%s3] sm:$0xf]
    %v213 = vld [vmem:[#allocation2] sm:$0xff]
    %v214 = vld [vmem:[#allocation2 + $0x8] sm:$0xff]
    %v215 = vld [vmem:[#allocation2 + $0x10] sm:$0xff]
    %v216 = vld [vmem:[#allocation2 + $0x18] sm:$0xff]
    %v217 = vld [vmem:[#allocation2 + $0x20] sm:$0xff]
    %v218 = vld [vmem:[#allocation2 + $0x28] sm:$0xff]
    %v219 = vld [vmem:[#allocation2 + $0x30] sm:$0xff]
    %v220 = vld [vmem:[#allocation2 + $0x38] sm:$0xff]
    %v222 = vlaneseq
    %v223 = vshrl.u32 %v222, 7
    %v224 = vsub.s32 0, %v223
    %v225 = vrot.slane %v212, %v224
    %v226 = vlaneseq
    %v227 = vshrl.u32 %v226, 7
    %v228 = vsub.s32 1, %v227
    %v229 = vrot.slane %v212, %v228
    %v230 = vlaneseq
    %v231 = vshrl.u32 %v230, 7
    %v232 = vsub.s32 2, %v231
    %v233 = vrot.slane %v212, %v232
    %v234 = vlaneseq
    %v235 = vshrl.u32 %v234, 7
    %v236 = vsub.s32 3, %v235
    %v237 = vrot.slane %v212, %v236
    %242 = vmatprep.subr.mxu0 %v85
    %243 = vmatpush1.msra.mxu0 %v84
    %244 = vmatprep.subr.mxu0 %v89
    %245 = vmatpush1.msra.mxu0 %v88
    %246 = vmatprep.subr.mxu0 %v93
    %247 = vmatpush1.msra.mxu0 %v92
    %248 = vmatprep.subr.mxu0 %v97
    %249 = vmatpush1.msra.mxu0 %v96
    %250 = vmatprep.subr.mxu0 %v101
    %251 = vmatpush1.msra.mxu0 %v100
    %252 = vmatprep.subr.mxu0 %v105
    %253 = vmatpush1.msra.mxu0 %v104
    %254 = vmatprep.subr.mxu0 %v109
    %255 = vmatpush1.msra.mxu0 %v108
    %256 = vmatprep.subr.mxu0 %v113
    %257 = vmatpush1.msra.mxu0 %v112
    %258 = vmatprep.subr.mxu0 %v117
    %259 = vmatpush1.msra.mxu0 %v116
    %260 = vmatprep.subr.mxu0 %v121
    %261 = vmatpush1.msra.mxu0 %v120
    %262 = vmatprep.subr.mxu0 %v125
    %263 = vmatpush1.msra.mxu0 %v124
    %264 = vmatprep.subr.mxu0 %v129
    %265 = vmatpush1.msra.mxu0 %v128
    %266 = vmatprep.subr.mxu0 %v133
    %267 = vmatpush1.msra.mxu0 %v132
    %268 = vmatprep.subr.mxu0 %v137
    %269 = vmatpush1.msra.mxu0 %v136
    %270 = vmatprep.subr.mxu0 %v141
    %271 = vmatpush1.msra.mxu0 %v140
    %272 = vmatprep.subr.mxu0 %v145
    %273 = vmatpush1.msra.mxu0 %v144
    %274 = vmatprep.subr.mxu0 0.0
    %275 = vmatpush1.msra.mxu0 0.0
    %276 = vmatprep.subr.mxu0 0.0
    %277 = vmatpush1.msra.mxu0 0.0
    %278 = vmatprep.subr.mxu0 0.0
    %279 = vmatpush1.msra.mxu0 0.0
    %280 = vmatprep.subr.mxu0 0.0
    %281 = vmatpush1.msra.mxu0 0.0
    %282 = vmatprep.subr.mxu0 0.0
    %283 = vmatpush1.msra.mxu0 0.0
    %284 = vmatprep.subr.mxu0 0.0
    %285 = vmatpush1.msra.mxu0 0.0
    %286 = vmatprep.subr.mxu0 0.0
    %287 = vmatpush1.msra.mxu0 0.0
    %288 = vmatprep.subr.mxu0 0.0
    %289 = vmatpush1.msra.mxu0 0.0
    %290 = vmatprep.subr.mxu0 0.0
    %291 = vmatpush1.msra.mxu0 0.0
    %292 = vmatprep.subr.mxu0 0.0
    %293 = vmatpush1.msra.mxu0 0.0
    %294 = vmatprep.subr.mxu0 0.0
    %295 = vmatpush1.msra.mxu0 0.0
    %296 = vmatprep.subr.mxu0 0.0
    %297 = vmatpush1.msra.mxu0 0.0
    %298 = vmatprep.subr.mxu0 0.0
    %299 = vmatpush1.msra.mxu0 0.0
    %300 = vmatprep.subr.mxu0 0.0
    %301 = vmatpush1.msra.mxu0 0.0
    %302 = vmatprep.subr.mxu0 0.0
    %303 = vmatpush1.msra.mxu0 0.0
    %304 = vmatprep.subr.mxu0 0.0
    %305 = vmatpush1.msra.mxu0 0.0
    %306 = vmatprep.mubr.f32.mxu0 0.0
    %307 = vmatmul.mubr.f32.gmra.mrb[0].mxu0 %v213
    %v308 = vpop.f32.mrb[0].mxu0
    %v309 = vadd.f32 %v225, %v308
    %v310 = vpop.f32.mrb[0].mxu0
    %v311 = vadd.f32 %v229, %v310
    %312 = vmatprep.mubr.f32.mxu0 0.0
    %313 = vmatmul.mubr.f32.gmra.mrb[0].mxu0 %v214
    %v314 = vpop.f32.mrb[0].mxu0
    %v315 = vadd.f32 %v225, %v314
    %v316 = vpop.f32.mrb[0].mxu0
    %v317 = vadd.f32 %v229, %v316
    %318 = vmatprep.mubr.f32.mxu0 0.0
    %319 = vmatmul.mubr.f32.gmra.mrb[0].mxu0 %v215
    %v320 = vpop.f32.mrb[0].mxu0
    %v321 = vadd.f32 %v225, %v320
    %v322 = vpop.f32.mrb[0].mxu0
    %v323 = vadd.f32 %v229, %v322
    %324 = vmatprep.mubr.f32.mxu0 0.0
    %325 = vmatmul.mubr.f32.gmra.mrb[0].mxu0 %v216
    %v326 = vpop.f32.mrb[0].mxu0
    %v327 = vadd.f32 %v225, %v326
    %v328 = vpop.f32.mrb[0].mxu0
    %v329 = vadd.f32 %v229, %v328
    %330 = vmatprep.mubr.f32.mxu0 0.0
    %331 = vmatmul.mubr.f32.gmra.mrb[0].mxu0 %v217
    %v332 = vpop.f32.mrb[0].mxu0
    %v333 = vadd.f32 %v225, %v332
    %v334 = vpop.f32.mrb[0].mxu0
    %v335 = vadd.f32 %v229, %v334
    %336 = vmatprep.mubr.f32.mxu0 0.0
    %337 = vmatmul.mubr.f32.gmra.mrb[0].mxu0 %v218
    %v338 = vpop.f32.mrb[0].mxu0
    %v339 = vadd.f32 %v225, %v338
    %v340 = vpop.f32.mrb[0].mxu0
    %v341 = vadd.f32 %v229, %v340
    %342 = vmatprep.mubr.f32.mxu0 0.0
    %343 = vmatmul.mubr.f32.gmra.mrb[0].mxu0 %v219
    %v344 = vpop.f32.mrb[0].mxu0
    %v345 = vadd.f32 %v225, %v344
    %v346 = vpop.f32.mrb[0].mxu0
    %v347 = vadd.f32 %v229, %v346
    %348 = vmatprep.mubr.f32.mxu0 0.0
    %349 = vmatmul.mubr.f32.gmra.mrb[0].mxu0 %v220
    %v350 = vpop.f32.mrb[0].mxu0
    %v351 = vadd.f32 %v225, %v350
    %v352 = vpop.f32.mrb[0].mxu0
    %v353 = vadd.f32 %v229, %v352
    %354 = vdwg.mxu0
    %355 = vmatprep.subr.mxu0 %v87
    %356 = vmatpush1.msra.mxu0 %v86
    %357 = vmatprep.subr.mxu0 %v91
    %358 = vmatpush1.msra.mxu0 %v90
    %359 = vmatprep.subr.mxu0 %v95
    %360 = vmatpush1.msra.mxu0 %v94
    %361 = vmatprep.subr.mxu0 %v99
    %362 = vmatpush1.msra.mxu0 %v98
    %363 = vmatprep.subr.mxu0 %v103
    %364 = vmatpush1.msra.mxu0 %v102
    %365 = vmatprep.subr.mxu0 %v107
    %366 = vmatpush1.msra.mxu0 %v106
    %367 = vmatprep.subr.mxu0 %v111
    %368 = vmatpush1.msra.mxu0 %v110
    %369 = vmatprep.subr.mxu0 %v115
    %370 = vmatpush1.msra.mxu0 %v114
    %371 = vmatprep.subr.mxu0 %v119
    %372 = vmatpush1.msra.mxu0 %v118
    %373 = vmatprep.subr.mxu0 %v123
    %374 = vmatpush1.msra.mxu0 %v122
    %375 = vmatprep.subr.mxu0 %v127
    %376 = vmatpush1.msra.mxu0 %v126
    %377 = vmatprep.subr.mxu0 %v131
    %378 = vmatpush1.msra.mxu0 %v130
    %379 = vmatprep.subr.mxu0 %v135
    %380 = vmatpush1.msra.mxu0 %v134
    %381 = vmatprep.subr.mxu0 %v139
    %382 = vmatpush1.msra.mxu0 %v138
    %383 = vmatprep.subr.mxu0 %v143
    %384 = vmatpush1.msra.mxu0 %v142
    %385 = vmatprep.subr.mxu0 %v147
    %386 = vmatpush1.msra.mxu0 %v146
    %387 = vmatprep.subr.mxu0 0.0
    %388 = vmatpush1.msra.mxu0 0.0
    %389 = vmatprep.subr.mxu0 0.0
    %390 = vmatpush1.msra.mxu0 0.0
    %391 = vmatprep.subr.mxu0 0.0
    %392 = vmatpush1.msra.mxu0 0.0
    %393 = vmatprep.subr.mxu0 0.0
    %394 = vmatpush1.msra.mxu0 0.0
    %395 = vmatprep.subr.mxu0 0.0
    %396 = vmatpush1.msra.mxu0 0.0
    %397 = vmatprep.subr.mxu0 0.0
    %398 = vmatpush1.msra.mxu0 0.0
    %399 = vmatprep.subr.mxu0 0.0
    %400 = vmatpush1.msra.mxu0 0.0
    %401 = vmatprep.subr.mxu0 0.0
    %402 = vmatpush1.msra.mxu0 0.0
    %403 = vmatprep.subr.mxu0 0.0
    %404 = vmatpush1.msra.mxu0 0.0
    %405 = vmatprep.subr.mxu0 0.0
    %406 = vmatpush1.msra.mxu0 0.0
    %407 = vmatprep.subr.mxu0 0.0
    %408 = vmatpush1.msra.mxu0 0.0
    %409 = vmatprep.subr.mxu0 0.0
    %410 = vmatpush1.msra.mxu0 0.0
    %411 = vmatprep.subr.mxu0 0.0
    %412 = vmatpush1.msra.mxu0 0.0
    %413 = vmatprep.subr.mxu0 0.0
    %414 = vmatpush1.msra.mxu0 0.0
    %415 = vmatprep.subr.mxu0 0.0
    %416 = vmatpush1.msra.mxu0 0.0
    %417 = vmatprep.subr.mxu0 0.0
    %418 = vmatpush1.msra.mxu0 0.0
    %419 = vmatprep.mubr.f32.mxu0 0.0
    %420 = vmatmul.mubr.f32.gmra.mrb[0].mxu0 %v213
    %v421 = vpop.f32.mrb[0].mxu0
    %v422 = vadd.f32 %v233, %v421
    %v423 = vpop.f32.mrb[0].mxu0
    %v424 = vadd.f32 %v237, %v423
    %425 = vmatprep.mubr.f32.mxu0 0.0
    %426 = vmatmul.mubr.f32.gmra.mrb[0].mxu0 %v214
    %v427 = vpop.f32.mrb[0].mxu0
    %v428 = vadd.f32 %v233, %v427
    %v429 = vpop.f32.mrb[0].mxu0
    %v430 = vadd.f32 %v237, %v429
    %431 = vmatprep.mubr.f32.mxu0 0.0
    %432 = vmatmul.mubr.f32.gmra.mrb[0].mxu0 %v215
    %v433 = vpop.f32.mrb[0].mxu0
    %v434 = vadd.f32 %v233, %v433
    %v435 = vpop.f32.mrb[0].mxu0
    %v436 = vadd.f32 %v237, %v435
    %437 = vmatprep.mubr.f32.mxu0 0.0
    %438 = vmatmul.mubr.f32.gmra.mrb[0].mxu0 %v216
    %v439 = vpop.f32.mrb[0].mxu0
    %v440 = vadd.f32 %v233, %v439
    %v441 = vpop.f32.mrb[0].mxu0
    %v442 = vadd.f32 %v237, %v441
    %443 = vmatprep.mubr.f32.mxu0 0.0
    %444 = vmatmul.mubr.f32.gmra.mrb[0].mxu0 %v217
    %v445 = vpop.f32.mrb[0].mxu0
    %v446 = vadd.f32 %v233, %v445
    %v447 = vpop.f32.mrb[0].mxu0
    %v448 = vadd.f32 %v237, %v447
    %449 = vmatprep.mubr.f32.mxu0 0.0
    %450 = vmatmul.mubr.f32.gmra.mrb[0].mxu0 %v218
    %v451 = vpop.f32.mrb[0].mxu0
    %v452 = vadd.f32 %v233, %v451
    %v453 = vpop.f32.mrb[0].mxu0
    %v454 = vadd.f32 %v237, %v453
    %455 = vmatprep.mubr.f32.mxu0 0.0
    %456 = vmatmul.mubr.f32.gmra.mrb[0].mxu0 %v219
    %v457 = vpop.f32.mrb[0].mxu0
    %v458 = vadd.f32 %v233, %v457
    %v459 = vpop.f32.mrb[0].mxu0
    %v460 = vadd.f32 %v237, %v459
    %461 = vmatprep.mubr.f32.mxu0 0.0
    %462 = vmatmul.mubr.f32.gmra.mrb[0].mxu0 %v220
    %v463 = vpop.f32.mrb[0].mxu0
    %v464 = vadd.f32 %v233, %v463
    %v465 = vpop.f32.mrb[0].mxu0
    %v466 = vadd.f32 %v237, %v465
    %467 = vdwg.mxu0
    %468 = vst [vmem:[#allocation3] sm:$0xff] %v309
    %469 = vst [vmem:[#allocation3 + $0x8] sm:$0xff] %v311
    %470 = vst [vmem:[#allocation3 + $0x10] sm:$0xff] %v422
    %471 = vst [vmem:[#allocation3 + $0x18] sm:$0xff] %v424
    %472 = vst [vmem:[#allocation3 + $0x20] sm:$0xff] %v315
    %473 = vst [vmem:[#allocation3 + $0x28] sm:$0xff] %v317
    %474 = vst [vmem:[#allocation3 + $0x30] sm:$0xff] %v428
    %475 = vst [vmem:[#allocation3 + $0x38] sm:$0xff] %v430
    %476 = vst [vmem:[#allocation3 + $0x40] sm:$0xff] %v321
    %477 = vst [vmem:[#allocation3 + $0x48] sm:$0xff] %v323
    %478 = vst [vmem:[#allocation3 + $0x50] sm:$0xff] %v434
    %479 = vst [vmem:[#allocation3 + $0x58] sm:$0xff] %v436
    %480 = vst [vmem:[#allocation3 + $0x60] sm:$0xff] %v327
    %481 = vst [vmem:[#allocation3 + $0x68] sm:$0xff] %v329
    %482 = vst [vmem:[#allocation3 + $0x70] sm:$0xff] %v440
    %483 = vst [vmem:[#allocation3 + $0x78] sm:$0xff] %v442
    %484 = vst [vmem:[#allocation3 + $0x80] sm:$0xff] %v333
    %485 = vst [vmem:[#allocation3 + $0x88] sm:$0xff] %v335
    %486 = vst [vmem:[#allocation3 + $0x90] sm:$0xff] %v446
    %487 = vst [vmem:[#allocation3 + $0x98] sm:$0xff] %v448
    %488 = vst [vmem:[#allocation3 + $0xa0] sm:$0xff] %v339
    %489 = vst [vmem:[#allocation3 + $0xa8] sm:$0xff] %v341
    %490 = vst [vmem:[#allocation3 + $0xb0] sm:$0xff] %v452
    %491 = vst [vmem:[#allocation3 + $0xb8] sm:$0xff] %v454
    %492 = vst [vmem:[#allocation3 + $0xc0] sm:$0xff] %v345
    %493 = vst [vmem:[#allocation3 + $0xc8] sm:$0xff] %v347
    %494 = vst [vmem:[#allocation3 + $0xd0] sm:$0xff] %v458
    %495 = vst [vmem:[#allocation3 + $0xd8] sm:$0xff] %v460
    %496 = vst [vmem:[#allocation3 + $0xe0] sm:$0xff] %v351
    %497 = vst [vmem:[#allocation3 + $0xe8] sm:$0xff] %v353
    %498 = vst [vmem:[#allocation3 + $0xf0] sm:$0xff] %v464
    %499 = vst [vmem:[#allocation3 + $0xf8] sm:$0xff] %v466
    %v500 = vld [vmem:[#allocation3] sm:$0xff]
    %v501 = vld [vmem:[#allocation3 + $0x8] sm:$0xff]
    %v502 = vld [vmem:[#allocation3 + $0x10] sm:$0xff]
    %v503 = vld [vmem:[#allocation3 + $0x18] sm:$0xff]
    %504 = vmatprep.subr.mxu0 %v149
    %505 = vmatpush1.msra.mxu0 %v148
    %506 = vmatprep.subr.mxu0 %v153
    %507 = vmatpush1.msra.mxu0 %v152
    %508 = vmatprep.subr.mxu0 %v157
    %509 = vmatpush1.msra.mxu0 %v156
    %510 = vmatprep.subr.mxu0 %v161
    %511 = vmatpush1.msra.mxu0 %v160
    %512 = vmatprep.subr.mxu0 %v165
    %513 = vmatpush1.msra.mxu0 %v164
    %514 = vmatprep.subr.mxu0 %v169
    %515 = vmatpush1.msra.mxu0 %v168
    %516 = vmatprep.subr.mxu0 %v173
    %517 = vmatpush1.msra.mxu0 %v172
    %518 = vmatprep.subr.mxu0 %v177
    %519 = vmatpush1.msra.mxu0 %v176
    %520 = vmatprep.subr.mxu0 %v181
    %521 = vmatpush1.msra.mxu0 %v180
    %522 = vmatprep.subr.mxu0 %v185
    %523 = vmatpush1.msra.mxu0 %v184
    %524 = vmatprep.subr.mxu0 %v189
    %525 = vmatpush1.msra.mxu0 %v188
    %526 = vmatprep.subr.mxu0 %v193
    %527 = vmatpush1.msra.mxu0 %v192
    %528 = vmatprep.subr.mxu0 %v197
    %529 = vmatpush1.msra.mxu0 %v196
    %530 = vmatprep.subr.mxu0 %v201
    %531 = vmatpush1.msra.mxu0 %v200
    %532 = vmatprep.subr.mxu0 %v205
    %533 = vmatpush1.msra.mxu0 %v204
    %534 = vmatprep.subr.mxu0 %v209
    %535 = vmatpush1.msra.mxu0 %v208
    %536 = vmatprep.subr.mxu0 0.0
    %537 = vmatpush1.msra.mxu0 0.0
    %538 = vmatprep.subr.mxu0 0.0
    %539 = vmatpush1.msra.mxu0 0.0
    %540 = vmatprep.subr.mxu0 0.0
    %541 = vmatpush1.msra.mxu0 0.0
    %542 = vmatprep.subr.mxu0 0.0
    %543 = vmatpush1.msra.mxu0 0.0
    %544 = vmatprep.subr.mxu0 0.0
    %545 = vmatpush1.msra.mxu0 0.0
    %546 = vmatprep.subr.mxu0 0.0
    %547 = vmatpush1.msra.mxu0 0.0
    %548 = vmatprep.subr.mxu0 0.0
    %549 = vmatpush1.msra.mxu0 0.0
    %550 = vmatprep.subr.mxu0 0.0
    %551 = vmatpush1.msra.mxu0 0.0
    %552 = vmatprep.subr.mxu0 0.0
    %553 = vmatpush1.msra.mxu0 0.0
    %554 = vmatprep.subr.mxu0 0.0
    %555 = vmatpush1.msra.mxu0 0.0
    %556 = vmatprep.subr.mxu0 0.0
    %557 = vmatpush1.msra.mxu0 0.0
    %558 = vmatprep.subr.mxu0 0.0
    %559 = vmatpush1.msra.mxu0 0.0
    %560 = vmatprep.subr.mxu0 0.0
    %561 = vmatpush1.msra.mxu0 0.0
    %562 = vmatprep.subr.mxu0 0.0
    %563 = vmatpush1.msra.mxu0 0.0
    %564 = vmatprep.subr.mxu0 0.0
    %565 = vmatpush1.msra.mxu0 0.0
    %566 = vmatprep.subr.mxu0 0.0
    %567 = vmatpush1.msra.mxu0 0.0
    %568 = vmatprep.mubr.f32.mxu0 0.0
    %569 = vmatmul.mubr.f32.gmra.mrb[0].mxu0 0.0
    %v570 = vpop.f32.mrb[0].mxu0
    %v571 = vadd.f32 0.0, %v570
    %v572 = vpop.f32.mrb[0].mxu0
    %v573 = vadd.f32 0.0, %v572
    %574 = vdwg.mxu0
    %575 = vmatprep.subr.mxu0 %v151
    %576 = vmatpush1.msra.mxu0 %v150
    %577 = vmatprep.subr.mxu0 %v155
    %578 = vmatpush1.msra.mxu0 %v154
    %579 = vmatprep.subr.mxu0 %v159
    %580 = vmatpush1.msra.mxu0 %v158
    %581 = vmatprep.subr.mxu0 %v163
    %582 = vmatpush1.msra.mxu0 %v162
    %583 = vmatprep.subr.mxu0 %v167
    %584 = vmatpush1.msra.mxu0 %v166
    %585 = vmatprep.subr.mxu0 %v171
    %586 = vmatpush1.msra.mxu0 %v170
    %587 = vmatprep.subr.mxu0 %v175
    %588 = vmatpush1.msra.mxu0 %v174
    %589 = vmatprep.subr.mxu0 %v179
    %590 = vmatpush1.msra.mxu0 %v178
    %591 = vmatprep.subr.mxu0 %v183
    %592 = vmatpush1.msra.mxu0 %v182
    %593 = vmatprep.subr.mxu0 %v187
    %594 = vmatpush1.msra.mxu0 %v186
    %595 = vmatprep.subr.mxu0 %v191
    %596 = vmatpush1.msra.mxu0 %v190
    %597 = vmatprep.subr.mxu0 %v195
    %598 = vmatpush1.msra.mxu0 %v194
    %599 = vmatprep.subr.mxu0 %v199
    %600 = vmatpush1.msra.mxu0 %v198
    %601 = vmatprep.subr.mxu0 %v203
    %602 = vmatpush1.msra.mxu0 %v202
    %603 = vmatprep.subr.mxu0 %v207
    %604 = vmatpush1.msra.mxu0 %v206
    %605 = vmatprep.subr.mxu0 %v211
    %606 = vmatpush1.msra.mxu0 %v210
    %607 = vmatprep.subr.mxu0 0.0
    %608 = vmatpush1.msra.mxu0 0.0
    %609 = vmatprep.subr.mxu0 0.0
    %610 = vmatpush1.msra.mxu0 0.0
    %611 = vmatprep.subr.mxu0 0.0
    %612 = vmatpush1.msra.mxu0 0.0
    %613 = vmatprep.subr.mxu0 0.0
    %614 = vmatpush1.msra.mxu0 0.0
    %615 = vmatprep.subr.mxu0 0.0
    %616 = vmatpush1.msra.mxu0 0.0
    %617 = vmatprep.subr.mxu0 0.0
    %618 = vmatpush1.msra.mxu0 0.0
    %619 = vmatprep.subr.mxu0 0.0
    %620 = vmatpush1.msra.mxu0 0.0
    %621 = vmatprep.subr.mxu0 0.0
    %622 = vmatpush1.msra.mxu0 0.0
    %623 = vmatprep.subr.mxu0 0.0
    %624 = vmatpush1.msra.mxu0 0.0
    %625 = vmatprep.subr.mxu0 0.0
    %626 = vmatpush1.msra.mxu0 0.0
    %627 = vmatprep.subr.mxu0 0.0
    %628 = vmatpush1.msra.mxu0 0.0
    %629 = vmatprep.subr.mxu0 0.0
    %630 = vmatpush1.msra.mxu0 0.0
    %631 = vmatprep.subr.mxu0 0.0
    %632 = vmatpush1.msra.mxu0 0.0
    %633 = vmatprep.subr.mxu0 0.0
    %634 = vmatpush1.msra.mxu0 0.0
    %635 = vmatprep.subr.mxu0 0.0
    %636 = vmatpush1.msra.mxu0 0.0
    %637 = vmatprep.subr.mxu0 0.0
    %638 = vmatpush1.msra.mxu0 0.0
    %639 = vmatprep.mubr.f32.mxu0 0.0
    %640 = vmatmul.mubr.f32.gmra.mrb[0].mxu0 0.0
    %v641 = vpop.f32.mrb[0].mxu0
    %v642 = vadd.f32 0.0, %v641
    %v643 = vpop.f32.mrb[0].mxu0
    %v644 = vadd.f32 0.0, %v643
    %645 = vdwg.mxu0
    %v646 = vadd.f32 %v500, %v571
    %v647 = vadd.f32 %v501, %v573
    %v648 = vadd.f32 %v502, %v642
    %v649 = vadd.f32 %v503, %v644
    %v650 = vxor.u32 %v646, 2147483648
    %v651 = vmul.f32 %v650, 1.442695
    %v652 = vpow.pop %v651
    %v653 = vadd.f32 %v652, 1.0
    %v654 = vrcp.pop %v653
    %v655 = vmul.f32 1.0, %v654
    %v656 = vxor.u32 %v647, 2147483648
    %v657 = vmul.f32 %v656, 1.442695
    %v658 = vpow.pop %v657
    %v659 = vadd.f32 %v658, 1.0
    %v660 = vrcp.pop %v659
    %v661 = vmul.f32 1.0, %v660
    %v662 = vtanh.pop %v648
    %v663 = vxor.u32 %v649, 2147483648
    %v664 = vmul.f32 %v663, 1.442695
    %v665 = vpow.pop %v664
    %v666 = vadd.f32 %v665, 1.0
    %v667 = vrcp.pop %v666
    %v668 = vmul.f32 1.0, %v667
    %v669 = vmul.f32 %v661, 0.0
    %v670 = vmul.f32 %v655, %v662
    %v671 = vadd.f32 %v669, %v670
    %v672 = vtanh.pop %v671
    %v673 = vmul.f32 %v668, %v672
    %674 = vst [vmem:[#allocation2] sm:$0xff] %v673
    %s675 = scalar_lea.vmem [#allocation3], 32
    %v676 = vld [vmem:[%s675] sm:$0xff]
    %v677 = vld [vmem:[%s675 + $0x8] sm:$0xff]
    %v678 = vld [vmem:[%s675 + $0x10] sm:$0xff]
    %v679 = vld [vmem:[%s675 + $0x18] sm:$0xff]
    %680 = vmatprep.subr.mxu0 %v149
    %681 = vmatpush1.msra.mxu0 %v148
    %682 = vmatprep.subr.mxu0 %v153
    %683 = vmatpush1.msra.mxu0 %v152
    %684 = vmatprep.subr.mxu0 %v157
    %685 = vmatpush1.msra.mxu0 %v156
    %686 = vmatprep.subr.mxu0 %v161
    %687 = vmatpush1.msra.mxu0 %v160
    %688 = vmatprep.subr.mxu0 %v165
    %689 = vmatpush1.msra.mxu0 %v164
    %690 = vmatprep.subr.mxu0 %v169
    %691 = vmatpush1.msra.mxu0 %v168
    %692 = vmatprep.subr.mxu0 %v173
    %693 = vmatpush1.msra.mxu0 %v172
    %694 = vmatprep.subr.mxu0 %v177
    %695 = vmatpush1.msra.mxu0 %v176
    %696 = vmatprep.subr.mxu0 %v181
    %697 = vmatpush1.msra.mxu0 %v180
    %698 = vmatprep.subr.mxu0 %v185
    %699 = vmatpush1.msra.mxu0 %v184
    %700 = vmatprep.subr.mxu0 %v189
    %701 = vmatpush1.msra.mxu0 %v188
    %702 = vmatprep.subr.mxu0 %v193
    %703 = vmatpush1.msra.mxu0 %v192
    %704 = vmatprep.subr.mxu0 %v197
    %705 = vmatpush1.msra.mxu0 %v196
    %706 = vmatprep.subr.mxu0 %v201
    %707 = vmatpush1.msra.mxu0 %v200
    %708 = vmatprep.subr.mxu0 %v205
    %709 = vmatpush1.msra.mxu0 %v204
    %710 = vmatprep.subr.mxu0 %v209
    %711 = vmatpush1.msra.mxu0 %v208
    %712 = vmatprep.subr.mxu0 0.0
    %713 = vmatpush1.msra.mxu0 0.0
    %714 = vmatprep.subr.mxu0 0.0
    %715 = vmatpush1.msra.mxu0 0.0
    %716 = vmatprep.subr.mxu0 0.0
    %717 = vmatpush1.msra.mxu0 0.0
    %718 = vmatprep.subr.mxu0 0.0
    %719 = vmatpush1.msra.mxu0 0.0
    %720 = vmatprep.subr.mxu0 0.0
    %721 = vmatpush1.msra.mxu0 0.0
    %722 = vmatprep.subr.mxu0 0.0
    %723 = vmatpush1.msra.mxu0 0.0
    %724 = vmatprep.subr.mxu0 0.0
    %725 = vmatpush1.msra.mxu0 0.0
    %726 = vmatprep.subr.mxu0 0.0
    %727 = vmatpush1.msra.mxu0 0.0
    %728 = vmatprep.subr.mxu0 0.0
    %729 = vmatpush1.msra.mxu0 0.0
    %730 = vmatprep.subr.mxu0 0.0
    %731 = vmatpush1.msra.mxu0 0.0
    %732 = vmatprep.subr.mxu0 0.0
    %733 = vmatpush1.msra.mxu0 0.0
    %734 = vmatprep.subr.mxu0 0.0
    %735 = vmatpush1.msra.mxu0 0.0
    %736 = vmatprep.subr.mxu0 0.0
    %737 = vmatpush1.msra.mxu0 0.0
    %738 = vmatprep.subr.mxu0 0.0
    %739 = vmatpush1.msra.mxu0 0.0
    %740 = vmatprep.subr.mxu0 0.0
    %741 = vmatpush1.msra.mxu0 0.0
    %742 = vmatprep.subr.mxu0 0.0
    %743 = vmatpush1.msra.mxu0 0.0
    %744 = vmatprep.mubr.f32.mxu0 0.0
    %745 = vmatmul.mubr.f32.gmra.mrb[0].mxu0 %v673
    %v746 = vpop.f32.mrb[0].mxu0
    %v747 = vadd.f32 0.0, %v746
    %v748 = vpop.f32.mrb[0].mxu0
    %v749 = vadd.f32 0.0, %v748
    %750 = vdwg.mxu0
    %751 = vmatprep.subr.mxu0 %v151
    %752 = vmatpush1.msra.mxu0 %v150
    %753 = vmatprep.subr.mxu0 %v155
    %754 = vmatpush1.msra.mxu0 %v154
    %755 = vmatprep.subr.mxu0 %v159
    %756 = vmatpush1.msra.mxu0 %v158
    %757 = vmatprep.subr.mxu0 %v163
    %758 = vmatpush1.msra.mxu0 %v162
    %759 = vmatprep.subr.mxu0 %v167
    %760 = vmatpush1.msra.mxu0 %v166
    %761 = vmatprep.subr.mxu0 %v171
    %762 = vmatpush1.msra.mxu0 %v170
    %763 = vmatprep.subr.mxu0 %v175
    %764 = vmatpush1.msra.mxu0 %v174
    %765 = vmatprep.subr.mxu0 %v179
    %766 = vmatpush1.msra.mxu0 %v178
    %767 = vmatprep.subr.mxu0 %v183
    %768 = vmatpush1.msra.mxu0 %v182
    %769 = vmatprep.subr.mxu0 %v187
    %770 = vmatpush1.msra.mxu0 %v186
    %771 = vmatprep.subr.mxu0 %v191
    %772 = vmatpush1.msra.mxu0 %v190
    %773 = vmatprep.subr.mxu0 %v195
    %774 = vmatpush1.msra.mxu0 %v194
    %775 = vmatprep.subr.mxu0 %v199
    %776 = vmatpush1.msra.mxu0 %v198
    %777 = vmatprep.subr.mxu0 %v203
    %778 = vmatpush1.msra.mxu0 %v202
    %779 = vmatprep.subr.mxu0 %v207
    %780 = vmatpush1.msra.mxu0 %v206
    %781 = vmatprep.subr.mxu0 %v211
    %782 = vmatpush1.msra.mxu0 %v210
    %783 = vmatprep.subr.mxu0 0.0
    %784 = vmatpush1.msra.mxu0 0.0
    %785 = vmatprep.subr.mxu0 0.0
    %786 = vmatpush1.msra.mxu0 0.0
    %787 = vmatprep.subr.mxu0 0.0
    %788 = vmatpush1.msra.mxu0 0.0
    %789 = vmatprep.subr.mxu0 0.0
    %790 = vmatpush1.msra.mxu0 0.0
    %791 = vmatprep.subr.mxu0 0.0
    %792 = vmatpush1.msra.mxu0 0.0
    %793 = vmatprep.subr.mxu0 0.0
    %794 = vmatpush1.msra.mxu0 0.0
    %795 = vmatprep.subr.mxu0 0.0
    %796 = vmatpush1.msra.mxu0 0.0
    %797 = vmatprep.subr.mxu0 0.0
    %798 = vmatpush1.msra.mxu0 0.0
    %799 = vmatprep.subr.mxu0 0.0
    %800 = vmatpush1.msra.mxu0 0.0
    %801 = vmatprep.subr.mxu0 0.0
    %802 = vmatpush1.msra.mxu0 0.0
    %803 = vmatprep.subr.mxu0 0.0
    %804 = vmatpush1.msra.mxu0 0.0
    %805 = vmatprep.subr.mxu0 0.0
    %806 = vmatpush1.msra.mxu0 0.0
    %807 = vmatprep.subr.mxu0 0.0
    %808 = vmatpush1.msra.mxu0 0.0
    %809 = vmatprep.subr.mxu0 0.0
    %810 = vmatpush1.msra.mxu0 0.0
    %811 = vmatprep.subr.mxu0 0.0
    %812 = vmatpush1.msra.mxu0 0.0
    %813 = vmatprep.subr.mxu0 0.0
    %814 = vmatpush1.msra.mxu0 0.0
    %815 = vmatprep.mubr.f32.mxu0 0.0
    %816 = vmatmul.mubr.f32.gmra.mrb[0].mxu0 %v673
    %v817 = vpop.f32.mrb[0].mxu0
    %v818 = vadd.f32 0.0, %v817
    %v819 = vpop.f32.mrb[0].mxu0
    %v820 = vadd.f32 0.0, %v819
    %821 = vdwg.mxu0
    %v822 = vadd.f32 %v676, %v747
    %v823 = vadd.f32 %v677, %v749
    %v824 = vadd.f32 %v678, %v818
    %v825 = vadd.f32 %v679, %v820
    %v826 = vxor.u32 %v822, 2147483648
    %v827 = vmul.f32 %v826, 1.442695
    %v828 = vpow.pop %v827
    %v829 = vadd.f32 %v828, 1.0
    %v830 = vrcp.pop %v829
    %v831 = vmul.f32 1.0, %v830
    %v832 = vxor.u32 %v823, 2147483648
    %v833 = vmul.f32 %v832, 1.442695
    %v834 = vpow.pop %v833
    %v835 = vadd.f32 %v834, 1.0
    %v836 = vrcp.pop %v835
    %v837 = vmul.f32 1.0, %v836
    %v838 = vtanh.pop %v824
    %v839 = vxor.u32 %v825, 2147483648
    %v840 = vmul.f32 %v839, 1.442695
    %v841 = vpow.pop %v840
    %v842 = vadd.f32 %v841, 1.0
    %v843 = vrcp.pop %v842
    %v844 = vmul.f32 1.0, %v843
    %v845 = vmul.f32 %v837, %v671
    %v846 = vmul.f32 %v831, %v838
    %v847 = vadd.f32 %v845, %v846
    %v848 = vtanh.pop %v847
    %v849 = vmul.f32 %v844, %v848
    %s850 = scalar_lea.vmem [#allocation2], 8
    %851 = vst [vmem:[%s850] sm:$0xff] %v849
    %s852 = scalar_lea.vmem [#allocation3], 64
    %v853 = vld [vmem:[%s852] sm:$0xff]
    %v854 = vld [vmem:[%s852 + $0x8] sm:$0xff]
    %v855 = vld [vmem:[%s852 + $0x10] sm:$0xff]
    %v856 = vld [vmem:[%s852 + $0x18] sm:$0xff]
    %857 = vmatprep.subr.mxu0 %v149
    %858 = vmatpush1.msra.mxu0 %v148
    %859 = vmatprep.subr.mxu0 %v153
    %860 = vmatpush1.msra.mxu0 %v152
    %861 = vmatprep.subr.mxu0 %v157
    %862 = vmatpush1.msra.mxu0 %v156
    %863 = vmatprep.subr.mxu0 %v161
    %864 = vmatpush1.msra.mxu0 %v160
    %865 = vmatprep.subr.mxu0 %v165
    %866 = vmatpush1.msra.mxu0 %v164
    %867 = vmatprep.subr.mxu0 %v169
    %868 = vmatpush1.msra.mxu0 %v168
    %869 = vmatprep.subr.mxu0 %v173
    %870 = vmatpush1.msra.mxu0 %v172
    %871 = vmatprep.subr.mxu0 %v177
    %872 = vmatpush1.msra.mxu0 %v176
    %873 = vmatprep.subr.mxu0 %v181
    %874 = vmatpush1.msra.mxu0 %v180
    %875 = vmatprep.subr.mxu0 %v185
    %876 = vmatpush1.msra.mxu0 %v184
    %877 = vmatprep.subr.mxu0 %v189
    %878 = vmatpush1.msra.mxu0 %v188
    %879 = vmatprep.subr.mxu0 %v193
    %880 = vmatpush1.msra.mxu0 %v192
    %881 = vmatprep.subr.mxu0 %v197
    %882 = vmatpush1.msra.mxu0 %v196
    %883 = vmatprep.subr.mxu0 %v201
    %884 = vmatpush1.msra.mxu0 %v200
    %885 = vmatprep.subr.mxu0 %v205
    %886 = vmatpush1.msra.mxu0 %v204
    %887 = vmatprep.subr.mxu0 %v209
    %888 = vmatpush1.msra.mxu0 %v208
    %889 = vmatprep.subr.mxu0 0.0
    %890 = vmatpush1.msra.mxu0 0.0
    %891 = vmatprep.subr.mxu0 0.0
    %892 = vmatpush1.msra.mxu0 0.0
    %893 = vmatprep.subr.mxu0 0.0
    %894 = vmatpush1.msra.mxu0 0.0
    %895 = vmatprep.subr.mxu0 0.0
    %896 = vmatpush1.msra.mxu0 0.0
    %897 = vmatprep.subr.mxu0 0.0
    %898 = vmatpush1.msra.mxu0 0.0
    %899 = vmatprep.subr.mxu0 0.0
    %900 = vmatpush1.msra.mxu0 0.0
    %901 = vmatprep.subr.mxu0 0.0
    %902 = vmatpush1.msra.mxu0 0.0
    %903 = vmatprep.subr.mxu0 0.0
    %904 = vmatpush1.msra.mxu0 0.0
    %905 = vmatprep.subr.mxu0 0.0
    %906 = vmatpush1.msra.mxu0 0.0
    %907 = vmatprep.subr.mxu0 0.0
    %908 = vmatpush1.msra.mxu0 0.0
    %909 = vmatprep.subr.mxu0 0.0
    %910 = vmatpush1.msra.mxu0 0.0
    %911 = vmatprep.subr.mxu0 0.0
    %912 = vmatpush1.msra.mxu0 0.0
    %913 = vmatprep.subr.mxu0 0.0
    %914 = vmatpush1.msra.mxu0 0.0
    %915 = vmatprep.subr.mxu0 0.0
    %916 = vmatpush1.msra.mxu0 0.0
    %917 = vmatprep.subr.mxu0 0.0
    %918 = vmatpush1.msra.mxu0 0.0
    %919 = vmatprep.subr.mxu0 0.0
    %920 = vmatpush1.msra.mxu0 0.0
    %921 = vmatprep.mubr.f32.mxu0 0.0
    %922 = vmatmul.mubr.f32.gmra.mrb[0].mxu0 %v849
    %v923 = vpop.f32.mrb[0].mxu0
    %v924 = vadd.f32 0.0, %v923
    %v925 = vpop.f32.mrb[0].mxu0
    %v926 = vadd.f32 0.0, %v925
    %927 = vdwg.mxu0
    %928 = vmatprep.subr.mxu0 %v151
    %929 = vmatpush1.msra.mxu0 %v150
    %930 = vmatprep.subr.mxu0 %v155
    %931 = vmatpush1.msra.mxu0 %v154
    %932 = vmatprep.subr.mxu0 %v159
    %933 = vmatpush1.msra.mxu0 %v158
    %934 = vmatprep.subr.mxu0 %v163
    %935 = vmatpush1.msra.mxu0 %v162
    %936 = vmatprep.subr.mxu0 %v167
    %937 = vmatpush1.msra.mxu0 %v166
    %938 = vmatprep.subr.mxu0 %v171
    %939 = vmatpush1.msra.mxu0 %v170
    %940 = vmatprep.subr.mxu0 %v175
    %941 = vmatpush1.msra.mxu0 %v174
    %942 = vmatprep.subr.mxu0 %v179
    %943 = vmatpush1.msra.mxu0 %v178
    %944 = vmatprep.subr.mxu0 %v183
    %945 = vmatpush1.msra.mxu0 %v182
    %946 = vmatprep.subr.mxu0 %v187
    %947 = vmatpush1.msra.mxu0 %v186
    %948 = vmatprep.subr.mxu0 %v191
    %949 = vmatpush1.msra.mxu0 %v190
    %950 = vmatprep.subr.mxu0 %v195
    %951 = vmatpush1.msra.mxu0 %v194
    %952 = vmatprep.subr.mxu0 %v199
    %953 = vmatpush1.msra.mxu0 %v198
    %954 = vmatprep.subr.mxu0 %v203
    %955 = vmatpush1.msra.mxu0 %v202
    %956 = vmatprep.subr.mxu0 %v207
    %957 = vmatpush1.msra.mxu0 %v206
    %958 = vmatprep.subr.mxu0 %v211
    %959 = vmatpush1.msra.mxu0 %v210
    %960 = vmatprep.subr.mxu0 0.0
    %961 = vmatpush1.msra.mxu0 0.0
    %962 = vmatprep.subr.mxu0 0.0
    %963 = vmatpush1.msra.mxu0 0.0
    %964 = vmatprep.subr.mxu0 0.0
    %965 = vmatpush1.msra.mxu0 0.0
    %966 = vmatprep.subr.mxu0 0.0
    %967 = vmatpush1.msra.mxu0 0.0
    %968 = vmatprep.subr.mxu0 0.0
    %969 = vmatpush1.msra.mxu0 0.0
    %970 = vmatprep.subr.mxu0 0.0
    %971 = vmatpush1.msra.mxu0 0.0
    %972 = vmatprep.subr.mxu0 0.0
    %973 = vmatpush1.msra.mxu0 0.0
    %974 = vmatprep.subr.mxu0 0.0
    %975 = vmatpush1.msra.mxu0 0.0
    %976 = vmatprep.subr.mxu0 0.0
    %977 = vmatpush1.msra.mxu0 0.0
    %978 = vmatprep.subr.mxu0 0.0
    %979 = vmatpush1.msra.mxu0 0.0
    %980 = vmatprep.subr.mxu0 0.0
    %981 = vmatpush1.msra.mxu0 0.0
    %982 = vmatprep.subr.mxu0 0.0
    %983 = vmatpush1.msra.mxu0 0.0
    %984 = vmatprep.subr.mxu0 0.0
    %985 = vmatpush1.msra.mxu0 0.0
    %986 = vmatprep.subr.mxu0 0.0
    %987 = vmatpush1.msra.mxu0 0.0
    %988 = vmatprep.subr.mxu0 0.0
    %989 = vmatpush1.msra.mxu0 0.0
    %990 = vmatprep.subr.mxu0 0.0
    %991 = vmatpush1.msra.mxu0 0.0
    %992 = vmatprep.mubr.f32.mxu0 0.0
    %993 = vmatmul.mubr.f32.gmra.mrb[0].mxu0 %v849
    %v994 = vpop.f32.mrb[0].mxu0
    %v995 = vadd.f32 0.0, %v994
    %v996 = vpop.f32.mrb[0].mxu0
    %v997 = vadd.f32 0.0, %v996
    %998 = vdwg.mxu0
    %v999 = vadd.f32 %v853, %v924
    %v1000 = vadd.f32 %v854, %v926
    %v1001 = vadd.f32 %v855, %v995
    %v1002 = vadd.f32 %v856, %v997
    %v1003 = vxor.u32 %v999, 2147483648
    %v1004 = vmul.f32 %v1003, 1.442695
    %v1005 = vpow.pop %v1004
    %v1006 = vadd.f32 %v1005, 1.0
    %v1007 = vrcp.pop %v1006
    %v1008 = vmul.f32 1.0, %v1007
    %v1009 = vxor.u32 %v1000, 2147483648
    %v1010 = vmul.f32 %v1009, 1.442695
    %v1011 = vpow.pop %v1010
    %v1012 = vadd.f32 %v1011, 1.0
    %v1013 = vrcp.pop %v1012
    %v1014 = vmul.f32 1.0, %v1013
    %v1015 = vtanh.pop %v1001
    %v1016 = vxor.u32 %v1002, 2147483648
    %v1017 = vmul.f32 %v1016, 1.442695
    %v1018 = vpow.pop %v1017
    %v1019 = vadd.f32 %v1018, 1.0
    %v1020 = vrcp.pop %v1019
    %v1021 = vmul.f32 1.0, %v1020
    %v1022 = vmul.f32 %v1014, %v847
    %v1023 = vmul.f32 %v1008, %v1015
    %v1024 = vadd.f32 %v1022, %v1023
    %v1025 = vtanh.pop %v1024
    %v1026 = vmul.f32 %v1021, %v1025
    %s1027 = scalar_lea.vmem [#allocation2], 16
    %1028 = vst [vmem:[%s1027] sm:$0xff] %v1026
    %s1029 = scalar_lea.vmem [#allocation3], 96
    %v1030 = vld [vmem:[%s1029] sm:$0xff]
    %v1031 = vld [vmem:[%s1029 + $0x8] sm:$0xff]
    %v1032 = vld [vmem:[%s1029 + $0x10] sm:$0xff]
    %v1033 = vld [vmem:[%s1029 + $0x18] sm:$0xff]
    %1034 = vmatprep.subr.mxu0 %v149
    %1035 = vmatpush1.msra.mxu0 %v148
    %1036 = vmatprep.subr.mxu0 %v153
    %1037 = vmatpush1.msra.mxu0 %v152
    %1038 = vmatprep.subr.mxu0 %v157
    %1039 = vmatpush1.msra.mxu0 %v156
    %1040 = vmatprep.subr.mxu0 %v161
    %1041 = vmatpush1.msra.mxu0 %v160
    %1042 = vmatprep.subr.mxu0 %v165
    %1043 = vmatpush1.msra.mxu0 %v164
    %1044 = vmatprep.subr.mxu0 %v169
    %1045 = vmatpush1.msra.mxu0 %v168
    %1046 = vmatprep.subr.mxu0 %v173
    %1047 = vmatpush1.msra.mxu0 %v172
    %1048 = vmatprep.subr.mxu0 %v177
    %1049 = vmatpush1.msra.mxu0 %v176
    %1050 = vmatprep.subr.mxu0 %v181
    %1051 = vmatpush1.msra.mxu0 %v180
    %1052 = vmatprep.subr.mxu0 %v185
    %1053 = vmatpush1.msra.mxu0 %v184
    %1054 = vmatprep.subr.mxu0 %v189
    %1055 = vmatpush1.msra.mxu0 %v188
    %1056 = vmatprep.subr.mxu0 %v193
    %1057 = vmatpush1.msra.mxu0 %v192
    %1058 = vmatprep.subr.mxu0 %v197
    %1059 = vmatpush1.msra.mxu0 %v196
    %1060 = vmatprep.subr.mxu0 %v201
    %1061 = vmatpush1.msra.mxu0 %v200
    %1062 = vmatprep.subr.mxu0 %v205
    %1063 = vmatpush1.msra.mxu0 %v204
    %1064 = vmatprep.subr.mxu0 %v209
    %1065 = vmatpush1.msra.mxu0 %v208
    %1066 = vmatprep.subr.mxu0 0.0
    %1067 = vmatpush1.msra.mxu0 0.0
    %1068 = vmatprep.subr.mxu0 0.0
    %1069 = vmatpush1.msra.mxu0 0.0
    %1070 = vmatprep.subr.mxu0 0.0
    %1071 = vmatpush1.msra.mxu0 0.0
    %1072 = vmatprep.subr.mxu0 0.0
    %1073 = vmatpush1.msra.mxu0 0.0
    %1074 = vmatprep.subr.mxu0 0.0
    %1075 = vmatpush1.msra.mxu0 0.0
    %1076 = vmatprep.subr.mxu0 0.0
    %1077 = vmatpush1.msra.mxu0 0.0
    %1078 = vmatprep.subr.mxu0 0.0
    %1079 = vmatpush1.msra.mxu0 0.0
    %1080 = vmatprep.subr.mxu0 0.0
    %1081 = vmatpush1.msra.mxu0 0.0
    %1082 = vmatprep.subr.mxu0 0.0
    %1083 = vmatpush1.msra.mxu0 0.0
    %1084 = vmatprep.subr.mxu0 0.0
    %1085 = vmatpush1.msra.mxu0 0.0
    %1086 = vmatprep.subr.mxu0 0.0
    %1087 = vmatpush1.msra.mxu0 0.0
    %1088 = vmatprep.subr.mxu0 0.0
    %1089 = vmatpush1.msra.mxu0 0.0
    %1090 = vmatprep.subr.mxu0 0.0
    %1091 = vmatpush1.msra.mxu0 0.0
    %1092 = vmatprep.subr.mxu0 0.0
    %1093 = vmatpush1.msra.mxu0 0.0
    %1094 = vmatprep.subr.mxu0 0.0
    %1095 = vmatpush1.msra.mxu0 0.0
    %1096 = vmatprep.subr.mxu0 0.0
    %1097 = vmatpush1.msra.mxu0 0.0
    %1098 = vmatprep.mubr.f32.mxu0 0.0
    %1099 = vmatmul.mubr.f32.gmra.mrb[0].mxu0 %v1026
    %v1100 = vpop.f32.mrb[0].mxu0
    %v1101 = vadd.f32 0.0, %v1100
    %v1102 = vpop.f32.mrb[0].mxu0
    %v1103 = vadd.f32 0.0, %v1102
    %1104 = vdwg.mxu0
    %1105 = vmatprep.subr.mxu0 %v151
    %1106 = vmatpush1.msra.mxu0 %v150
    %1107 = vmatprep.subr.mxu0 %v155
    %1108 = vmatpush1.msra.mxu0 %v154
    %1109 = vmatprep.subr.mxu0 %v159
    %1110 = vmatpush1.msra.mxu0 %v158
    %1111 = vmatprep.subr.mxu0 %v163
    %1112 = vmatpush1.msra.mxu0 %v162
    %1113 = vmatprep.subr.mxu0 %v167
    %1114 = vmatpush1.msra.mxu0 %v166
    %1115 = vmatprep.subr.mxu0 %v171
    %1116 = vmatpush1.msra.mxu0 %v170
    %1117 = vmatprep.subr.mxu0 %v175
    %1118 = vmatpush1.msra.mxu0 %v174
    %1119 = vmatprep.subr.mxu0 %v179
    %1120 = vmatpush1.msra.mxu0 %v178
    %1121 = vmatprep.subr.mxu0 %v183
    %1122 = vmatpush1.msra.mxu0 %v182
    %1123 = vmatprep.subr.mxu0 %v187
    %1124 = vmatpush1.msra.mxu0 %v186
    %1125 = vmatprep.subr.mxu0 %v191
    %1126 = vmatpush1.msra.mxu0 %v190
    %1127 = vmatprep.subr.mxu0 %v195
    %1128 = vmatpush1.msra.mxu0 %v194
    %1129 = vmatprep.subr.mxu0 %v199
    %1130 = vmatpush1.msra.mxu0 %v198
    %1131 = vmatprep.subr.mxu0 %v203
    %1132 = vmatpush1.msra.mxu0 %v202
    %1133 = vmatprep.subr.mxu0 %v207
    %1134 = vmatpush1.msra.mxu0 %v206
    %1135 = vmatprep.subr.mxu0 %v211
    %1136 = vmatpush1.msra.mxu0 %v210
    %1137 = vmatprep.subr.mxu0 0.0
    %1138 = vmatpush1.msra.mxu0 0.0
    %1139 = vmatprep.subr.mxu0 0.0
    %1140 = vmatpush1.msra.mxu0 0.0
    %1141 = vmatprep.subr.mxu0 0.0
    %1142 = vmatpush1.msra.mxu0 0.0
    %1143 = vmatprep.subr.mxu0 0.0
    %1144 = vmatpush1.msra.mxu0 0.0
    %1145 = vmatprep.subr.mxu0 0.0
    %1146 = vmatpush1.msra.mxu0 0.0
    %1147 = vmatprep.subr.mxu0 0.0
    %1148 = vmatpush1.msra.mxu0 0.0
    %1149 = vmatprep.subr.mxu0 0.0
    %1150 = vmatpush1.msra.mxu0 0.0
    %1151 = vmatprep.subr.mxu0 0.0
    %1152 = vmatpush1.msra.mxu0 0.0
    %1153 = vmatprep.subr.mxu0 0.0
    %1154 = vmatpush1.msra.mxu0 0.0
    %1155 = vmatprep.subr.mxu0 0.0
    %1156 = vmatpush1.msra.mxu0 0.0
    %1157 = vmatprep.subr.mxu0 0.0
    %1158 = vmatpush1.msra.mxu0 0.0
    %1159 = vmatprep.subr.mxu0 0.0
    %1160 = vmatpush1.msra.mxu0 0.0
    %1161 = vmatprep.subr.mxu0 0.0
    %1162 = vmatpush1.msra.mxu0 0.0
    %1163 = vmatprep.subr.mxu0 0.0
    %1164 = vmatpush1.msra.mxu0 0.0
    %1165 = vmatprep.subr.mxu0 0.0
    %1166 = vmatpush1.msra.mxu0 0.0
    %1167 = vmatprep.subr.mxu0 0.0
    %1168 = vmatpush1.msra.mxu0 0.0
    %1169 = vmatprep.mubr.f32.mxu0 0.0
    %1170 = vmatmul.mubr.f32.gmra.mrb[0].mxu0 %v1026
    %v1171 = vpop.f32.mrb[0].mxu0
    %v1172 = vadd.f32 0.0, %v1171
    %v1173 = vpop.f32.mrb[0].mxu0
    %v1174 = vadd.f32 0.0, %v1173
    %1175 = vdwg.mxu0
    %v1176 = vadd.f32 %v1030, %v1101
    %v1177 = vadd.f32 %v1031, %v1103
    %v1178 = vadd.f32 %v1032, %v1172
    %v1179 = vadd.f32 %v1033, %v1174
    %v1180 = vxor.u32 %v1176, 2147483648
    %v1181 = vmul.f32 %v1180, 1.442695
    %v1182 = vpow.pop %v1181
    %v1183 = vadd.f32 %v1182, 1.0
    %v1184 = vrcp.pop %v1183
    %v1185 = vmul.f32 1.0, %v1184
    %v1186 = vxor.u32 %v1177, 2147483648
    %v1187 = vmul.f32 %v1186, 1.442695
    %v1188 = vpow.pop %v1187
    %v1189 = vadd.f32 %v1188, 1.0
    %v1190 = vrcp.pop %v1189
    %v1191 = vmul.f32 1.0, %v1190
    %v1192 = vtanh.pop %v1178
    %v1193 = vxor.u32 %v1179, 2147483648
    %v1194 = vmul.f32 %v1193, 1.442695
    %v1195 = vpow.pop %v1194
    %v1196 = vadd.f32 %v1195, 1.0
    %v1197 = vrcp.pop %v1196
    %v1198 = vmul.f32 1.0, %v1197
    %v1199 = vmul.f32 %v1191, %v1024
    %v1200 = vmul.f32 %v1185, %v1192
    %v1201 = vadd.f32 %v1199, %v1200
    %v1202 = vtanh.pop %v1201
    %v1203 = vmul.f32 %v1198, %v1202
    %s1204 = scalar_lea.vmem [#allocation2], 24
    %1205 = vst [vmem:[%s1204] sm:$0xff] %v1203
    %s1206 = scalar_lea.vmem [#allocation3], 128
    %v1207 = vld [vmem:[%s1206] sm:$0xff]
    %v1208 = vld [vmem:[%s1206 + $0x8] sm:$0xff]
    %v1209 = vld [vmem:[%s1206 + $0x10] sm:$0xff]
    %v1210 = vld [vmem:[%s1206 + $0x18] sm:$0xff]
    %1211 = vmatprep.subr.mxu0 %v149
    %1212 = vmatpush1.msra.mxu0 %v148
    %1213 = vmatprep.subr.mxu0 %v153
    %1214 = vmatpush1.msra.mxu0 %v152
    %1215 = vmatprep.subr.mxu0 %v157
    %1216 = vmatpush1.msra.mxu0 %v156
    %1217 = vmatprep.subr.mxu0 %v161
    %1218 = vmatpush1.msra.mxu0 %v160
    %1219 = vmatprep.subr.mxu0 %v165
    %1220 = vmatpush1.msra.mxu0 %v164
    %1221 = vmatprep.subr.mxu0 %v169
    %1222 = vmatpush1.msra.mxu0 %v168
    %1223 = vmatprep.subr.mxu0 %v173
    %1224 = vmatpush1.msra.mxu0 %v172
    %1225 = vmatprep.subr.mxu0 %v177
    %1226 = vmatpush1.msra.mxu0 %v176
    %1227 = vmatprep.subr.mxu0 %v181
    %1228 = vmatpush1.msra.mxu0 %v180
    %1229 = vmatprep.subr.mxu0 %v185
    %1230 = vmatpush1.msra.mxu0 %v184
    %1231 = vmatprep.subr.mxu0 %v189
    %1232 = vmatpush1.msra.mxu0 %v188
    %1233 = vmatprep.subr.mxu0 %v193
    %1234 = vmatpush1.msra.mxu0 %v192
    %1235 = vmatprep.subr.mxu0 %v197
    %1236 = vmatpush1.msra.mxu0 %v196
    %1237 = vmatprep.subr.mxu0 %v201
    %1238 = vmatpush1.msra.mxu0 %v200
    %1239 = vmatprep.subr.mxu0 %v205
    %1240 = vmatpush1.msra.mxu0 %v204
    %1241 = vmatprep.subr.mxu0 %v209
    %1242 = vmatpush1.msra.mxu0 %v208
    %1243 = vmatprep.subr.mxu0 0.0
    %1244 = vmatpush1.msra.mxu0 0.0
    %1245 = vmatprep.subr.mxu0 0.0
    %1246 = vmatpush1.msra.mxu0 0.0
    %1247 = vmatprep.subr.mxu0 0.0
    %1248 = vmatpush1.msra.mxu0 0.0
    %1249 = vmatprep.subr.mxu0 0.0
    %1250 = vmatpush1.msra.mxu0 0.0
    %1251 = vmatprep.subr.mxu0 0.0
    %1252 = vmatpush1.msra.mxu0 0.0
    %1253 = vmatprep.subr.mxu0 0.0
    %1254 = vmatpush1.msra.mxu0 0.0
    %1255 = vmatprep.subr.mxu0 0.0
    %1256 = vmatpush1.msra.mxu0 0.0
    %1257 = vmatprep.subr.mxu0 0.0
    %1258 = vmatpush1.msra.mxu0 0.0
    %1259 = vmatprep.subr.mxu0 0.0
    %1260 = vmatpush1.msra.mxu0 0.0
    %1261 = vmatprep.subr.mxu0 0.0
    %1262 = vmatpush1.msra.mxu0 0.0
    %1263 = vmatprep.subr.mxu0 0.0
    %1264 = vmatpush1.msra.mxu0 0.0
    %1265 = vmatprep.subr.mxu0 0.0
    %1266 = vmatpush1.msra.mxu0 0.0
    %1267 = vmatprep.subr.mxu0 0.0
    %1268 = vmatpush1.msra.mxu0 0.0
    %1269 = vmatprep.subr.mxu0 0.0
    %1270 = vmatpush1.msra.mxu0 0.0
    %1271 = vmatprep.subr.mxu0 0.0
    %1272 = vmatpush1.msra.mxu0 0.0
    %1273 = vmatprep.subr.mxu0 0.0
    %1274 = vmatpush1.msra.mxu0 0.0
    %1275 = vmatprep.mubr.f32.mxu0 0.0
    %1276 = vmatmul.mubr.f32.gmra.mrb[0].mxu0 %v1203
    %v1277 = vpop.f32.mrb[0].mxu0
    %v1278 = vadd.f32 0.0, %v1277
    %v1279 = vpop.f32.mrb[0].mxu0
    %v1280 = vadd.f32 0.0, %v1279
    %1281 = vdwg.mxu0
    %1282 = vmatprep.subr.mxu0 %v151
    %1283 = vmatpush1.msra.mxu0 %v150
    %1284 = vmatprep.subr.mxu0 %v155
    %1285 = vmatpush1.msra.mxu0 %v154
    %1286 = vmatprep.subr.mxu0 %v159
    %1287 = vmatpush1.msra.mxu0 %v158
    %1288 = vmatprep.subr.mxu0 %v163
    %1289 = vmatpush1.msra.mxu0 %v162
    %1290 = vmatprep.subr.mxu0 %v167
    %1291 = vmatpush1.msra.mxu0 %v166
    %1292 = vmatprep.subr.mxu0 %v171
    %1293 = vmatpush1.msra.mxu0 %v170
    %1294 = vmatprep.subr.mxu0 %v175
    %1295 = vmatpush1.msra.mxu0 %v174
    %1296 = vmatprep.subr.mxu0 %v179
    %1297 = vmatpush1.msra.mxu0 %v178
    %1298 = vmatprep.subr.mxu0 %v183
    %1299 = vmatpush1.msra.mxu0 %v182
    %1300 = vmatprep.subr.mxu0 %v187
    %1301 = vmatpush1.msra.mxu0 %v186
    %1302 = vmatprep.subr.mxu0 %v191
    %1303 = vmatpush1.msra.mxu0 %v190
    %1304 = vmatprep.subr.mxu0 %v195
    %1305 = vmatpush1.msra.mxu0 %v194
    %1306 = vmatprep.subr.mxu0 %v199
    %1307 = vmatpush1.msra.mxu0 %v198
    %1308 = vmatprep.subr.mxu0 %v203
    %1309 = vmatpush1.msra.mxu0 %v202
    %1310 = vmatprep.subr.mxu0 %v207
    %1311 = vmatpush1.msra.mxu0 %v206
    %1312 = vmatprep.subr.mxu0 %v211
    %1313 = vmatpush1.msra.mxu0 %v210
    %1314 = vmatprep.subr.mxu0 0.0
    %1315 = vmatpush1.msra.mxu0 0.0
    %1316 = vmatprep.subr.mxu0 0.0
    %1317 = vmatpush1.msra.mxu0 0.0
    %1318 = vmatprep.subr.mxu0 0.0
    %1319 = vmatpush1.msra.mxu0 0.0
    %1320 = vmatprep.subr.mxu0 0.0
    %1321 = vmatpush1.msra.mxu0 0.0
    %1322 = vmatprep.subr.mxu0 0.0
    %1323 = vmatpush1.msra.mxu0 0.0
    %1324 = vmatprep.subr.mxu0 0.0
    %1325 = vmatpush1.msra.mxu0 0.0
    %1326 = vmatprep.subr.mxu0 0.0
    %1327 = vmatpush1.msra.mxu0 0.0
    %1328 = vmatprep.subr.mxu0 0.0
    %1329 = vmatpush1.msra.mxu0 0.0
    %1330 = vmatprep.subr.mxu0 0.0
    %1331 = vmatpush1.msra.mxu0 0.0
    %1332 = vmatprep.subr.mxu0 0.0
    %1333 = vmatpush1.msra.mxu0 0.0
    %1334 = vmatprep.subr.mxu0 0.0
    %1335 = vmatpush1.msra.mxu0 0.0
    %1336 = vmatprep.subr.mxu0 0.0
    %1337 = vmatpush1.msra.mxu0 0.0
    %1338 = vmatprep.subr.mxu0 0.0
    %1339 = vmatpush1.msra.mxu0 0.0
    %1340 = vmatprep.subr.mxu0 0.0
    %1341 = vmatpush1.msra.mxu0 0.0
    %1342 = vmatprep.subr.mxu0 0.0
    %1343 = vmatpush1.msra.mxu0 0.0
    %1344 = vmatprep.subr.mxu0 0.0
    %1345 = vmatpush1.msra.mxu0 0.0
    %1346 = vmatprep.mubr.f32.mxu0 0.0
    %1347 = vmatmul.mubr.f32.gmra.mrb[0].mxu0 %v1203
    %v1348 = vpop.f32.mrb[0].mxu0
    %v1349 = vadd.f32 0.0, %v1348
    %v1350 = vpop.f32.mrb[0].mxu0
    %v1351 = vadd.f32 0.0, %v1350
    %1352 = vdwg.mxu0
    %v1353 = vadd.f32 %v1207, %v1278
    %v1354 = vadd.f32 %v1208, %v1280
    %v1355 = vadd.f32 %v1209, %v1349
    %v1356 = vadd.f32 %v1210, %v1351
    %v1357 = vxor.u32 %v1353, 2147483648
    %v1358 = vmul.f32 %v1357, 1.442695
    %v1359 = vpow.pop %v1358
    %v1360 = vadd.f32 %v1359, 1.0
    %v1361 = vrcp.pop %v1360
    %v1362 = vmul.f32 1.0, %v1361
    %v1363 = vxor.u32 %v1354, 2147483648
    %v1364 = vmul.f32 %v1363, 1.442695
    %v1365 = vpow.pop %v1364
    %v1366 = vadd.f32 %v1365, 1.0
    %v1367 = vrcp.pop %v1366
    %v1368 = vmul.f32 1.0, %v1367
    %v1369 = vtanh.pop %v1355
    %v1370 = vxor.u32 %v1356, 2147483648
    %v1371 = vmul.f32 %v1370, 1.442695
    %v1372 = vpow.pop %v1371
    %v1373 = vadd.f32 %v1372, 1.0
    %v1374 = vrcp.pop %v1373
    %v1375 = vmul.f32 1.0, %v1374
    %v1376 = vmul.f32 %v1368, %v1201
    %v1377 = vmul.f32 %v1362, %v1369
    %v1378 = vadd.f32 %v1376, %v1377
    %v1379 = vtanh.pop %v1378
    %v1380 = vmul.f32 %v1375, %v1379
    %s1381 = scalar_lea.vmem [#allocation2], 32
    %1382 = vst [vmem:[%s1381] sm:$0xff] %v1380
    %s1383 = scalar_lea.vmem [#allocation3], 160
    %v1384 = vld [vmem:[%s1383] sm:$0xff]
    %v1385 = vld [vmem:[%s1383 + $0x8] sm:$0xff]
    %v1386 = vld [vmem:[%s1383 + $0x10] sm:$0xff]
    %v1387 = vld [vmem:[%s1383 + $0x18] sm:$0xff]
    %1388 = vmatprep.subr.mxu0 %v149
    %1389 = vmatpush1.msra.mxu0 %v148
    %1390 = vmatprep.subr.mxu0 %v153
    %1391 = vmatpush1.msra.mxu0 %v152
    %1392 = vmatprep.subr.mxu0 %v157
    %1393 = vmatpush1.msra.mxu0 %v156
    %1394 = vmatprep.subr.mxu0 %v161
    %1395 = vmatpush1.msra.mxu0 %v160
    %1396 = vmatprep.subr.mxu0 %v165
    %1397 = vmatpush1.msra.mxu0 %v164
    %1398 = vmatprep.subr.mxu0 %v169
    %1399 = vmatpush1.msra.mxu0 %v168
    %1400 = vmatprep.subr.mxu0 %v173
    %1401 = vmatpush1.msra.mxu0 %v172
    %1402 = vmatprep.subr.mxu0 %v177
    %1403 = vmatpush1.msra.mxu0 %v176
    %1404 = vmatprep.subr.mxu0 %v181
    %1405 = vmatpush1.msra.mxu0 %v180
    %1406 = vmatprep.subr.mxu0 %v185
    %1407 = vmatpush1.msra.mxu0 %v184
    %1408 = vmatprep.subr.mxu0 %v189
    %1409 = vmatpush1.msra.mxu0 %v188
    %1410 = vmatprep.subr.mxu0 %v193
    %1411 = vmatpush1.msra.mxu0 %v192
    %1412 = vmatprep.subr.mxu0 %v197
    %1413 = vmatpush1.msra.mxu0 %v196
    %1414 = vmatprep.subr.mxu0 %v201
    %1415 = vmatpush1.msra.mxu0 %v200
    %1416 = vmatprep.subr.mxu0 %v205
    %1417 = vmatpush1.msra.mxu0 %v204
    %1418 = vmatprep.subr.mxu0 %v209
    %1419 = vmatpush1.msra.mxu0 %v208
    %1420 = vmatprep.subr.mxu0 0.0
    %1421 = vmatpush1.msra.mxu0 0.0
    %1422 = vmatprep.subr.mxu0 0.0
    %1423 = vmatpush1.msra.mxu0 0.0
    %1424 = vmatprep.subr.mxu0 0.0
    %1425 = vmatpush1.msra.mxu0 0.0
    %1426 = vmatprep.subr.mxu0 0.0
    %1427 = vmatpush1.msra.mxu0 0.0
    %1428 = vmatprep.subr.mxu0 0.0
    %1429 = vmatpush1.msra.mxu0 0.0
    %1430 = vmatprep.subr.mxu0 0.0
    %1431 = vmatpush1.msra.mxu0 0.0
    %1432 = vmatprep.subr.mxu0 0.0
    %1433 = vmatpush1.msra.mxu0 0.0
    %1434 = vmatprep.subr.mxu0 0.0
    %1435 = vmatpush1.msra.mxu0 0.0
    %1436 = vmatprep.subr.mxu0 0.0
    %1437 = vmatpush1.msra.mxu0 0.0
    %1438 = vmatprep.subr.mxu0 0.0
    %1439 = vmatpush1.msra.mxu0 0.0
    %1440 = vmatprep.subr.mxu0 0.0
    %1441 = vmatpush1.msra.mxu0 0.0
    %1442 = vmatprep.subr.mxu0 0.0
    %1443 = vmatpush1.msra.mxu0 0.0
    %1444 = vmatprep.subr.mxu0 0.0
    %1445 = vmatpush1.msra.mxu0 0.0
    %1446 = vmatprep.subr.mxu0 0.0
    %1447 = vmatpush1.msra.mxu0 0.0
    %1448 = vmatprep.subr.mxu0 0.0
    %1449 = vmatpush1.msra.mxu0 0.0
    %1450 = vmatprep.subr.mxu0 0.0
    %1451 = vmatpush1.msra.mxu0 0.0
    %1452 = vmatprep.mubr.f32.mxu0 0.0
    %1453 = vmatmul.mubr.f32.gmra.mrb[0].mxu0 %v1380
    %v1454 = vpop.f32.mrb[0].mxu0
    %v1455 = vadd.f32 0.0, %v1454
    %v1456 = vpop.f32.mrb[0].mxu0
    %v1457 = vadd.f32 0.0, %v1456
    %1458 = vdwg.mxu0
    %1459 = vmatprep.subr.mxu0 %v151
    %1460 = vmatpush1.msra.mxu0 %v150
    %1461 = vmatprep.subr.mxu0 %v155
    %1462 = vmatpush1.msra.mxu0 %v154
    %1463 = vmatprep.subr.mxu0 %v159
    %1464 = vmatpush1.msra.mxu0 %v158
    %1465 = vmatprep.subr.mxu0 %v163
    %1466 = vmatpush1.msra.mxu0 %v162
    %1467 = vmatprep.subr.mxu0 %v167
    %1468 = vmatpush1.msra.mxu0 %v166
    %1469 = vmatprep.subr.mxu0 %v171
    %1470 = vmatpush1.msra.mxu0 %v170
    %1471 = vmatprep.subr.mxu0 %v175
    %1472 = vmatpush1.msra.mxu0 %v174
    %1473 = vmatprep.subr.mxu0 %v179
    %1474 = vmatpush1.msra.mxu0 %v178
    %1475 = vmatprep.subr.mxu0 %v183
    %1476 = vmatpush1.msra.mxu0 %v182
    %1477 = vmatprep.subr.mxu0 %v187
    %1478 = vmatpush1.msra.mxu0 %v186
    %1479 = vmatprep.subr.mxu0 %v191
    %1480 = vmatpush1.msra.mxu0 %v190
    %1481 = vmatprep.subr.mxu0 %v195
    %1482 = vmatpush1.msra.mxu0 %v194
    %1483 = vmatprep.subr.mxu0 %v199
    %1484 = vmatpush1.msra.mxu0 %v198
    %1485 = vmatprep.subr.mxu0 %v203
    %1486 = vmatpush1.msra.mxu0 %v202
    %1487 = vmatprep.subr.mxu0 %v207
    %1488 = vmatpush1.msra.mxu0 %v206
    %1489 = vmatprep.subr.mxu0 %v211
    %1490 = vmatpush1.msra.mxu0 %v210
    %1491 = vmatprep.subr.mxu0 0.0
    %1492 = vmatpush1.msra.mxu0 0.0
    %1493 = vmatprep.subr.mxu0 0.0
    %1494 = vmatpush1.msra.mxu0 0.0
    %1495 = vmatprep.subr.mxu0 0.0
    %1496 = vmatpush1.msra.mxu0 0.0
    %1497 = vmatprep.subr.mxu0 0.0
    %1498 = vmatpush1.msra.mxu0 0.0
    %1499 = vmatprep.subr.mxu0 0.0
    %1500 = vmatpush1.msra.mxu0 0.0
    %1501 = vmatprep.subr.mxu0 0.0
    %1502 = vmatpush1.msra.mxu0 0.0
    %1503 = vmatprep.subr.mxu0 0.0
    %1504 = vmatpush1.msra.mxu0 0.0
    %1505 = vmatprep.subr.mxu0 0.0
    %1506 = vmatpush1.msra.mxu0 0.0
    %1507 = vmatprep.subr.mxu0 0.0
    %1508 = vmatpush1.msra.mxu0 0.0
    %1509 = vmatprep.subr.mxu0 0.0
    %1510 = vmatpush1.msra.mxu0 0.0
    %1511 = vmatprep.subr.mxu0 0.0
    %1512 = vmatpush1.msra.mxu0 0.0
    %1513 = vmatprep.subr.mxu0 0.0
    %1514 = vmatpush1.msra.mxu0 0.0
    %1515 = vmatprep.subr.mxu0 0.0
    %1516 = vmatpush1.msra.mxu0 0.0
    %1517 = vmatprep.subr.mxu0 0.0
    %1518 = vmatpush1.msra.mxu0 0.0
    %1519 = vmatprep.subr.mxu0 0.0
    %1520 = vmatpush1.msra.mxu0 0.0
    %1521 = vmatprep.subr.mxu0 0.0
    %1522 = vmatpush1.msra.mxu0 0.0
    %1523 = vmatprep.mubr.f32.mxu0 0.0
    %1524 = vmatmul.mubr.f32.gmra.mrb[0].mxu0 %v1380
    %v1525 = vpop.f32.mrb[0].mxu0
    %v1526 = vadd.f32 0.0, %v1525
    %v1527 = vpop.f32.mrb[0].mxu0
    %v1528 = vadd.f32 0.0, %v1527
    %1529 = vdwg.mxu0
    %v1530 = vadd.f32 %v1384, %v1455
    %v1531 = vadd.f32 %v1385, %v1457
    %v1532 = vadd.f32 %v1386, %v1526
    %v1533 = vadd.f32 %v1387, %v1528
    %v1534 = vxor.u32 %v1530, 2147483648
    %v1535 = vmul.f32 %v1534, 1.442695
    %v1536 = vpow.pop %v1535
    %v1537 = vadd.f32 %v1536, 1.0
    %v1538 = vrcp.pop %v1537
    %v1539 = vmul.f32 1.0, %v1538
    %v1540 = vxor.u32 %v1531, 2147483648
    %v1541 = vmul.f32 %v1540, 1.442695
    %v1542 = vpow.pop %v1541
    %v1543 = vadd.f32 %v1542, 1.0
    %v1544 = vrcp.pop %v1543
    %v1545 = vmul.f32 1.0, %v1544
    %v1546 = vtanh.pop %v1532
    %v1547 = vxor.u32 %v1533, 2147483648
    %v1548 = vmul.f32 %v1547, 1.442695
    %v1549 = vpow.pop %v1548
    %v1550 = vadd.f32 %v1549, 1.0
    %v1551 = vrcp.pop %v1550
    %v1552 = vmul.f32 1.0, %v1551
    %v1553 = vmul.f32 %v1545, %v1378
    %v1554 = vmul.f32 %v1539, %v1546
    %v1555 = vadd.f32 %v1553, %v1554
    %v1556 = vtanh.pop %v1555
    %v1557 = vmul.f32 %v1552, %v1556
    %s1558 = scalar_lea.vmem [#allocation2], 40
    %1559 = vst [vmem:[%s1558] sm:$0xff] %v1557
    %s1560 = scalar_lea.vmem [#allocation3], 192
    %v1561 = vld [vmem:[%s1560] sm:$0xff]
    %v1562 = vld [vmem:[%s1560 + $0x8] sm:$0xff]
    %v1563 = vld [vmem:[%s1560 + $0x10] sm:$0xff]
    %v1564 = vld [vmem:[%s1560 + $0x18] sm:$0xff]
    %1565 = vmatprep.subr.mxu0 %v149
    %1566 = vmatpush1.msra.mxu0 %v148
    %1567 = vmatprep.subr.mxu0 %v153
    %1568 = vmatpush1.msra.mxu0 %v152
    %1569 = vmatprep.subr.mxu0 %v157
    %1570 = vmatpush1.msra.mxu0 %v156
    %1571 = vmatprep.subr.mxu0 %v161
    %1572 = vmatpush1.msra.mxu0 %v160
    %1573 = vmatprep.subr.mxu0 %v165
    %1574 = vmatpush1.msra.mxu0 %v164
    %1575 = vmatprep.subr.mxu0 %v169
    %1576 = vmatpush1.msra.mxu0 %v168
    %1577 = vmatprep.subr.mxu0 %v173
    %1578 = vmatpush1.msra.mxu0 %v172
    %1579 = vmatprep.subr.mxu0 %v177
    %1580 = vmatpush1.msra.mxu0 %v176
    %1581 = vmatprep.subr.mxu0 %v181
    %1582 = vmatpush1.msra.mxu0 %v180
    %1583 = vmatprep.subr.mxu0 %v185
    %1584 = vmatpush1.msra.mxu0 %v184
    %1585 = vmatprep.subr.mxu0 %v189
    %1586 = vmatpush1.msra.mxu0 %v188
    %1587 = vmatprep.subr.mxu0 %v193
    %1588 = vmatpush1.msra.mxu0 %v192
    %1589 = vmatprep.subr.mxu0 %v197
    %1590 = vmatpush1.msra.mxu0 %v196
    %1591 = vmatprep.subr.mxu0 %v201
    %1592 = vmatpush1.msra.mxu0 %v200
    %1593 = vmatprep.subr.mxu0 %v205
    %1594 = vmatpush1.msra.mxu0 %v204
    %1595 = vmatprep.subr.mxu0 %v209
    %1596 = vmatpush1.msra.mxu0 %v208
    %1597 = vmatprep.subr.mxu0 0.0
    %1598 = vmatpush1.msra.mxu0 0.0
    %1599 = vmatprep.subr.mxu0 0.0
    %1600 = vmatpush1.msra.mxu0 0.0
    %1601 = vmatprep.subr.mxu0 0.0
    %1602 = vmatpush1.msra.mxu0 0.0
    %1603 = vmatprep.subr.mxu0 0.0
    %1604 = vmatpush1.msra.mxu0 0.0
    %1605 = vmatprep.subr.mxu0 0.0
    %1606 = vmatpush1.msra.mxu0 0.0
    %1607 = vmatprep.subr.mxu0 0.0
    %1608 = vmatpush1.msra.mxu0 0.0
    %1609 = vmatprep.subr.mxu0 0.0
    %1610 = vmatpush1.msra.mxu0 0.0
    %1611 = vmatprep.subr.mxu0 0.0
    %1612 = vmatpush1.msra.mxu0 0.0
    %1613 = vmatprep.subr.mxu0 0.0
    %1614 = vmatpush1.msra.mxu0 0.0
    %1615 = vmatprep.subr.mxu0 0.0
    %1616 = vmatpush1.msra.mxu0 0.0
    %1617 = vmatprep.subr.mxu0 0.0
    %1618 = vmatpush1.msra.mxu0 0.0
    %1619 = vmatprep.subr.mxu0 0.0
    %1620 = vmatpush1.msra.mxu0 0.0
    %1621 = vmatprep.subr.mxu0 0.0
    %1622 = vmatpush1.msra.mxu0 0.0
    %1623 = vmatprep.subr.mxu0 0.0
    %1624 = vmatpush1.msra.mxu0 0.0
    %1625 = vmatprep.subr.mxu0 0.0
    %1626 = vmatpush1.msra.mxu0 0.0
    %1627 = vmatprep.subr.mxu0 0.0
    %1628 = vmatpush1.msra.mxu0 0.0
    %1629 = vmatprep.mubr.f32.mxu0 0.0
    %1630 = vmatmul.mubr.f32.gmra.mrb[0].mxu0 %v1557
    %v1631 = vpop.f32.mrb[0].mxu0
    %v1632 = vadd.f32 0.0, %v1631
    %v1633 = vpop.f32.mrb[0].mxu0
    %v1634 = vadd.f32 0.0, %v1633
    %1635 = vdwg.mxu0
    %1636 = vmatprep.subr.mxu0 %v151
    %1637 = vmatpush1.msra.mxu0 %v150
    %1638 = vmatprep.subr.mxu0 %v155
    %1639 = vmatpush1.msra.mxu0 %v154
    %1640 = vmatprep.subr.mxu0 %v159
    %1641 = vmatpush1.msra.mxu0 %v158
    %1642 = vmatprep.subr.mxu0 %v163
    %1643 = vmatpush1.msra.mxu0 %v162
    %1644 = vmatprep.subr.mxu0 %v167
    %1645 = vmatpush1.msra.mxu0 %v166
    %1646 = vmatprep.subr.mxu0 %v171
    %1647 = vmatpush1.msra.mxu0 %v170
    %1648 = vmatprep.subr.mxu0 %v175
    %1649 = vmatpush1.msra.mxu0 %v174
    %1650 = vmatprep.subr.mxu0 %v179
    %1651 = vmatpush1.msra.mxu0 %v178
    %1652 = vmatprep.subr.mxu0 %v183
    %1653 = vmatpush1.msra.mxu0 %v182
    %1654 = vmatprep.subr.mxu0 %v187
    %1655 = vmatpush1.msra.mxu0 %v186
    %1656 = vmatprep.subr.mxu0 %v191
    %1657 = vmatpush1.msra.mxu0 %v190
    %1658 = vmatprep.subr.mxu0 %v195
    %1659 = vmatpush1.msra.mxu0 %v194
    %1660 = vmatprep.subr.mxu0 %v199
    %1661 = vmatpush1.msra.mxu0 %v198
    %1662 = vmatprep.subr.mxu0 %v203
    %1663 = vmatpush1.msra.mxu0 %v202
    %1664 = vmatprep.subr.mxu0 %v207
    %1665 = vmatpush1.msra.mxu0 %v206
    %1666 = vmatprep.subr.mxu0 %v211
    %1667 = vmatpush1.msra.mxu0 %v210
    %1668 = vmatprep.subr.mxu0 0.0
    %1669 = vmatpush1.msra.mxu0 0.0
    %1670 = vmatprep.subr.mxu0 0.0
    %1671 = vmatpush1.msra.mxu0 0.0
    %1672 = vmatprep.subr.mxu0 0.0
    %1673 = vmatpush1.msra.mxu0 0.0
    %1674 = vmatprep.subr.mxu0 0.0
    %1675 = vmatpush1.msra.mxu0 0.0
    %1676 = vmatprep.subr.mxu0 0.0
    %1677 = vmatpush1.msra.mxu0 0.0
    %1678 = vmatprep.subr.mxu0 0.0
    %1679 = vmatpush1.msra.mxu0 0.0
    %1680 = vmatprep.subr.mxu0 0.0
    %1681 = vmatpush1.msra.mxu0 0.0
    %1682 = vmatprep.subr.mxu0 0.0
    %1683 = vmatpush1.msra.mxu0 0.0
    %1684 = vmatprep.subr.mxu0 0.0
    %1685 = vmatpush1.msra.mxu0 0.0
    %1686 = vmatprep.subr.mxu0 0.0
    %1687 = vmatpush1.msra.mxu0 0.0
    %1688 = vmatprep.subr.mxu0 0.0
    %1689 = vmatpush1.msra.mxu0 0.0
    %1690 = vmatprep.subr.mxu0 0.0
    %1691 = vmatpush1.msra.mxu0 0.0
    %1692 = vmatprep.subr.mxu0 0.0
    %1693 = vmatpush1.msra.mxu0 0.0
    %1694 = vmatprep.subr.mxu0 0.0
    %1695 = vmatpush1.msra.mxu0 0.0
    %1696 = vmatprep.subr.mxu0 0.0
    %1697 = vmatpush1.msra.mxu0 0.0
    %1698 = vmatprep.subr.mxu0 0.0
    %1699 = vmatpush1.msra.mxu0 0.0
    %1700 = vmatprep.mubr.f32.mxu0 0.0
    %1701 = vmatmul.mubr.f32.gmra.mrb[0].mxu0 %v1557
    %v1702 = vpop.f32.mrb[0].mxu0
    %v1703 = vadd.f32 0.0, %v1702
    %v1704 = vpop.f32.mrb[0].mxu0
    %v1705 = vadd.f32 0.0, %v1704
    %1706 = vdwg.mxu0
    %v1707 = vadd.f32 %v1561, %v1632
    %v1708 = vadd.f32 %v1562, %v1634
    %v1709 = vadd.f32 %v1563, %v1703
    %v1710 = vadd.f32 %v1564, %v1705
    %v1711 = vxor.u32 %v1707, 2147483648
    %v1712 = vmul.f32 %v1711, 1.442695
    %v1713 = vpow.pop %v1712
    %v1714 = vadd.f32 %v1713, 1.0
    %v1715 = vrcp.pop %v1714
    %v1716 = vmul.f32 1.0, %v1715
    %v1717 = vxor.u32 %v1708, 2147483648
    %v1718 = vmul.f32 %v1717, 1.442695
    %v1719 = vpow.pop %v1718
    %v1720 = vadd.f32 %v1719, 1.0
    %v1721 = vrcp.pop %v1720
    %v1722 = vmul.f32 1.0, %v1721
    %v1723 = vtanh.pop %v1709
    %v1724 = vxor.u32 %v1710, 2147483648
    %v1725 = vmul.f32 %v1724, 1.442695
    %v1726 = vpow.pop %v1725
    %v1727 = vadd.f32 %v1726, 1.0
    %v1728 = vrcp.pop %v1727
    %v1729 = vmul.f32 1.0, %v1728
    %v1730 = vmul.f32 %v1722, %v1555
    %v1731 = vmul.f32 %v1716, %v1723
    %v1732 = vadd.f32 %v1730, %v1731
    %v1733 = vtanh.pop %v1732
    %v1734 = vmul.f32 %v1729, %v1733
    %s1735 = scalar_lea.vmem [#allocation2], 48
    %1736 = vst [vmem:[%s1735] sm:$0xff] %v1734
    %s1737 = scalar_lea.vmem [#allocation3], 224
    %v1738 = vld [vmem:[%s1737] sm:$0xff]
    %v1739 = vld [vmem:[%s1737 + $0x8] sm:$0xff]
    %v1740 = vld [vmem:[%s1737 + $0x10] sm:$0xff]
    %v1741 = vld [vmem:[%s1737 + $0x18] sm:$0xff]
    %1742 = vmatprep.subr.mxu0 %v149
    %1743 = vmatpush1.msra.mxu0 %v148
    %1744 = vmatprep.subr.mxu0 %v153
    %1745 = vmatpush1.msra.mxu0 %v152
    %1746 = vmatprep.subr.mxu0 %v157
    %1747 = vmatpush1.msra.mxu0 %v156
    %1748 = vmatprep.subr.mxu0 %v161
    %1749 = vmatpush1.msra.mxu0 %v160
    %1750 = vmatprep.subr.mxu0 %v165
    %1751 = vmatpush1.msra.mxu0 %v164
    %1752 = vmatprep.subr.mxu0 %v169
    %1753 = vmatpush1.msra.mxu0 %v168
    %1754 = vmatprep.subr.mxu0 %v173
    %1755 = vmatpush1.msra.mxu0 %v172
    %1756 = vmatprep.subr.mxu0 %v177
    %1757 = vmatpush1.msra.mxu0 %v176
    %1758 = vmatprep.subr.mxu0 %v181
    %1759 = vmatpush1.msra.mxu0 %v180
    %1760 = vmatprep.subr.mxu0 %v185
    %1761 = vmatpush1.msra.mxu0 %v184
    %1762 = vmatprep.subr.mxu0 %v189
    %1763 = vmatpush1.msra.mxu0 %v188
    %1764 = vmatprep.subr.mxu0 %v193
    %1765 = vmatpush1.msra.mxu0 %v192
    %1766 = vmatprep.subr.mxu0 %v197
    %1767 = vmatpush1.msra.mxu0 %v196
    %1768 = vmatprep.subr.mxu0 %v201
    %1769 = vmatpush1.msra.mxu0 %v200
    %1770 = vmatprep.subr.mxu0 %v205
    %1771 = vmatpush1.msra.mxu0 %v204
    %1772 = vmatprep.subr.mxu0 %v209
    %1773 = vmatpush1.msra.mxu0 %v208
    %1774 = vmatprep.subr.mxu0 0.0
    %1775 = vmatpush1.msra.mxu0 0.0
    %1776 = vmatprep.subr.mxu0 0.0
    %1777 = vmatpush1.msra.mxu0 0.0
    %1778 = vmatprep.subr.mxu0 0.0
    %1779 = vmatpush1.msra.mxu0 0.0
    %1780 = vmatprep.subr.mxu0 0.0
    %1781 = vmatpush1.msra.mxu0 0.0
    %1782 = vmatprep.subr.mxu0 0.0
    %1783 = vmatpush1.msra.mxu0 0.0
    %1784 = vmatprep.subr.mxu0 0.0
    %1785 = vmatpush1.msra.mxu0 0.0
    %1786 = vmatprep.subr.mxu0 0.0
    %1787 = vmatpush1.msra.mxu0 0.0
    %1788 = vmatprep.subr.mxu0 0.0
    %1789 = vmatpush1.msra.mxu0 0.0
    %1790 = vmatprep.subr.mxu0 0.0
    %1791 = vmatpush1.msra.mxu0 0.0
    %1792 = vmatprep.subr.mxu0 0.0
    %1793 = vmatpush1.msra.mxu0 0.0
    %1794 = vmatprep.subr.mxu0 0.0
    %1795 = vmatpush1.msra.mxu0 0.0
    %1796 = vmatprep.subr.mxu0 0.0
    %1797 = vmatpush1.msra.mxu0 0.0
    %1798 = vmatprep.subr.mxu0 0.0
    %1799 = vmatpush1.msra.mxu0 0.0
    %1800 = vmatprep.subr.mxu0 0.0
    %1801 = vmatpush1.msra.mxu0 0.0
    %1802 = vmatprep.subr.mxu0 0.0
    %1803 = vmatpush1.msra.mxu0 0.0
    %1804 = vmatprep.subr.mxu0 0.0
    %1805 = vmatpush1.msra.mxu0 0.0
    %1806 = vmatprep.mubr.f32.mxu0 0.0
    %1807 = vmatmul.mubr.f32.gmra.mrb[0].mxu0 %v1734
    %v1808 = vpop.f32.mrb[0].mxu0
    %v1809 = vadd.f32 0.0, %v1808
    %v1810 = vpop.f32.mrb[0].mxu0
    %v1811 = vadd.f32 0.0, %v1810
    %1812 = vdwg.mxu0
    %1813 = vmatprep.subr.mxu0 %v151
    %1814 = vmatpush1.msra.mxu0 %v150
    %1815 = vmatprep.subr.mxu0 %v155
    %1816 = vmatpush1.msra.mxu0 %v154
    %1817 = vmatprep.subr.mxu0 %v159
    %1818 = vmatpush1.msra.mxu0 %v158
    %1819 = vmatprep.subr.mxu0 %v163
    %1820 = vmatpush1.msra.mxu0 %v162
    %1821 = vmatprep.subr.mxu0 %v167
    %1822 = vmatpush1.msra.mxu0 %v166
    %1823 = vmatprep.subr.mxu0 %v171
    %1824 = vmatpush1.msra.mxu0 %v170
    %1825 = vmatprep.subr.mxu0 %v175
    %1826 = vmatpush1.msra.mxu0 %v174
    %1827 = vmatprep.subr.mxu0 %v179
    %1828 = vmatpush1.msra.mxu0 %v178
    %1829 = vmatprep.subr.mxu0 %v183
    %1830 = vmatpush1.msra.mxu0 %v182
    %1831 = vmatprep.subr.mxu0 %v187
    %1832 = vmatpush1.msra.mxu0 %v186
    %1833 = vmatprep.subr.mxu0 %v191
    %1834 = vmatpush1.msra.mxu0 %v190
    %1835 = vmatprep.subr.mxu0 %v195
    %1836 = vmatpush1.msra.mxu0 %v194
    %1837 = vmatprep.subr.mxu0 %v199
    %1838 = vmatpush1.msra.mxu0 %v198
    %1839 = vmatprep.subr.mxu0 %v203
    %1840 = vmatpush1.msra.mxu0 %v202
    %1841 = vmatprep.subr.mxu0 %v207
    %1842 = vmatpush1.msra.mxu0 %v206
    %1843 = vmatprep.subr.mxu0 %v211
    %1844 = vmatpush1.msra.mxu0 %v210
    %1845 = vmatprep.subr.mxu0 0.0
    %1846 = vmatpush1.msra.mxu0 0.0
    %1847 = vmatprep.subr.mxu0 0.0
    %1848 = vmatpush1.msra.mxu0 0.0
    %1849 = vmatprep.subr.mxu0 0.0
    %1850 = vmatpush1.msra.mxu0 0.0
    %1851 = vmatprep.subr.mxu0 0.0
    %1852 = vmatpush1.msra.mxu0 0.0
    %1853 = vmatprep.subr.mxu0 0.0
    %1854 = vmatpush1.msra.mxu0 0.0
    %1855 = vmatprep.subr.mxu0 0.0
    %1856 = vmatpush1.msra.mxu0 0.0
    %1857 = vmatprep.subr.mxu0 0.0
    %1858 = vmatpush1.msra.mxu0 0.0
    %1859 = vmatprep.subr.mxu0 0.0
    %1860 = vmatpush1.msra.mxu0 0.0
    %1861 = vmatprep.subr.mxu0 0.0
    %1862 = vmatpush1.msra.mxu0 0.0
    %1863 = vmatprep.subr.mxu0 0.0
    %1864 = vmatpush1.msra.mxu0 0.0
    %1865 = vmatprep.subr.mxu0 0.0
    %1866 = vmatpush1.msra.mxu0 0.0
    %1867 = vmatprep.subr.mxu0 0.0
    %1868 = vmatpush1.msra.mxu0 0.0
    %1869 = vmatprep.subr.mxu0 0.0
    %1870 = vmatpush1.msra.mxu0 0.0
    %1871 = vmatprep.subr.mxu0 0.0
    %1872 = vmatpush1.msra.mxu0 0.0
    %1873 = vmatprep.subr.mxu0 0.0
    %1874 = vmatpush1.msra.mxu0 0.0
    %1875 = vmatprep.subr.mxu0 0.0
    %1876 = vmatpush1.msra.mxu0 0.0
    %1877 = vmatprep.mubr.f32.mxu0 0.0
    %1878 = vmatmul.mubr.f32.gmra.mrb[0].mxu0 %v1734
    %v1879 = vpop.f32.mrb[0].mxu0
    %v1880 = vadd.f32 0.0, %v1879
    %v1881 = vpop.f32.mrb[0].mxu0
    %v1882 = vadd.f32 0.0, %v1881
    %1883 = vdwg.mxu0
    %v1884 = vadd.f32 %v1738, %v1809
    %v1885 = vadd.f32 %v1739, %v1811
    %v1886 = vadd.f32 %v1740, %v1880
    %v1887 = vadd.f32 %v1741, %v1882
    %v1888 = vxor.u32 %v1884, 2147483648
    %v1889 = vmul.f32 %v1888, 1.442695
    %v1890 = vpow.pop %v1889
    %v1891 = vadd.f32 %v1890, 1.0
    %v1892 = vrcp.pop %v1891
    %v1893 = vmul.f32 1.0, %v1892
    %v1894 = vxor.u32 %v1885, 2147483648
    %v1895 = vmul.f32 %v1894, 1.442695
    %v1896 = vpow.pop %v1895
    %v1897 = vadd.f32 %v1896, 1.0
    %v1898 = vrcp.pop %v1897
    %v1899 = vmul.f32 1.0, %v1898
    %v1900 = vtanh.pop %v1886
    %v1901 = vxor.u32 %v1887, 2147483648
    %v1902 = vmul.f32 %v1901, 1.442695
    %v1903 = vpow.pop %v1902
    %v1904 = vadd.f32 %v1903, 1.0
    %v1905 = vrcp.pop %v1904
    %v1906 = vmul.f32 1.0, %v1905
    %v1907 = vmul.f32 %v1899, %v1732
    %v1908 = vmul.f32 %v1893, %v1900
    %v1909 = vadd.f32 %v1907, %v1908
    %v1910 = vtanh.pop %v1909
    %v1911 = vmul.f32 %v1906, %v1910
    %s1912 = scalar_lea.vmem [#allocation2], 56
    %1913 = vst [vmem:[%s1912] sm:$0xff] %v1911
    %s1914 = scalar_lea.vmem [#allocation4], 512
    %v1915 = vld [vmem:[%s1914] sm:$0xff]
    %v1916 = vld [vmem:[%s1914 + $0x8] sm:$0xff]
    %v1917 = vld [vmem:[%s1914 + $0x10] sm:$0xff]
    %v1918 = vld [vmem:[%s1914 + $0x18] sm:$0xff]
    %v1919 = vld [vmem:[%s1914 + $0x20] sm:$0xff]
    %v1920 = vld [vmem:[%s1914 + $0x28] sm:$0xff]
    %v1921 = vld [vmem:[%s1914 + $0x30] sm:$0xff]
    %v1922 = vld [vmem:[%s1914 + $0x38] sm:$0xff]
    %v1923 = vld [vmem:[%s1914 + $0x40] sm:$0xff]
    %v1924 = vld [vmem:[%s1914 + $0x48] sm:$0xff]
    %v1925 = vld [vmem:[%s1914 + $0x50] sm:$0xff]
    %v1926 = vld [vmem:[%s1914 + $0x58] sm:$0xff]
    %v1927 = vld [vmem:[%s1914 + $0x60] sm:$0xff]
    %v1928 = vld [vmem:[%s1914 + $0x68] sm:$0xff]
    %v1929 = vld [vmem:[%s1914 + $0x70] sm:$0xff]
    %v1930 = vld [vmem:[%s1914 + $0x78] sm:$0xff]
    %v1931 = vld [vmem:[%s1914 + $0x80] sm:$0xff]
    %v1932 = vld [vmem:[%s1914 + $0x88] sm:$0xff]
    %v1933 = vld [vmem:[%s1914 + $0x90] sm:$0xff]
    %v1934 = vld [vmem:[%s1914 + $0x98] sm:$0xff]
    %v1935 = vld [vmem:[%s1914 + $0xa0] sm:$0xff]
    %v1936 = vld [vmem:[%s1914 + $0xa8] sm:$0xff]
    %v1937 = vld [vmem:[%s1914 + $0xb0] sm:$0xff]
    %v1938 = vld [vmem:[%s1914 + $0xb8] sm:$0xff]
    %v1939 = vld [vmem:[%s1914 + $0xc0] sm:$0xff]
    %v1940 = vld [vmem:[%s1914 + $0xc8] sm:$0xff]
    %v1941 = vld [vmem:[%s1914 + $0xd0] sm:$0xff]
    %v1942 = vld [vmem:[%s1914 + $0xd8] sm:$0xff]
    %v1943 = vld [vmem:[%s1914 + $0xe0] sm:$0xff]
    %v1944 = vld [vmem:[%s1914 + $0xe8] sm:$0xff]
    %v1945 = vld [vmem:[%s1914 + $0xf0] sm:$0xff]
    %v1946 = vld [vmem:[%s1914 + $0xf8] sm:$0xff]
    %v1947 = vld [vmem:[%s1914 + $0x100] sm:$0xff]
    %v1948 = vld [vmem:[%s1914 + $0x108] sm:$0xff]
    %v1949 = vld [vmem:[%s1914 + $0x110] sm:$0xff]
    %v1950 = vld [vmem:[%s1914 + $0x118] sm:$0xff]
    %v1951 = vld [vmem:[%s1914 + $0x120] sm:$0xff]
    %v1952 = vld [vmem:[%s1914 + $0x128] sm:$0xff]
    %v1953 = vld [vmem:[%s1914 + $0x130] sm:$0xff]
    %v1954 = vld [vmem:[%s1914 + $0x138] sm:$0xff]
    %v1955 = vld [vmem:[%s1914 + $0x140] sm:$0xff]
    %v1956 = vld [vmem:[%s1914 + $0x148] sm:$0xff]
    %v1957 = vld [vmem:[%s1914 + $0x150] sm:$0xff]
    %v1958 = vld [vmem:[%s1914 + $0x158] sm:$0xff]
    %v1959 = vld [vmem:[%s1914 + $0x160] sm:$0xff]
    %v1960 = vld [vmem:[%s1914 + $0x168] sm:$0xff]
    %v1961 = vld [vmem:[%s1914 + $0x170] sm:$0xff]
    %v1962 = vld [vmem:[%s1914 + $0x178] sm:$0xff]
    %v1963 = vld [vmem:[%s1914 + $0x180] sm:$0xff]
    %v1964 = vld [vmem:[%s1914 + $0x188] sm:$0xff]
    %v1965 = vld [vmem:[%s1914 + $0x190] sm:$0xff]
    %v1966 = vld [vmem:[%s1914 + $0x198] sm:$0xff]
    %v1967 = vld [vmem:[%s1914 + $0x1a0] sm:$0xff]
    %v1968 = vld [vmem:[%s1914 + $0x1a8] sm:$0xff]
    %v1969 = vld [vmem:[%s1914 + $0x1b0] sm:$0xff]
    %v1970 = vld [vmem:[%s1914 + $0x1b8] sm:$0xff]
    %v1971 = vld [vmem:[%s1914 + $0x1c0] sm:$0xff]
    %v1972 = vld [vmem:[%s1914 + $0x1c8] sm:$0xff]
    %v1973 = vld [vmem:[%s1914 + $0x1d0] sm:$0xff]
    %v1974 = vld [vmem:[%s1914 + $0x1d8] sm:$0xff]
    %v1975 = vld [vmem:[%s1914 + $0x1e0] sm:$0xff]
    %v1976 = vld [vmem:[%s1914 + $0x1e8] sm:$0xff]
    %v1977 = vld [vmem:[%s1914 + $0x1f0] sm:$0xff]
    %v1978 = vld [vmem:[%s1914 + $0x1f8] sm:$0xff]
    %s1979 = scalar_lea.vmem [#allocation7], 512
    %v1980 = vld [vmem:[%s1979] sm:$0xff]
    %v1981 = vld [vmem:[%s1979 + $0x8] sm:$0xff]
    %v1982 = vld [vmem:[%s1979 + $0x10] sm:$0xff]
    %v1983 = vld [vmem:[%s1979 + $0x18] sm:$0xff]
    %v1984 = vld [vmem:[%s1979 + $0x20] sm:$0xff]
    %v1985 = vld [vmem:[%s1979 + $0x28] sm:$0xff]
    %v1986 = vld [vmem:[%s1979 + $0x30] sm:$0xff]
    %v1987 = vld [vmem:[%s1979 + $0x38] sm:$0xff]
    %v1988 = vld [vmem:[%s1979 + $0x40] sm:$0xff]
    %v1989 = vld [vmem:[%s1979 + $0x48] sm:$0xff]
    %v1990 = vld [vmem:[%s1979 + $0x50] sm:$0xff]
    %v1991 = vld [vmem:[%s1979 + $0x58] sm:$0xff]
    %v1992 = vld [vmem:[%s1979 + $0x60] sm:$0xff]
    %v1993 = vld [vmem:[%s1979 + $0x68] sm:$0xff]
    %v1994 = vld [vmem:[%s1979 + $0x70] sm:$0xff]
    %v1995 = vld [vmem:[%s1979 + $0x78] sm:$0xff]
    %v1996 = vld [vmem:[%s1979 + $0x80] sm:$0xff]
    %v1997 = vld [vmem:[%s1979 + $0x88] sm:$0xff]
    %v1998 = vld [vmem:[%s1979 + $0x90] sm:$0xff]
    %v1999 = vld [vmem:[%s1979 + $0x98] sm:$0xff]
    %v2000 = vld [vmem:[%s1979 + $0xa0] sm:$0xff]
    %v2001 = vld [vmem:[%s1979 + $0xa8] sm:$0xff]
    %v2002 = vld [vmem:[%s1979 + $0xb0] sm:$0xff]
    %v2003 = vld [vmem:[%s1979 + $0xb8] sm:$0xff]
    %v2004 = vld [vmem:[%s1979 + $0xc0] sm:$0xff]
    %v2005 = vld [vmem:[%s1979 + $0xc8] sm:$0xff]
    %v2006 = vld [vmem:[%s1979 + $0xd0] sm:$0xff]
    %v2007 = vld [vmem:[%s1979 + $0xd8] sm:$0xff]
    %v2008 = vld [vmem:[%s1979 + $0xe0] sm:$0xff]
    %v2009 = vld [vmem:[%s1979 + $0xe8] sm:$0xff]
    %v2010 = vld [vmem:[%s1979 + $0xf0] sm:$0xff]
    %v2011 = vld [vmem:[%s1979 + $0xf8] sm:$0xff]
    %v2012 = vld [vmem:[%s1979 + $0x100] sm:$0xff]
    %v2013 = vld [vmem:[%s1979 + $0x108] sm:$0xff]
    %v2014 = vld [vmem:[%s1979 + $0x110] sm:$0xff]
    %v2015 = vld [vmem:[%s1979 + $0x118] sm:$0xff]
    %v2016 = vld [vmem:[%s1979 + $0x120] sm:$0xff]
    %v2017 = vld [vmem:[%s1979 + $0x128] sm:$0xff]
    %v2018 = vld [vmem:[%s1979 + $0x130] sm:$0xff]
    %v2019 = vld [vmem:[%s1979 + $0x138] sm:$0xff]
    %v2020 = vld [vmem:[%s1979 + $0x140] sm:$0xff]
    %v2021 = vld [vmem:[%s1979 + $0x148] sm:$0xff]
    %v2022 = vld [vmem:[%s1979 + $0x150] sm:$0xff]
    %v2023 = vld [vmem:[%s1979 + $0x158] sm:$0xff]
    %v2024 = vld [vmem:[%s1979 + $0x160] sm:$0xff]
    %v2025 = vld [vmem:[%s1979 + $0x168] sm:$0xff]
    %v2026 = vld [vmem:[%s1979 + $0x170] sm:$0xff]
    %v2027 = vld [vmem:[%s1979 + $0x178] sm:$0xff]
    %v2028 = vld [vmem:[%s1979 + $0x180] sm:$0xff]
    %v2029 = vld [vmem:[%s1979 + $0x188] sm:$0xff]
    %v2030 = vld [vmem:[%s1979 + $0x190] sm:$0xff]
    %v2031 = vld [vmem:[%s1979 + $0x198] sm:$0xff]
    %v2032 = vld [vmem:[%s1979 + $0x1a0] sm:$0xff]
    %v2033 = vld [vmem:[%s1979 + $0x1a8] sm:$0xff]
    %v2034 = vld [vmem:[%s1979 + $0x1b0] sm:$0xff]
    %v2035 = vld [vmem:[%s1979 + $0x1b8] sm:$0xff]
    %v2036 = vld [vmem:[%s1979 + $0x1c0] sm:$0xff]
    %v2037 = vld [vmem:[%s1979 + $0x1c8] sm:$0xff]
    %v2038 = vld [vmem:[%s1979 + $0x1d0] sm:$0xff]
    %v2039 = vld [vmem:[%s1979 + $0x1d8] sm:$0xff]
    %v2040 = vld [vmem:[%s1979 + $0x1e0] sm:$0xff]
    %v2041 = vld [vmem:[%s1979 + $0x1e8] sm:$0xff]
    %v2042 = vld [vmem:[%s1979 + $0x1f0] sm:$0xff]
    %v2043 = vld [vmem:[%s1979 + $0x1f8] sm:$0xff]
    %s2044 = scalar_lea.vmem %s3, 4
    %v2045 = vld [vmem:[%s2044] sm:$0xf]
    %v2046 = vld [vmem:[#allocation2] sm:$0xff]
    %v2047 = vld [vmem:[#allocation2 + $0x8] sm:$0xff]
    %v2048 = vld [vmem:[#allocation2 + $0x10] sm:$0xff]
    %v2049 = vld [vmem:[#allocation2 + $0x18] sm:$0xff]
    %v2050 = vld [vmem:[#allocation2 + $0x20] sm:$0xff]
    %v2051 = vld [vmem:[#allocation2 + $0x28] sm:$0xff]
    %v2052 = vld [vmem:[#allocation2 + $0x30] sm:$0xff]
    %v2053 = vld [vmem:[#allocation2 + $0x38] sm:$0xff]
    %v2055 = vlaneseq
    %v2056 = vshrl.u32 %v2055, 7
    %v2057 = vsub.s32 0, %v2056
    %v2058 = vrot.slane %v2045, %v2057
    %v2059 = vlaneseq
    %v2060 = vshrl.u32 %v2059, 7
    %v2061 = vsub.s32 1, %v2060
    %v2062 = vrot.slane %v2045, %v2061
    %v2063 = vlaneseq
    %v2064 = vshrl.u32 %v2063, 7
    %v2065 = vsub.s32 2, %v2064
    %v2066 = vrot.slane %v2045, %v2065
    %v2067 = vlaneseq
    %v2068 = vshrl.u32 %v2067, 7
    %v2069 = vsub.s32 3, %v2068
    %v2070 = vrot.slane %v2045, %v2069
    %2075 = vmatprep.subr.mxu0 %v1916
    %2076 = vmatpush1.msra.mxu0 %v1915
    %2077 = vmatprep.subr.mxu0 %v1920
    %2078 = vmatpush1.msra.mxu0 %v1919
    %2079 = vmatprep.subr.mxu0 %v1924
    %2080 = vmatpush1.msra.mxu0 %v1923
    %2081 = vmatprep.subr.mxu0 %v1928
    %2082 = vmatpush1.msra.mxu0 %v1927
    %2083 = vmatprep.subr.mxu0 %v1932
    %2084 = vmatpush1.msra.mxu0 %v1931
    %2085 = vmatprep.subr.mxu0 %v1936
    %2086 = vmatpush1.msra.mxu0 %v1935
    %2087 = vmatprep.subr.mxu0 %v1940
    %2088 = vmatpush1.msra.mxu0 %v1939
    %2089 = vmatprep.subr.mxu0 %v1944
    %2090 = vmatpush1.msra.mxu0 %v1943
    %2091 = vmatprep.subr.mxu0 %v1948
    %2092 = vmatpush1.msra.mxu0 %v1947
    %2093 = vmatprep.subr.mxu0 %v1952
    %2094 = vmatpush1.msra.mxu0 %v1951
    %2095 = vmatprep.subr.mxu0 %v1956
    %2096 = vmatpush1.msra.mxu0 %v1955
    %2097 = vmatprep.subr.mxu0 %v1960
    %2098 = vmatpush1.msra.mxu0 %v1959
    %2099 = vmatprep.subr.mxu0 %v1964
    %2100 = vmatpush1.msra.mxu0 %v1963
    %2101 = vmatprep.subr.mxu0 %v1968
    %2102 = vmatpush1.msra.mxu0 %v1967
    %2103 = vmatprep.subr.mxu0 %v1972
    %2104 = vmatpush1.msra.mxu0 %v1971
    %2105 = vmatprep.subr.mxu0 %v1976
    %2106 = vmatpush1.msra.mxu0 %v1975
    %2107 = vmatprep.subr.mxu0 0.0
    %2108 = vmatpush1.msra.mxu0 0.0
    %2109 = vmatprep.subr.mxu0 0.0
    %2110 = vmatpush1.msra.mxu0 0.0
    %2111 = vmatprep.subr.mxu0 0.0
    %2112 = vmatpush1.msra.mxu0 0.0
    %2113 = vmatprep.subr.mxu0 0.0
    %2114 = vmatpush1.msra.mxu0 0.0
    %2115 = vmatprep.subr.mxu0 0.0
    %2116 = vmatpush1.msra.mxu0 0.0
    %2117 = vmatprep.subr.mxu0 0.0
    %2118 = vmatpush1.msra.mxu0 0.0
    %2119 = vmatprep.subr.mxu0 0.0
    %2120 = vmatpush1.msra.mxu0 0.0
    %2121 = vmatprep.subr.mxu0 0.0
    %2122 = vmatpush1.msra.mxu0 0.0
    %2123 = vmatprep.subr.mxu0 0.0
    %2124 = vmatpush1.msra.mxu0 0.0
    %2125 = vmatprep.subr.mxu0 0.0
    %2126 = vmatpush1.msra.mxu0 0.0
    %2127 = vmatprep.subr.mxu0 0.0
    %2128 = vmatpush1.msra.mxu0 0.0
    %2129 = vmatprep.subr.mxu0 0.0
    %2130 = vmatpush1.msra.mxu0 0.0
    %2131 = vmatprep.subr.mxu0 0.0
    %2132 = vmatpush1.msra.mxu0 0.0
    %2133 = vmatprep.subr.mxu0 0.0
    %2134 = vmatpush1.msra.mxu0 0.0
    %2135 = vmatprep.subr.mxu0 0.0
    %2136 = vmatpush1.msra.mxu0 0.0
    %2137 = vmatprep.subr.mxu0 0.0
    %2138 = vmatpush1.msra.mxu0 0.0
    %2139 = vmatprep.mubr.f32.mxu0 0.0
    %2140 = vmatmul.mubr.f32.gmra.mrb[0].mxu0 %v2046
    %v2141 = vpop.f32.mrb[0].mxu0
    %v2142 = vadd.f32 %v2058, %v2141
    %v2143 = vpop.f32.mrb[0].mxu0
    %v2144 = vadd.f32 %v2062, %v2143
    %2145 = vmatprep.mubr.f32.mxu0 0.0
    %2146 = vmatmul.mubr.f32.gmra.mrb[0].mxu0 %v2047
    %v2147 = vpop.f32.mrb[0].mxu0
    %v2148 = vadd.f32 %v2058, %v2147
    %v2149 = vpop.f32.mrb[0].mxu0
    %v2150 = vadd.f32 %v2062, %v2149
    %2151 = vmatprep.mubr.f32.mxu0 0.0
    %2152 = vmatmul.mubr.f32.gmra.mrb[0].mxu0 %v2048
    %v2153 = vpop.f32.mrb[0].mxu0
    %v2154 = vadd.f32 %v2058, %v2153
    %v2155 = vpop.f32.mrb[0].mxu0
    %v2156 = vadd.f32 %v2062, %v2155
    %2157 = vmatprep.mubr.f32.mxu0 0.0
    %2158 = vmatmul.mubr.f32.gmra.mrb[0].mxu0 %v2049
    %v2159 = vpop.f32.mrb[0].mxu0
    %v2160 = vadd.f32 %v2058, %v2159
    %v2161 = vpop.f32.mrb[0].mxu0
    %v2162 = vadd.f32 %v2062, %v2161
    %2163 = vmatprep.mubr.f32.mxu0 0.0
    %2164 = vmatmul.mubr.f32.gmra.mrb[0].mxu0 %v2050
    %v2165 = vpop.f32.mrb[0].mxu0
    %v2166 = vadd.f32 %v2058, %v2165
    %v2167 = vpop.f32.mrb[0].mxu0
    %v2168 = vadd.f32 %v2062, %v2167
    %2169 = vmatprep.mubr.f32.mxu0 0.0
    %2170 = vmatmul.mubr.f32.gmra.mrb[0].mxu0 %v2051
    %v2171 = vpop.f32.mrb[0].mxu0
    %v2172 = vadd.f32 %v2058, %v2171
    %v2173 = vpop.f32.mrb[0].mxu0
    %v2174 = vadd.f32 %v2062, %v2173
    %2175 = vmatprep.mubr.f32.mxu0 0.0
    %2176 = vmatmul.mubr.f32.gmra.mrb[0].mxu0 %v2052
    %v2177 = vpop.f32.mrb[0].mxu0
    %v2178 = vadd.f32 %v2058, %v2177
    %v2179 = vpop.f32.mrb[0].mxu0
    %v2180 = vadd.f32 %v2062, %v2179
    %2181 = vmatprep.mubr.f32.mxu0 0.0
    %2182 = vmatmul.mubr.f32.gmra.mrb[0].mxu0 %v2053
    %v2183 = vpop.f32.mrb[0].mxu0
    %v2184 = vadd.f32 %v2058, %v2183
    %v2185 = vpop.f32.mrb[0].mxu0
    %v2186 = vadd.f32 %v2062, %v2185
    %2187 = vdwg.mxu0
    %2188 = vmatprep.subr.mxu0 %v1918
    %2189 = vmatpush1.msra.mxu0 %v1917
    %2190 = vmatprep.subr.mxu0 %v1922
    %2191 = vmatpush1.msra.mxu0 %v1921
    %2192 = vmatprep.subr.mxu0 %v1926
    %2193 = vmatpush1.msra.mxu0 %v1925
    %2194 = vmatprep.subr.mxu0 %v1930
    %2195 = vmatpush1.msra.mxu0 %v1929
    %2196 = vmatprep.subr.mxu0 %v1934
    %2197 = vmatpush1.msra.mxu0 %v1933
    %2198 = vmatprep.subr.mxu0 %v1938
    %2199 = vmatpush1.msra.mxu0 %v1937
    %2200 = vmatprep.subr.mxu0 %v1942
    %2201 = vmatpush1.msra.mxu0 %v1941
    %2202 = vmatprep.subr.mxu0 %v1946
    %2203 = vmatpush1.msra.mxu0 %v1945
    %2204 = vmatprep.subr.mxu0 %v1950
    %2205 = vmatpush1.msra.mxu0 %v1949
    %2206 = vmatprep.subr.mxu0 %v1954
    %2207 = vmatpush1.msra.mxu0 %v1953
    %2208 = vmatprep.subr.mxu0 %v1958
    %2209 = vmatpush1.msra.mxu0 %v1957
    %2210 = vmatprep.subr.mxu0 %v1962
    %2211 = vmatpush1.msra.mxu0 %v1961
    %2212 = vmatprep.subr.mxu0 %v1966
    %2213 = vmatpush1.msra.mxu0 %v1965
    %2214 = vmatprep.subr.mxu0 %v1970
    %2215 = vmatpush1.msra.mxu0 %v1969
    %2216 = vmatprep.subr.mxu0 %v1974
    %2217 = vmatpush1.msra.mxu0 %v1973
    %2218 = vmatprep.subr.mxu0 %v1978
    %2219 = vmatpush1.msra.mxu0 %v1977
    %2220 = vmatprep.subr.mxu0 0.0
    %2221 = vmatpush1.msra.mxu0 0.0
    %2222 = vmatprep.subr.mxu0 0.0
    %2223 = vmatpush1.msra.mxu0 0.0
    %2224 = vmatprep.subr.mxu0 0.0
    %2225 = vmatpush1.msra.mxu0 0.0
    %2226 = vmatprep.subr.mxu0 0.0
    %2227 = vmatpush1.msra.mxu0 0.0
    %2228 = vmatprep.subr.mxu0 0.0
    %2229 = vmatpush1.msra.mxu0 0.0
    %2230 = vmatprep.subr.mxu0 0.0
    %2231 = vmatpush1.msra.mxu0 0.0
    %2232 = vmatprep.subr.mxu0 0.0
    %2233 = vmatpush1.msra.mxu0 0.0
    %2234 = vmatprep.subr.mxu0 0.0
    %2235 = vmatpush1.msra.mxu0 0.0
    %2236 = vmatprep.subr.mxu0 0.0
    %2237 = vmatpush1.msra.mxu0 0.0
    %2238 = vmatprep.subr.mxu0 0.0
    %2239 = vmatpush1.msra.mxu0 0.0
    %2240 = vmatprep.subr.mxu0 0.0
    %2241 = vmatpush1.msra.mxu0 0.0
    %2242 = vmatprep.subr.mxu0 0.0
    %2243 = vmatpush1.msra.mxu0 0.0
    %2244 = vmatprep.subr.mxu0 0.0
    %2245 = vmatpush1.msra.mxu0 0.0
    %2246 = vmatprep.subr.mxu0 0.0
    %2247 = vmatpush1.msra.mxu0 0.0
    %2248 = vmatprep.subr.mxu0 0.0
    %2249 = vmatpush1.msra.mxu0 0.0
    %2250 = vmatprep.subr.mxu0 0.0
    %2251 = vmatpush1.msra.mxu0 0.0
    %2252 = vmatprep.mubr.f32.mxu0 0.0
    %2253 = vmatmul.mubr.f32.gmra.mrb[0].mxu0 %v2046
    %v2254 = vpop.f32.mrb[0].mxu0
    %v2255 = vadd.f32 %v2066, %v2254
    %v2256 = vpop.f32.mrb[0].mxu0
    %v2257 = vadd.f32 %v2070, %v2256
    %2258 = vmatprep.mubr.f32.mxu0 0.0
    %2259 = vmatmul.mubr.f32.gmra.mrb[0].mxu0 %v2047
    %v2260 = vpop.f32.mrb[0].mxu0
    %v2261 = vadd.f32 %v2066, %v2260
    %v2262 = vpop.f32.mrb[0].mxu0
    %v2263 = vadd.f32 %v2070, %v2262
    %2264 = vmatprep.mubr.f32.mxu0 0.0
    %2265 = vmatmul.mubr.f32.gmra.mrb[0].mxu0 %v2048
    %v2266 = vpop.f32.mrb[0].mxu0
    %v2267 = vadd.f32 %v2066, %v2266
    %v2268 = vpop.f32.mrb[0].mxu0
    %v2269 = vadd.f32 %v2070, %v2268
    %2270 = vmatprep.mubr.f32.mxu0 0.0
    %2271 = vmatmul.mubr.f32.gmra.mrb[0].mxu0 %v2049
    %v2272 = vpop.f32.mrb[0].mxu0
    %v2273 = vadd.f32 %v2066, %v2272
    %v2274 = vpop.f32.mrb[0].mxu0
    %v2275 = vadd.f32 %v2070, %v2274
    %2276 = vmatprep.mubr.f32.mxu0 0.0
    %2277 = vmatmul.mubr.f32.gmra.mrb[0].mxu0 %v2050
    %v2278 = vpop.f32.mrb[0].mxu0
    %v2279 = vadd.f32 %v2066, %v2278
    %v2280 = vpop.f32.mrb[0].mxu0
    %v2281 = vadd.f32 %v2070, %v2280
    %2282 = vmatprep.mubr.f32.mxu0 0.0
    %2283 = vmatmul.mubr.f32.gmra.mrb[0].mxu0 %v2051
    %v2284 = vpop.f32.mrb[0].mxu0
    %v2285 = vadd.f32 %v2066, %v2284
    %v2286 = vpop.f32.mrb[0].mxu0
    %v2287 = vadd.f32 %v2070, %v2286
    %2288 = vmatprep.mubr.f32.mxu0 0.0
    %2289 = vmatmul.mubr.f32.gmra.mrb[0].mxu0 %v2052
    %v2290 = vpop.f32.mrb[0].mxu0
    %v2291 = vadd.f32 %v2066, %v2290
    %v2292 = vpop.f32.mrb[0].mxu0
    %v2293 = vadd.f32 %v2070, %v2292
    %2294 = vmatprep.mubr.f32.mxu0 0.0
    %2295 = vmatmul.mubr.f32.gmra.mrb[0].mxu0 %v2053
    %v2296 = vpop.f32.mrb[0].mxu0
    %v2297 = vadd.f32 %v2066, %v2296
    %v2298 = vpop.f32.mrb[0].mxu0
    %v2299 = vadd.f32 %v2070, %v2298
    %2300 = vdwg.mxu0
    %2301 = vst [vmem:[#allocation3] sm:$0xff] %v2142
    %2302 = vst [vmem:[#allocation3 + $0x8] sm:$0xff] %v2144
    %2303 = vst [vmem:[#allocation3 + $0x10] sm:$0xff] %v2255
    %2304 = vst [vmem:[#allocation3 + $0x18] sm:$0xff] %v2257
    %2305 = vst [vmem:[#allocation3 + $0x20] sm:$0xff] %v2148
    %2306 = vst [vmem:[#allocation3 + $0x28] sm:$0xff] %v2150
    %2307 = vst [vmem:[#allocation3 + $0x30] sm:$0xff] %v2261
    %2308 = vst [vmem:[#allocation3 + $0x38] sm:$0xff] %v2263
    %2309 = vst [vmem:[#allocation3 + $0x40] sm:$0xff] %v2154
    %2310 = vst [vmem:[#allocation3 + $0x48] sm:$0xff] %v2156
    %2311 = vst [vmem:[#allocation3 + $0x50] sm:$0xff] %v2267
    %2312 = vst [vmem:[#allocation3 + $0x58] sm:$0xff] %v2269
    %2313 = vst [vmem:[#allocation3 + $0x60] sm:$0xff] %v2160
    %2314 = vst [vmem:[#allocation3 + $0x68] sm:$0xff] %v2162
    %2315 = vst [vmem:[#allocation3 + $0x70] sm:$0xff] %v2273
    %2316 = vst [vmem:[#allocation3 + $0x78] sm:$0xff] %v2275
    %2317 = vst [vmem:[#allocation3 + $0x80] sm:$0xff] %v2166
    %2318 = vst [vmem:[#allocation3 + $0x88] sm:$0xff] %v2168
    %2319 = vst [vmem:[#allocation3 + $0x90] sm:$0xff] %v2279
    %2320 = vst [vmem:[#allocation3 + $0x98] sm:$0xff] %v2281
    %2321 = vst [vmem:[#allocation3 + $0xa0] sm:$0xff] %v2172
    %2322 = vst [vmem:[#allocation3 + $0xa8] sm:$0xff] %v2174
    %2323 = vst [vmem:[#allocation3 + $0xb0] sm:$0xff] %v2285
    %2324 = vst [vmem:[#allocation3 + $0xb8] sm:$0xff] %v2287
    %2325 = vst [vmem:[#allocation3 + $0xc0] sm:$0xff] %v2178
    %2326 = vst [vmem:[#allocation3 + $0xc8] sm:$0xff] %v2180
    %2327 = vst [vmem:[#allocation3 + $0xd0] sm:$0xff] %v2291
    %2328 = vst [vmem:[#allocation3 + $0xd8] sm:$0xff] %v2293
    %2329 = vst [vmem:[#allocation3 + $0xe0] sm:$0xff] %v2184
    %2330 = vst [vmem:[#allocation3 + $0xe8] sm:$0xff] %v2186
    %2331 = vst [vmem:[#allocation3 + $0xf0] sm:$0xff] %v2297
    %2332 = vst [vmem:[#allocation3 + $0xf8] sm:$0xff] %v2299
    %v2333 = vld [vmem:[#allocation3] sm:$0xff]
    %v2334 = vld [vmem:[#allocation3 + $0x8] sm:$0xff]
    %v2335 = vld [vmem:[#allocation3 + $0x10] sm:$0xff]
    %v2336 = vld [vmem:[#allocation3 + $0x18] sm:$0xff]
    %2337 = vmatprep.subr.mxu0 %v1981
    %2338 = vmatpush1.msra.mxu0 %v1980
    %2339 = vmatprep.subr.mxu0 %v1985
    %2340 = vmatpush1.msra.mxu0 %v1984
    %2341 = vmatprep.subr.mxu0 %v1989
    %2342 = vmatpush1.msra.mxu0 %v1988
    %2343 = vmatprep.subr.mxu0 %v1993
    %2344 = vmatpush1.msra.mxu0 %v1992
    %2345 = vmatprep.subr.mxu0 %v1997
    %2346 = vmatpush1.msra.mxu0 %v1996
    %2347 = vmatprep.subr.mxu0 %v2001
    %2348 = vmatpush1.msra.mxu0 %v2000
    %2349 = vmatprep.subr.mxu0 %v2005
    %2350 = vmatpush1.msra.mxu0 %v2004
    %2351 = vmatprep.subr.mxu0 %v2009
    %2352 = vmatpush1.msra.mxu0 %v2008
    %2353 = vmatprep.subr.mxu0 %v2013
    %2354 = vmatpush1.msra.mxu0 %v2012
    %2355 = vmatprep.subr.mxu0 %v2017
    %2356 = vmatpush1.msra.mxu0 %v2016
    %2357 = vmatprep.subr.mxu0 %v2021
    %2358 = vmatpush1.msra.mxu0 %v2020
    %2359 = vmatprep.subr.mxu0 %v2025
    %2360 = vmatpush1.msra.mxu0 %v2024
    %2361 = vmatprep.subr.mxu0 %v2029
    %2362 = vmatpush1.msra.mxu0 %v2028
    %2363 = vmatprep.subr.mxu0 %v2033
    %2364 = vmatpush1.msra.mxu0 %v2032
    %2365 = vmatprep.subr.mxu0 %v2037
    %2366 = vmatpush1.msra.mxu0 %v2036
    %2367 = vmatprep.subr.mxu0 %v2041
    %2368 = vmatpush1.msra.mxu0 %v2040
    %2369 = vmatprep.subr.mxu0 0.0
    %2370 = vmatpush1.msra.mxu0 0.0
    %2371 = vmatprep.subr.mxu0 0.0
    %2372 = vmatpush1.msra.mxu0 0.0
    %2373 = vmatprep.subr.mxu0 0.0
    %2374 = vmatpush1.msra.mxu0 0.0
    %2375 = vmatprep.subr.mxu0 0.0
    %2376 = vmatpush1.msra.mxu0 0.0
    %2377 = vmatprep.subr.mxu0 0.0
    %2378 = vmatpush1.msra.mxu0 0.0
    %2379 = vmatprep.subr.mxu0 0.0
    %2380 = vmatpush1.msra.mxu0 0.0
    %2381 = vmatprep.subr.mxu0 0.0
    %2382 = vmatpush1.msra.mxu0 0.0
    %2383 = vmatprep.subr.mxu0 0.0
    %2384 = vmatpush1.msra.mxu0 0.0
    %2385 = vmatprep.subr.mxu0 0.0
    %2386 = vmatpush1.msra.mxu0 0.0
    %2387 = vmatprep.subr.mxu0 0.0
    %2388 = vmatpush1.msra.mxu0 0.0
    %2389 = vmatprep.subr.mxu0 0.0
    %2390 = vmatpush1.msra.mxu0 0.0
    %2391 = vmatprep.subr.mxu0 0.0
    %2392 = vmatpush1.msra.mxu0 0.0
    %2393 = vmatprep.subr.mxu0 0.0
    %2394 = vmatpush1.msra.mxu0 0.0
    %2395 = vmatprep.subr.mxu0 0.0
    %2396 = vmatpush1.msra.mxu0 0.0
    %2397 = vmatprep.subr.mxu0 0.0
    %2398 = vmatpush1.msra.mxu0 0.0
    %2399 = vmatprep.subr.mxu0 0.0
    %2400 = vmatpush1.msra.mxu0 0.0
    %2401 = vmatprep.mubr.f32.mxu0 0.0
    %2402 = vmatmul.mubr.f32.gmra.mrb[0].mxu0 0.0
    %v2403 = vpop.f32.mrb[0].mxu0
    %v2404 = vadd.f32 0.0, %v2403
    %v2405 = vpop.f32.mrb[0].mxu0
    %v2406 = vadd.f32 0.0, %v2405
    %2407 = vdwg.mxu0
    %2408 = vmatprep.subr.mxu0 %v1983
    %2409 = vmatpush1.msra.mxu0 %v1982
    %2410 = vmatprep.subr.mxu0 %v1987
    %2411 = vmatpush1.msra.mxu0 %v1986
    %2412 = vmatprep.subr.mxu0 %v1991
    %2413 = vmatpush1.msra.mxu0 %v1990
    %2414 = vmatprep.subr.mxu0 %v1995
    %2415 = vmatpush1.msra.mxu0 %v1994
    %2416 = vmatprep.subr.mxu0 %v1999
    %2417 = vmatpush1.msra.mxu0 %v1998
    %2418 = vmatprep.subr.mxu0 %v2003
    %2419 = vmatpush1.msra.mxu0 %v2002
    %2420 = vmatprep.subr.mxu0 %v2007
    %2421 = vmatpush1.msra.mxu0 %v2006
    %2422 = vmatprep.subr.mxu0 %v2011
    %2423 = vmatpush1.msra.mxu0 %v2010
    %2424 = vmatprep.subr.mxu0 %v2015
    %2425 = vmatpush1.msra.mxu0 %v2014
    %2426 = vmatprep.subr.mxu0 %v2019
    %2427 = vmatpush1.msra.mxu0 %v2018
    %2428 = vmatprep.subr.mxu0 %v2023
    %2429 = vmatpush1.msra.mxu0 %v2022
    %2430 = vmatprep.subr.mxu0 %v2027
    %2431 = vmatpush1.msra.mxu0 %v2026
    %2432 = vmatprep.subr.mxu0 %v2031
    %2433 = vmatpush1.msra.mxu0 %v2030
    %2434 = vmatprep.subr.mxu0 %v2035
    %2435 = vmatpush1.msra.mxu0 %v2034
    %2436 = vmatprep.subr.mxu0 %v2039
    %2437 = vmatpush1.msra.mxu0 %v2038
    %2438 = vmatprep.subr.mxu0 %v2043
    %2439 = vmatpush1.msra.mxu0 %v2042
    %2440 = vmatprep.subr.mxu0 0.0
    %2441 = vmatpush1.msra.mxu0 0.0
    %2442 = vmatprep.subr.mxu0 0.0
    %2443 = vmatpush1.msra.mxu0 0.0
    %2444 = vmatprep.subr.mxu0 0.0
    %2445 = vmatpush1.msra.mxu0 0.0
    %2446 = vmatprep.subr.mxu0 0.0
    %2447 = vmatpush1.msra.mxu0 0.0
    %2448 = vmatprep.subr.mxu0 0.0
    %2449 = vmatpush1.msra.mxu0 0.0
    %2450 = vmatprep.subr.mxu0 0.0
    %2451 = vmatpush1.msra.mxu0 0.0
    %2452 = vmatprep.subr.mxu0 0.0
    %2453 = vmatpush1.msra.mxu0 0.0
    %2454 = vmatprep.subr.mxu0 0.0
    %2455 = vmatpush1.msra.mxu0 0.0
    %2456 = vmatprep.subr.mxu0 0.0
    %2457 = vmatpush1.msra.mxu0 0.0
    %2458 = vmatprep.subr.mxu0 0.0
    %2459 = vmatpush1.msra.mxu0 0.0
    %2460 = vmatprep.subr.mxu0 0.0
    %2461 = vmatpush1.msra.mxu0 0.0
    %2462 = vmatprep.subr.mxu0 0.0
    %2463 = vmatpush1.msra.mxu0 0.0
    %2464 = vmatprep.subr.mxu0 0.0
    %2465 = vmatpush1.msra.mxu0 0.0
    %2466 = vmatprep.subr.mxu0 0.0
    %2467 = vmatpush1.msra.mxu0 0.0
    %2468 = vmatprep.subr.mxu0 0.0
    %2469 = vmatpush1.msra.mxu0 0.0
    %2470 = vmatprep.subr.mxu0 0.0
    %2471 = vmatpush1.msra.mxu0 0.0
    %2472 = vmatprep.mubr.f32.mxu0 0.0
    %2473 = vmatmul.mubr.f32.gmra.mrb[0].mxu0 0.0
    %v2474 = vpop.f32.mrb[0].mxu0
    %v2475 = vadd.f32 0.0, %v2474
    %v2476 = vpop.f32.mrb[0].mxu0
    %v2477 = vadd.f32 0.0, %v2476
    %2478 = vdwg.mxu0
    %v2479 = vadd.f32 %v2333, %v2404
    %v2480 = vadd.f32 %v2334, %v2406
    %v2481 = vadd.f32 %v2335, %v2475
    %v2482 = vadd.f32 %v2336, %v2477
    %v2483 = vxor.u32 %v2479, 2147483648
    %v2484 = vmul.f32 %v2483, 1.442695
    %v2485 = vpow.pop %v2484
    %v2486 = vadd.f32 %v2485, 1.0
    %v2487 = vrcp.pop %v2486
    %v2488 = vmul.f32 1.0, %v2487
    %v2489 = vxor.u32 %v2480, 2147483648
    %v2490 = vmul.f32 %v2489, 1.442695
    %v2491 = vpow.pop %v2490
    %v2492 = vadd.f32 %v2491, 1.0
    %v2493 = vrcp.pop %v2492
    %v2494 = vmul.f32 1.0, %v2493
    %v2495 = vtanh.pop %v2481
    %v2496 = vxor.u32 %v2482, 2147483648
    %v2497 = vmul.f32 %v2496, 1.442695
    %v2498 = vpow.pop %v2497
    %v2499 = vadd.f32 %v2498, 1.0
    %v2500 = vrcp.pop %v2499
    %v2501 = vmul.f32 1.0, %v2500
    %v2502 = vmul.f32 %v2494, 0.0
    %v2503 = vmul.f32 %v2488, %v2495
    %v2504 = vadd.f32 %v2502, %v2503
    %v2505 = vtanh.pop %v2504
    %v2506 = vmul.f32 %v2501, %v2505
    %2507 = vst [vmem:[#allocation2] sm:$0xff] %v2506
    %v2508 = vld [vmem:[%s675] sm:$0xff]
    %v2509 = vld [vmem:[%s675 + $0x8] sm:$0xff]
    %v2510 = vld [vmem:[%s675 + $0x10] sm:$0xff]
    %v2511 = vld [vmem:[%s675 + $0x18] sm:$0xff]
    %2512 = vmatprep.subr.mxu0 %v1981
    %2513 = vmatpush1.msra.mxu0 %v1980
    %2514 = vmatprep.subr.mxu0 %v1985
    %2515 = vmatpush1.msra.mxu0 %v1984
    %2516 = vmatprep.subr.mxu0 %v1989
    %2517 = vmatpush1.msra.mxu0 %v1988
    %2518 = vmatprep.subr.mxu0 %v1993
    %2519 = vmatpush1.msra.mxu0 %v1992
    %2520 = vmatprep.subr.mxu0 %v1997
    %2521 = vmatpush1.msra.mxu0 %v1996
    %2522 = vmatprep.subr.mxu0 %v2001
    %2523 = vmatpush1.msra.mxu0 %v2000
    %2524 = vmatprep.subr.mxu0 %v2005
    %2525 = vmatpush1.msra.mxu0 %v2004
    %2526 = vmatprep.subr.mxu0 %v2009
    %2527 = vmatpush1.msra.mxu0 %v2008
    %2528 = vmatprep.subr.mxu0 %v2013
    %2529 = vmatpush1.msra.mxu0 %v2012
    %2530 = vmatprep.subr.mxu0 %v2017
    %2531 = vmatpush1.msra.mxu0 %v2016
    %2532 = vmatprep.subr.mxu0 %v2021
    %2533 = vmatpush1.msra.mxu0 %v2020
    %2534 = vmatprep.subr.mxu0 %v2025
    %2535 = vmatpush1.msra.mxu0 %v2024
    %2536 = vmatprep.subr.mxu0 %v2029
    %2537 = vmatpush1.msra.mxu0 %v2028
    %2538 = vmatprep.subr.mxu0 %v2033
    %2539 = vmatpush1.msra.mxu0 %v2032
    %2540 = vmatprep.subr.mxu0 %v2037
    %2541 = vmatpush1.msra.mxu0 %v2036
    %2542 = vmatprep.subr.mxu0 %v2041
    %2543 = vmatpush1.msra.mxu0 %v2040
    %2544 = vmatprep.subr.mxu0 0.0
    %2545 = vmatpush1.msra.mxu0 0.0
    %2546 = vmatprep.subr.mxu0 0.0
    %2547 = vmatpush1.msra.mxu0 0.0
    %2548 = vmatprep.subr.mxu0 0.0
    %2549 = vmatpush1.msra.mxu0 0.0
    %2550 = vmatprep.subr.mxu0 0.0
    %2551 = vmatpush1.msra.mxu0 0.0
    %2552 = vmatprep.subr.mxu0 0.0
    %2553 = vmatpush1.msra.mxu0 0.0
    %2554 = vmatprep.subr.mxu0 0.0
    %2555 = vmatpush1.msra.mxu0 0.0
    %2556 = vmatprep.subr.mxu0 0.0
    %2557 = vmatpush1.msra.mxu0 0.0
    %2558 = vmatprep.subr.mxu0 0.0
    %2559 = vmatpush1.msra.mxu0 0.0
    %2560 = vmatprep.subr.mxu0 0.0
    %2561 = vmatpush1.msra.mxu0 0.0
    %2562 = vmatprep.subr.mxu0 0.0
    %2563 = vmatpush1.msra.mxu0 0.0
    %2564 = vmatprep.subr.mxu0 0.0
    %2565 = vmatpush1.msra.mxu0 0.0
    %2566 = vmatprep.subr.mxu0 0.0
    %2567 = vmatpush1.msra.mxu0 0.0
    %2568 = vmatprep.subr.mxu0 0.0
    %2569 = vmatpush1.msra.mxu0 0.0
    %2570 = vmatprep.subr.mxu0 0.0
    %2571 = vmatpush1.msra.mxu0 0.0
    %2572 = vmatprep.subr.mxu0 0.0
    %2573 = vmatpush1.msra.mxu0 0.0
    %2574 = vmatprep.subr.mxu0 0.0
    %2575 = vmatpush1.msra.mxu0 0.0
    %2576 = vmatprep.mubr.f32.mxu0 0.0
    %2577 = vmatmul.mubr.f32.gmra.mrb[0].mxu0 %v2506
    %v2578 = vpop.f32.mrb[0].mxu0
    %v2579 = vadd.f32 0.0, %v2578
    %v2580 = vpop.f32.mrb[0].mxu0
    %v2581 = vadd.f32 0.0, %v2580
    %2582 = vdwg.mxu0
    %2583 = vmatprep.subr.mxu0 %v1983
    %2584 = vmatpush1.msra.mxu0 %v1982
    %2585 = vmatprep.subr.mxu0 %v1987
    %2586 = vmatpush1.msra.mxu0 %v1986
    %2587 = vmatprep.subr.mxu0 %v1991
    %2588 = vmatpush1.msra.mxu0 %v1990
    %2589 = vmatprep.subr.mxu0 %v1995
    %2590 = vmatpush1.msra.mxu0 %v1994
    %2591 = vmatprep.subr.mxu0 %v1999
    %2592 = vmatpush1.msra.mxu0 %v1998
    %2593 = vmatprep.subr.mxu0 %v2003
    %2594 = vmatpush1.msra.mxu0 %v2002
    %2595 = vmatprep.subr.mxu0 %v2007
    %2596 = vmatpush1.msra.mxu0 %v2006
    %2597 = vmatprep.subr.mxu0 %v2011
    %2598 = vmatpush1.msra.mxu0 %v2010
    %2599 = vmatprep.subr.mxu0 %v2015
    %2600 = vmatpush1.msra.mxu0 %v2014
    %2601 = vmatprep.subr.mxu0 %v2019
    %2602 = vmatpush1.msra.mxu0 %v2018
    %2603 = vmatprep.subr.mxu0 %v2023
    %2604 = vmatpush1.msra.mxu0 %v2022
    %2605 = vmatprep.subr.mxu0 %v2027
    %2606 = vmatpush1.msra.mxu0 %v2026
    %2607 = vmatprep.subr.mxu0 %v2031
    %2608 = vmatpush1.msra.mxu0 %v2030
    %2609 = vmatprep.subr.mxu0 %v2035
    %2610 = vmatpush1.msra.mxu0 %v2034
    %2611 = vmatprep.subr.mxu0 %v2039
    %2612 = vmatpush1.msra.mxu0 %v2038
    %2613 = vmatprep.subr.mxu0 %v2043
    %2614 = vmatpush1.msra.mxu0 %v2042
    %2615 = vmatprep.subr.mxu0 0.0
    %2616 = vmatpush1.msra.mxu0 0.0
    %2617 = vmatprep.subr.mxu0 0.0
    %2618 = vmatpush1.msra.mxu0 0.0
    %2619 = vmatprep.subr.mxu0 0.0
    %2620 = vmatpush1.msra.mxu0 0.0
    %2621 = vmatprep.subr.mxu0 0.0
    %2622 = vmatpush1.msra.mxu0 0.0
    %2623 = vmatprep.subr.mxu0 0.0
    %2624 = vmatpush1.msra.mxu0 0.0
    %2625 = vmatprep.subr.mxu0 0.0
    %2626 = vmatpush1.msra.mxu0 0.0
    %2627 = vmatprep.subr.mxu0 0.0
    %2628 = vmatpush1.msra.mxu0 0.0
    %2629 = vmatprep.subr.mxu0 0.0
    %2630 = vmatpush1.msra.mxu0 0.0
    %2631 = vmatprep.subr.mxu0 0.0
    %2632 = vmatpush1.msra.mxu0 0.0
    %2633 = vmatprep.subr.mxu0 0.0
    %2634 = vmatpush1.msra.mxu0 0.0
    %2635 = vmatprep.subr.mxu0 0.0
    %2636 = vmatpush1.msra.mxu0 0.0
    %2637 = vmatprep.subr.mxu0 0.0
    %2638 = vmatpush1.msra.mxu0 0.0
    %2639 = vmatprep.subr.mxu0 0.0
    %2640 = vmatpush1.msra.mxu0 0.0
    %2641 = vmatprep.subr.mxu0 0.0
    %2642 = vmatpush1.msra.mxu0 0.0
    %2643 = vmatprep.subr.mxu0 0.0
    %2644 = vmatpush1.msra.mxu0 0.0
    %2645 = vmatprep.subr.mxu0 0.0
    %2646 = vmatpush1.msra.mxu0 0.0
    %2647 = vmatprep.mubr.f32.mxu0 0.0
    %2648 = vmatmul.mubr.f32.gmra.mrb[0].mxu0 %v2506
    %v2649 = vpop.f32.mrb[0].mxu0
    %v2650 = vadd.f32 0.0, %v2649
    %v2651 = vpop.f32.mrb[0].mxu0
    %v2652 = vadd.f32 0.0, %v2651
    %2653 = vdwg.mxu0
    %v2654 = vadd.f32 %v2508, %v2579
    %v2655 = vadd.f32 %v2509, %v2581
    %v2656 = vadd.f32 %v2510, %v2650
    %v2657 = vadd.f32 %v2511, %v2652
    %v2658 = vxor.u32 %v2654, 2147483648
    %v2659 = vmul.f32 %v2658, 1.442695
    %v2660 = vpow.pop %v2659
    %v2661 = vadd.f32 %v2660, 1.0
    %v2662 = vrcp.pop %v2661
    %v2663 = vmul.f32 1.0, %v2662
    %v2664 = vxor.u32 %v2655, 2147483648
    %v2665 = vmul.f32 %v2664, 1.442695
    %v2666 = vpow.pop %v2665
    %v2667 = vadd.f32 %v2666, 1.0
    %v2668 = vrcp.pop %v2667
    %v2669 = vmul.f32 1.0, %v2668
    %v2670 = vtanh.pop %v2656
    %v2671 = vxor.u32 %v2657, 2147483648
    %v2672 = vmul.f32 %v2671, 1.442695
    %v2673 = vpow.pop %v2672
    %v2674 = vadd.f32 %v2673, 1.0
    %v2675 = vrcp.pop %v2674
    %v2676 = vmul.f32 1.0, %v2675
    %v2677 = vmul.f32 %v2669, %v2504
    %v2678 = vmul.f32 %v2663, %v2670
    %v2679 = vadd.f32 %v2677, %v2678
    %v2680 = vtanh.pop %v2679
    %v2681 = vmul.f32 %v2676, %v2680
    %2682 = vst [vmem:[%s850] sm:$0xff] %v2681
    %v2683 = vld [vmem:[%s852] sm:$0xff]
    %v2684 = vld [vmem:[%s852 + $0x8] sm:$0xff]
    %v2685 = vld [vmem:[%s852 + $0x10] sm:$0xff]
    %v2686 = vld [vmem:[%s852 + $0x18] sm:$0xff]
    %2687 = vmatprep.subr.mxu0 %v1981
    %2688 = vmatpush1.msra.mxu0 %v1980
    %2689 = vmatprep.subr.mxu0 %v1985
    %2690 = vmatpush1.msra.mxu0 %v1984
    %2691 = vmatprep.subr.mxu0 %v1989
    %2692 = vmatpush1.msra.mxu0 %v1988
    %2693 = vmatprep.subr.mxu0 %v1993
    %2694 = vmatpush1.msra.mxu0 %v1992
    %2695 = vmatprep.subr.mxu0 %v1997
    %2696 = vmatpush1.msra.mxu0 %v1996
    %2697 = vmatprep.subr.mxu0 %v2001
    %2698 = vmatpush1.msra.mxu0 %v2000
    %2699 = vmatprep.subr.mxu0 %v2005
    %2700 = vmatpush1.msra.mxu0 %v2004
    %2701 = vmatprep.subr.mxu0 %v2009
    %2702 = vmatpush1.msra.mxu0 %v2008
    %2703 = vmatprep.subr.mxu0 %v2013
    %2704 = vmatpush1.msra.mxu0 %v2012
    %2705 = vmatprep.subr.mxu0 %v2017
    %2706 = vmatpush1.msra.mxu0 %v2016
    %2707 = vmatprep.subr.mxu0 %v2021
    %2708 = vmatpush1.msra.mxu0 %v2020
    %2709 = vmatprep.subr.mxu0 %v2025
    %2710 = vmatpush1.msra.mxu0 %v2024
    %2711 = vmatprep.subr.mxu0 %v2029
    %2712 = vmatpush1.msra.mxu0 %v2028
    %2713 = vmatprep.subr.mxu0 %v2033
    %2714 = vmatpush1.msra.mxu0 %v2032
    %2715 = vmatprep.subr.mxu0 %v2037
    %2716 = vmatpush1.msra.mxu0 %v2036
    %2717 = vmatprep.subr.mxu0 %v2041
    %2718 = vmatpush1.msra.mxu0 %v2040
    %2719 = vmatprep.subr.mxu0 0.0
    %2720 = vmatpush1.msra.mxu0 0.0
    %2721 = vmatprep.subr.mxu0 0.0
    %2722 = vmatpush1.msra.mxu0 0.0
    %2723 = vmatprep.subr.mxu0 0.0
    %2724 = vmatpush1.msra.mxu0 0.0
    %2725 = vmatprep.subr.mxu0 0.0
    %2726 = vmatpush1.msra.mxu0 0.0
    %2727 = vmatprep.subr.mxu0 0.0
    %2728 = vmatpush1.msra.mxu0 0.0
    %2729 = vmatprep.subr.mxu0 0.0
    %2730 = vmatpush1.msra.mxu0 0.0
    %2731 = vmatprep.subr.mxu0 0.0
    %2732 = vmatpush1.msra.mxu0 0.0
    %2733 = vmatprep.subr.mxu0 0.0
    %2734 = vmatpush1.msra.mxu0 0.0
    %2735 = vmatprep.subr.mxu0 0.0
    %2736 = vmatpush1.msra.mxu0 0.0
    %2737 = vmatprep.subr.mxu0 0.0
    %2738 = vmatpush1.msra.mxu0 0.0
    %2739 = vmatprep.subr.mxu0 0.0
    %2740 = vmatpush1.msra.mxu0 0.0
    %2741 = vmatprep.subr.mxu0 0.0
    %2742 = vmatpush1.msra.mxu0 0.0
    %2743 = vmatprep.subr.mxu0 0.0
    %2744 = vmatpush1.msra.mxu0 0.0
    %2745 = vmatprep.subr.mxu0 0.0
    %2746 = vmatpush1.msra.mxu0 0.0
    %2747 = vmatprep.subr.mxu0 0.0
    %2748 = vmatpush1.msra.mxu0 0.0
    %2749 = vmatprep.subr.mxu0 0.0
    %2750 = vmatpush1.msra.mxu0 0.0
    %2751 = vmatprep.mubr.f32.mxu0 0.0
    %2752 = vmatmul.mubr.f32.gmra.mrb[0].mxu0 %v2681
    %v2753 = vpop.f32.mrb[0].mxu0
    %v2754 = vadd.f32 0.0, %v2753
    %v2755 = vpop.f32.mrb[0].mxu0
    %v2756 = vadd.f32 0.0, %v2755
    %2757 = vdwg.mxu0
    %2758 = vmatprep.subr.mxu0 %v1983
    %2759 = vmatpush1.msra.mxu0 %v1982
    %2760 = vmatprep.subr.mxu0 %v1987
    %2761 = vmatpush1.msra.mxu0 %v1986
    %2762 = vmatprep.subr.mxu0 %v1991
    %2763 = vmatpush1.msra.mxu0 %v1990
    %2764 = vmatprep.subr.mxu0 %v1995
    %2765 = vmatpush1.msra.mxu0 %v1994
    %2766 = vmatprep.subr.mxu0 %v1999
    %2767 = vmatpush1.msra.mxu0 %v1998
    %2768 = vmatprep.subr.mxu0 %v2003
    %2769 = vmatpush1.msra.mxu0 %v2002
    %2770 = vmatprep.subr.mxu0 %v2007
    %2771 = vmatpush1.msra.mxu0 %v2006
    %2772 = vmatprep.subr.mxu0 %v2011
    %2773 = vmatpush1.msra.mxu0 %v2010
    %2774 = vmatprep.subr.mxu0 %v2015
    %2775 = vmatpush1.msra.mxu0 %v2014
    %2776 = vmatprep.subr.mxu0 %v2019
    %2777 = vmatpush1.msra.mxu0 %v2018
    %2778 = vmatprep.subr.mxu0 %v2023
    %2779 = vmatpush1.msra.mxu0 %v2022
    %2780 = vmatprep.subr.mxu0 %v2027
    %2781 = vmatpush1.msra.mxu0 %v2026
    %2782 = vmatprep.subr.mxu0 %v2031
    %2783 = vmatpush1.msra.mxu0 %v2030
    %2784 = vmatprep.subr.mxu0 %v2035
    %2785 = vmatpush1.msra.mxu0 %v2034
    %2786 = vmatprep.subr.mxu0 %v2039
    %2787 = vmatpush1.msra.mxu0 %v2038
    %2788 = vmatprep.subr.mxu0 %v2043
    %2789 = vmatpush1.msra.mxu0 %v2042
    %2790 = vmatprep.subr.mxu0 0.0
    %2791 = vmatpush1.msra.mxu0 0.0
    %2792 = vmatprep.subr.mxu0 0.0
    %2793 = vmatpush1.msra.mxu0 0.0
    %2794 = vmatprep.subr.mxu0 0.0
    %2795 = vmatpush1.msra.mxu0 0.0
    %2796 = vmatprep.subr.mxu0 0.0
    %2797 = vmatpush1.msra.mxu0 0.0
    %2798 = vmatprep.subr.mxu0 0.0
    %2799 = vmatpush1.msra.mxu0 0.0
    %2800 = vmatprep.subr.mxu0 0.0
    %2801 = vmatpush1.msra.mxu0 0.0
    %2802 = vmatprep.subr.mxu0 0.0
    %2803 = vmatpush1.msra.mxu0 0.0
    %2804 = vmatprep.subr.mxu0 0.0
    %2805 = vmatpush1.msra.mxu0 0.0
    %2806 = vmatprep.subr.mxu0 0.0
    %2807 = vmatpush1.msra.mxu0 0.0
    %2808 = vmatprep.subr.mxu0 0.0
    %2809 = vmatpush1.msra.mxu0 0.0
    %2810 = vmatprep.subr.mxu0 0.0
    %2811 = vmatpush1.msra.mxu0 0.0
    %2812 = vmatprep.subr.mxu0 0.0
    %2813 = vmatpush1.msra.mxu0 0.0
    %2814 = vmatprep.subr.mxu0 0.0
    %2815 = vmatpush1.msra.mxu0 0.0
    %2816 = vmatprep.subr.mxu0 0.0
    %2817 = vmatpush1.msra.mxu0 0.0
    %2818 = vmatprep.subr.mxu0 0.0
    %2819 = vmatpush1.msra.mxu0 0.0
    %2820 = vmatprep.subr.mxu0 0.0
    %2821 = vmatpush1.msra.mxu0 0.0
    %2822 = vmatprep.mubr.f32.mxu0 0.0
    %2823 = vmatmul.mubr.f32.gmra.mrb[0].mxu0 %v2681
    %v2824 = vpop.f32.mrb[0].mxu0
    %v2825 = vadd.f32 0.0, %v2824
    %v2826 = vpop.f32.mrb[0].mxu0
    %v2827 = vadd.f32 0.0, %v2826
    %2828 = vdwg.mxu0
    %v2829 = vadd.f32 %v2683, %v2754
    %v2830 = vadd.f32 %v2684, %v2756
    %v2831 = vadd.f32 %v2685, %v2825
    %v2832 = vadd.f32 %v2686, %v2827
    %v2833 = vxor.u32 %v2829, 2147483648
    %v2834 = vmul.f32 %v2833, 1.442695
    %v2835 = vpow.pop %v2834
    %v2836 = vadd.f32 %v2835, 1.0
    %v2837 = vrcp.pop %v2836
    %v2838 = vmul.f32 1.0, %v2837
    %v2839 = vxor.u32 %v2830, 2147483648
    %v2840 = vmul.f32 %v2839, 1.442695
    %v2841 = vpow.pop %v2840
    %v2842 = vadd.f32 %v2841, 1.0
    %v2843 = vrcp.pop %v2842
    %v2844 = vmul.f32 1.0, %v2843
    %v2845 = vtanh.pop %v2831
    %v2846 = vxor.u32 %v2832, 2147483648
    %v2847 = vmul.f32 %v2846, 1.442695
    %v2848 = vpow.pop %v2847
    %v2849 = vadd.f32 %v2848, 1.0
    %v2850 = vrcp.pop %v2849
    %v2851 = vmul.f32 1.0, %v2850
    %v2852 = vmul.f32 %v2844, %v2679
    %v2853 = vmul.f32 %v2838, %v2845
    %v2854 = vadd.f32 %v2852, %v2853
    %v2855 = vtanh.pop %v2854
    %v2856 = vmul.f32 %v2851, %v2855
    %2857 = vst [vmem:[%s1027] sm:$0xff] %v2856
    %v2858 = vld [vmem:[%s1029] sm:$0xff]
    %v2859 = vld [vmem:[%s1029 + $0x8] sm:$0xff]
    %v2860 = vld [vmem:[%s1029 + $0x10] sm:$0xff]
    %v2861 = vld [vmem:[%s1029 + $0x18] sm:$0xff]
    %2862 = vmatprep.subr.mxu0 %v1981
    %2863 = vmatpush1.msra.mxu0 %v1980
    %2864 = vmatprep.subr.mxu0 %v1985
    %2865 = vmatpush1.msra.mxu0 %v1984
    %2866 = vmatprep.subr.mxu0 %v1989
    %2867 = vmatpush1.msra.mxu0 %v1988
    %2868 = vmatprep.subr.mxu0 %v1993
    %2869 = vmatpush1.msra.mxu0 %v1992
    %2870 = vmatprep.subr.mxu0 %v1997
    %2871 = vmatpush1.msra.mxu0 %v1996
    %2872 = vmatprep.subr.mxu0 %v2001
    %2873 = vmatpush1.msra.mxu0 %v2000
    %2874 = vmatprep.subr.mxu0 %v2005
    %2875 = vmatpush1.msra.mxu0 %v2004
    %2876 = vmatprep.subr.mxu0 %v2009
    %2877 = vmatpush1.msra.mxu0 %v2008
    %2878 = vmatprep.subr.mxu0 %v2013
    %2879 = vmatpush1.msra.mxu0 %v2012
    %2880 = vmatprep.subr.mxu0 %v2017
    %2881 = vmatpush1.msra.mxu0 %v2016
    %2882 = vmatprep.subr.mxu0 %v2021
    %2883 = vmatpush1.msra.mxu0 %v2020
    %2884 = vmatprep.subr.mxu0 %v2025
    %2885 = vmatpush1.msra.mxu0 %v2024
    %2886 = vmatprep.subr.mxu0 %v2029
    %2887 = vmatpush1.msra.mxu0 %v2028
    %2888 = vmatprep.subr.mxu0 %v2033
    %2889 = vmatpush1.msra.mxu0 %v2032
    %2890 = vmatprep.subr.mxu0 %v2037
    %2891 = vmatpush1.msra.mxu0 %v2036
    %2892 = vmatprep.subr.mxu0 %v2041
    %2893 = vmatpush1.msra.mxu0 %v2040
    %2894 = vmatprep.subr.mxu0 0.0
    %2895 = vmatpush1.msra.mxu0 0.0
    %2896 = vmatprep.subr.mxu0 0.0
    %2897 = vmatpush1.msra.mxu0 0.0
    %2898 = vmatprep.subr.mxu0 0.0
    %2899 = vmatpush1.msra.mxu0 0.0
    %2900 = vmatprep.subr.mxu0 0.0
    %2901 = vmatpush1.msra.mxu0 0.0
    %2902 = vmatprep.subr.mxu0 0.0
    %2903 = vmatpush1.msra.mxu0 0.0
    %2904 = vmatprep.subr.mxu0 0.0
    %2905 = vmatpush1.msra.mxu0 0.0
    %2906 = vmatprep.subr.mxu0 0.0
    %2907 = vmatpush1.msra.mxu0 0.0
    %2908 = vmatprep.subr.mxu0 0.0
    %2909 = vmatpush1.msra.mxu0 0.0
    %2910 = vmatprep.subr.mxu0 0.0
    %2911 = vmatpush1.msra.mxu0 0.0
    %2912 = vmatprep.subr.mxu0 0.0
    %2913 = vmatpush1.msra.mxu0 0.0
    %2914 = vmatprep.subr.mxu0 0.0
    %2915 = vmatpush1.msra.mxu0 0.0
    %2916 = vmatprep.subr.mxu0 0.0
    %2917 = vmatpush1.msra.mxu0 0.0
    %2918 = vmatprep.subr.mxu0 0.0
    %2919 = vmatpush1.msra.mxu0 0.0
    %2920 = vmatprep.subr.mxu0 0.0
    %2921 = vmatpush1.msra.mxu0 0.0
    %2922 = vmatprep.subr.mxu0 0.0
    %2923 = vmatpush1.msra.mxu0 0.0
    %2924 = vmatprep.subr.mxu0 0.0
    %2925 = vmatpush1.msra.mxu0 0.0
    %2926 = vmatprep.mubr.f32.mxu0 0.0
    %2927 = vmatmul.mubr.f32.gmra.mrb[0].mxu0 %v2856
    %v2928 = vpop.f32.mrb[0].mxu0
    %v2929 = vadd.f32 0.0, %v2928
    %v2930 = vpop.f32.mrb[0].mxu0
    %v2931 = vadd.f32 0.0, %v2930
    %2932 = vdwg.mxu0
    %2933 = vmatprep.subr.mxu0 %v1983
    %2934 = vmatpush1.msra.mxu0 %v1982
    %2935 = vmatprep.subr.mxu0 %v1987
    %2936 = vmatpush1.msra.mxu0 %v1986
    %2937 = vmatprep.subr.mxu0 %v1991
    %2938 = vmatpush1.msra.mxu0 %v1990
    %2939 = vmatprep.subr.mxu0 %v1995
    %2940 = vmatpush1.msra.mxu0 %v1994
    %2941 = vmatprep.subr.mxu0 %v1999
    %2942 = vmatpush1.msra.mxu0 %v1998
    %2943 = vmatprep.subr.mxu0 %v2003
    %2944 = vmatpush1.msra.mxu0 %v2002
    %2945 = vmatprep.subr.mxu0 %v2007
    %2946 = vmatpush1.msra.mxu0 %v2006
    %2947 = vmatprep.subr.mxu0 %v2011
    %2948 = vmatpush1.msra.mxu0 %v2010
    %2949 = vmatprep.subr.mxu0 %v2015
    %2950 = vmatpush1.msra.mxu0 %v2014
    %2951 = vmatprep.subr.mxu0 %v2019
    %2952 = vmatpush1.msra.mxu0 %v2018
    %2953 = vmatprep.subr.mxu0 %v2023
    %2954 = vmatpush1.msra.mxu0 %v2022
    %2955 = vmatprep.subr.mxu0 %v2027
    %2956 = vmatpush1.msra.mxu0 %v2026
    %2957 = vmatprep.subr.mxu0 %v2031
    %2958 = vmatpush1.msra.mxu0 %v2030
    %2959 = vmatprep.subr.mxu0 %v2035
    %2960 = vmatpush1.msra.mxu0 %v2034
    %2961 = vmatprep.subr.mxu0 %v2039
    %2962 = vmatpush1.msra.mxu0 %v2038
    %2963 = vmatprep.subr.mxu0 %v2043
    %2964 = vmatpush1.msra.mxu0 %v2042
    %2965 = vmatprep.subr.mxu0 0.0
    %2966 = vmatpush1.msra.mxu0 0.0
    %2967 = vmatprep.subr.mxu0 0.0
    %2968 = vmatpush1.msra.mxu0 0.0
    %2969 = vmatprep.subr.mxu0 0.0
    %2970 = vmatpush1.msra.mxu0 0.0
    %2971 = vmatprep.subr.mxu0 0.0
    %2972 = vmatpush1.msra.mxu0 0.0
    %2973 = vmatprep.subr.mxu0 0.0
    %2974 = vmatpush1.msra.mxu0 0.0
    %2975 = vmatprep.subr.mxu0 0.0
    %2976 = vmatpush1.msra.mxu0 0.0
    %2977 = vmatprep.subr.mxu0 0.0
    %2978 = vmatpush1.msra.mxu0 0.0
    %2979 = vmatprep.subr.mxu0 0.0
    %2980 = vmatpush1.msra.mxu0 0.0
    %2981 = vmatprep.subr.mxu0 0.0
    %2982 = vmatpush1.msra.mxu0 0.0
    %2983 = vmatprep.subr.mxu0 0.0
    %2984 = vmatpush1.msra.mxu0 0.0
    %2985 = vmatprep.subr.mxu0 0.0
    %2986 = vmatpush1.msra.mxu0 0.0
    %2987 = vmatprep.subr.mxu0 0.0
    %2988 = vmatpush1.msra.mxu0 0.0
    %2989 = vmatprep.subr.mxu0 0.0
    %2990 = vmatpush1.msra.mxu0 0.0
    %2991 = vmatprep.subr.mxu0 0.0
    %2992 = vmatpush1.msra.mxu0 0.0
    %2993 = vmatprep.subr.mxu0 0.0
    %2994 = vmatpush1.msra.mxu0 0.0
    %2995 = vmatprep.subr.mxu0 0.0
    %2996 = vmatpush1.msra.mxu0 0.0
    %2997 = vmatprep.mubr.f32.mxu0 0.0
    %2998 = vmatmul.mubr.f32.gmra.mrb[0].mxu0 %v2856
    %v2999 = vpop.f32.mrb[0].mxu0
    %v3000 = vadd.f32 0.0, %v2999
    %v3001 = vpop.f32.mrb[0].mxu0
    %v3002 = vadd.f32 0.0, %v3001
    %3003 = vdwg.mxu0
    %v3004 = vadd.f32 %v2858, %v2929
    %v3005 = vadd.f32 %v2859, %v2931
    %v3006 = vadd.f32 %v2860, %v3000
    %v3007 = vadd.f32 %v2861, %v3002
    %v3008 = vxor.u32 %v3004, 2147483648
    %v3009 = vmul.f32 %v3008, 1.442695
    %v3010 = vpow.pop %v3009
    %v3011 = vadd.f32 %v3010, 1.0
    %v3012 = vrcp.pop %v3011
    %v3013 = vmul.f32 1.0, %v3012
    %v3014 = vxor.u32 %v3005, 2147483648
    %v3015 = vmul.f32 %v3014, 1.442695
    %v3016 = vpow.pop %v3015
    %v3017 = vadd.f32 %v3016, 1.0
    %v3018 = vrcp.pop %v3017
    %v3019 = vmul.f32 1.0, %v3018
    %v3020 = vtanh.pop %v3006
    %v3021 = vxor.u32 %v3007, 2147483648
    %v3022 = vmul.f32 %v3021, 1.442695
    %v3023 = vpow.pop %v3022
    %v3024 = vadd.f32 %v3023, 1.0
    %v3025 = vrcp.pop %v3024
    %v3026 = vmul.f32 1.0, %v3025
    %v3027 = vmul.f32 %v3019, %v2854
    %v3028 = vmul.f32 %v3013, %v3020
    %v3029 = vadd.f32 %v3027, %v3028
    %v3030 = vtanh.pop %v3029
    %v3031 = vmul.f32 %v3026, %v3030
    %3032 = vst [vmem:[%s1204] sm:$0xff] %v3031
    %v3033 = vld [vmem:[%s1206] sm:$0xff]
    %v3034 = vld [vmem:[%s1206 + $0x8] sm:$0xff]
    %v3035 = vld [vmem:[%s1206 + $0x10] sm:$0xff]
    %v3036 = vld [vmem:[%s1206 + $0x18] sm:$0xff]
    %3037 = vmatprep.subr.mxu0 %v1981
    %3038 = vmatpush1.msra.mxu0 %v1980
    %3039 = vmatprep.subr.mxu0 %v1985
    %3040 = vmatpush1.msra.mxu0 %v1984
    %3041 = vmatprep.subr.mxu0 %v1989
    %3042 = vmatpush1.msra.mxu0 %v1988
    %3043 = vmatprep.subr.mxu0 %v1993
    %3044 = vmatpush1.msra.mxu0 %v1992
    %3045 = vmatprep.subr.mxu0 %v1997
    %3046 = vmatpush1.msra.mxu0 %v1996
    %3047 = vmatprep.subr.mxu0 %v2001
    %3048 = vmatpush1.msra.mxu0 %v2000
    %3049 = vmatprep.subr.mxu0 %v2005
    %3050 = vmatpush1.msra.mxu0 %v2004
    %3051 = vmatprep.subr.mxu0 %v2009
    %3052 = vmatpush1.msra.mxu0 %v2008
    %3053 = vmatprep.subr.mxu0 %v2013
    %3054 = vmatpush1.msra.mxu0 %v2012
    %3055 = vmatprep.subr.mxu0 %v2017
    %3056 = vmatpush1.msra.mxu0 %v2016
    %3057 = vmatprep.subr.mxu0 %v2021
    %3058 = vmatpush1.msra.mxu0 %v2020
    %3059 = vmatprep.subr.mxu0 %v2025
    %3060 = vmatpush1.msra.mxu0 %v2024
    %3061 = vmatprep.subr.mxu0 %v2029
    %3062 = vmatpush1.msra.mxu0 %v2028
    %3063 = vmatprep.subr.mxu0 %v2033
    %3064 = vmatpush1.msra.mxu0 %v2032
    %3065 = vmatprep.subr.mxu0 %v2037
    %3066 = vmatpush1.msra.mxu0 %v2036
    %3067 = vmatprep.subr.mxu0 %v2041
    %3068 = vmatpush1.msra.mxu0 %v2040
    %3069 = vmatprep.subr.mxu0 0.0
    %3070 = vmatpush1.msra.mxu0 0.0
    %3071 = vmatprep.subr.mxu0 0.0
    %3072 = vmatpush1.msra.mxu0 0.0
    %3073 = vmatprep.subr.mxu0 0.0
    %3074 = vmatpush1.msra.mxu0 0.0
    %3075 = vmatprep.subr.mxu0 0.0
    %3076 = vmatpush1.msra.mxu0 0.0
    %3077 = vmatprep.subr.mxu0 0.0
    %3078 = vmatpush1.msra.mxu0 0.0
    %3079 = vmatprep.subr.mxu0 0.0
    %3080 = vmatpush1.msra.mxu0 0.0
    %3081 = vmatprep.subr.mxu0 0.0
    %3082 = vmatpush1.msra.mxu0 0.0
    %3083 = vmatprep.subr.mxu0 0.0
    %3084 = vmatpush1.msra.mxu0 0.0
    %3085 = vmatprep.subr.mxu0 0.0
    %3086 = vmatpush1.msra.mxu0 0.0
    %3087 = vmatprep.subr.mxu0 0.0
    %3088 = vmatpush1.msra.mxu0 0.0
    %3089 = vmatprep.subr.mxu0 0.0
    %3090 = vmatpush1.msra.mxu0 0.0
    %3091 = vmatprep.subr.mxu0 0.0
    %3092 = vmatpush1.msra.mxu0 0.0
    %3093 = vmatprep.subr.mxu0 0.0
    %3094 = vmatpush1.msra.mxu0 0.0
    %3095 = vmatprep.subr.mxu0 0.0
    %3096 = vmatpush1.msra.mxu0 0.0
    %3097 = vmatprep.subr.mxu0 0.0
    %3098 = vmatpush1.msra.mxu0 0.0
    %3099 = vmatprep.subr.mxu0 0.0
    %3100 = vmatpush1.msra.mxu0 0.0
    %3101 = vmatprep.mubr.f32.mxu0 0.0
    %3102 = vmatmul.mubr.f32.gmra.mrb[0].mxu0 %v3031
    %v3103 = vpop.f32.mrb[0].mxu0
    %v3104 = vadd.f32 0.0, %v3103
    %v3105 = vpop.f32.mrb[0].mxu0
    %v3106 = vadd.f32 0.0, %v3105
    %3107 = vdwg.mxu0
    %3108 = vmatprep.subr.mxu0 %v1983
    %3109 = vmatpush1.msra.mxu0 %v1982
    %3110 = vmatprep.subr.mxu0 %v1987
    %3111 = vmatpush1.msra.mxu0 %v1986
    %3112 = vmatprep.subr.mxu0 %v1991
    %3113 = vmatpush1.msra.mxu0 %v1990
    %3114 = vmatprep.subr.mxu0 %v1995
    %3115 = vmatpush1.msra.mxu0 %v1994
    %3116 = vmatprep.subr.mxu0 %v1999
    %3117 = vmatpush1.msra.mxu0 %v1998
    %3118 = vmatprep.subr.mxu0 %v2003
    %3119 = vmatpush1.msra.mxu0 %v2002
    %3120 = vmatprep.subr.mxu0 %v2007
    %3121 = vmatpush1.msra.mxu0 %v2006
    %3122 = vmatprep.subr.mxu0 %v2011
    %3123 = vmatpush1.msra.mxu0 %v2010
    %3124 = vmatprep.subr.mxu0 %v2015
    %3125 = vmatpush1.msra.mxu0 %v2014
    %3126 = vmatprep.subr.mxu0 %v2019
    %3127 = vmatpush1.msra.mxu0 %v2018
    %3128 = vmatprep.subr.mxu0 %v2023
    %3129 = vmatpush1.msra.mxu0 %v2022
    %3130 = vmatprep.subr.mxu0 %v2027
    %3131 = vmatpush1.msra.mxu0 %v2026
    %3132 = vmatprep.subr.mxu0 %v2031
    %3133 = vmatpush1.msra.mxu0 %v2030
    %3134 = vmatprep.subr.mxu0 %v2035
    %3135 = vmatpush1.msra.mxu0 %v2034
    %3136 = vmatprep.subr.mxu0 %v2039
    %3137 = vmatpush1.msra.mxu0 %v2038
    %3138 = vmatprep.subr.mxu0 %v2043
    %3139 = vmatpush1.msra.mxu0 %v2042
    %3140 = vmatprep.subr.mxu0 0.0
    %3141 = vmatpush1.msra.mxu0 0.0
    %3142 = vmatprep.subr.mxu0 0.0
    %3143 = vmatpush1.msra.mxu0 0.0
    %3144 = vmatprep.subr.mxu0 0.0
    %3145 = vmatpush1.msra.mxu0 0.0
    %3146 = vmatprep.subr.mxu0 0.0
    %3147 = vmatpush1.msra.mxu0 0.0
    %3148 = vmatprep.subr.mxu0 0.0
    %3149 = vmatpush1.msra.mxu0 0.0
    %3150 = vmatprep.subr.mxu0 0.0
    %3151 = vmatpush1.msra.mxu0 0.0
    %3152 = vmatprep.subr.mxu0 0.0
    %3153 = vmatpush1.msra.mxu0 0.0
    %3154 = vmatprep.subr.mxu0 0.0
    %3155 = vmatpush1.msra.mxu0 0.0
    %3156 = vmatprep.subr.mxu0 0.0
    %3157 = vmatpush1.msra.mxu0 0.0
    %3158 = vmatprep.subr.mxu0 0.0
    %3159 = vmatpush1.msra.mxu0 0.0
    %3160 = vmatprep.subr.mxu0 0.0
    %3161 = vmatpush1.msra.mxu0 0.0
    %3162 = vmatprep.subr.mxu0 0.0
    %3163 = vmatpush1.msra.mxu0 0.0
    %3164 = vmatprep.subr.mxu0 0.0
    %3165 = vmatpush1.msra.mxu0 0.0
    %3166 = vmatprep.subr.mxu0 0.0
    %3167 = vmatpush1.msra.mxu0 0.0
    %3168 = vmatprep.subr.mxu0 0.0
    %3169 = vmatpush1.msra.mxu0 0.0
    %3170 = vmatprep.subr.mxu0 0.0
    %3171 = vmatpush1.msra.mxu0 0.0
    %3172 = vmatprep.mubr.f32.mxu0 0.0
    %3173 = vmatmul.mubr.f32.gmra.mrb[0].mxu0 %v3031
    %v3174 = vpop.f32.mrb[0].mxu0
    %v3175 = vadd.f32 0.0, %v3174
    %v3176 = vpop.f32.mrb[0].mxu0
    %v3177 = vadd.f32 0.0, %v3176
    %3178 = vdwg.mxu0
    %v3179 = vadd.f32 %v3033, %v3104
    %v3180 = vadd.f32 %v3034, %v3106
    %v3181 = vadd.f32 %v3035, %v3175
    %v3182 = vadd.f32 %v3036, %v3177
    %v3183 = vxor.u32 %v3179, 2147483648
    %v3184 = vmul.f32 %v3183, 1.442695
    %v3185 = vpow.pop %v3184
    %v3186 = vadd.f32 %v3185, 1.0
    %v3187 = vrcp.pop %v3186
    %v3188 = vmul.f32 1.0, %v3187
    %v3189 = vxor.u32 %v3180, 2147483648
    %v3190 = vmul.f32 %v3189, 1.442695
    %v3191 = vpow.pop %v3190
    %v3192 = vadd.f32 %v3191, 1.0
    %v3193 = vrcp.pop %v3192
    %v3194 = vmul.f32 1.0, %v3193
    %v3195 = vtanh.pop %v3181
    %v3196 = vxor.u32 %v3182, 2147483648
    %v3197 = vmul.f32 %v3196, 1.442695
    %v3198 = vpow.pop %v3197
    %v3199 = vadd.f32 %v3198, 1.0
    %v3200 = vrcp.pop %v3199
    %v3201 = vmul.f32 1.0, %v3200
    %v3202 = vmul.f32 %v3194, %v3029
    %v3203 = vmul.f32 %v3188, %v3195
    %v3204 = vadd.f32 %v3202, %v3203
    %v3205 = vtanh.pop %v3204
    %v3206 = vmul.f32 %v3201, %v3205
    %3207 = vst [vmem:[%s1381] sm:$0xff] %v3206
    %v3208 = vld [vmem:[%s1383] sm:$0xff]
    %v3209 = vld [vmem:[%s1383 + $0x8] sm:$0xff]
    %v3210 = vld [vmem:[%s1383 + $0x10] sm:$0xff]
    %v3211 = vld [vmem:[%s1383 + $0x18] sm:$0xff]
    %3212 = vmatprep.subr.mxu0 %v1981
    %3213 = vmatpush1.msra.mxu0 %v1980
    %3214 = vmatprep.subr.mxu0 %v1985
    %3215 = vmatpush1.msra.mxu0 %v1984
    %3216 = vmatprep.subr.mxu0 %v1989
    %3217 = vmatpush1.msra.mxu0 %v1988
    %3218 = vmatprep.subr.mxu0 %v1993
    %3219 = vmatpush1.msra.mxu0 %v1992
    %3220 = vmatprep.subr.mxu0 %v1997
    %3221 = vmatpush1.msra.mxu0 %v1996
    %3222 = vmatprep.subr.mxu0 %v2001
    %3223 = vmatpush1.msra.mxu0 %v2000
    %3224 = vmatprep.subr.mxu0 %v2005
    %3225 = vmatpush1.msra.mxu0 %v2004
    %3226 = vmatprep.subr.mxu0 %v2009
    %3227 = vmatpush1.msra.mxu0 %v2008
    %3228 = vmatprep.subr.mxu0 %v2013
    %3229 = vmatpush1.msra.mxu0 %v2012
    %3230 = vmatprep.subr.mxu0 %v2017
    %3231 = vmatpush1.msra.mxu0 %v2016
    %3232 = vmatprep.subr.mxu0 %v2021
    %3233 = vmatpush1.msra.mxu0 %v2020
    %3234 = vmatprep.subr.mxu0 %v2025
    %3235 = vmatpush1.msra.mxu0 %v2024
    %3236 = vmatprep.subr.mxu0 %v2029
    %3237 = vmatpush1.msra.mxu0 %v2028
    %3238 = vmatprep.subr.mxu0 %v2033
    %3239 = vmatpush1.msra.mxu0 %v2032
    %3240 = vmatprep.subr.mxu0 %v2037
    %3241 = vmatpush1.msra.mxu0 %v2036
    %3242 = vmatprep.subr.mxu0 %v2041
    %3243 = vmatpush1.msra.mxu0 %v2040
    %3244 = vmatprep.subr.mxu0 0.0
    %3245 = vmatpush1.msra.mxu0 0.0
    %3246 = vmatprep.subr.mxu0 0.0
    %3247 = vmatpush1.msra.mxu0 0.0
    %3248 = vmatprep.subr.mxu0 0.0
    %3249 = vmatpush1.msra.mxu0 0.0
    %3250 = vmatprep.subr.mxu0 0.0
    %3251 = vmatpush1.msra.mxu0 0.0
    %3252 = vmatprep.subr.mxu0 0.0
    %3253 = vmatpush1.msra.mxu0 0.0
    %3254 = vmatprep.subr.mxu0 0.0
    %3255 = vmatpush1.msra.mxu0 0.0
    %3256 = vmatprep.subr.mxu0 0.0
    %3257 = vmatpush1.msra.mxu0 0.0
    %3258 = vmatprep.subr.mxu0 0.0
    %3259 = vmatpush1.msra.mxu0 0.0
    %3260 = vmatprep.subr.mxu0 0.0
    %3261 = vmatpush1.msra.mxu0 0.0
    %3262 = vmatprep.subr.mxu0 0.0
    %3263 = vmatpush1.msra.mxu0 0.0
    %3264 = vmatprep.subr.mxu0 0.0
    %3265 = vmatpush1.msra.mxu0 0.0
    %3266 = vmatprep.subr.mxu0 0.0
    %3267 = vmatpush1.msra.mxu0 0.0
    %3268 = vmatprep.subr.mxu0 0.0
    %3269 = vmatpush1.msra.mxu0 0.0
    %3270 = vmatprep.subr.mxu0 0.0
    %3271 = vmatpush1.msra.mxu0 0.0
    %3272 = vmatprep.subr.mxu0 0.0
    %3273 = vmatpush1.msra.mxu0 0.0
    %3274 = vmatprep.subr.mxu0 0.0
    %3275 = vmatpush1.msra.mxu0 0.0
    %3276 = vmatprep.mubr.f32.mxu0 0.0
    %3277 = vmatmul.mubr.f32.gmra.mrb[0].mxu0 %v3206
    %v3278 = vpop.f32.mrb[0].mxu0
    %v3279 = vadd.f32 0.0, %v3278
    %v3280 = vpop.f32.mrb[0].mxu0
    %v3281 = vadd.f32 0.0, %v3280
    %3282 = vdwg.mxu0
    %3283 = vmatprep.subr.mxu0 %v1983
    %3284 = vmatpush1.msra.mxu0 %v1982
    %3285 = vmatprep.subr.mxu0 %v1987
    %3286 = vmatpush1.msra.mxu0 %v1986
    %3287 = vmatprep.subr.mxu0 %v1991
    %3288 = vmatpush1.msra.mxu0 %v1990
    %3289 = vmatprep.subr.mxu0 %v1995
    %3290 = vmatpush1.msra.mxu0 %v1994
    %3291 = vmatprep.subr.mxu0 %v1999
    %3292 = vmatpush1.msra.mxu0 %v1998
    %3293 = vmatprep.subr.mxu0 %v2003
    %3294 = vmatpush1.msra.mxu0 %v2002
    %3295 = vmatprep.subr.mxu0 %v2007
    %3296 = vmatpush1.msra.mxu0 %v2006
    %3297 = vmatprep.subr.mxu0 %v2011
    %3298 = vmatpush1.msra.mxu0 %v2010
    %3299 = vmatprep.subr.mxu0 %v2015
    %3300 = vmatpush1.msra.mxu0 %v2014
    %3301 = vmatprep.subr.mxu0 %v2019
    %3302 = vmatpush1.msra.mxu0 %v2018
    %3303 = vmatprep.subr.mxu0 %v2023
    %3304 = vmatpush1.msra.mxu0 %v2022
    %3305 = vmatprep.subr.mxu0 %v2027
    %3306 = vmatpush1.msra.mxu0 %v2026
    %3307 = vmatprep.subr.mxu0 %v2031
    %3308 = vmatpush1.msra.mxu0 %v2030
    %3309 = vmatprep.subr.mxu0 %v2035
    %3310 = vmatpush1.msra.mxu0 %v2034
    %3311 = vmatprep.subr.mxu0 %v2039
    %3312 = vmatpush1.msra.mxu0 %v2038
    %3313 = vmatprep.subr.mxu0 %v2043
    %3314 = vmatpush1.msra.mxu0 %v2042
    %3315 = vmatprep.subr.mxu0 0.0
    %3316 = vmatpush1.msra.mxu0 0.0
    %3317 = vmatprep.subr.mxu0 0.0
    %3318 = vmatpush1.msra.mxu0 0.0
    %3319 = vmatprep.subr.mxu0 0.0
    %3320 = vmatpush1.msra.mxu0 0.0
    %3321 = vmatprep.subr.mxu0 0.0
    %3322 = vmatpush1.msra.mxu0 0.0
    %3323 = vmatprep.subr.mxu0 0.0
    %3324 = vmatpush1.msra.mxu0 0.0
    %3325 = vmatprep.subr.mxu0 0.0
    %3326 = vmatpush1.msra.mxu0 0.0
    %3327 = vmatprep.subr.mxu0 0.0
    %3328 = vmatpush1.msra.mxu0 0.0
    %3329 = vmatprep.subr.mxu0 0.0
    %3330 = vmatpush1.msra.mxu0 0.0
    %3331 = vmatprep.subr.mxu0 0.0
    %3332 = vmatpush1.msra.mxu0 0.0
    %3333 = vmatprep.subr.mxu0 0.0
    %3334 = vmatpush1.msra.mxu0 0.0
    %3335 = vmatprep.subr.mxu0 0.0
    %3336 = vmatpush1.msra.mxu0 0.0
    %3337 = vmatprep.subr.mxu0 0.0
    %3338 = vmatpush1.msra.mxu0 0.0
    %3339 = vmatprep.subr.mxu0 0.0
    %3340 = vmatpush1.msra.mxu0 0.0
    %3341 = vmatprep.subr.mxu0 0.0
    %3342 = vmatpush1.msra.mxu0 0.0
    %3343 = vmatprep.subr.mxu0 0.0
    %3344 = vmatpush1.msra.mxu0 0.0
    %3345 = vmatprep.subr.mxu0 0.0
    %3346 = vmatpush1.msra.mxu0 0.0
    %3347 = vmatprep.mubr.f32.mxu0 0.0
    %3348 = vmatmul.mubr.f32.gmra.mrb[0].mxu0 %v3206
    %v3349 = vpop.f32.mrb[0].mxu0
    %v3350 = vadd.f32 0.0, %v3349
    %v3351 = vpop.f32.mrb[0].mxu0
    %v3352 = vadd.f32 0.0, %v3351
    %3353 = vdwg.mxu0
    %v3354 = vadd.f32 %v3208, %v3279
    %v3355 = vadd.f32 %v3209, %v3281
    %v3356 = vadd.f32 %v3210, %v3350
    %v3357 = vadd.f32 %v3211, %v3352
    %v3358 = vxor.u32 %v3354, 2147483648
    %v3359 = vmul.f32 %v3358, 1.442695
    %v3360 = vpow.pop %v3359
    %v3361 = vadd.f32 %v3360, 1.0
    %v3362 = vrcp.pop %v3361
    %v3363 = vmul.f32 1.0, %v3362
    %v3364 = vxor.u32 %v3355, 2147483648
    %v3365 = vmul.f32 %v3364, 1.442695
    %v3366 = vpow.pop %v3365
    %v3367 = vadd.f32 %v3366, 1.0
    %v3368 = vrcp.pop %v3367
    %v3369 = vmul.f32 1.0, %v3368
    %v3370 = vtanh.pop %v3356
    %v3371 = vxor.u32 %v3357, 2147483648
    %v3372 = vmul.f32 %v3371, 1.442695
    %v3373 = vpow.pop %v3372
    %v3374 = vadd.f32 %v3373, 1.0
    %v3375 = vrcp.pop %v3374
    %v3376 = vmul.f32 1.0, %v3375
    %v3377 = vmul.f32 %v3369, %v3204
    %v3378 = vmul.f32 %v3363, %v3370
    %v3379 = vadd.f32 %v3377, %v3378
    %v3380 = vtanh.pop %v3379
    %v3381 = vmul.f32 %v3376, %v3380
    %3382 = vst [vmem:[%s1558] sm:$0xff] %v3381
    %v3383 = vld [vmem:[%s1560] sm:$0xff]
    %v3384 = vld [vmem:[%s1560 + $0x8] sm:$0xff]
    %v3385 = vld [vmem:[%s1560 + $0x10] sm:$0xff]
    %v3386 = vld [vmem:[%s1560 + $0x18] sm:$0xff]
    %3387 = vmatprep.subr.mxu0 %v1981
    %3388 = vmatpush1.msra.mxu0 %v1980
    %3389 = vmatprep.subr.mxu0 %v1985
    %3390 = vmatpush1.msra.mxu0 %v1984
    %3391 = vmatprep.subr.mxu0 %v1989
    %3392 = vmatpush1.msra.mxu0 %v1988
    %3393 = vmatprep.subr.mxu0 %v1993
    %3394 = vmatpush1.msra.mxu0 %v1992
    %3395 = vmatprep.subr.mxu0 %v1997
    %3396 = vmatpush1.msra.mxu0 %v1996
    %3397 = vmatprep.subr.mxu0 %v2001
    %3398 = vmatpush1.msra.mxu0 %v2000
    %3399 = vmatprep.subr.mxu0 %v2005
    %3400 = vmatpush1.msra.mxu0 %v2004
    %3401 = vmatprep.subr.mxu0 %v2009
    %3402 = vmatpush1.msra.mxu0 %v2008
    %3403 = vmatprep.subr.mxu0 %v2013
    %3404 = vmatpush1.msra.mxu0 %v2012
    %3405 = vmatprep.subr.mxu0 %v2017
    %3406 = vmatpush1.msra.mxu0 %v2016
    %3407 = vmatprep.subr.mxu0 %v2021
    %3408 = vmatpush1.msra.mxu0 %v2020
    %3409 = vmatprep.subr.mxu0 %v2025
    %3410 = vmatpush1.msra.mxu0 %v2024
    %3411 = vmatprep.subr.mxu0 %v2029
    %3412 = vmatpush1.msra.mxu0 %v2028
    %3413 = vmatprep.subr.mxu0 %v2033
    %3414 = vmatpush1.msra.mxu0 %v2032
    %3415 = vmatprep.subr.mxu0 %v2037
    %3416 = vmatpush1.msra.mxu0 %v2036
    %3417 = vmatprep.subr.mxu0 %v2041
    %3418 = vmatpush1.msra.mxu0 %v2040
    %3419 = vmatprep.subr.mxu0 0.0
    %3420 = vmatpush1.msra.mxu0 0.0
    %3421 = vmatprep.subr.mxu0 0.0
    %3422 = vmatpush1.msra.mxu0 0.0
    %3423 = vmatprep.subr.mxu0 0.0
    %3424 = vmatpush1.msra.mxu0 0.0
    %3425 = vmatprep.subr.mxu0 0.0
    %3426 = vmatpush1.msra.mxu0 0.0
    %3427 = vmatprep.subr.mxu0 0.0
    %3428 = vmatpush1.msra.mxu0 0.0
    %3429 = vmatprep.subr.mxu0 0.0
    %3430 = vmatpush1.msra.mxu0 0.0
    %3431 = vmatprep.subr.mxu0 0.0
    %3432 = vmatpush1.msra.mxu0 0.0
    %3433 = vmatprep.subr.mxu0 0.0
    %3434 = vmatpush1.msra.mxu0 0.0
    %3435 = vmatprep.subr.mxu0 0.0
    %3436 = vmatpush1.msra.mxu0 0.0
    %3437 = vmatprep.subr.mxu0 0.0
    %3438 = vmatpush1.msra.mxu0 0.0
    %3439 = vmatprep.subr.mxu0 0.0
    %3440 = vmatpush1.msra.mxu0 0.0
    %3441 = vmatprep.subr.mxu0 0.0
    %3442 = vmatpush1.msra.mxu0 0.0
    %3443 = vmatprep.subr.mxu0 0.0
    %3444 = vmatpush1.msra.mxu0 0.0
    %3445 = vmatprep.subr.mxu0 0.0
    %3446 = vmatpush1.msra.mxu0 0.0
    %3447 = vmatprep.subr.mxu0 0.0
    %3448 = vmatpush1.msra.mxu0 0.0
    %3449 = vmatprep.subr.mxu0 0.0
    %3450 = vmatpush1.msra.mxu0 0.0
    %3451 = vmatprep.mubr.f32.mxu0 0.0
    %3452 = vmatmul.mubr.f32.gmra.mrb[0].mxu0 %v3381
    %v3453 = vpop.f32.mrb[0].mxu0
    %v3454 = vadd.f32 0.0, %v3453
    %v3455 = vpop.f32.mrb[0].mxu0
    %v3456 = vadd.f32 0.0, %v3455
    %3457 = vdwg.mxu0
    %3458 = vmatprep.subr.mxu0 %v1983
    %3459 = vmatpush1.msra.mxu0 %v1982
    %3460 = vmatprep.subr.mxu0 %v1987
    %3461 = vmatpush1.msra.mxu0 %v1986
    %3462 = vmatprep.subr.mxu0 %v1991
    %3463 = vmatpush1.msra.mxu0 %v1990
    %3464 = vmatprep.subr.mxu0 %v1995
    %3465 = vmatpush1.msra.mxu0 %v1994
    %3466 = vmatprep.subr.mxu0 %v1999
    %3467 = vmatpush1.msra.mxu0 %v1998
    %3468 = vmatprep.subr.mxu0 %v2003
    %3469 = vmatpush1.msra.mxu0 %v2002
    %3470 = vmatprep.subr.mxu0 %v2007
    %3471 = vmatpush1.msra.mxu0 %v2006
    %3472 = vmatprep.subr.mxu0 %v2011
    %3473 = vmatpush1.msra.mxu0 %v2010
    %3474 = vmatprep.subr.mxu0 %v2015
    %3475 = vmatpush1.msra.mxu0 %v2014
    %3476 = vmatprep.subr.mxu0 %v2019
    %3477 = vmatpush1.msra.mxu0 %v2018
    %3478 = vmatprep.subr.mxu0 %v2023
    %3479 = vmatpush1.msra.mxu0 %v2022
    %3480 = vmatprep.subr.mxu0 %v2027
    %3481 = vmatpush1.msra.mxu0 %v2026
    %3482 = vmatprep.subr.mxu0 %v2031
    %3483 = vmatpush1.msra.mxu0 %v2030
    %3484 = vmatprep.subr.mxu0 %v2035
    %3485 = vmatpush1.msra.mxu0 %v2034
    %3486 = vmatprep.subr.mxu0 %v2039
    %3487 = vmatpush1.msra.mxu0 %v2038
    %3488 = vmatprep.subr.mxu0 %v2043
    %3489 = vmatpush1.msra.mxu0 %v2042
    %3490 = vmatprep.subr.mxu0 0.0
    %3491 = vmatpush1.msra.mxu0 0.0
    %3492 = vmatprep.subr.mxu0 0.0
    %3493 = vmatpush1.msra.mxu0 0.0
    %3494 = vmatprep.subr.mxu0 0.0
    %3495 = vmatpush1.msra.mxu0 0.0
    %3496 = vmatprep.subr.mxu0 0.0
    %3497 = vmatpush1.msra.mxu0 0.0
    %3498 = vmatprep.subr.mxu0 0.0
    %3499 = vmatpush1.msra.mxu0 0.0
    %3500 = vmatprep.subr.mxu0 0.0
    %3501 = vmatpush1.msra.mxu0 0.0
    %3502 = vmatprep.subr.mxu0 0.0
    %3503 = vmatpush1.msra.mxu0 0.0
    %3504 = vmatprep.subr.mxu0 0.0
    %3505 = vmatpush1.msra.mxu0 0.0
    %3506 = vmatprep.subr.mxu0 0.0
    %3507 = vmatpush1.msra.mxu0 0.0
    %3508 = vmatprep.subr.mxu0 0.0
    %3509 = vmatpush1.msra.mxu0 0.0
    %3510 = vmatprep.subr.mxu0 0.0
    %3511 = vmatpush1.msra.mxu0 0.0
    %3512 = vmatprep.subr.mxu0 0.0
    %3513 = vmatpush1.msra.mxu0 0.0
    %3514 = vmatprep.subr.mxu0 0.0
    %3515 = vmatpush1.msra.mxu0 0.0
    %3516 = vmatprep.subr.mxu0 0.0
    %3517 = vmatpush1.msra.mxu0 0.0
    %3518 = vmatprep.subr.mxu0 0.0
    %3519 = vmatpush1.msra.mxu0 0.0
    %3520 = vmatprep.subr.mxu0 0.0
    %3521 = vmatpush1.msra.mxu0 0.0
    %3522 = vmatprep.mubr.f32.mxu0 0.0
    %3523 = vmatmul.mubr.f32.gmra.mrb[0].mxu0 %v3381
    %v3524 = vpop.f32.mrb[0].mxu0
    %v3525 = vadd.f32 0.0, %v3524
    %v3526 = vpop.f32.mrb[0].mxu0
    %v3527 = vadd.f32 0.0, %v3526
    %3528 = vdwg.mxu0
    %v3529 = vadd.f32 %v3383, %v3454
    %v3530 = vadd.f32 %v3384, %v3456
    %v3531 = vadd.f32 %v3385, %v3525
    %v3532 = vadd.f32 %v3386, %v3527
    %v3533 = vxor.u32 %v3529, 2147483648
    %v3534 = vmul.f32 %v3533, 1.442695
    %v3535 = vpow.pop %v3534
    %v3536 = vadd.f32 %v3535, 1.0
    %v3537 = vrcp.pop %v3536
    %v3538 = vmul.f32 1.0, %v3537
    %v3539 = vxor.u32 %v3530, 2147483648
    %v3540 = vmul.f32 %v3539, 1.442695
    %v3541 = vpow.pop %v3540
    %v3542 = vadd.f32 %v3541, 1.0
    %v3543 = vrcp.pop %v3542
    %v3544 = vmul.f32 1.0, %v3543
    %v3545 = vtanh.pop %v3531
    %v3546 = vxor.u32 %v3532, 2147483648
    %v3547 = vmul.f32 %v3546, 1.442695
    %v3548 = vpow.pop %v3547
    %v3549 = vadd.f32 %v3548, 1.0
    %v3550 = vrcp.pop %v3549
    %v3551 = vmul.f32 1.0, %v3550
    %v3552 = vmul.f32 %v3544, %v3379
    %v3553 = vmul.f32 %v3538, %v3545
    %v3554 = vadd.f32 %v3552, %v3553
    %v3555 = vtanh.pop %v3554
    %v3556 = vmul.f32 %v3551, %v3555
    %3557 = vst [vmem:[%s1735] sm:$0xff] %v3556
    %v3558 = vld [vmem:[%s1737] sm:$0xff]
    %v3559 = vld [vmem:[%s1737 + $0x8] sm:$0xff]
    %v3560 = vld [vmem:[%s1737 + $0x10] sm:$0xff]
    %v3561 = vld [vmem:[%s1737 + $0x18] sm:$0xff]
    %3562 = vmatprep.subr.mxu0 %v1981
    %3563 = vmatpush1.msra.mxu0 %v1980
    %3564 = vmatprep.subr.mxu0 %v1985
    %3565 = vmatpush1.msra.mxu0 %v1984
    %3566 = vmatprep.subr.mxu0 %v1989
    %3567 = vmatpush1.msra.mxu0 %v1988
    %3568 = vmatprep.subr.mxu0 %v1993
    %3569 = vmatpush1.msra.mxu0 %v1992
    %3570 = vmatprep.subr.mxu0 %v1997
    %3571 = vmatpush1.msra.mxu0 %v1996
    %3572 = vmatprep.subr.mxu0 %v2001
    %3573 = vmatpush1.msra.mxu0 %v2000
    %3574 = vmatprep.subr.mxu0 %v2005
    %3575 = vmatpush1.msra.mxu0 %v2004
    %3576 = vmatprep.subr.mxu0 %v2009
    %3577 = vmatpush1.msra.mxu0 %v2008
    %3578 = vmatprep.subr.mxu0 %v2013
    %3579 = vmatpush1.msra.mxu0 %v2012
    %3580 = vmatprep.subr.mxu0 %v2017
    %3581 = vmatpush1.msra.mxu0 %v2016
    %3582 = vmatprep.subr.mxu0 %v2021
    %3583 = vmatpush1.msra.mxu0 %v2020
    %3584 = vmatprep.subr.mxu0 %v2025
    %3585 = vmatpush1.msra.mxu0 %v2024
    %3586 = vmatprep.subr.mxu0 %v2029
    %3587 = vmatpush1.msra.mxu0 %v2028
    %3588 = vmatprep.subr.mxu0 %v2033
    %3589 = vmatpush1.msra.mxu0 %v2032
    %3590 = vmatprep.subr.mxu0 %v2037
    %3591 = vmatpush1.msra.mxu0 %v2036
    %3592 = vmatprep.subr.mxu0 %v2041
    %3593 = vmatpush1.msra.mxu0 %v2040
    %3594 = vmatprep.subr.mxu0 0.0
    %3595 = vmatpush1.msra.mxu0 0.0
    %3596 = vmatprep.subr.mxu0 0.0
    %3597 = vmatpush1.msra.mxu0 0.0
    %3598 = vmatprep.subr.mxu0 0.0
    %3599 = vmatpush1.msra.mxu0 0.0
    %3600 = vmatprep.subr.mxu0 0.0
    %3601 = vmatpush1.msra.mxu0 0.0
    %3602 = vmatprep.subr.mxu0 0.0
    %3603 = vmatpush1.msra.mxu0 0.0
    %3604 = vmatprep.subr.mxu0 0.0
    %3605 = vmatpush1.msra.mxu0 0.0
    %3606 = vmatprep.subr.mxu0 0.0
    %3607 = vmatpush1.msra.mxu0 0.0
    %3608 = vmatprep.subr.mxu0 0.0
    %3609 = vmatpush1.msra.mxu0 0.0
    %3610 = vmatprep.subr.mxu0 0.0
    %3611 = vmatpush1.msra.mxu0 0.0
    %3612 = vmatprep.subr.mxu0 0.0
    %3613 = vmatpush1.msra.mxu0 0.0
    %3614 = vmatprep.subr.mxu0 0.0
    %3615 = vmatpush1.msra.mxu0 0.0
    %3616 = vmatprep.subr.mxu0 0.0
    %3617 = vmatpush1.msra.mxu0 0.0
    %3618 = vmatprep.subr.mxu0 0.0
    %3619 = vmatpush1.msra.mxu0 0.0
    %3620 = vmatprep.subr.mxu0 0.0
    %3621 = vmatpush1.msra.mxu0 0.0
    %3622 = vmatprep.subr.mxu0 0.0
    %3623 = vmatpush1.msra.mxu0 0.0
    %3624 = vmatprep.subr.mxu0 0.0
    %3625 = vmatpush1.msra.mxu0 0.0
    %3626 = vmatprep.mubr.f32.mxu0 0.0
    %3627 = vmatmul.mubr.f32.gmra.mrb[0].mxu0 %v3556
    %v3628 = vpop.f32.mrb[0].mxu0
    %v3629 = vadd.f32 0.0, %v3628
    %v3630 = vpop.f32.mrb[0].mxu0
    %v3631 = vadd.f32 0.0, %v3630
    %3632 = vdwg.mxu0
    %3633 = vmatprep.subr.mxu0 %v1983
    %3634 = vmatpush1.msra.mxu0 %v1982
    %3635 = vmatprep.subr.mxu0 %v1987
    %3636 = vmatpush1.msra.mxu0 %v1986
    %3637 = vmatprep.subr.mxu0 %v1991
    %3638 = vmatpush1.msra.mxu0 %v1990
    %3639 = vmatprep.subr.mxu0 %v1995
    %3640 = vmatpush1.msra.mxu0 %v1994
    %3641 = vmatprep.subr.mxu0 %v1999
    %3642 = vmatpush1.msra.mxu0 %v1998
    %3643 = vmatprep.subr.mxu0 %v2003
    %3644 = vmatpush1.msra.mxu0 %v2002
    %3645 = vmatprep.subr.mxu0 %v2007
    %3646 = vmatpush1.msra.mxu0 %v2006
    %3647 = vmatprep.subr.mxu0 %v2011
    %3648 = vmatpush1.msra.mxu0 %v2010
    %3649 = vmatprep.subr.mxu0 %v2015
    %3650 = vmatpush1.msra.mxu0 %v2014
    %3651 = vmatprep.subr.mxu0 %v2019
    %3652 = vmatpush1.msra.mxu0 %v2018
    %3653 = vmatprep.subr.mxu0 %v2023
    %3654 = vmatpush1.msra.mxu0 %v2022
    %3655 = vmatprep.subr.mxu0 %v2027
    %3656 = vmatpush1.msra.mxu0 %v2026
    %3657 = vmatprep.subr.mxu0 %v2031
    %3658 = vmatpush1.msra.mxu0 %v2030
    %3659 = vmatprep.subr.mxu0 %v2035
    %3660 = vmatpush1.msra.mxu0 %v2034
    %3661 = vmatprep.subr.mxu0 %v2039
    %3662 = vmatpush1.msra.mxu0 %v2038
    %3663 = vmatprep.subr.mxu0 %v2043
    %3664 = vmatpush1.msra.mxu0 %v2042
    %3665 = vmatprep.subr.mxu0 0.0
    %3666 = vmatpush1.msra.mxu0 0.0
    %3667 = vmatprep.subr.mxu0 0.0
    %3668 = vmatpush1.msra.mxu0 0.0
    %3669 = vmatprep.subr.mxu0 0.0
    %3670 = vmatpush1.msra.mxu0 0.0
    %3671 = vmatprep.subr.mxu0 0.0
    %3672 = vmatpush1.msra.mxu0 0.0
    %3673 = vmatprep.subr.mxu0 0.0
    %3674 = vmatpush1.msra.mxu0 0.0
    %3675 = vmatprep.subr.mxu0 0.0
    %3676 = vmatpush1.msra.mxu0 0.0
    %3677 = vmatprep.subr.mxu0 0.0
    %3678 = vmatpush1.msra.mxu0 0.0
    %3679 = vmatprep.subr.mxu0 0.0
    %3680 = vmatpush1.msra.mxu0 0.0
    %3681 = vmatprep.subr.mxu0 0.0
    %3682 = vmatpush1.msra.mxu0 0.0
    %3683 = vmatprep.subr.mxu0 0.0
    %3684 = vmatpush1.msra.mxu0 0.0
    %3685 = vmatprep.subr.mxu0 0.0
    %3686 = vmatpush1.msra.mxu0 0.0
    %3687 = vmatprep.subr.mxu0 0.0
    %3688 = vmatpush1.msra.mxu0 0.0
    %3689 = vmatprep.subr.mxu0 0.0
    %3690 = vmatpush1.msra.mxu0 0.0
    %3691 = vmatprep.subr.mxu0 0.0
    %3692 = vmatpush1.msra.mxu0 0.0
    %3693 = vmatprep.subr.mxu0 0.0
    %3694 = vmatpush1.msra.mxu0 0.0
    %3695 = vmatprep.subr.mxu0 0.0
    %3696 = vmatpush1.msra.mxu0 0.0
    %3697 = vmatprep.mubr.f32.mxu0 0.0
    %3698 = vmatmul.mubr.f32.gmra.mrb[0].mxu0 %v3556
    %v3699 = vpop.f32.mrb[0].mxu0
    %v3700 = vadd.f32 0.0, %v3699
    %v3701 = vpop.f32.mrb[0].mxu0
    %v3702 = vadd.f32 0.0, %v3701
    %3703 = vdwg.mxu0
    %v3704 = vadd.f32 %v3558, %v3629
    %v3705 = vadd.f32 %v3559, %v3631
    %v3706 = vadd.f32 %v3560, %v3700
    %v3707 = vadd.f32 %v3561, %v3702
    %v3708 = vxor.u32 %v3704, 2147483648
    %v3709 = vmul.f32 %v3708, 1.442695
    %v3710 = vpow.pop %v3709
    %v3711 = vadd.f32 %v3710, 1.0
    %v3712 = vrcp.pop %v3711
    %v3713 = vmul.f32 1.0, %v3712
    %v3714 = vxor.u32 %v3705, 2147483648
    %v3715 = vmul.f32 %v3714, 1.442695
    %v3716 = vpow.pop %v3715
    %v3717 = vadd.f32 %v3716, 1.0
    %v3718 = vrcp.pop %v3717
    %v3719 = vmul.f32 1.0, %v3718
    %v3720 = vtanh.pop %v3706
    %v3721 = vxor.u32 %v3707, 2147483648
    %v3722 = vmul.f32 %v3721, 1.442695
    %v3723 = vpow.pop %v3722
    %v3724 = vadd.f32 %v3723, 1.0
    %v3725 = vrcp.pop %v3724
    %v3726 = vmul.f32 1.0, %v3725
    %v3727 = vmul.f32 %v3719, %v3554
    %v3728 = vmul.f32 %v3713, %v3720
    %v3729 = vadd.f32 %v3727, %v3728
    %v3730 = vtanh.pop %v3729
    %v3731 = vmul.f32 %v3726, %v3730
    %3732 = vst [vmem:[%s1912] sm:$0xff] %v3731
    %s3733 = scalar_lea.vmem [#allocation4], 1024
    %v3734 = vld [vmem:[%s3733] sm:$0xff]
    %v3735 = vld [vmem:[%s3733 + $0x8] sm:$0xff]
    %v3736 = vld [vmem:[%s3733 + $0x10] sm:$0xff]
    %v3737 = vld [vmem:[%s3733 + $0x18] sm:$0xff]
    %v3738 = vld [vmem:[%s3733 + $0x20] sm:$0xff]
    %v3739 = vld [vmem:[%s3733 + $0x28] sm:$0xff]
    %v3740 = vld [vmem:[%s3733 + $0x30] sm:$0xff]
    %v3741 = vld [vmem:[%s3733 + $0x38] sm:$0xff]
    %v3742 = vld [vmem:[%s3733 + $0x40] sm:$0xff]
    %v3743 = vld [vmem:[%s3733 + $0x48] sm:$0xff]
    %v3744 = vld [vmem:[%s3733 + $0x50] sm:$0xff]
    %v3745 = vld [vmem:[%s3733 + $0x58] sm:$0xff]
    %v3746 = vld [vmem:[%s3733 + $0x60] sm:$0xff]
    %v3747 = vld [vmem:[%s3733 + $0x68] sm:$0xff]
    %v3748 = vld [vmem:[%s3733 + $0x70] sm:$0xff]
    %v3749 = vld [vmem:[%s3733 + $0x78] sm:$0xff]
    %v3750 = vld [vmem:[%s3733 + $0x80] sm:$0xff]
    %v3751 = vld [vmem:[%s3733 + $0x88] sm:$0xff]
    %v3752 = vld [vmem:[%s3733 + $0x90] sm:$0xff]
    %v3753 = vld [vmem:[%s3733 + $0x98] sm:$0xff]
    %v3754 = vld [vmem:[%s3733 + $0xa0] sm:$0xff]
    %v3755 = vld [vmem:[%s3733 + $0xa8] sm:$0xff]
    %v3756 = vld [vmem:[%s3733 + $0xb0] sm:$0xff]
    %v3757 = vld [vmem:[%s3733 + $0xb8] sm:$0xff]
    %v3758 = vld [vmem:[%s3733 + $0xc0] sm:$0xff]
    %v3759 = vld [vmem:[%s3733 + $0xc8] sm:$0xff]
    %v3760 = vld [vmem:[%s3733 + $0xd0] sm:$0xff]
    %v3761 = vld [vmem:[%s3733 + $0xd8] sm:$0xff]
    %v3762 = vld [vmem:[%s3733 + $0xe0] sm:$0xff]
    %v3763 = vld [vmem:[%s3733 + $0xe8] sm:$0xff]
    %v3764 = vld [vmem:[%s3733 + $0xf0] sm:$0xff]
    %v3765 = vld [vmem:[%s3733 + $0xf8] sm:$0xff]
    %v3766 = vld [vmem:[%s3733 + $0x100] sm:$0xff]
    %v3767 = vld [vmem:[%s3733 + $0x108] sm:$0xff]
    %v3768 = vld [vmem:[%s3733 + $0x110] sm:$0xff]
    %v3769 = vld [vmem:[%s3733 + $0x118] sm:$0xff]
    %v3770 = vld [vmem:[%s3733 + $0x120] sm:$0xff]
    %v3771 = vld [vmem:[%s3733 + $0x128] sm:$0xff]
    %v3772 = vld [vmem:[%s3733 + $0x130] sm:$0xff]
    %v3773 = vld [vmem:[%s3733 + $0x138] sm:$0xff]
    %v3774 = vld [vmem:[%s3733 + $0x140] sm:$0xff]
    %v3775 = vld [vmem:[%s3733 + $0x148] sm:$0xff]
    %v3776 = vld [vmem:[%s3733 + $0x150] sm:$0xff]
    %v3777 = vld [vmem:[%s3733 + $0x158] sm:$0xff]
    %v3778 = vld [vmem:[%s3733 + $0x160] sm:$0xff]
    %v3779 = vld [vmem:[%s3733 + $0x168] sm:$0xff]
    %v3780 = vld [vmem:[%s3733 + $0x170] sm:$0xff]
    %v3781 = vld [vmem:[%s3733 + $0x178] sm:$0xff]
    %v3782 = vld [vmem:[%s3733 + $0x180] sm:$0xff]
    %v3783 = vld [vmem:[%s3733 + $0x188] sm:$0xff]
    %v3784 = vld [vmem:[%s3733 + $0x190] sm:$0xff]
    %v3785 = vld [vmem:[%s3733 + $0x198] sm:$0xff]
    %v3786 = vld [vmem:[%s3733 + $0x1a0] sm:$0xff]
    %v3787 = vld [vmem:[%s3733 + $0x1a8] sm:$0xff]
    %v3788 = vld [vmem:[%s3733 + $0x1b0] sm:$0xff]
    %v3789 = vld [vmem:[%s3733 + $0x1b8] sm:$0xff]
    %v3790 = vld [vmem:[%s3733 + $0x1c0] sm:$0xff]
    %v3791 = vld [vmem:[%s3733 + $0x1c8] sm:$0xff]
    %v3792 = vld [vmem:[%s3733 + $0x1d0] sm:$0xff]
    %v3793 = vld [vmem:[%s3733 + $0x1d8] sm:$0xff]
    %v3794 = vld [vmem:[%s3733 + $0x1e0] sm:$0xff]
    %v3795 = vld [vmem:[%s3733 + $0x1e8] sm:$0xff]
    %v3796 = vld [vmem:[%s3733 + $0x1f0] sm:$0xff]
    %v3797 = vld [vmem:[%s3733 + $0x1f8] sm:$0xff]
    %s3798 = scalar_lea.vmem [#allocation7], 1024
    %v3799 = vld [vmem:[%s3798] sm:$0xff]
    %v3800 = vld [vmem:[%s3798 + $0x8] sm:$0xff]
    %v3801 = vld [vmem:[%s3798 + $0x10] sm:$0xff]
    %v3802 = vld [vmem:[%s3798 + $0x18] sm:$0xff]
    %v3803 = vld [vmem:[%s3798 + $0x20] sm:$0xff]
    %v3804 = vld [vmem:[%s3798 + $0x28] sm:$0xff]
    %v3805 = vld [vmem:[%s3798 + $0x30] sm:$0xff]
    %v3806 = vld [vmem:[%s3798 + $0x38] sm:$0xff]
    %v3807 = vld [vmem:[%s3798 + $0x40] sm:$0xff]
    %v3808 = vld [vmem:[%s3798 + $0x48] sm:$0xff]
    %v3809 = vld [vmem:[%s3798 + $0x50] sm:$0xff]
    %v3810 = vld [vmem:[%s3798 + $0x58] sm:$0xff]
    %v3811 = vld [vmem:[%s3798 + $0x60] sm:$0xff]
    %v3812 = vld [vmem:[%s3798 + $0x68] sm:$0xff]
    %v3813 = vld [vmem:[%s3798 + $0x70] sm:$0xff]
    %v3814 = vld [vmem:[%s3798 + $0x78] sm:$0xff]
    %v3815 = vld [vmem:[%s3798 + $0x80] sm:$0xff]
    %v3816 = vld [vmem:[%s3798 + $0x88] sm:$0xff]
    %v3817 = vld [vmem:[%s3798 + $0x90] sm:$0xff]
    %v3818 = vld [vmem:[%s3798 + $0x98] sm:$0xff]
    %v3819 = vld [vmem:[%s3798 + $0xa0] sm:$0xff]
    %v3820 = vld [vmem:[%s3798 + $0xa8] sm:$0xff]
    %v3821 = vld [vmem:[%s3798 + $0xb0] sm:$0xff]
    %v3822 = vld [vmem:[%s3798 + $0xb8] sm:$0xff]
    %v3823 = vld [vmem:[%s3798 + $0xc0] sm:$0xff]
    %v3824 = vld [vmem:[%s3798 + $0xc8] sm:$0xff]
    %v3825 = vld [vmem:[%s3798 + $0xd0] sm:$0xff]
    %v3826 = vld [vmem:[%s3798 + $0xd8] sm:$0xff]
    %v3827 = vld [vmem:[%s3798 + $0xe0] sm:$0xff]
    %v3828 = vld [vmem:[%s3798 + $0xe8] sm:$0xff]
    %v3829 = vld [vmem:[%s3798 + $0xf0] sm:$0xff]
    %v3830 = vld [vmem:[%s3798 + $0xf8] sm:$0xff]
    %v3831 = vld [vmem:[%s3798 + $0x100] sm:$0xff]
    %v3832 = vld [vmem:[%s3798 + $0x108] sm:$0xff]
    %v3833 = vld [vmem:[%s3798 + $0x110] sm:$0xff]
    %v3834 = vld [vmem:[%s3798 + $0x118] sm:$0xff]
    %v3835 = vld [vmem:[%s3798 + $0x120] sm:$0xff]
    %v3836 = vld [vmem:[%s3798 + $0x128] sm:$0xff]
    %v3837 = vld [vmem:[%s3798 + $0x130] sm:$0xff]
    %v3838 = vld [vmem:[%s3798 + $0x138] sm:$0xff]
    %v3839 = vld [vmem:[%s3798 + $0x140] sm:$0xff]
    %v3840 = vld [vmem:[%s3798 + $0x148] sm:$0xff]
    %v3841 = vld [vmem:[%s3798 + $0x150] sm:$0xff]
    %v3842 = vld [vmem:[%s3798 + $0x158] sm:$0xff]
    %v3843 = vld [vmem:[%s3798 + $0x160] sm:$0xff]
    %v3844 = vld [vmem:[%s3798 + $0x168] sm:$0xff]
    %v3845 = vld [vmem:[%s3798 + $0x170] sm:$0xff]
    %v3846 = vld [vmem:[%s3798 + $0x178] sm:$0xff]
    %v3847 = vld [vmem:[%s3798 + $0x180] sm:$0xff]
    %v3848 = vld [vmem:[%s3798 + $0x188] sm:$0xff]
    %v3849 = vld [vmem:[%s3798 + $0x190] sm:$0xff]
    %v3850 = vld [vmem:[%s3798 + $0x198] sm:$0xff]
    %v3851 = vld [vmem:[%s3798 + $0x1a0] sm:$0xff]
    %v3852 = vld [vmem:[%s3798 + $0x1a8] sm:$0xff]
    %v3853 = vld [vmem:[%s3798 + $0x1b0] sm:$0xff]
    %v3854 = vld [vmem:[%s3798 + $0x1b8] sm:$0xff]
    %v3855 = vld [vmem:[%s3798 + $0x1c0] sm:$0xff]
    %v3856 = vld [vmem:[%s3798 + $0x1c8] sm:$0xff]
    %v3857 = vld [vmem:[%s3798 + $0x1d0] sm:$0xff]
    %v3858 = vld [vmem:[%s3798 + $0x1d8] sm:$0xff]
    %v3859 = vld [vmem:[%s3798 + $0x1e0] sm:$0xff]
    %v3860 = vld [vmem:[%s3798 + $0x1e8] sm:$0xff]
    %v3861 = vld [vmem:[%s3798 + $0x1f0] sm:$0xff]
    %v3862 = vld [vmem:[%s3798 + $0x1f8] sm:$0xff]
    %s3863 = scalar_lea.vmem %s3, 8
    %v3864 = vld [vmem:[%s3863] sm:$0xf]
    %v3865 = vld [vmem:[#allocation2] sm:$0xff]
    %v3866 = vld [vmem:[#allocation2 + $0x8] sm:$0xff]
    %v3867 = vld [vmem:[#allocation2 + $0x10] sm:$0xff]
    %v3868 = vld [vmem:[#allocation2 + $0x18] sm:$0xff]
    %v3869 = vld [vmem:[#allocation2 + $0x20] sm:$0xff]
    %v3870 = vld [vmem:[#allocation2 + $0x28] sm:$0xff]
    %v3871 = vld [vmem:[#allocation2 + $0x30] sm:$0xff]
    %v3872 = vld [vmem:[#allocation2 + $0x38] sm:$0xff]
    %v3874 = vlaneseq
    %v3875 = vshrl.u32 %v3874, 7
    %v3876 = vsub.s32 0, %v3875
    %v3877 = vrot.slane %v3864, %v3876
    %v3878 = vlaneseq
    %v3879 = vshrl.u32 %v3878, 7
    %v3880 = vsub.s32 1, %v3879
    %v3881 = vrot.slane %v3864, %v3880
    %v3882 = vlaneseq
    %v3883 = vshrl.u32 %v3882, 7
    %v3884 = vsub.s32 2, %v3883
    %v3885 = vrot.slane %v3864, %v3884
    %v3886 = vlaneseq
    %v3887 = vshrl.u32 %v3886, 7
    %v3888 = vsub.s32 3, %v3887
    %v3889 = vrot.slane %v3864, %v3888
    %3894 = vmatprep.subr.mxu0 %v3735
    %3895 = vmatpush1.msra.mxu0 %v3734
    %3896 = vmatprep.subr.mxu0 %v3739
    %3897 = vmatpush1.msra.mxu0 %v3738
    %3898 = vmatprep.subr.mxu0 %v3743
    %3899 = vmatpush1.msra.mxu0 %v3742
    %3900 = vmatprep.subr.mxu0 %v3747
    %3901 = vmatpush1.msra.mxu0 %v3746
    %3902 = vmatprep.subr.mxu0 %v3751
    %3903 = vmatpush1.msra.mxu0 %v3750
    %3904 = vmatprep.subr.mxu0 %v3755
    %3905 = vmatpush1.msra.mxu0 %v3754
    %3906 = vmatprep.subr.mxu0 %v3759
    %3907 = vmatpush1.msra.mxu0 %v3758
    %3908 = vmatprep.subr.mxu0 %v3763
    %3909 = vmatpush1.msra.mxu0 %v3762
    %3910 = vmatprep.subr.mxu0 %v3767
    %3911 = vmatpush1.msra.mxu0 %v3766
    %3912 = vmatprep.subr.mxu0 %v3771
    %3913 = vmatpush1.msra.mxu0 %v3770
    %3914 = vmatprep.subr.mxu0 %v3775
    %3915 = vmatpush1.msra.mxu0 %v3774
    %3916 = vmatprep.subr.mxu0 %v3779
    %3917 = vmatpush1.msra.mxu0 %v3778
    %3918 = vmatprep.subr.mxu0 %v3783
    %3919 = vmatpush1.msra.mxu0 %v3782
    %3920 = vmatprep.subr.mxu0 %v3787
    %3921 = vmatpush1.msra.mxu0 %v3786
    %3922 = vmatprep.subr.mxu0 %v3791
    %3923 = vmatpush1.msra.mxu0 %v3790
    %3924 = vmatprep.subr.mxu0 %v3795
    %3925 = vmatpush1.msra.mxu0 %v3794
    %3926 = vmatprep.subr.mxu0 0.0
    %3927 = vmatpush1.msra.mxu0 0.0
    %3928 = vmatprep.subr.mxu0 0.0
    %3929 = vmatpush1.msra.mxu0 0.0
    %3930 = vmatprep.subr.mxu0 0.0
    %3931 = vmatpush1.msra.mxu0 0.0
    %3932 = vmatprep.subr.mxu0 0.0
    %3933 = vmatpush1.msra.mxu0 0.0
    %3934 = vmatprep.subr.mxu0 0.0
    %3935 = vmatpush1.msra.mxu0 0.0
    %3936 = vmatprep.subr.mxu0 0.0
    %3937 = vmatpush1.msra.mxu0 0.0
    %3938 = vmatprep.subr.mxu0 0.0
    %3939 = vmatpush1.msra.mxu0 0.0
    %3940 = vmatprep.subr.mxu0 0.0
    %3941 = vmatpush1.msra.mxu0 0.0
    %3942 = vmatprep.subr.mxu0 0.0
    %3943 = vmatpush1.msra.mxu0 0.0
    %3944 = vmatprep.subr.mxu0 0.0
    %3945 = vmatpush1.msra.mxu0 0.0
    %3946 = vmatprep.subr.mxu0 0.0
    %3947 = vmatpush1.msra.mxu0 0.0
    %3948 = vmatprep.subr.mxu0 0.0
    %3949 = vmatpush1.msra.mxu0 0.0
    %3950 = vmatprep.subr.mxu0 0.0
    %3951 = vmatpush1.msra.mxu0 0.0
    %3952 = vmatprep.subr.mxu0 0.0
    %3953 = vmatpush1.msra.mxu0 0.0
    %3954 = vmatprep.subr.mxu0 0.0
    %3955 = vmatpush1.msra.mxu0 0.0
    %3956 = vmatprep.subr.mxu0 0.0
    %3957 = vmatpush1.msra.mxu0 0.0
    %3958 = vmatprep.mubr.f32.mxu0 0.0
    %3959 = vmatmul.mubr.f32.gmra.mrb[0].mxu0 %v3865
    %v3960 = vpop.f32.mrb[0].mxu0
    %v3961 = vadd.f32 %v3877, %v3960
    %v3962 = vpop.f32.mrb[0].mxu0
    %v3963 = vadd.f32 %v3881, %v3962
    %3964 = vmatprep.mubr.f32.mxu0 0.0
    %3965 = vmatmul.mubr.f32.gmra.mrb[0].mxu0 %v3866
    %v3966 = vpop.f32.mrb[0].mxu0
    %v3967 = vadd.f32 %v3877, %v3966
    %v3968 = vpop.f32.mrb[0].mxu0
    %v3969 = vadd.f32 %v3881, %v3968
    %3970 = vmatprep.mubr.f32.mxu0 0.0
    %3971 = vmatmul.mubr.f32.gmra.mrb[0].mxu0 %v3867
    %v3972 = vpop.f32.mrb[0].mxu0
    %v3973 = vadd.f32 %v3877, %v3972
    %v3974 = vpop.f32.mrb[0].mxu0
    %v3975 = vadd.f32 %v3881, %v3974
    %3976 = vmatprep.mubr.f32.mxu0 0.0
    %3977 = vmatmul.mubr.f32.gmra.mrb[0].mxu0 %v3868
    %v3978 = vpop.f32.mrb[0].mxu0
    %v3979 = vadd.f32 %v3877, %v3978
    %v3980 = vpop.f32.mrb[0].mxu0
    %v3981 = vadd.f32 %v3881, %v3980
    %3982 = vmatprep.mubr.f32.mxu0 0.0
    %3983 = vmatmul.mubr.f32.gmra.mrb[0].mxu0 %v3869
    %v3984 = vpop.f32.mrb[0].mxu0
    %v3985 = vadd.f32 %v3877, %v3984
    %v3986 = vpop.f32.mrb[0].mxu0
    %v3987 = vadd.f32 %v3881, %v3986
    %3988 = vmatprep.mubr.f32.mxu0 0.0
    %3989 = vmatmul.mubr.f32.gmra.mrb[0].mxu0 %v3870
    %v3990 = vpop.f32.mrb[0].mxu0
    %v3991 = vadd.f32 %v3877, %v3990
    %v3992 = vpop.f32.mrb[0].mxu0
    %v3993 = vadd.f32 %v3881, %v3992
    %3994 = vmatprep.mubr.f32.mxu0 0.0
    %3995 = vmatmul.mubr.f32.gmra.mrb[0].mxu0 %v3871
    %v3996 = vpop.f32.mrb[0].mxu0
    %v3997 = vadd.f32 %v3877, %v3996
    %v3998 = vpop.f32.mrb[0].mxu0
    %v3999 = vadd.f32 %v3881, %v3998
    %4000 = vmatprep.mubr.f32.mxu0 0.0
    %4001 = vmatmul.mubr.f32.gmra.mrb[0].mxu0 %v3872
    %v4002 = vpop.f32.mrb[0].mxu0
    %v4003 = vadd.f32 %v3877, %v4002
    %v4004 = vpop.f32.mrb[0].mxu0
    %v4005 = vadd.f32 %v3881, %v4004
    %4006 = vdwg.mxu0
    %4007 = vmatprep.subr.mxu0 %v3737
    %4008 = vmatpush1.msra.mxu0 %v3736
    %4009 = vmatprep.subr.mxu0 %v3741
    %4010 = vmatpush1.msra.mxu0 %v3740
    %4011 = vmatprep.subr.mxu0 %v3745
    %4012 = vmatpush1.msra.mxu0 %v3744
    %4013 = vmatprep.subr.mxu0 %v3749
    %4014 = vmatpush1.msra.mxu0 %v3748
    %4015 = vmatprep.subr.mxu0 %v3753
    %4016 = vmatpush1.msra.mxu0 %v3752
    %4017 = vmatprep.subr.mxu0 %v3757
    %4018 = vmatpush1.msra.mxu0 %v3756
    %4019 = vmatprep.subr.mxu0 %v3761
    %4020 = vmatpush1.msra.mxu0 %v3760
    %4021 = vmatprep.subr.mxu0 %v3765
    %4022 = vmatpush1.msra.mxu0 %v3764
    %4023 = vmatprep.subr.mxu0 %v3769
    %4024 = vmatpush1.msra.mxu0 %v3768
    %4025 = vmatprep.subr.mxu0 %v3773
    %4026 = vmatpush1.msra.mxu0 %v3772
    %4027 = vmatprep.subr.mxu0 %v3777
    %4028 = vmatpush1.msra.mxu0 %v3776
    %4029 = vmatprep.subr.mxu0 %v3781
    %4030 = vmatpush1.msra.mxu0 %v3780
    %4031 = vmatprep.subr.mxu0 %v3785
    %4032 = vmatpush1.msra.mxu0 %v3784
    %4033 = vmatprep.subr.mxu0 %v3789
    %4034 = vmatpush1.msra.mxu0 %v3788
    %4035 = vmatprep.subr.mxu0 %v3793
    %4036 = vmatpush1.msra.mxu0 %v3792
    %4037 = vmatprep.subr.mxu0 %v3797
    %4038 = vmatpush1.msra.mxu0 %v3796
    %4039 = vmatprep.subr.mxu0 0.0
    %4040 = vmatpush1.msra.mxu0 0.0
    %4041 = vmatprep.subr.mxu0 0.0
    %4042 = vmatpush1.msra.mxu0 0.0
    %4043 = vmatprep.subr.mxu0 0.0
    %4044 = vmatpush1.msra.mxu0 0.0
    %4045 = vmatprep.subr.mxu0 0.0
    %4046 = vmatpush1.msra.mxu0 0.0
    %4047 = vmatprep.subr.mxu0 0.0
    %4048 = vmatpush1.msra.mxu0 0.0
    %4049 = vmatprep.subr.mxu0 0.0
    %4050 = vmatpush1.msra.mxu0 0.0
    %4051 = vmatprep.subr.mxu0 0.0
    %4052 = vmatpush1.msra.mxu0 0.0
    %4053 = vmatprep.subr.mxu0 0.0
    %4054 = vmatpush1.msra.mxu0 0.0
    %4055 = vmatprep.subr.mxu0 0.0
    %4056 = vmatpush1.msra.mxu0 0.0
    %4057 = vmatprep.subr.mxu0 0.0
    %4058 = vmatpush1.msra.mxu0 0.0
    %4059 = vmatprep.subr.mxu0 0.0
    %4060 = vmatpush1.msra.mxu0 0.0
    %4061 = vmatprep.subr.mxu0 0.0
    %4062 = vmatpush1.msra.mxu0 0.0
    %4063 = vmatprep.subr.mxu0 0.0
    %4064 = vmatpush1.msra.mxu0 0.0
    %4065 = vmatprep.subr.mxu0 0.0
    %4066 = vmatpush1.msra.mxu0 0.0
    %4067 = vmatprep.subr.mxu0 0.0
    %4068 = vmatpush1.msra.mxu0 0.0
    %4069 = vmatprep.subr.mxu0 0.0
    %4070 = vmatpush1.msra.mxu0 0.0
    %4071 = vmatprep.mubr.f32.mxu0 0.0
    %4072 = vmatmul.mubr.f32.gmra.mrb[0].mxu0 %v3865
    %v4073 = vpop.f32.mrb[0].mxu0
    %v4074 = vadd.f32 %v3885, %v4073
    %v4075 = vpop.f32.mrb[0].mxu0
    %v4076 = vadd.f32 %v3889, %v4075
    %4077 = vmatprep.mubr.f32.mxu0 0.0
    %4078 = vmatmul.mubr.f32.gmra.mrb[0].mxu0 %v3866
    %v4079 = vpop.f32.mrb[0].mxu0
    %v4080 = vadd.f32 %v3885, %v4079
    %v4081 = vpop.f32.mrb[0].mxu0
    %v4082 = vadd.f32 %v3889, %v4081
    %4083 = vmatprep.mubr.f32.mxu0 0.0
    %4084 = vmatmul.mubr.f32.gmra.mrb[0].mxu0 %v3867
    %v4085 = vpop.f32.mrb[0].mxu0
    %v4086 = vadd.f32 %v3885, %v4085
    %v4087 = vpop.f32.mrb[0].mxu0
    %v4088 = vadd.f32 %v3889, %v4087
    %4089 = vmatprep.mubr.f32.mxu0 0.0
    %4090 = vmatmul.mubr.f32.gmra.mrb[0].mxu0 %v3868
    %v4091 = vpop.f32.mrb[0].mxu0
    %v4092 = vadd.f32 %v3885, %v4091
    %v4093 = vpop.f32.mrb[0].mxu0
    %v4094 = vadd.f32 %v3889, %v4093
    %4095 = vmatprep.mubr.f32.mxu0 0.0
    %4096 = vmatmul.mubr.f32.gmra.mrb[0].mxu0 %v3869
    %v4097 = vpop.f32.mrb[0].mxu0
    %v4098 = vadd.f32 %v3885, %v4097
    %v4099 = vpop.f32.mrb[0].mxu0
    %v4100 = vadd.f32 %v3889, %v4099
    %4101 = vmatprep.mubr.f32.mxu0 0.0
    %4102 = vmatmul.mubr.f32.gmra.mrb[0].mxu0 %v3870
    %v4103 = vpop.f32.mrb[0].mxu0
    %v4104 = vadd.f32 %v3885, %v4103
    %v4105 = vpop.f32.mrb[0].mxu0
    %v4106 = vadd.f32 %v3889, %v4105
    %4107 = vmatprep.mubr.f32.mxu0 0.0
    %4108 = vmatmul.mubr.f32.gmra.mrb[0].mxu0 %v3871
    %v4109 = vpop.f32.mrb[0].mxu0
    %v4110 = vadd.f32 %v3885, %v4109
    %v4111 = vpop.f32.mrb[0].mxu0
    %v4112 = vadd.f32 %v3889, %v4111
    %4113 = vmatprep.mubr.f32.mxu0 0.0
    %4114 = vmatmul.mubr.f32.gmra.mrb[0].mxu0 %v3872
    %v4115 = vpop.f32.mrb[0].mxu0
    %v4116 = vadd.f32 %v3885, %v4115
    %v4117 = vpop.f32.mrb[0].mxu0
    %v4118 = vadd.f32 %v3889, %v4117
    %4119 = vdwg.mxu0
    %4120 = vst [vmem:[#allocation3] sm:$0xff] %v3961
    %4121 = vst [vmem:[#allocation3 + $0x8] sm:$0xff] %v3963
    %4122 = vst [vmem:[#allocation3 + $0x10] sm:$0xff] %v4074
    %4123 = vst [vmem:[#allocation3 + $0x18] sm:$0xff] %v4076
    %4124 = vst [vmem:[#allocation3 + $0x20] sm:$0xff] %v3967
    %4125 = vst [vmem:[#allocation3 + $0x28] sm:$0xff] %v3969
    %4126 = vst [vmem:[#allocation3 + $0x30] sm:$0xff] %v4080
    %4127 = vst [vmem:[#allocation3 + $0x38] sm:$0xff] %v4082
    %4128 = vst [vmem:[#allocation3 + $0x40] sm:$0xff] %v3973
    %4129 = vst [vmem:[#allocation3 + $0x48] sm:$0xff] %v3975
    %4130 = vst [vmem:[#allocation3 + $0x50] sm:$0xff] %v4086
    %4131 = vst [vmem:[#allocation3 + $0x58] sm:$0xff] %v4088
    %4132 = vst [vmem:[#allocation3 + $0x60] sm:$0xff] %v3979
    %4133 = vst [vmem:[#allocation3 + $0x68] sm:$0xff] %v3981
    %4134 = vst [vmem:[#allocation3 + $0x70] sm:$0xff] %v4092
    %4135 = vst [vmem:[#allocation3 + $0x78] sm:$0xff] %v4094
    %4136 = vst [vmem:[#allocation3 + $0x80] sm:$0xff] %v3985
    %4137 = vst [vmem:[#allocation3 + $0x88] sm:$0xff] %v3987
    %4138 = vst [vmem:[#allocation3 + $0x90] sm:$0xff] %v4098
    %4139 = vst [vmem:[#allocation3 + $0x98] sm:$0xff] %v4100
    %4140 = vst [vmem:[#allocation3 + $0xa0] sm:$0xff] %v3991
    %4141 = vst [vmem:[#allocation3 + $0xa8] sm:$0xff] %v3993
    %4142 = vst [vmem:[#allocation3 + $0xb0] sm:$0xff] %v4104
    %4143 = vst [vmem:[#allocation3 + $0xb8] sm:$0xff] %v4106
    %4144 = vst [vmem:[#allocation3 + $0xc0] sm:$0xff] %v3997
    %4145 = vst [vmem:[#allocation3 + $0xc8] sm:$0xff] %v3999
    %4146 = vst [vmem:[#allocation3 + $0xd0] sm:$0xff] %v4110
    %4147 = vst [vmem:[#allocation3 + $0xd8] sm:$0xff] %v4112
    %4148 = vst [vmem:[#allocation3 + $0xe0] sm:$0xff] %v4003
    %4149 = vst [vmem:[#allocation3 + $0xe8] sm:$0xff] %v4005
    %4150 = vst [vmem:[#allocation3 + $0xf0] sm:$0xff] %v4116
    %4151 = vst [vmem:[#allocation3 + $0xf8] sm:$0xff] %v4118
    %v4152 = vld [vmem:[#allocation3] sm:$0xff]
    %v4153 = vld [vmem:[#allocation3 + $0x8] sm:$0xff]
    %v4154 = vld [vmem:[#allocation3 + $0x10] sm:$0xff]
    %v4155 = vld [vmem:[#allocation3 + $0x18] sm:$0xff]
    %4156 = vmatprep.subr.mxu0 %v3800
    %4157 = vmatpush1.msra.mxu0 %v3799
    %4158 = vmatprep.subr.mxu0 %v3804
    %4159 = vmatpush1.msra.mxu0 %v3803
    %4160 = vmatprep.subr.mxu0 %v3808
    %4161 = vmatpush1.msra.mxu0 %v3807
    %4162 = vmatprep.subr.mxu0 %v3812
    %4163 = vmatpush1.msra.mxu0 %v3811
    %4164 = vmatprep.subr.mxu0 %v3816
    %4165 = vmatpush1.msra.mxu0 %v3815
    %4166 = vmatprep.subr.mxu0 %v3820
    %4167 = vmatpush1.msra.mxu0 %v3819
    %4168 = vmatprep.subr.mxu0 %v3824
    %4169 = vmatpush1.msra.mxu0 %v3823
    %4170 = vmatprep.subr.mxu0 %v3828
    %4171 = vmatpush1.msra.mxu0 %v3827
    %4172 = vmatprep.subr.mxu0 %v3832
    %4173 = vmatpush1.msra.mxu0 %v3831
    %4174 = vmatprep.subr.mxu0 %v3836
    %4175 = vmatpush1.msra.mxu0 %v3835
    %4176 = vmatprep.subr.mxu0 %v3840
    %4177 = vmatpush1.msra.mxu0 %v3839
    %4178 = vmatprep.subr.mxu0 %v3844
    %4179 = vmatpush1.msra.mxu0 %v3843
    %4180 = vmatprep.subr.mxu0 %v3848
    %4181 = vmatpush1.msra.mxu0 %v3847
    %4182 = vmatprep.subr.mxu0 %v3852
    %4183 = vmatpush1.msra.mxu0 %v3851
    %4184 = vmatprep.subr.mxu0 %v3856
    %4185 = vmatpush1.msra.mxu0 %v3855
    %4186 = vmatprep.subr.mxu0 %v3860
    %4187 = vmatpush1.msra.mxu0 %v3859
    %4188 = vmatprep.subr.mxu0 0.0
    %4189 = vmatpush1.msra.mxu0 0.0
    %4190 = vmatprep.subr.mxu0 0.0
    %4191 = vmatpush1.msra.mxu0 0.0
    %4192 = vmatprep.subr.mxu0 0.0
    %4193 = vmatpush1.msra.mxu0 0.0
    %4194 = vmatprep.subr.mxu0 0.0
    %4195 = vmatpush1.msra.mxu0 0.0
    %4196 = vmatprep.subr.mxu0 0.0
    %4197 = vmatpush1.msra.mxu0 0.0
    %4198 = vmatprep.subr.mxu0 0.0
    %4199 = vmatpush1.msra.mxu0 0.0
    %4200 = vmatprep.subr.mxu0 0.0
    %4201 = vmatpush1.msra.mxu0 0.0
    %4202 = vmatprep.subr.mxu0 0.0
    %4203 = vmatpush1.msra.mxu0 0.0
    %4204 = vmatprep.subr.mxu0 0.0
    %4205 = vmatpush1.msra.mxu0 0.0
    %4206 = vmatprep.subr.mxu0 0.0
    %4207 = vmatpush1.msra.mxu0 0.0
    %4208 = vmatprep.subr.mxu0 0.0
    %4209 = vmatpush1.msra.mxu0 0.0
    %4210 = vmatprep.subr.mxu0 0.0
    %4211 = vmatpush1.msra.mxu0 0.0
    %4212 = vmatprep.subr.mxu0 0.0
    %4213 = vmatpush1.msra.mxu0 0.0
    %4214 = vmatprep.subr.mxu0 0.0
    %4215 = vmatpush1.msra.mxu0 0.0
    %4216 = vmatprep.subr.mxu0 0.0
    %4217 = vmatpush1.msra.mxu0 0.0
    %4218 = vmatprep.subr.mxu0 0.0
    %4219 = vmatpush1.msra.mxu0 0.0
    %4220 = vmatprep.mubr.f32.mxu0 0.0
    %4221 = vmatmul.mubr.f32.gmra.mrb[0].mxu0 0.0
    %v4222 = vpop.f32.mrb[0].mxu0
    %v4223 = vadd.f32 0.0, %v4222
    %v4224 = vpop.f32.mrb[0].mxu0
    %v4225 = vadd.f32 0.0, %v4224
    %4226 = vdwg.mxu0
    %4227 = vmatprep.subr.mxu0 %v3802
    %4228 = vmatpush1.msra.mxu0 %v3801
    %4229 = vmatprep.subr.mxu0 %v3806
    %4230 = vmatpush1.msra.mxu0 %v3805
    %4231 = vmatprep.subr.mxu0 %v3810
    %4232 = vmatpush1.msra.mxu0 %v3809
    %4233 = vmatprep.subr.mxu0 %v3814
    %4234 = vmatpush1.msra.mxu0 %v3813
    %4235 = vmatprep.subr.mxu0 %v3818
    %4236 = vmatpush1.msra.mxu0 %v3817
    %4237 = vmatprep.subr.mxu0 %v3822
    %4238 = vmatpush1.msra.mxu0 %v3821
    %4239 = vmatprep.subr.mxu0 %v3826
    %4240 = vmatpush1.msra.mxu0 %v3825
    %4241 = vmatprep.subr.mxu0 %v3830
    %4242 = vmatpush1.msra.mxu0 %v3829
    %4243 = vmatprep.subr.mxu0 %v3834
    %4244 = vmatpush1.msra.mxu0 %v3833
    %4245 = vmatprep.subr.mxu0 %v3838
    %4246 = vmatpush1.msra.mxu0 %v3837
    %4247 = vmatprep.subr.mxu0 %v3842
    %4248 = vmatpush1.msra.mxu0 %v3841
    %4249 = vmatprep.subr.mxu0 %v3846
    %4250 = vmatpush1.msra.mxu0 %v3845
    %4251 = vmatprep.subr.mxu0 %v3850
    %4252 = vmatpush1.msra.mxu0 %v3849
    %4253 = vmatprep.subr.mxu0 %v3854
    %4254 = vmatpush1.msra.mxu0 %v3853
    %4255 = vmatprep.subr.mxu0 %v3858
    %4256 = vmatpush1.msra.mxu0 %v3857
    %4257 = vmatprep.subr.mxu0 %v3862
    %4258 = vmatpush1.msra.mxu0 %v3861
    %4259 = vmatprep.subr.mxu0 0.0
    %4260 = vmatpush1.msra.mxu0 0.0
    %4261 = vmatprep.subr.mxu0 0.0
    %4262 = vmatpush1.msra.mxu0 0.0
    %4263 = vmatprep.subr.mxu0 0.0
    %4264 = vmatpush1.msra.mxu0 0.0
    %4265 = vmatprep.subr.mxu0 0.0
    %4266 = vmatpush1.msra.mxu0 0.0
    %4267 = vmatprep.subr.mxu0 0.0
    %4268 = vmatpush1.msra.mxu0 0.0
    %4269 = vmatprep.subr.mxu0 0.0
    %4270 = vmatpush1.msra.mxu0 0.0
    %4271 = vmatprep.subr.mxu0 0.0
    %4272 = vmatpush1.msra.mxu0 0.0
    %4273 = vmatprep.subr.mxu0 0.0
    %4274 = vmatpush1.msra.mxu0 0.0
    %4275 = vmatprep.subr.mxu0 0.0
    %4276 = vmatpush1.msra.mxu0 0.0
    %4277 = vmatprep.subr.mxu0 0.0
    %4278 = vmatpush1.msra.mxu0 0.0
    %4279 = vmatprep.subr.mxu0 0.0
    %4280 = vmatpush1.msra.mxu0 0.0
    %4281 = vmatprep.subr.mxu0 0.0
    %4282 = vmatpush1.msra.mxu0 0.0
    %4283 = vmatprep.subr.mxu0 0.0
    %4284 = vmatpush1.msra.mxu0 0.0
    %4285 = vmatprep.subr.mxu0 0.0
    %4286 = vmatpush1.msra.mxu0 0.0
    %4287 = vmatprep.subr.mxu0 0.0
    %4288 = vmatpush1.msra.mxu0 0.0
    %4289 = vmatprep.subr.mxu0 0.0
    %4290 = vmatpush1.msra.mxu0 0.0
    %4291 = vmatprep.mubr.f32.mxu0 0.0
    %4292 = vmatmul.mubr.f32.gmra.mrb[0].mxu0 0.0
    %v4293 = vpop.f32.mrb[0].mxu0
    %v4294 = vadd.f32 0.0, %v4293
    %v4295 = vpop.f32.mrb[0].mxu0
    %v4296 = vadd.f32 0.0, %v4295
    %4297 = vdwg.mxu0
    %v4298 = vadd.f32 %v4152, %v4223
    %v4299 = vadd.f32 %v4153, %v4225
    %v4300 = vadd.f32 %v4154, %v4294
    %v4301 = vadd.f32 %v4155, %v4296
    %v4302 = vxor.u32 %v4298, 2147483648
    %v4303 = vmul.f32 %v4302, 1.442695
    %v4304 = vpow.pop %v4303
    %v4305 = vadd.f32 %v4304, 1.0
    %v4306 = vrcp.pop %v4305
    %v4307 = vmul.f32 1.0, %v4306
    %v4308 = vxor.u32 %v4299, 2147483648
    %v4309 = vmul.f32 %v4308, 1.442695
    %v4310 = vpow.pop %v4309
    %v4311 = vadd.f32 %v4310, 1.0
    %v4312 = vrcp.pop %v4311
    %v4313 = vmul.f32 1.0, %v4312
    %v4314 = vtanh.pop %v4300
    %v4315 = vxor.u32 %v4301, 2147483648
    %v4316 = vmul.f32 %v4315, 1.442695
    %v4317 = vpow.pop %v4316
    %v4318 = vadd.f32 %v4317, 1.0
    %v4319 = vrcp.pop %v4318
    %v4320 = vmul.f32 1.0, %v4319
    %v4321 = vmul.f32 %v4313, 0.0
    %v4322 = vmul.f32 %v4307, %v4314
    %v4323 = vadd.f32 %v4321, %v4322
    %v4324 = vtanh.pop %v4323
    %v4325 = vmul.f32 %v4320, %v4324
    %4326 = vst [vmem:[#allocation2] sm:$0xff] %v4325
    %v4327 = vld [vmem:[%s675] sm:$0xff]
    %v4328 = vld [vmem:[%s675 + $0x8] sm:$0xff]
    %v4329 = vld [vmem:[%s675 + $0x10] sm:$0xff]
    %v4330 = vld [vmem:[%s675 + $0x18] sm:$0xff]
    %4331 = vmatprep.subr.mxu0 %v3800
    %4332 = vmatpush1.msra.mxu0 %v3799
    %4333 = vmatprep.subr.mxu0 %v3804
    %4334 = vmatpush1.msra.mxu0 %v3803
    %4335 = vmatprep.subr.mxu0 %v3808
    %4336 = vmatpush1.msra.mxu0 %v3807
    %4337 = vmatprep.subr.mxu0 %v3812
    %4338 = vmatpush1.msra.mxu0 %v3811
    %4339 = vmatprep.subr.mxu0 %v3816
    %4340 = vmatpush1.msra.mxu0 %v3815
    %4341 = vmatprep.subr.mxu0 %v3820
    %4342 = vmatpush1.msra.mxu0 %v3819
    %4343 = vmatprep.subr.mxu0 %v3824
    %4344 = vmatpush1.msra.mxu0 %v3823
    %4345 = vmatprep.subr.mxu0 %v3828
    %4346 = vmatpush1.msra.mxu0 %v3827
    %4347 = vmatprep.subr.mxu0 %v3832
    %4348 = vmatpush1.msra.mxu0 %v3831
    %4349 = vmatprep.subr.mxu0 %v3836
    %4350 = vmatpush1.msra.mxu0 %v3835
    %4351 = vmatprep.subr.mxu0 %v3840
    %4352 = vmatpush1.msra.mxu0 %v3839
    %4353 = vmatprep.subr.mxu0 %v3844
    %4354 = vmatpush1.msra.mxu0 %v3843
    %4355 = vmatprep.subr.mxu0 %v3848
    %4356 = vmatpush1.msra.mxu0 %v3847
    %4357 = vmatprep.subr.mxu0 %v3852
    %4358 = vmatpush1.msra.mxu0 %v3851
    %4359 = vmatprep.subr.mxu0 %v3856
    %4360 = vmatpush1.msra.mxu0 %v3855
    %4361 = vmatprep.subr.mxu0 %v3860
    %4362 = vmatpush1.msra.mxu0 %v3859
    %4363 = vmatprep.subr.mxu0 0.0
    %4364 = vmatpush1.msra.mxu0 0.0
    %4365 = vmatprep.subr.mxu0 0.0
    %4366 = vmatpush1.msra.mxu0 0.0
    %4367 = vmatprep.subr.mxu0 0.0
    %4368 = vmatpush1.msra.mxu0 0.0
    %4369 = vmatprep.subr.mxu0 0.0
    %4370 = vmatpush1.msra.mxu0 0.0
    %4371 = vmatprep.subr.mxu0 0.0
    %4372 = vmatpush1.msra.mxu0 0.0
    %4373 = vmatprep.subr.mxu0 0.0
    %4374 = vmatpush1.msra.mxu0 0.0
    %4375 = vmatprep.subr.mxu0 0.0
    %4376 = vmatpush1.msra.mxu0 0.0
    %4377 = vmatprep.subr.mxu0 0.0
    %4378 = vmatpush1.msra.mxu0 0.0
    %4379 = vmatprep.subr.mxu0 0.0
    %4380 = vmatpush1.msra.mxu0 0.0
    %4381 = vmatprep.subr.mxu0 0.0
    %4382 = vmatpush1.msra.mxu0 0.0
    %4383 = vmatprep.subr.mxu0 0.0
    %4384 = vmatpush1.msra.mxu0 0.0
    %4385 = vmatprep.subr.mxu0 0.0
    %4386 = vmatpush1.msra.mxu0 0.0
    %4387 = vmatprep.subr.mxu0 0.0
    %4388 = vmatpush1.msra.mxu0 0.0
    %4389 = vmatprep.subr.mxu0 0.0
    %4390 = vmatpush1.msra.mxu0 0.0
    %4391 = vmatprep.subr.mxu0 0.0
    %4392 = vmatpush1.msra.mxu0 0.0
    %4393 = vmatprep.subr.mxu0 0.0
    %4394 = vmatpush1.msra.mxu0 0.0
    %4395 = vmatprep.mubr.f32.mxu0 0.0
    %4396 = vmatmul.mubr.f32.gmra.mrb[0].mxu0 %v4325
    %v4397 = vpop.f32.mrb[0].mxu0
    %v4398 = vadd.f32 0.0, %v4397
    %v4399 = vpop.f32.mrb[0].mxu0
    %v4400 = vadd.f32 0.0, %v4399
    %4401 = vdwg.mxu0
    %4402 = vmatprep.subr.mxu0 %v3802
    %4403 = vmatpush1.msra.mxu0 %v3801
    %4404 = vmatprep.subr.mxu0 %v3806
    %4405 = vmatpush1.msra.mxu0 %v3805
    %4406 = vmatprep.subr.mxu0 %v3810
    %4407 = vmatpush1.msra.mxu0 %v3809
    %4408 = vmatprep.subr.mxu0 %v3814
    %4409 = vmatpush1.msra.mxu0 %v3813
    %4410 = vmatprep.subr.mxu0 %v3818
    %4411 = vmatpush1.msra.mxu0 %v3817
    %4412 = vmatprep.subr.mxu0 %v3822
    %4413 = vmatpush1.msra.mxu0 %v3821
    %4414 = vmatprep.subr.mxu0 %v3826
    %4415 = vmatpush1.msra.mxu0 %v3825
    %4416 = vmatprep.subr.mxu0 %v3830
    %4417 = vmatpush1.msra.mxu0 %v3829
    %4418 = vmatprep.subr.mxu0 %v3834
    %4419 = vmatpush1.msra.mxu0 %v3833
    %4420 = vmatprep.subr.mxu0 %v3838
    %4421 = vmatpush1.msra.mxu0 %v3837
    %4422 = vmatprep.subr.mxu0 %v3842
    %4423 = vmatpush1.msra.mxu0 %v3841
    %4424 = vmatprep.subr.mxu0 %v3846
    %4425 = vmatpush1.msra.mxu0 %v3845
    %4426 = vmatprep.subr.mxu0 %v3850
    %4427 = vmatpush1.msra.mxu0 %v3849
    %4428 = vmatprep.subr.mxu0 %v3854
    %4429 = vmatpush1.msra.mxu0 %v3853
    %4430 = vmatprep.subr.mxu0 %v3858
    %4431 = vmatpush1.msra.mxu0 %v3857
    %4432 = vmatprep.subr.mxu0 %v3862
    %4433 = vmatpush1.msra.mxu0 %v3861
    %4434 = vmatprep.subr.mxu0 0.0
    %4435 = vmatpush1.msra.mxu0 0.0
    %4436 = vmatprep.subr.mxu0 0.0
    %4437 = vmatpush1.msra.mxu0 0.0
    %4438 = vmatprep.subr.mxu0 0.0
    %4439 = vmatpush1.msra.mxu0 0.0
    %4440 = vmatprep.subr.mxu0 0.0
    %4441 = vmatpush1.msra.mxu0 0.0
    %4442 = vmatprep.subr.mxu0 0.0
    %4443 = vmatpush1.msra.mxu0 0.0
    %4444 = vmatprep.subr.mxu0 0.0
    %4445 = vmatpush1.msra.mxu0 0.0
    %4446 = vmatprep.subr.mxu0 0.0
    %4447 = vmatpush1.msra.mxu0 0.0
    %4448 = vmatprep.subr.mxu0 0.0
    %4449 = vmatpush1.msra.mxu0 0.0
    %4450 = vmatprep.subr.mxu0 0.0
    %4451 = vmatpush1.msra.mxu0 0.0
    %4452 = vmatprep.subr.mxu0 0.0
    %4453 = vmatpush1.msra.mxu0 0.0
    %4454 = vmatprep.subr.mxu0 0.0
    %4455 = vmatpush1.msra.mxu0 0.0
    %4456 = vmatprep.subr.mxu0 0.0
    %4457 = vmatpush1.msra.mxu0 0.0
    %4458 = vmatprep.subr.mxu0 0.0
    %4459 = vmatpush1.msra.mxu0 0.0
    %4460 = vmatprep.subr.mxu0 0.0
    %4461 = vmatpush1.msra.mxu0 0.0
    %4462 = vmatprep.subr.mxu0 0.0
    %4463 = vmatpush1.msra.mxu0 0.0
    %4464 = vmatprep.subr.mxu0 0.0
    %4465 = vmatpush1.msra.mxu0 0.0
    %4466 = vmatprep.mubr.f32.mxu0 0.0
    %4467 = vmatmul.mubr.f32.gmra.mrb[0].mxu0 %v4325
    %v4468 = vpop.f32.mrb[0].mxu0
    %v4469 = vadd.f32 0.0, %v4468
    %v4470 = vpop.f32.mrb[0].mxu0
    %v4471 = vadd.f32 0.0, %v4470
    %4472 = vdwg.mxu0
    %v4473 = vadd.f32 %v4327, %v4398
    %v4474 = vadd.f32 %v4328, %v4400
    %v4475 = vadd.f32 %v4329, %v4469
    %v4476 = vadd.f32 %v4330, %v4471
    %v4477 = vxor.u32 %v4473, 2147483648
    %v4478 = vmul.f32 %v4477, 1.442695
    %v4479 = vpow.pop %v4478
    %v4480 = vadd.f32 %v4479, 1.0
    %v4481 = vrcp.pop %v4480
    %v4482 = vmul.f32 1.0, %v4481
    %v4483 = vxor.u32 %v4474, 2147483648
    %v4484 = vmul.f32 %v4483, 1.442695
    %v4485 = vpow.pop %v4484
    %v4486 = vadd.f32 %v4485, 1.0
    %v4487 = vrcp.pop %v4486
    %v4488 = vmul.f32 1.0, %v4487
    %v4489 = vtanh.pop %v4475
    %v4490 = vxor.u32 %v4476, 2147483648
    %v4491 = vmul.f32 %v4490, 1.442695
    %v4492 = vpow.pop %v4491
    %v4493 = vadd.f32 %v4492, 1.0
    %v4494 = vrcp.pop %v4493
    %v4495 = vmul.f32 1.0, %v4494
    %v4496 = vmul.f32 %v4488, %v4323
    %v4497 = vmul.f32 %v4482, %v4489
    %v4498 = vadd.f32 %v4496, %v4497
    %v4499 = vtanh.pop %v4498
    %v4500 = vmul.f32 %v4495, %v4499
    %4501 = vst [vmem:[%s850] sm:$0xff] %v4500
    %v4502 = vld [vmem:[%s852] sm:$0xff]
    %v4503 = vld [vmem:[%s852 + $0x8] sm:$0xff]
    %v4504 = vld [vmem:[%s852 + $0x10] sm:$0xff]
    %v4505 = vld [vmem:[%s852 + $0x18] sm:$0xff]
    %4506 = vmatprep.subr.mxu0 %v3800
    %4507 = vmatpush1.msra.mxu0 %v3799
    %4508 = vmatprep.subr.mxu0 %v3804
    %4509 = vmatpush1.msra.mxu0 %v3803
    %4510 = vmatprep.subr.mxu0 %v3808
    %4511 = vmatpush1.msra.mxu0 %v3807
    %4512 = vmatprep.subr.mxu0 %v3812
    %4513 = vmatpush1.msra.mxu0 %v3811
    %4514 = vmatprep.subr.mxu0 %v3816
    %4515 = vmatpush1.msra.mxu0 %v3815
    %4516 = vmatprep.subr.mxu0 %v3820
    %4517 = vmatpush1.msra.mxu0 %v3819
    %4518 = vmatprep.subr.mxu0 %v3824
    %4519 = vmatpush1.msra.mxu0 %v3823
    %4520 = vmatprep.subr.mxu0 %v3828
    %4521 = vmatpush1.msra.mxu0 %v3827
    %4522 = vmatprep.subr.mxu0 %v3832
    %4523 = vmatpush1.msra.mxu0 %v3831
    %4524 = vmatprep.subr.mxu0 %v3836
    %4525 = vmatpush1.msra.mxu0 %v3835
    %4526 = vmatprep.subr.mxu0 %v3840
    %4527 = vmatpush1.msra.mxu0 %v3839
    %4528 = vmatprep.subr.mxu0 %v3844
    %4529 = vmatpush1.msra.mxu0 %v3843
    %4530 = vmatprep.subr.mxu0 %v3848
    %4531 = vmatpush1.msra.mxu0 %v3847
    %4532 = vmatprep.subr.mxu0 %v3852
    %4533 = vmatpush1.msra.mxu0 %v3851
    %4534 = vmatprep.subr.mxu0 %v3856
    %4535 = vmatpush1.msra.mxu0 %v3855
    %4536 = vmatprep.subr.mxu0 %v3860
    %4537 = vmatpush1.msra.mxu0 %v3859
    %4538 = vmatprep.subr.mxu0 0.0
    %4539 = vmatpush1.msra.mxu0 0.0
    %4540 = vmatprep.subr.mxu0 0.0
    %4541 = vmatpush1.msra.mxu0 0.0
    %4542 = vmatprep.subr.mxu0 0.0
    %4543 = vmatpush1.msra.mxu0 0.0
    %4544 = vmatprep.subr.mxu0 0.0
    %4545 = vmatpush1.msra.mxu0 0.0
    %4546 = vmatprep.subr.mxu0 0.0
    %4547 = vmatpush1.msra.mxu0 0.0
    %4548 = vmatprep.subr.mxu0 0.0
    %4549 = vmatpush1.msra.mxu0 0.0
    %4550 = vmatprep.subr.mxu0 0.0
    %4551 = vmatpush1.msra.mxu0 0.0
    %4552 = vmatprep.subr.mxu0 0.0
    %4553 = vmatpush1.msra.mxu0 0.0
    %4554 = vmatprep.subr.mxu0 0.0
    %4555 = vmatpush1.msra.mxu0 0.0
    %4556 = vmatprep.subr.mxu0 0.0
    %4557 = vmatpush1.msra.mxu0 0.0
    %4558 = vmatprep.subr.mxu0 0.0
    %4559 = vmatpush1.msra.mxu0 0.0
    %4560 = vmatprep.subr.mxu0 0.0
    %4561 = vmatpush1.msra.mxu0 0.0
    %4562 = vmatprep.subr.mxu0 0.0
    %4563 = vmatpush1.msra.mxu0 0.0
    %4564 = vmatprep.subr.mxu0 0.0
    %4565 = vmatpush1.msra.mxu0 0.0
    %4566 = vmatprep.subr.mxu0 0.0
    %4567 = vmatpush1.msra.mxu0 0.0
    %4568 = vmatprep.subr.mxu0 0.0
    %4569 = vmatpush1.msra.mxu0 0.0
    %4570 = vmatprep.mubr.f32.mxu0 0.0
    %4571 = vmatmul.mubr.f32.gmra.mrb[0].mxu0 %v4500
    %v4572 = vpop.f32.mrb[0].mxu0
    %v4573 = vadd.f32 0.0, %v4572
    %v4574 = vpop.f32.mrb[0].mxu0
    %v4575 = vadd.f32 0.0, %v4574
    %4576 = vdwg.mxu0
    %4577 = vmatprep.subr.mxu0 %v3802
    %4578 = vmatpush1.msra.mxu0 %v3801
    %4579 = vmatprep.subr.mxu0 %v3806
    %4580 = vmatpush1.msra.mxu0 %v3805
    %4581 = vmatprep.subr.mxu0 %v3810
    %4582 = vmatpush1.msra.mxu0 %v3809
    %4583 = vmatprep.subr.mxu0 %v3814
    %4584 = vmatpush1.msra.mxu0 %v3813
    %4585 = vmatprep.subr.mxu0 %v3818
    %4586 = vmatpush1.msra.mxu0 %v3817
    %4587 = vmatprep.subr.mxu0 %v3822
    %4588 = vmatpush1.msra.mxu0 %v3821
    %4589 = vmatprep.subr.mxu0 %v3826
    %4590 = vmatpush1.msra.mxu0 %v3825
    %4591 = vmatprep.subr.mxu0 %v3830
    %4592 = vmatpush1.msra.mxu0 %v3829
    %4593 = vmatprep.subr.mxu0 %v3834
    %4594 = vmatpush1.msra.mxu0 %v3833
    %4595 = vmatprep.subr.mxu0 %v3838
    %4596 = vmatpush1.msra.mxu0 %v3837
    %4597 = vmatprep.subr.mxu0 %v3842
    %4598 = vmatpush1.msra.mxu0 %v3841
    %4599 = vmatprep.subr.mxu0 %v3846
    %4600 = vmatpush1.msra.mxu0 %v3845
    %4601 = vmatprep.subr.mxu0 %v3850
    %4602 = vmatpush1.msra.mxu0 %v3849
    %4603 = vmatprep.subr.mxu0 %v3854
    %4604 = vmatpush1.msra.mxu0 %v3853
    %4605 = vmatprep.subr.mxu0 %v3858
    %4606 = vmatpush1.msra.mxu0 %v3857
    %4607 = vmatprep.subr.mxu0 %v3862
    %4608 = vmatpush1.msra.mxu0 %v3861
    %4609 = vmatprep.subr.mxu0 0.0
    %4610 = vmatpush1.msra.mxu0 0.0
    %4611 = vmatprep.subr.mxu0 0.0
    %4612 = vmatpush1.msra.mxu0 0.0
    %4613 = vmatprep.subr.mxu0 0.0
    %4614 = vmatpush1.msra.mxu0 0.0
    %4615 = vmatprep.subr.mxu0 0.0
    %4616 = vmatpush1.msra.mxu0 0.0
    %4617 = vmatprep.subr.mxu0 0.0
    %4618 = vmatpush1.msra.mxu0 0.0
    %4619 = vmatprep.subr.mxu0 0.0
    %4620 = vmatpush1.msra.mxu0 0.0
    %4621 = vmatprep.subr.mxu0 0.0
    %4622 = vmatpush1.msra.mxu0 0.0
    %4623 = vmatprep.subr.mxu0 0.0
    %4624 = vmatpush1.msra.mxu0 0.0
    %4625 = vmatprep.subr.mxu0 0.0
    %4626 = vmatpush1.msra.mxu0 0.0
    %4627 = vmatprep.subr.mxu0 0.0
    %4628 = vmatpush1.msra.mxu0 0.0
    %4629 = vmatprep.subr.mxu0 0.0
    %4630 = vmatpush1.msra.mxu0 0.0
    %4631 = vmatprep.subr.mxu0 0.0
    %4632 = vmatpush1.msra.mxu0 0.0
    %4633 = vmatprep.subr.mxu0 0.0
    %4634 = vmatpush1.msra.mxu0 0.0
    %4635 = vmatprep.subr.mxu0 0.0
    %4636 = vmatpush1.msra.mxu0 0.0
    %4637 = vmatprep.subr.mxu0 0.0
    %4638 = vmatpush1.msra.mxu0 0.0
    %4639 = vmatprep.subr.mxu0 0.0
    %4640 = vmatpush1.msra.mxu0 0.0
    %4641 = vmatprep.mubr.f32.mxu0 0.0
    %4642 = vmatmul.mubr.f32.gmra.mrb[0].mxu0 %v4500
    %v4643 = vpop.f32.mrb[0].mxu0
    %v4644 = vadd.f32 0.0, %v4643
    %v4645 = vpop.f32.mrb[0].mxu0
    %v4646 = vadd.f32 0.0, %v4645
    %4647 = vdwg.mxu0
    %v4648 = vadd.f32 %v4502, %v4573
    %v4649 = vadd.f32 %v4503, %v4575
    %v4650 = vadd.f32 %v4504, %v4644
    %v4651 = vadd.f32 %v4505, %v4646
    %v4652 = vxor.u32 %v4648, 2147483648
    %v4653 = vmul.f32 %v4652, 1.442695
    %v4654 = vpow.pop %v4653
    %v4655 = vadd.f32 %v4654, 1.0
    %v4656 = vrcp.pop %v4655
    %v4657 = vmul.f32 1.0, %v4656
    %v4658 = vxor.u32 %v4649, 2147483648
    %v4659 = vmul.f32 %v4658, 1.442695
    %v4660 = vpow.pop %v4659
    %v4661 = vadd.f32 %v4660, 1.0
    %v4662 = vrcp.pop %v4661
    %v4663 = vmul.f32 1.0, %v4662
    %v4664 = vtanh.pop %v4650
    %v4665 = vxor.u32 %v4651, 2147483648
    %v4666 = vmul.f32 %v4665, 1.442695
    %v4667 = vpow.pop %v4666
    %v4668 = vadd.f32 %v4667, 1.0
    %v4669 = vrcp.pop %v4668
    %v4670 = vmul.f32 1.0, %v4669
    %v4671 = vmul.f32 %v4663, %v4498
    %v4672 = vmul.f32 %v4657, %v4664
    %v4673 = vadd.f32 %v4671, %v4672
    %v4674 = vtanh.pop %v4673
    %v4675 = vmul.f32 %v4670, %v4674
    %4676 = vst [vmem:[%s1027] sm:$0xff] %v4675
    %v4677 = vld [vmem:[%s1029] sm:$0xff]
    %v4678 = vld [vmem:[%s1029 + $0x8] sm:$0xff]
    %v4679 = vld [vmem:[%s1029 + $0x10] sm:$0xff]
    %v4680 = vld [vmem:[%s1029 + $0x18] sm:$0xff]
    %4681 = vmatprep.subr.mxu0 %v3800
    %4682 = vmatpush1.msra.mxu0 %v3799
    %4683 = vmatprep.subr.mxu0 %v3804
    %4684 = vmatpush1.msra.mxu0 %v3803
    %4685 = vmatprep.subr.mxu0 %v3808
    %4686 = vmatpush1.msra.mxu0 %v3807
    %4687 = vmatprep.subr.mxu0 %v3812
    %4688 = vmatpush1.msra.mxu0 %v3811
    %4689 = vmatprep.subr.mxu0 %v3816
    %4690 = vmatpush1.msra.mxu0 %v3815
    %4691 = vmatprep.subr.mxu0 %v3820
    %4692 = vmatpush1.msra.mxu0 %v3819
    %4693 = vmatprep.subr.mxu0 %v3824
    %4694 = vmatpush1.msra.mxu0 %v3823
    %4695 = vmatprep.subr.mxu0 %v3828
    %4696 = vmatpush1.msra.mxu0 %v3827
    %4697 = vmatprep.subr.mxu0 %v3832
    %4698 = vmatpush1.msra.mxu0 %v3831
    %4699 = vmatprep.subr.mxu0 %v3836
    %4700 = vmatpush1.msra.mxu0 %v3835
    %4701 = vmatprep.subr.mxu0 %v3840
    %4702 = vmatpush1.msra.mxu0 %v3839
    %4703 = vmatprep.subr.mxu0 %v3844
    %4704 = vmatpush1.msra.mxu0 %v3843
    %4705 = vmatprep.subr.mxu0 %v3848
    %4706 = vmatpush1.msra.mxu0 %v3847
    %4707 = vmatprep.subr.mxu0 %v3852
    %4708 = vmatpush1.msra.mxu0 %v3851
    %4709 = vmatprep.subr.mxu0 %v3856
    %4710 = vmatpush1.msra.mxu0 %v3855
    %4711 = vmatprep.subr.mxu0 %v3860
    %4712 = vmatpush1.msra.mxu0 %v3859
    %4713 = vmatprep.subr.mxu0 0.0
    %4714 = vmatpush1.msra.mxu0 0.0
    %4715 = vmatprep.subr.mxu0 0.0
    %4716 = vmatpush1.msra.mxu0 0.0
    %4717 = vmatprep.subr.mxu0 0.0
    %4718 = vmatpush1.msra.mxu0 0.0
    %4719 = vmatprep.subr.mxu0 0.0
    %4720 = vmatpush1.msra.mxu0 0.0
    %4721 = vmatprep.subr.mxu0 0.0
    %4722 = vmatpush1.msra.mxu0 0.0
    %4723 = vmatprep.subr.mxu0 0.0
    %4724 = vmatpush1.msra.mxu0 0.0
    %4725 = vmatprep.subr.mxu0 0.0
    %4726 = vmatpush1.msra.mxu0 0.0
    %4727 = vmatprep.subr.mxu0 0.0
    %4728 = vmatpush1.msra.mxu0 0.0
    %4729 = vmatprep.subr.mxu0 0.0
    %4730 = vmatpush1.msra.mxu0 0.0
    %4731 = vmatprep.subr.mxu0 0.0
    %4732 = vmatpush1.msra.mxu0 0.0
    %4733 = vmatprep.subr.mxu0 0.0
    %4734 = vmatpush1.msra.mxu0 0.0
    %4735 = vmatprep.subr.mxu0 0.0
    %4736 = vmatpush1.msra.mxu0 0.0
    %4737 = vmatprep.subr.mxu0 0.0
    %4738 = vmatpush1.msra.mxu0 0.0
    %4739 = vmatprep.subr.mxu0 0.0
    %4740 = vmatpush1.msra.mxu0 0.0
    %4741 = vmatprep.subr.mxu0 0.0
    %4742 = vmatpush1.msra.mxu0 0.0
    %4743 = vmatprep.subr.mxu0 0.0
    %4744 = vmatpush1.msra.mxu0 0.0
    %4745 = vmatprep.mubr.f32.mxu0 0.0
    %4746 = vmatmul.mubr.f32.gmra.mrb[0].mxu0 %v4675
    %v4747 = vpop.f32.mrb[0].mxu0
    %v4748 = vadd.f32 0.0, %v4747
    %v4749 = vpop.f32.mrb[0].mxu0
    %v4750 = vadd.f32 0.0, %v4749
    %4751 = vdwg.mxu0
    %4752 = vmatprep.subr.mxu0 %v3802
    %4753 = vmatpush1.msra.mxu0 %v3801
    %4754 = vmatprep.subr.mxu0 %v3806
    %4755 = vmatpush1.msra.mxu0 %v3805
    %4756 = vmatprep.subr.mxu0 %v3810
    %4757 = vmatpush1.msra.mxu0 %v3809
    %4758 = vmatprep.subr.mxu0 %v3814
    %4759 = vmatpush1.msra.mxu0 %v3813
    %4760 = vmatprep.subr.mxu0 %v3818
    %4761 = vmatpush1.msra.mxu0 %v3817
    %4762 = vmatprep.subr.mxu0 %v3822
    %4763 = vmatpush1.msra.mxu0 %v3821
    %4764 = vmatprep.subr.mxu0 %v3826
    %4765 = vmatpush1.msra.mxu0 %v3825
    %4766 = vmatprep.subr.mxu0 %v3830
    %4767 = vmatpush1.msra.mxu0 %v3829
    %4768 = vmatprep.subr.mxu0 %v3834
    %4769 = vmatpush1.msra.mxu0 %v3833
    %4770 = vmatprep.subr.mxu0 %v3838
    %4771 = vmatpush1.msra.mxu0 %v3837
    %4772 = vmatprep.subr.mxu0 %v3842
    %4773 = vmatpush1.msra.mxu0 %v3841
    %4774 = vmatprep.subr.mxu0 %v3846
    %4775 = vmatpush1.msra.mxu0 %v3845
    %4776 = vmatprep.subr.mxu0 %v3850
    %4777 = vmatpush1.msra.mxu0 %v3849
    %4778 = vmatprep.subr.mxu0 %v3854
    %4779 = vmatpush1.msra.mxu0 %v3853
    %4780 = vmatprep.subr.mxu0 %v3858
    %4781 = vmatpush1.msra.mxu0 %v3857
    %4782 = vmatprep.subr.mxu0 %v3862
    %4783 = vmatpush1.msra.mxu0 %v3861
    %4784 = vmatprep.subr.mxu0 0.0
    %4785 = vmatpush1.msra.mxu0 0.0
    %4786 = vmatprep.subr.mxu0 0.0
    %4787 = vmatpush1.msra.mxu0 0.0
    %4788 = vmatprep.subr.mxu0 0.0
    %4789 = vmatpush1.msra.mxu0 0.0
    %4790 = vmatprep.subr.mxu0 0.0
    %4791 = vmatpush1.msra.mxu0 0.0
    %4792 = vmatprep.subr.mxu0 0.0
    %4793 = vmatpush1.msra.mxu0 0.0
    %4794 = vmatprep.subr.mxu0 0.0
    %4795 = vmatpush1.msra.mxu0 0.0
    %4796 = vmatprep.subr.mxu0 0.0
    %4797 = vmatpush1.msra.mxu0 0.0
    %4798 = vmatprep.subr.mxu0 0.0
    %4799 = vmatpush1.msra.mxu0 0.0
    %4800 = vmatprep.subr.mxu0 0.0
    %4801 = vmatpush1.msra.mxu0 0.0
    %4802 = vmatprep.subr.mxu0 0.0
    %4803 = vmatpush1.msra.mxu0 0.0
    %4804 = vmatprep.subr.mxu0 0.0
    %4805 = vmatpush1.msra.mxu0 0.0
    %4806 = vmatprep.subr.mxu0 0.0
    %4807 = vmatpush1.msra.mxu0 0.0
    %4808 = vmatprep.subr.mxu0 0.0
    %4809 = vmatpush1.msra.mxu0 0.0
    %4810 = vmatprep.subr.mxu0 0.0
    %4811 = vmatpush1.msra.mxu0 0.0
    %4812 = vmatprep.subr.mxu0 0.0
    %4813 = vmatpush1.msra.mxu0 0.0
    %4814 = vmatprep.subr.mxu0 0.0
    %4815 = vmatpush1.msra.mxu0 0.0
    %4816 = vmatprep.mubr.f32.mxu0 0.0
    %4817 = vmatmul.mubr.f32.gmra.mrb[0].mxu0 %v4675
    %v4818 = vpop.f32.mrb[0].mxu0
    %v4819 = vadd.f32 0.0, %v4818
    %v4820 = vpop.f32.mrb[0].mxu0
    %v4821 = vadd.f32 0.0, %v4820
    %4822 = vdwg.mxu0
    %v4823 = vadd.f32 %v4677, %v4748
    %v4824 = vadd.f32 %v4678, %v4750
    %v4825 = vadd.f32 %v4679, %v4819
    %v4826 = vadd.f32 %v4680, %v4821
    %v4827 = vxor.u32 %v4823, 2147483648
    %v4828 = vmul.f32 %v4827, 1.442695
    %v4829 = vpow.pop %v4828
    %v4830 = vadd.f32 %v4829, 1.0
    %v4831 = vrcp.pop %v4830
    %v4832 = vmul.f32 1.0, %v4831
    %v4833 = vxor.u32 %v4824, 2147483648
    %v4834 = vmul.f32 %v4833, 1.442695
    %v4835 = vpow.pop %v4834
    %v4836 = vadd.f32 %v4835, 1.0
    %v4837 = vrcp.pop %v4836
    %v4838 = vmul.f32 1.0, %v4837
    %v4839 = vtanh.pop %v4825
    %v4840 = vxor.u32 %v4826, 2147483648
    %v4841 = vmul.f32 %v4840, 1.442695
    %v4842 = vpow.pop %v4841
    %v4843 = vadd.f32 %v4842, 1.0
    %v4844 = vrcp.pop %v4843
    %v4845 = vmul.f32 1.0, %v4844
    %v4846 = vmul.f32 %v4838, %v4673
    %v4847 = vmul.f32 %v4832, %v4839
    %v4848 = vadd.f32 %v4846, %v4847
    %v4849 = vtanh.pop %v4848
    %v4850 = vmul.f32 %v4845, %v4849
    %4851 = vst [vmem:[%s1204] sm:$0xff] %v4850
    %v4852 = vld [vmem:[%s1206] sm:$0xff]
    %v4853 = vld [vmem:[%s1206 + $0x8] sm:$0xff]
    %v4854 = vld [vmem:[%s1206 + $0x10] sm:$0xff]
    %v4855 = vld [vmem:[%s1206 + $0x18] sm:$0xff]
    %4856 = vmatprep.subr.mxu0 %v3800
    %4857 = vmatpush1.msra.mxu0 %v3799
    %4858 = vmatprep.subr.mxu0 %v3804
    %4859 = vmatpush1.msra.mxu0 %v3803
    %4860 = vmatprep.subr.mxu0 %v3808
    %4861 = vmatpush1.msra.mxu0 %v3807
    %4862 = vmatprep.subr.mxu0 %v3812
    %4863 = vmatpush1.msra.mxu0 %v3811
    %4864 = vmatprep.subr.mxu0 %v3816
    %4865 = vmatpush1.msra.mxu0 %v3815
    %4866 = vmatprep.subr.mxu0 %v3820
    %4867 = vmatpush1.msra.mxu0 %v3819
    %4868 = vmatprep.subr.mxu0 %v3824
    %4869 = vmatpush1.msra.mxu0 %v3823
    %4870 = vmatprep.subr.mxu0 %v3828
    %4871 = vmatpush1.msra.mxu0 %v3827
    %4872 = vmatprep.subr.mxu0 %v3832
    %4873 = vmatpush1.msra.mxu0 %v3831
    %4874 = vmatprep.subr.mxu0 %v3836
    %4875 = vmatpush1.msra.mxu0 %v3835
    %4876 = vmatprep.subr.mxu0 %v3840
    %4877 = vmatpush1.msra.mxu0 %v3839
    %4878 = vmatprep.subr.mxu0 %v3844
    %4879 = vmatpush1.msra.mxu0 %v3843
    %4880 = vmatprep.subr.mxu0 %v3848
    %4881 = vmatpush1.msra.mxu0 %v3847
    %4882 = vmatprep.subr.mxu0 %v3852
    %4883 = vmatpush1.msra.mxu0 %v3851
    %4884 = vmatprep.subr.mxu0 %v3856
    %4885 = vmatpush1.msra.mxu0 %v3855
    %4886 = vmatprep.subr.mxu0 %v3860
    %4887 = vmatpush1.msra.mxu0 %v3859
    %4888 = vmatprep.subr.mxu0 0.0
    %4889 = vmatpush1.msra.mxu0 0.0
    %4890 = vmatprep.subr.mxu0 0.0
    %4891 = vmatpush1.msra.mxu0 0.0
    %4892 = vmatprep.subr.mxu0 0.0
    %4893 = vmatpush1.msra.mxu0 0.0
    %4894 = vmatprep.subr.mxu0 0.0
    %4895 = vmatpush1.msra.mxu0 0.0
    %4896 = vmatprep.subr.mxu0 0.0
    %4897 = vmatpush1.msra.mxu0 0.0
    %4898 = vmatprep.subr.mxu0 0.0
    %4899 = vmatpush1.msra.mxu0 0.0
    %4900 = vmatprep.subr.mxu0 0.0
    %4901 = vmatpush1.msra.mxu0 0.0
    %4902 = vmatprep.subr.mxu0 0.0
    %4903 = vmatpush1.msra.mxu0 0.0
    %4904 = vmatprep.subr.mxu0 0.0
    %4905 = vmatpush1.msra.mxu0 0.0
    %4906 = vmatprep.subr.mxu0 0.0
    %4907 = vmatpush1.msra.mxu0 0.0
    %4908 = vmatprep.subr.mxu0 0.0
    %4909 = vmatpush1.msra.mxu0 0.0
    %4910 = vmatprep.subr.mxu0 0.0
    %4911 = vmatpush1.msra.mxu0 0.0
    %4912 = vmatprep.subr.mxu0 0.0
    %4913 = vmatpush1.msra.mxu0 0.0
    %4914 = vmatprep.subr.mxu0 0.0
    %4915 = vmatpush1.msra.mxu0 0.0
    %4916 = vmatprep.subr.mxu0 0.0
    %4917 = vmatpush1.msra.mxu0 0.0
    %4918 = vmatprep.subr.mxu0 0.0
    %4919 = vmatpush1.msra.mxu0 0.0
    %4920 = vmatprep.mubr.f32.mxu0 0.0
    %4921 = vmatmul.mubr.f32.gmra.mrb[0].mxu0 %v4850
    %v4922 = vpop.f32.mrb[0].mxu0
    %v4923 = vadd.f32 0.0, %v4922
    %v4924 = vpop.f32.mrb[0].mxu0
    %v4925 = vadd.f32 0.0, %v4924
    %4926 = vdwg.mxu0
    %4927 = vmatprep.subr.mxu0 %v3802
    %4928 = vmatpush1.msra.mxu0 %v3801
    %4929 = vmatprep.subr.mxu0 %v3806
    %4930 = vmatpush1.msra.mxu0 %v3805
    %4931 = vmatprep.subr.mxu0 %v3810
    %4932 = vmatpush1.msra.mxu0 %v3809
    %4933 = vmatprep.subr.mxu0 %v3814
    %4934 = vmatpush1.msra.mxu0 %v3813
    %4935 = vmatprep.subr.mxu0 %v3818
    %4936 = vmatpush1.msra.mxu0 %v3817
    %4937 = vmatprep.subr.mxu0 %v3822
    %4938 = vmatpush1.msra.mxu0 %v3821
    %4939 = vmatprep.subr.mxu0 %v3826
    %4940 = vmatpush1.msra.mxu0 %v3825
    %4941 = vmatprep.subr.mxu0 %v3830
    %4942 = vmatpush1.msra.mxu0 %v3829
    %4943 = vmatprep.subr.mxu0 %v3834
    %4944 = vmatpush1.msra.mxu0 %v3833
    %4945 = vmatprep.subr.mxu0 %v3838
    %4946 = vmatpush1.msra.mxu0 %v3837
    %4947 = vmatprep.subr.mxu0 %v3842
    %4948 = vmatpush1.msra.mxu0 %v3841
    %4949 = vmatprep.subr.mxu0 %v3846
    %4950 = vmatpush1.msra.mxu0 %v3845
    %4951 = vmatprep.subr.mxu0 %v3850
    %4952 = vmatpush1.msra.mxu0 %v3849
    %4953 = vmatprep.subr.mxu0 %v3854
    %4954 = vmatpush1.msra.mxu0 %v3853
    %4955 = vmatprep.subr.mxu0 %v3858
    %4956 = vmatpush1.msra.mxu0 %v3857
    %4957 = vmatprep.subr.mxu0 %v3862
    %4958 = vmatpush1.msra.mxu0 %v3861
    %4959 = vmatprep.subr.mxu0 0.0
    %4960 = vmatpush1.msra.mxu0 0.0
    %4961 = vmatprep.subr.mxu0 0.0
    %4962 = vmatpush1.msra.mxu0 0.0
    %4963 = vmatprep.subr.mxu0 0.0
    %4964 = vmatpush1.msra.mxu0 0.0
    %4965 = vmatprep.subr.mxu0 0.0
    %4966 = vmatpush1.msra.mxu0 0.0
    %4967 = vmatprep.subr.mxu0 0.0
    %4968 = vmatpush1.msra.mxu0 0.0
    %4969 = vmatprep.subr.mxu0 0.0
    %4970 = vmatpush1.msra.mxu0 0.0
    %4971 = vmatprep.subr.mxu0 0.0
    %4972 = vmatpush1.msra.mxu0 0.0
    %4973 = vmatprep.subr.mxu0 0.0
    %4974 = vmatpush1.msra.mxu0 0.0
    %4975 = vmatprep.subr.mxu0 0.0
    %4976 = vmatpush1.msra.mxu0 0.0
    %4977 = vmatprep.subr.mxu0 0.0
    %4978 = vmatpush1.msra.mxu0 0.0
    %4979 = vmatprep.subr.mxu0 0.0
    %4980 = vmatpush1.msra.mxu0 0.0
    %4981 = vmatprep.subr.mxu0 0.0
    %4982 = vmatpush1.msra.mxu0 0.0
    %4983 = vmatprep.subr.mxu0 0.0
    %4984 = vmatpush1.msra.mxu0 0.0
    %4985 = vmatprep.subr.mxu0 0.0
    %4986 = vmatpush1.msra.mxu0 0.0
    %4987 = vmatprep.subr.mxu0 0.0
    %4988 = vmatpush1.msra.mxu0 0.0
    %4989 = vmatprep.subr.mxu0 0.0
    %4990 = vmatpush1.msra.mxu0 0.0
    %4991 = vmatprep.mubr.f32.mxu0 0.0
    %4992 = vmatmul.mubr.f32.gmra.mrb[0].mxu0 %v4850
    %v4993 = vpop.f32.mrb[0].mxu0
    %v4994 = vadd.f32 0.0, %v4993
    %v4995 = vpop.f32.mrb[0].mxu0
    %v4996 = vadd.f32 0.0, %v4995
    %4997 = vdwg.mxu0
    %v4998 = vadd.f32 %v4852, %v4923
    %v4999 = vadd.f32 %v4853, %v4925
    %v5000 = vadd.f32 %v4854, %v4994
    %v5001 = vadd.f32 %v4855, %v4996
    %v5002 = vxor.u32 %v4998, 2147483648
    %v5003 = vmul.f32 %v5002, 1.442695
    %v5004 = vpow.pop %v5003
    %v5005 = vadd.f32 %v5004, 1.0
    %v5006 = vrcp.pop %v5005
    %v5007 = vmul.f32 1.0, %v5006
    %v5008 = vxor.u32 %v4999, 2147483648
    %v5009 = vmul.f32 %v5008, 1.442695
    %v5010 = vpow.pop %v5009
    %v5011 = vadd.f32 %v5010, 1.0
    %v5012 = vrcp.pop %v5011
    %v5013 = vmul.f32 1.0, %v5012
    %v5014 = vtanh.pop %v5000
    %v5015 = vxor.u32 %v5001, 2147483648
    %v5016 = vmul.f32 %v5015, 1.442695
    %v5017 = vpow.pop %v5016
    %v5018 = vadd.f32 %v5017, 1.0
    %v5019 = vrcp.pop %v5018
    %v5020 = vmul.f32 1.0, %v5019
    %v5021 = vmul.f32 %v5013, %v4848
    %v5022 = vmul.f32 %v5007, %v5014
    %v5023 = vadd.f32 %v5021, %v5022
    %v5024 = vtanh.pop %v5023
    %v5025 = vmul.f32 %v5020, %v5024
    %5026 = vst [vmem:[%s1381] sm:$0xff] %v5025
    %v5027 = vld [vmem:[%s1383] sm:$0xff]
    %v5028 = vld [vmem:[%s1383 + $0x8] sm:$0xff]
    %v5029 = vld [vmem:[%s1383 + $0x10] sm:$0xff]
    %v5030 = vld [vmem:[%s1383 + $0x18] sm:$0xff]
    %5031 = vmatprep.subr.mxu0 %v3800
    %5032 = vmatpush1.msra.mxu0 %v3799
    %5033 = vmatprep.subr.mxu0 %v3804
    %5034 = vmatpush1.msra.mxu0 %v3803
    %5035 = vmatprep.subr.mxu0 %v3808
    %5036 = vmatpush1.msra.mxu0 %v3807
    %5037 = vmatprep.subr.mxu0 %v3812
    %5038 = vmatpush1.msra.mxu0 %v3811
    %5039 = vmatprep.subr.mxu0 %v3816
    %5040 = vmatpush1.msra.mxu0 %v3815
    %5041 = vmatprep.subr.mxu0 %v3820
    %5042 = vmatpush1.msra.mxu0 %v3819
    %5043 = vmatprep.subr.mxu0 %v3824
    %5044 = vmatpush1.msra.mxu0 %v3823
    %5045 = vmatprep.subr.mxu0 %v3828
    %5046 = vmatpush1.msra.mxu0 %v3827
    %5047 = vmatprep.subr.mxu0 %v3832
    %5048 = vmatpush1.msra.mxu0 %v3831
    %5049 = vmatprep.subr.mxu0 %v3836
    %5050 = vmatpush1.msra.mxu0 %v3835
    %5051 = vmatprep.subr.mxu0 %v3840
    %5052 = vmatpush1.msra.mxu0 %v3839
    %5053 = vmatprep.subr.mxu0 %v3844
    %5054 = vmatpush1.msra.mxu0 %v3843
    %5055 = vmatprep.subr.mxu0 %v3848
    %5056 = vmatpush1.msra.mxu0 %v3847
    %5057 = vmatprep.subr.mxu0 %v3852
    %5058 = vmatpush1.msra.mxu0 %v3851
    %5059 = vmatprep.subr.mxu0 %v3856
    %5060 = vmatpush1.msra.mxu0 %v3855
    %5061 = vmatprep.subr.mxu0 %v3860
    %5062 = vmatpush1.msra.mxu0 %v3859
    %5063 = vmatprep.subr.mxu0 0.0
    %5064 = vmatpush1.msra.mxu0 0.0
    %5065 = vmatprep.subr.mxu0 0.0
    %5066 = vmatpush1.msra.mxu0 0.0
    %5067 = vmatprep.subr.mxu0 0.0
    %5068 = vmatpush1.msra.mxu0 0.0
    %5069 = vmatprep.subr.mxu0 0.0
    %5070 = vmatpush1.msra.mxu0 0.0
    %5071 = vmatprep.subr.mxu0 0.0
    %5072 = vmatpush1.msra.mxu0 0.0
    %5073 = vmatprep.subr.mxu0 0.0
    %5074 = vmatpush1.msra.mxu0 0.0
    %5075 = vmatprep.subr.mxu0 0.0
    %5076 = vmatpush1.msra.mxu0 0.0
    %5077 = vmatprep.subr.mxu0 0.0
    %5078 = vmatpush1.msra.mxu0 0.0
    %5079 = vmatprep.subr.mxu0 0.0
    %5080 = vmatpush1.msra.mxu0 0.0
    %5081 = vmatprep.subr.mxu0 0.0
    %5082 = vmatpush1.msra.mxu0 0.0
    %5083 = vmatprep.subr.mxu0 0.0
    %5084 = vmatpush1.msra.mxu0 0.0
    %5085 = vmatprep.subr.mxu0 0.0
    %5086 = vmatpush1.msra.mxu0 0.0
    %5087 = vmatprep.subr.mxu0 0.0
    %5088 = vmatpush1.msra.mxu0 0.0
    %5089 = vmatprep.subr.mxu0 0.0
    %5090 = vmatpush1.msra.mxu0 0.0
    %5091 = vmatprep.subr.mxu0 0.0
    %5092 = vmatpush1.msra.mxu0 0.0
    %5093 = vmatprep.subr.mxu0 0.0
    %5094 = vmatpush1.msra.mxu0 0.0
    %5095 = vmatprep.mubr.f32.mxu0 0.0
    %5096 = vmatmul.mubr.f32.gmra.mrb[0].mxu0 %v5025
    %v5097 = vpop.f32.mrb[0].mxu0
    %v5098 = vadd.f32 0.0, %v5097
    %v5099 = vpop.f32.mrb[0].mxu0
    %v5100 = vadd.f32 0.0, %v5099
    %5101 = vdwg.mxu0
    %5102 = vmatprep.subr.mxu0 %v3802
    %5103 = vmatpush1.msra.mxu0 %v3801
    %5104 = vmatprep.subr.mxu0 %v3806
    %5105 = vmatpush1.msra.mxu0 %v3805
    %5106 = vmatprep.subr.mxu0 %v3810
    %5107 = vmatpush1.msra.mxu0 %v3809
    %5108 = vmatprep.subr.mxu0 %v3814
    %5109 = vmatpush1.msra.mxu0 %v3813
    %5110 = vmatprep.subr.mxu0 %v3818
    %5111 = vmatpush1.msra.mxu0 %v3817
    %5112 = vmatprep.subr.mxu0 %v3822
    %5113 = vmatpush1.msra.mxu0 %v3821
    %5114 = vmatprep.subr.mxu0 %v3826
    %5115 = vmatpush1.msra.mxu0 %v3825
    %5116 = vmatprep.subr.mxu0 %v3830
    %5117 = vmatpush1.msra.mxu0 %v3829
    %5118 = vmatprep.subr.mxu0 %v3834
    %5119 = vmatpush1.msra.mxu0 %v3833
    %5120 = vmatprep.subr.mxu0 %v3838
    %5121 = vmatpush1.msra.mxu0 %v3837
    %5122 = vmatprep.subr.mxu0 %v3842
    %5123 = vmatpush1.msra.mxu0 %v3841
    %5124 = vmatprep.subr.mxu0 %v3846
    %5125 = vmatpush1.msra.mxu0 %v3845
    %5126 = vmatprep.subr.mxu0 %v3850
    %5127 = vmatpush1.msra.mxu0 %v3849
    %5128 = vmatprep.subr.mxu0 %v3854
    %5129 = vmatpush1.msra.mxu0 %v3853
    %5130 = vmatprep.subr.mxu0 %v3858
    %5131 = vmatpush1.msra.mxu0 %v3857
    %5132 = vmatprep.subr.mxu0 %v3862
    %5133 = vmatpush1.msra.mxu0 %v3861
    %5134 = vmatprep.subr.mxu0 0.0
    %5135 = vmatpush1.msra.mxu0 0.0
    %5136 = vmatprep.subr.mxu0 0.0
    %5137 = vmatpush1.msra.mxu0 0.0
    %5138 = vmatprep.subr.mxu0 0.0
    %5139 = vmatpush1.msra.mxu0 0.0
    %5140 = vmatprep.subr.mxu0 0.0
    %5141 = vmatpush1.msra.mxu0 0.0
    %5142 = vmatprep.subr.mxu0 0.0
    %5143 = vmatpush1.msra.mxu0 0.0
    %5144 = vmatprep.subr.mxu0 0.0
    %5145 = vmatpush1.msra.mxu0 0.0
    %5146 = vmatprep.subr.mxu0 0.0
    %5147 = vmatpush1.msra.mxu0 0.0
    %5148 = vmatprep.subr.mxu0 0.0
    %5149 = vmatpush1.msra.mxu0 0.0
    %5150 = vmatprep.subr.mxu0 0.0
    %5151 = vmatpush1.msra.mxu0 0.0
    %5152 = vmatprep.subr.mxu0 0.0
    %5153 = vmatpush1.msra.mxu0 0.0
    %5154 = vmatprep.subr.mxu0 0.0
    %5155 = vmatpush1.msra.mxu0 0.0
    %5156 = vmatprep.subr.mxu0 0.0
    %5157 = vmatpush1.msra.mxu0 0.0
    %5158 = vmatprep.subr.mxu0 0.0
    %5159 = vmatpush1.msra.mxu0 0.0
    %5160 = vmatprep.subr.mxu0 0.0
    %5161 = vmatpush1.msra.mxu0 0.0
    %5162 = vmatprep.subr.mxu0 0.0
    %5163 = vmatpush1.msra.mxu0 0.0
    %5164 = vmatprep.subr.mxu0 0.0
    %5165 = vmatpush1.msra.mxu0 0.0
    %5166 = vmatprep.mubr.f32.mxu0 0.0
    %5167 = vmatmul.mubr.f32.gmra.mrb[0].mxu0 %v5025
    %v5168 = vpop.f32.mrb[0].mxu0
    %v5169 = vadd.f32 0.0, %v5168
    %v5170 = vpop.f32.mrb[0].mxu0
    %v5171 = vadd.f32 0.0, %v5170
    %5172 = vdwg.mxu0
    %v5173 = vadd.f32 %v5027, %v5098
    %v5174 = vadd.f32 %v5028, %v5100
    %v5175 = vadd.f32 %v5029, %v5169
    %v5176 = vadd.f32 %v5030, %v5171
    %v5177 = vxor.u32 %v5173, 2147483648
    %v5178 = vmul.f32 %v5177, 1.442695
    %v5179 = vpow.pop %v5178
    %v5180 = vadd.f32 %v5179, 1.0
    %v5181 = vrcp.pop %v5180
    %v5182 = vmul.f32 1.0, %v5181
    %v5183 = vxor.u32 %v5174, 2147483648
    %v5184 = vmul.f32 %v5183, 1.442695
    %v5185 = vpow.pop %v5184
    %v5186 = vadd.f32 %v5185, 1.0
    %v5187 = vrcp.pop %v5186
    %v5188 = vmul.f32 1.0, %v5187
    %v5189 = vtanh.pop %v5175
    %v5190 = vxor.u32 %v5176, 2147483648
    %v5191 = vmul.f32 %v5190, 1.442695
    %v5192 = vpow.pop %v5191
    %v5193 = vadd.f32 %v5192, 1.0
    %v5194 = vrcp.pop %v5193
    %v5195 = vmul.f32 1.0, %v5194
    %v5196 = vmul.f32 %v5188, %v5023
    %v5197 = vmul.f32 %v5182, %v5189
    %v5198 = vadd.f32 %v5196, %v5197
    %v5199 = vtanh.pop %v5198
    %v5200 = vmul.f32 %v5195, %v5199
    %5201 = vst [vmem:[%s1558] sm:$0xff] %v5200
    %v5202 = vld [vmem:[%s1560] sm:$0xff]
    %v5203 = vld [vmem:[%s1560 + $0x8] sm:$0xff]
    %v5204 = vld [vmem:[%s1560 + $0x10] sm:$0xff]
    %v5205 = vld [vmem:[%s1560 + $0x18] sm:$0xff]
    %5206 = vmatprep.subr.mxu0 %v3800
    %5207 = vmatpush1.msra.mxu0 %v3799
    %5208 = vmatprep.subr.mxu0 %v3804
    %5209 = vmatpush1.msra.mxu0 %v3803
    %5210 = vmatprep.subr.mxu0 %v3808
    %5211 = vmatpush1.msra.mxu0 %v3807
    %5212 = vmatprep.subr.mxu0 %v3812
    %5213 = vmatpush1.msra.mxu0 %v3811
    %5214 = vmatprep.subr.mxu0 %v3816
    %5215 = vmatpush1.msra.mxu0 %v3815
    %5216 = vmatprep.subr.mxu0 %v3820
    %5217 = vmatpush1.msra.mxu0 %v3819
    %5218 = vmatprep.subr.mxu0 %v3824
    %5219 = vmatpush1.msra.mxu0 %v3823
    %5220 = vmatprep.subr.mxu0 %v3828
    %5221 = vmatpush1.msra.mxu0 %v3827
    %5222 = vmatprep.subr.mxu0 %v3832
    %5223 = vmatpush1.msra.mxu0 %v3831
    %5224 = vmatprep.subr.mxu0 %v3836
    %5225 = vmatpush1.msra.mxu0 %v3835
    %5226 = vmatprep.subr.mxu0 %v3840
    %5227 = vmatpush1.msra.mxu0 %v3839
    %5228 = vmatprep.subr.mxu0 %v3844
    %5229 = vmatpush1.msra.mxu0 %v3843
    %5230 = vmatprep.subr.mxu0 %v3848
    %5231 = vmatpush1.msra.mxu0 %v3847
    %5232 = vmatprep.subr.mxu0 %v3852
    %5233 = vmatpush1.msra.mxu0 %v3851
    %5234 = vmatprep.subr.mxu0 %v3856
    %5235 = vmatpush1.msra.mxu0 %v3855
    %5236 = vmatprep.subr.mxu0 %v3860
    %5237 = vmatpush1.msra.mxu0 %v3859
    %5238 = vmatprep.subr.mxu0 0.0
    %5239 = vmatpush1.msra.mxu0 0.0
    %5240 = vmatprep.subr.mxu0 0.0
    %5241 = vmatpush1.msra.mxu0 0.0
    %5242 = vmatprep.subr.mxu0 0.0
    %5243 = vmatpush1.msra.mxu0 0.0
    %5244 = vmatprep.subr.mxu0 0.0
    %5245 = vmatpush1.msra.mxu0 0.0
    %5246 = vmatprep.subr.mxu0 0.0
    %5247 = vmatpush1.msra.mxu0 0.0
    %5248 = vmatprep.subr.mxu0 0.0
    %5249 = vmatpush1.msra.mxu0 0.0
    %5250 = vmatprep.subr.mxu0 0.0
    %5251 = vmatpush1.msra.mxu0 0.0
    %5252 = vmatprep.subr.mxu0 0.0
    %5253 = vmatpush1.msra.mxu0 0.0
    %5254 = vmatprep.subr.mxu0 0.0
    %5255 = vmatpush1.msra.mxu0 0.0
    %5256 = vmatprep.subr.mxu0 0.0
    %5257 = vmatpush1.msra.mxu0 0.0
    %5258 = vmatprep.subr.mxu0 0.0
    %5259 = vmatpush1.msra.mxu0 0.0
    %5260 = vmatprep.subr.mxu0 0.0
    %5261 = vmatpush1.msra.mxu0 0.0
    %5262 = vmatprep.subr.mxu0 0.0
    %5263 = vmatpush1.msra.mxu0 0.0
    %5264 = vmatprep.subr.mxu0 0.0
    %5265 = vmatpush1.msra.mxu0 0.0
    %5266 = vmatprep.subr.mxu0 0.0
    %5267 = vmatpush1.msra.mxu0 0.0
    %5268 = vmatprep.subr.mxu0 0.0
    %5269 = vmatpush1.msra.mxu0 0.0
    %5270 = vmatprep.mubr.f32.mxu0 0.0
    %5271 = vmatmul.mubr.f32.gmra.mrb[0].mxu0 %v5200
    %v5272 = vpop.f32.mrb[0].mxu0
    %v5273 = vadd.f32 0.0, %v5272
    %v5274 = vpop.f32.mrb[0].mxu0
    %v5275 = vadd.f32 0.0, %v5274
    %5276 = vdwg.mxu0
    %5277 = vmatprep.subr.mxu0 %v3802
    %5278 = vmatpush1.msra.mxu0 %v3801
    %5279 = vmatprep.subr.mxu0 %v3806
    %5280 = vmatpush1.msra.mxu0 %v3805
    %5281 = vmatprep.subr.mxu0 %v3810
    %5282 = vmatpush1.msra.mxu0 %v3809
    %5283 = vmatprep.subr.mxu0 %v3814
    %5284 = vmatpush1.msra.mxu0 %v3813
    %5285 = vmatprep.subr.mxu0 %v3818
    %5286 = vmatpush1.msra.mxu0 %v3817
    %5287 = vmatprep.subr.mxu0 %v3822
    %5288 = vmatpush1.msra.mxu0 %v3821
    %5289 = vmatprep.subr.mxu0 %v3826
    %5290 = vmatpush1.msra.mxu0 %v3825
    %5291 = vmatprep.subr.mxu0 %v3830
    %5292 = vmatpush1.msra.mxu0 %v3829
    %5293 = vmatprep.subr.mxu0 %v3834
    %5294 = vmatpush1.msra.mxu0 %v3833
    %5295 = vmatprep.subr.mxu0 %v3838
    %5296 = vmatpush1.msra.mxu0 %v3837
    %5297 = vmatprep.subr.mxu0 %v3842
    %5298 = vmatpush1.msra.mxu0 %v3841
    %5299 = vmatprep.subr.mxu0 %v3846
    %5300 = vmatpush1.msra.mxu0 %v3845
    %5301 = vmatprep.subr.mxu0 %v3850
    %5302 = vmatpush1.msra.mxu0 %v3849
    %5303 = vmatprep.subr.mxu0 %v3854
    %5304 = vmatpush1.msra.mxu0 %v3853
    %5305 = vmatprep.subr.mxu0 %v3858
    %5306 = vmatpush1.msra.mxu0 %v3857
    %5307 = vmatprep.subr.mxu0 %v3862
    %5308 = vmatpush1.msra.mxu0 %v3861
    %5309 = vmatprep.subr.mxu0 0.0
    %5310 = vmatpush1.msra.mxu0 0.0
    %5311 = vmatprep.subr.mxu0 0.0
    %5312 = vmatpush1.msra.mxu0 0.0
    %5313 = vmatprep.subr.mxu0 0.0
    %5314 = vmatpush1.msra.mxu0 0.0
    %5315 = vmatprep.subr.mxu0 0.0
    %5316 = vmatpush1.msra.mxu0 0.0
    %5317 = vmatprep.subr.mxu0 0.0
    %5318 = vmatpush1.msra.mxu0 0.0
    %5319 = vmatprep.subr.mxu0 0.0
    %5320 = vmatpush1.msra.mxu0 0.0
    %5321 = vmatprep.subr.mxu0 0.0
    %5322 = vmatpush1.msra.mxu0 0.0
    %5323 = vmatprep.subr.mxu0 0.0
    %5324 = vmatpush1.msra.mxu0 0.0
    %5325 = vmatprep.subr.mxu0 0.0
    %5326 = vmatpush1.msra.mxu0 0.0
    %5327 = vmatprep.subr.mxu0 0.0
    %5328 = vmatpush1.msra.mxu0 0.0
    %5329 = vmatprep.subr.mxu0 0.0
    %5330 = vmatpush1.msra.mxu0 0.0
    %5331 = vmatprep.subr.mxu0 0.0
    %5332 = vmatpush1.msra.mxu0 0.0
    %5333 = vmatprep.subr.mxu0 0.0
    %5334 = vmatpush1.msra.mxu0 0.0
    %5335 = vmatprep.subr.mxu0 0.0
    %5336 = vmatpush1.msra.mxu0 0.0
    %5337 = vmatprep.subr.mxu0 0.0
    %5338 = vmatpush1.msra.mxu0 0.0
    %5339 = vmatprep.subr.mxu0 0.0
    %5340 = vmatpush1.msra.mxu0 0.0
    %5341 = vmatprep.mubr.f32.mxu0 0.0
    %5342 = vmatmul.mubr.f32.gmra.mrb[0].mxu0 %v5200
    %v5343 = vpop.f32.mrb[0].mxu0
    %v5344 = vadd.f32 0.0, %v5343
    %v5345 = vpop.f32.mrb[0].mxu0
    %v5346 = vadd.f32 0.0, %v5345
    %5347 = vdwg.mxu0
    %v5348 = vadd.f32 %v5202, %v5273
    %v5349 = vadd.f32 %v5203, %v5275
    %v5350 = vadd.f32 %v5204, %v5344
    %v5351 = vadd.f32 %v5205, %v5346
    %v5352 = vxor.u32 %v5348, 2147483648
    %v5353 = vmul.f32 %v5352, 1.442695
    %v5354 = vpow.pop %v5353
    %v5355 = vadd.f32 %v5354, 1.0
    %v5356 = vrcp.pop %v5355
    %v5357 = vmul.f32 1.0, %v5356
    %v5358 = vxor.u32 %v5349, 2147483648
    %v5359 = vmul.f32 %v5358, 1.442695
    %v5360 = vpow.pop %v5359
    %v5361 = vadd.f32 %v5360, 1.0
    %v5362 = vrcp.pop %v5361
    %v5363 = vmul.f32 1.0, %v5362
    %v5364 = vtanh.pop %v5350
    %v5365 = vxor.u32 %v5351, 2147483648
    %v5366 = vmul.f32 %v5365, 1.442695
    %v5367 = vpow.pop %v5366
    %v5368 = vadd.f32 %v5367, 1.0
    %v5369 = vrcp.pop %v5368
    %v5370 = vmul.f32 1.0, %v5369
    %v5371 = vmul.f32 %v5363, %v5198
    %v5372 = vmul.f32 %v5357, %v5364
    %v5373 = vadd.f32 %v5371, %v5372
    %v5374 = vtanh.pop %v5373
    %v5375 = vmul.f32 %v5370, %v5374
    %5376 = vst [vmem:[%s1735] sm:$0xff] %v5375
    %v5377 = vld [vmem:[%s1737] sm:$0xff]
    %v5378 = vld [vmem:[%s1737 + $0x8] sm:$0xff]
    %v5379 = vld [vmem:[%s1737 + $0x10] sm:$0xff]
    %v5380 = vld [vmem:[%s1737 + $0x18] sm:$0xff]
    %5381 = vmatprep.subr.mxu0 %v3800
    %5382 = vmatpush1.msra.mxu0 %v3799
    %5383 = vmatprep.subr.mxu0 %v3804
    %5384 = vmatpush1.msra.mxu0 %v3803
    %5385 = vmatprep.subr.mxu0 %v3808
    %5386 = vmatpush1.msra.mxu0 %v3807
    %5387 = vmatprep.subr.mxu0 %v3812
    %5388 = vmatpush1.msra.mxu0 %v3811
    %5389 = vmatprep.subr.mxu0 %v3816
    %5390 = vmatpush1.msra.mxu0 %v3815
    %5391 = vmatprep.subr.mxu0 %v3820
    %5392 = vmatpush1.msra.mxu0 %v3819
    %5393 = vmatprep.subr.mxu0 %v3824
    %5394 = vmatpush1.msra.mxu0 %v3823
    %5395 = vmatprep.subr.mxu0 %v3828
    %5396 = vmatpush1.msra.mxu0 %v3827
    %5397 = vmatprep.subr.mxu0 %v3832
    %5398 = vmatpush1.msra.mxu0 %v3831
    %5399 = vmatprep.subr.mxu0 %v3836
    %5400 = vmatpush1.msra.mxu0 %v3835
    %5401 = vmatprep.subr.mxu0 %v3840
    %5402 = vmatpush1.msra.mxu0 %v3839
    %5403 = vmatprep.subr.mxu0 %v3844
    %5404 = vmatpush1.msra.mxu0 %v3843
    %5405 = vmatprep.subr.mxu0 %v3848
    %5406 = vmatpush1.msra.mxu0 %v3847
    %5407 = vmatprep.subr.mxu0 %v3852
    %5408 = vmatpush1.msra.mxu0 %v3851
    %5409 = vmatprep.subr.mxu0 %v3856
    %5410 = vmatpush1.msra.mxu0 %v3855
    %5411 = vmatprep.subr.mxu0 %v3860
    %5412 = vmatpush1.msra.mxu0 %v3859
    %5413 = vmatprep.subr.mxu0 0.0
    %5414 = vmatpush1.msra.mxu0 0.0
    %5415 = vmatprep.subr.mxu0 0.0
    %5416 = vmatpush1.msra.mxu0 0.0
    %5417 = vmatprep.subr.mxu0 0.0
    %5418 = vmatpush1.msra.mxu0 0.0
    %5419 = vmatprep.subr.mxu0 0.0
    %5420 = vmatpush1.msra.mxu0 0.0
    %5421 = vmatprep.subr.mxu0 0.0
    %5422 = vmatpush1.msra.mxu0 0.0
    %5423 = vmatprep.subr.mxu0 0.0
    %5424 = vmatpush1.msra.mxu0 0.0
    %5425 = vmatprep.subr.mxu0 0.0
    %5426 = vmatpush1.msra.mxu0 0.0
    %5427 = vmatprep.subr.mxu0 0.0
    %5428 = vmatpush1.msra.mxu0 0.0
    %5429 = vmatprep.subr.mxu0 0.0
    %5430 = vmatpush1.msra.mxu0 0.0
    %5431 = vmatprep.subr.mxu0 0.0
    %5432 = vmatpush1.msra.mxu0 0.0
    %5433 = vmatprep.subr.mxu0 0.0
    %5434 = vmatpush1.msra.mxu0 0.0
    %5435 = vmatprep.subr.mxu0 0.0
    %5436 = vmatpush1.msra.mxu0 0.0
    %5437 = vmatprep.subr.mxu0 0.0
    %5438 = vmatpush1.msra.mxu0 0.0
    %5439 = vmatprep.subr.mxu0 0.0
    %5440 = vmatpush1.msra.mxu0 0.0
    %5441 = vmatprep.subr.mxu0 0.0
    %5442 = vmatpush1.msra.mxu0 0.0
    %5443 = vmatprep.subr.mxu0 0.0
    %5444 = vmatpush1.msra.mxu0 0.0
    %5445 = vmatprep.mubr.f32.mxu0 0.0
    %5446 = vmatmul.mubr.f32.gmra.mrb[0].mxu0 %v5375
    %v5447 = vpop.f32.mrb[0].mxu0
    %v5448 = vadd.f32 0.0, %v5447
    %v5449 = vpop.f32.mrb[0].mxu0
    %v5450 = vadd.f32 0.0, %v5449
    %5451 = vdwg.mxu0
    %5452 = vmatprep.subr.mxu0 %v3802
    %5453 = vmatpush1.msra.mxu0 %v3801
    %5454 = vmatprep.subr.mxu0 %v3806
    %5455 = vmatpush1.msra.mxu0 %v3805
    %5456 = vmatprep.subr.mxu0 %v3810
    %5457 = vmatpush1.msra.mxu0 %v3809
    %5458 = vmatprep.subr.mxu0 %v3814
    %5459 = vmatpush1.msra.mxu0 %v3813
    %5460 = vmatprep.subr.mxu0 %v3818
    %5461 = vmatpush1.msra.mxu0 %v3817
    %5462 = vmatprep.subr.mxu0 %v3822
    %5463 = vmatpush1.msra.mxu0 %v3821
    %5464 = vmatprep.subr.mxu0 %v3826
    %5465 = vmatpush1.msra.mxu0 %v3825
    %5466 = vmatprep.subr.mxu0 %v3830
    %5467 = vmatpush1.msra.mxu0 %v3829
    %5468 = vmatprep.subr.mxu0 %v3834
    %5469 = vmatpush1.msra.mxu0 %v3833
    %5470 = vmatprep.subr.mxu0 %v3838
    %5471 = vmatpush1.msra.mxu0 %v3837
    %5472 = vmatprep.subr.mxu0 %v3842
    %5473 = vmatpush1.msra.mxu0 %v3841
    %5474 = vmatprep.subr.mxu0 %v3846
    %5475 = vmatpush1.msra.mxu0 %v3845
    %5476 = vmatprep.subr.mxu0 %v3850
    %5477 = vmatpush1.msra.mxu0 %v3849
    %5478 = vmatprep.subr.mxu0 %v3854
    %5479 = vmatpush1.msra.mxu0 %v3853
    %5480 = vmatprep.subr.mxu0 %v3858
    %5481 = vmatpush1.msra.mxu0 %v3857
    %5482 = vmatprep.subr.mxu0 %v3862
    %5483 = vmatpush1.msra.mxu0 %v3861
    %5484 = vmatprep.subr.mxu0 0.0
    %5485 = vmatpush1.msra.mxu0 0.0
    %5486 = vmatprep.subr.mxu0 0.0
    %5487 = vmatpush1.msra.mxu0 0.0
    %5488 = vmatprep.subr.mxu0 0.0
    %5489 = vmatpush1.msra.mxu0 0.0
    %5490 = vmatprep.subr.mxu0 0.0
    %5491 = vmatpush1.msra.mxu0 0.0
    %5492 = vmatprep.subr.mxu0 0.0
    %5493 = vmatpush1.msra.mxu0 0.0
    %5494 = vmatprep.subr.mxu0 0.0
    %5495 = vmatpush1.msra.mxu0 0.0
    %5496 = vmatprep.subr.mxu0 0.0
    %5497 = vmatpush1.msra.mxu0 0.0
    %5498 = vmatprep.subr.mxu0 0.0
    %5499 = vmatpush1.msra.mxu0 0.0
    %5500 = vmatprep.subr.mxu0 0.0
    %5501 = vmatpush1.msra.mxu0 0.0
    %5502 = vmatprep.subr.mxu0 0.0
    %5503 = vmatpush1.msra.mxu0 0.0
    %5504 = vmatprep.subr.mxu0 0.0
    %5505 = vmatpush1.msra.mxu0 0.0
    %5506 = vmatprep.subr.mxu0 0.0
    %5507 = vmatpush1.msra.mxu0 0.0
    %5508 = vmatprep.subr.mxu0 0.0
    %5509 = vmatpush1.msra.mxu0 0.0
    %5510 = vmatprep.subr.mxu0 0.0
    %5511 = vmatpush1.msra.mxu0 0.0
    %5512 = vmatprep.subr.mxu0 0.0
    %5513 = vmatpush1.msra.mxu0 0.0
    %5514 = vmatprep.subr.mxu0 0.0
    %5515 = vmatpush1.msra.mxu0 0.0
    %5516 = vmatprep.mubr.f32.mxu0 0.0
    %5517 = vmatmul.mubr.f32.gmra.mrb[0].mxu0 %v5375
    %v5518 = vpop.f32.mrb[0].mxu0
    %v5519 = vadd.f32 0.0, %v5518
    %v5520 = vpop.f32.mrb[0].mxu0
    %v5521 = vadd.f32 0.0, %v5520
    %5522 = vdwg.mxu0
    %v5523 = vadd.f32 %v5377, %v5448
    %v5524 = vadd.f32 %v5378, %v5450
    %v5525 = vadd.f32 %v5379, %v5519
    %v5526 = vadd.f32 %v5380, %v5521
    %v5527 = vxor.u32 %v5523, 2147483648
    %v5528 = vmul.f32 %v5527, 1.442695
    %v5529 = vpow.pop %v5528
    %v5530 = vadd.f32 %v5529, 1.0
    %v5531 = vrcp.pop %v5530
    %v5532 = vmul.f32 1.0, %v5531
    %v5533 = vxor.u32 %v5524, 2147483648
    %v5534 = vmul.f32 %v5533, 1.442695
    %v5535 = vpow.pop %v5534
    %v5536 = vadd.f32 %v5535, 1.0
    %v5537 = vrcp.pop %v5536
    %v5538 = vmul.f32 1.0, %v5537
    %v5539 = vtanh.pop %v5525
    %v5540 = vxor.u32 %v5526, 2147483648
    %v5541 = vmul.f32 %v5540, 1.442695
    %v5542 = vpow.pop %v5541
    %v5543 = vadd.f32 %v5542, 1.0
    %v5544 = vrcp.pop %v5543
    %v5545 = vmul.f32 1.0, %v5544
    %v5546 = vmul.f32 %v5538, %v5373
    %v5547 = vmul.f32 %v5532, %v5539
    %v5548 = vadd.f32 %v5546, %v5547
    %v5549 = vtanh.pop %v5548
    %v5550 = vmul.f32 %v5545, %v5549
    %5551 = vst [vmem:[%s1912] sm:$0xff] %v5550
    %s5552 = scalar_lea.vmem [#allocation4], 1536
    %v5553 = vld [vmem:[%s5552] sm:$0xff]
    %v5554 = vld [vmem:[%s5552 + $0x8] sm:$0xff]
    %v5555 = vld [vmem:[%s5552 + $0x10] sm:$0xff]
    %v5556 = vld [vmem:[%s5552 + $0x18] sm:$0xff]
    %v5557 = vld [vmem:[%s5552 + $0x20] sm:$0xff]
    %v5558 = vld [vmem:[%s5552 + $0x28] sm:$0xff]
    %v5559 = vld [vmem:[%s5552 + $0x30] sm:$0xff]
    %v5560 = vld [vmem:[%s5552 + $0x38] sm:$0xff]
    %v5561 = vld [vmem:[%s5552 + $0x40] sm:$0xff]
    %v5562 = vld [vmem:[%s5552 + $0x48] sm:$0xff]
    %v5563 = vld [vmem:[%s5552 + $0x50] sm:$0xff]
    %v5564 = vld [vmem:[%s5552 + $0x58] sm:$0xff]
    %v5565 = vld [vmem:[%s5552 + $0x60] sm:$0xff]
    %v5566 = vld [vmem:[%s5552 + $0x68] sm:$0xff]
    %v5567 = vld [vmem:[%s5552 + $0x70] sm:$0xff]
    %v5568 = vld [vmem:[%s5552 + $0x78] sm:$0xff]
    %v5569 = vld [vmem:[%s5552 + $0x80] sm:$0xff]
    %v5570 = vld [vmem:[%s5552 + $0x88] sm:$0xff]
    %v5571 = vld [vmem:[%s5552 + $0x90] sm:$0xff]
    %v5572 = vld [vmem:[%s5552 + $0x98] sm:$0xff]
    %v5573 = vld [vmem:[%s5552 + $0xa0] sm:$0xff]
    %v5574 = vld [vmem:[%s5552 + $0xa8] sm:$0xff]
    %v5575 = vld [vmem:[%s5552 + $0xb0] sm:$0xff]
    %v5576 = vld [vmem:[%s5552 + $0xb8] sm:$0xff]
    %v5577 = vld [vmem:[%s5552 + $0xc0] sm:$0xff]
    %v5578 = vld [vmem:[%s5552 + $0xc8] sm:$0xff]
    %v5579 = vld [vmem:[%s5552 + $0xd0] sm:$0xff]
    %v5580 = vld [vmem:[%s5552 + $0xd8] sm:$0xff]
    %v5581 = vld [vmem:[%s5552 + $0xe0] sm:$0xff]
    %v5582 = vld [vmem:[%s5552 + $0xe8] sm:$0xff]
    %v5583 = vld [vmem:[%s5552 + $0xf0] sm:$0xff]
    %v5584 = vld [vmem:[%s5552 + $0xf8] sm:$0xff]
    %v5585 = vld [vmem:[%s5552 + $0x100] sm:$0xff]
    %v5586 = vld [vmem:[%s5552 + $0x108] sm:$0xff]
    %v5587 = vld [vmem:[%s5552 + $0x110] sm:$0xff]
    %v5588 = vld [vmem:[%s5552 + $0x118] sm:$0xff]
    %v5589 = vld [vmem:[%s5552 + $0x120] sm:$0xff]
    %v5590 = vld [vmem:[%s5552 + $0x128] sm:$0xff]
    %v5591 = vld [vmem:[%s5552 + $0x130] sm:$0xff]
    %v5592 = vld [vmem:[%s5552 + $0x138] sm:$0xff]
    %v5593 = vld [vmem:[%s5552 + $0x140] sm:$0xff]
    %v5594 = vld [vmem:[%s5552 + $0x148] sm:$0xff]
    %v5595 = vld [vmem:[%s5552 + $0x150] sm:$0xff]
    %v5596 = vld [vmem:[%s5552 + $0x158] sm:$0xff]
    %v5597 = vld [vmem:[%s5552 + $0x160] sm:$0xff]
    %v5598 = vld [vmem:[%s5552 + $0x168] sm:$0xff]
    %v5599 = vld [vmem:[%s5552 + $0x170] sm:$0xff]
    %v5600 = vld [vmem:[%s5552 + $0x178] sm:$0xff]
    %v5601 = vld [vmem:[%s5552 + $0x180] sm:$0xff]
    %v5602 = vld [vmem:[%s5552 + $0x188] sm:$0xff]
    %v5603 = vld [vmem:[%s5552 + $0x190] sm:$0xff]
    %v5604 = vld [vmem:[%s5552 + $0x198] sm:$0xff]
    %v5605 = vld [vmem:[%s5552 + $0x1a0] sm:$0xff]
    %v5606 = vld [vmem:[%s5552 + $0x1a8] sm:$0xff]
    %v5607 = vld [vmem:[%s5552 + $0x1b0] sm:$0xff]
    %v5608 = vld [vmem:[%s5552 + $0x1b8] sm:$0xff]
    %v5609 = vld [vmem:[%s5552 + $0x1c0] sm:$0xff]
    %v5610 = vld [vmem:[%s5552 + $0x1c8] sm:$0xff]
    %v5611 = vld [vmem:[%s5552 + $0x1d0] sm:$0xff]
    %v5612 = vld [vmem:[%s5552 + $0x1d8] sm:$0xff]
    %v5613 = vld [vmem:[%s5552 + $0x1e0] sm:$0xff]
    %v5614 = vld [vmem:[%s5552 + $0x1e8] sm:$0xff]
    %v5615 = vld [vmem:[%s5552 + $0x1f0] sm:$0xff]
    %v5616 = vld [vmem:[%s5552 + $0x1f8] sm:$0xff]
    %s5617 = scalar_lea.vmem [#allocation7], 1536
    %v5618 = vld [vmem:[%s5617] sm:$0xff]
    %v5619 = vld [vmem:[%s5617 + $0x8] sm:$0xff]
    %v5620 = vld [vmem:[%s5617 + $0x10] sm:$0xff]
    %v5621 = vld [vmem:[%s5617 + $0x18] sm:$0xff]
    %v5622 = vld [vmem:[%s5617 + $0x20] sm:$0xff]
    %v5623 = vld [vmem:[%s5617 + $0x28] sm:$0xff]
    %v5624 = vld [vmem:[%s5617 + $0x30] sm:$0xff]
    %v5625 = vld [vmem:[%s5617 + $0x38] sm:$0xff]
    %v5626 = vld [vmem:[%s5617 + $0x40] sm:$0xff]
    %v5627 = vld [vmem:[%s5617 + $0x48] sm:$0xff]
    %v5628 = vld [vmem:[%s5617 + $0x50] sm:$0xff]
    %v5629 = vld [vmem:[%s5617 + $0x58] sm:$0xff]
    %v5630 = vld [vmem:[%s5617 + $0x60] sm:$0xff]
    %v5631 = vld [vmem:[%s5617 + $0x68] sm:$0xff]
    %v5632 = vld [vmem:[%s5617 + $0x70] sm:$0xff]
    %v5633 = vld [vmem:[%s5617 + $0x78] sm:$0xff]
    %v5634 = vld [vmem:[%s5617 + $0x80] sm:$0xff]
    %v5635 = vld [vmem:[%s5617 + $0x88] sm:$0xff]
    %v5636 = vld [vmem:[%s5617 + $0x90] sm:$0xff]
    %v5637 = vld [vmem:[%s5617 + $0x98] sm:$0xff]
    %v5638 = vld [vmem:[%s5617 + $0xa0] sm:$0xff]
    %v5639 = vld [vmem:[%s5617 + $0xa8] sm:$0xff]
    %v5640 = vld [vmem:[%s5617 + $0xb0] sm:$0xff]
    %v5641 = vld [vmem:[%s5617 + $0xb8] sm:$0xff]
    %v5642 = vld [vmem:[%s5617 + $0xc0] sm:$0xff]
    %v5643 = vld [vmem:[%s5617 + $0xc8] sm:$0xff]
    %v5644 = vld [vmem:[%s5617 + $0xd0] sm:$0xff]
    %v5645 = vld [vmem:[%s5617 + $0xd8] sm:$0xff]
    %v5646 = vld [vmem:[%s5617 + $0xe0] sm:$0xff]
    %v5647 = vld [vmem:[%s5617 + $0xe8] sm:$0xff]
    %v5648 = vld [vmem:[%s5617 + $0xf0] sm:$0xff]
    %v5649 = vld [vmem:[%s5617 + $0xf8] sm:$0xff]
    %v5650 = vld [vmem:[%s5617 + $0x100] sm:$0xff]
    %v5651 = vld [vmem:[%s5617 + $0x108] sm:$0xff]
    %v5652 = vld [vmem:[%s5617 + $0x110] sm:$0xff]
    %v5653 = vld [vmem:[%s5617 + $0x118] sm:$0xff]
    %v5654 = vld [vmem:[%s5617 + $0x120] sm:$0xff]
    %v5655 = vld [vmem:[%s5617 + $0x128] sm:$0xff]
    %v5656 = vld [vmem:[%s5617 + $0x130] sm:$0xff]
    %v5657 = vld [vmem:[%s5617 + $0x138] sm:$0xff]
    %v5658 = vld [vmem:[%s5617 + $0x140] sm:$0xff]
    %v5659 = vld [vmem:[%s5617 + $0x148] sm:$0xff]
    %v5660 = vld [vmem:[%s5617 + $0x150] sm:$0xff]
    %v5661 = vld [vmem:[%s5617 + $0x158] sm:$0xff]
    %v5662 = vld [vmem:[%s5617 + $0x160] sm:$0xff]
    %v5663 = vld [vmem:[%s5617 + $0x168] sm:$0xff]
    %v5664 = vld [vmem:[%s5617 + $0x170] sm:$0xff]
    %v5665 = vld [vmem:[%s5617 + $0x178] sm:$0xff]
    %v5666 = vld [vmem:[%s5617 + $0x180] sm:$0xff]
    %v5667 = vld [vmem:[%s5617 + $0x188] sm:$0xff]
    %v5668 = vld [vmem:[%s5617 + $0x190] sm:$0xff]
    %v5669 = vld [vmem:[%s5617 + $0x198] sm:$0xff]
    %v5670 = vld [vmem:[%s5617 + $0x1a0] sm:$0xff]
    %v5671 = vld [vmem:[%s5617 + $0x1a8] sm:$0xff]
    %v5672 = vld [vmem:[%s5617 + $0x1b0] sm:$0xff]
    %v5673 = vld [vmem:[%s5617 + $0x1b8] sm:$0xff]
    %v5674 = vld [vmem:[%s5617 + $0x1c0] sm:$0xff]
    %v5675 = vld [vmem:[%s5617 + $0x1c8] sm:$0xff]
    %v5676 = vld [vmem:[%s5617 + $0x1d0] sm:$0xff]
    %v5677 = vld [vmem:[%s5617 + $0x1d8] sm:$0xff]
    %v5678 = vld [vmem:[%s5617 + $0x1e0] sm:$0xff]
    %v5679 = vld [vmem:[%s5617 + $0x1e8] sm:$0xff]
    %v5680 = vld [vmem:[%s5617 + $0x1f0] sm:$0xff]
    %v5681 = vld [vmem:[%s5617 + $0x1f8] sm:$0xff]
    %s5682 = scalar_lea.vmem %s3, 12
    %v5683 = vld [vmem:[%s5682] sm:$0xf]
    %v5684 = vld [vmem:[#allocation2] sm:$0xff]
    %v5685 = vld [vmem:[#allocation2 + $0x8] sm:$0xff]
    %v5686 = vld [vmem:[#allocation2 + $0x10] sm:$0xff]
    %v5687 = vld [vmem:[#allocation2 + $0x18] sm:$0xff]
    %v5688 = vld [vmem:[#allocation2 + $0x20] sm:$0xff]
    %v5689 = vld [vmem:[#allocation2 + $0x28] sm:$0xff]
    %v5690 = vld [vmem:[#allocation2 + $0x30] sm:$0xff]
    %v5691 = vld [vmem:[#allocation2 + $0x38] sm:$0xff]
    %v5693 = vlaneseq
    %v5694 = vshrl.u32 %v5693, 7
    %v5695 = vsub.s32 0, %v5694
    %v5696 = vrot.slane %v5683, %v5695
    %v5697 = vlaneseq
    %v5698 = vshrl.u32 %v5697, 7
    %v5699 = vsub.s32 1, %v5698
    %v5700 = vrot.slane %v5683, %v5699
    %v5701 = vlaneseq
    %v5702 = vshrl.u32 %v5701, 7
    %v5703 = vsub.s32 2, %v5702
    %v5704 = vrot.slane %v5683, %v5703
    %v5705 = vlaneseq
    %v5706 = vshrl.u32 %v5705, 7
    %v5707 = vsub.s32 3, %v5706
    %v5708 = vrot.slane %v5683, %v5707
    %5713 = vmatprep.subr.mxu0 %v5554
    %5714 = vmatpush1.msra.mxu0 %v5553
    %5715 = vmatprep.subr.mxu0 %v5558
    %5716 = vmatpush1.msra.mxu0 %v5557
    %5717 = vmatprep.subr.mxu0 %v5562
    %5718 = vmatpush1.msra.mxu0 %v5561
    %5719 = vmatprep.subr.mxu0 %v5566
    %5720 = vmatpush1.msra.mxu0 %v5565
    %5721 = vmatprep.subr.mxu0 %v5570
    %5722 = vmatpush1.msra.mxu0 %v5569
    %5723 = vmatprep.subr.mxu0 %v5574
    %5724 = vmatpush1.msra.mxu0 %v5573
    %5725 = vmatprep.subr.mxu0 %v5578
    %5726 = vmatpush1.msra.mxu0 %v5577
    %5727 = vmatprep.subr.mxu0 %v5582
    %5728 = vmatpush1.msra.mxu0 %v5581
    %5729 = vmatprep.subr.mxu0 %v5586
    %5730 = vmatpush1.msra.mxu0 %v5585
    %5731 = vmatprep.subr.mxu0 %v5590
    %5732 = vmatpush1.msra.mxu0 %v5589
    %5733 = vmatprep.subr.mxu0 %v5594
    %5734 = vmatpush1.msra.mxu0 %v5593
    %5735 = vmatprep.subr.mxu0 %v5598
    %5736 = vmatpush1.msra.mxu0 %v5597
    %5737 = vmatprep.subr.mxu0 %v5602
    %5738 = vmatpush1.msra.mxu0 %v5601
    %5739 = vmatprep.subr.mxu0 %v5606
    %5740 = vmatpush1.msra.mxu0 %v5605
    %5741 = vmatprep.subr.mxu0 %v5610
    %5742 = vmatpush1.msra.mxu0 %v5609
    %5743 = vmatprep.subr.mxu0 %v5614
    %5744 = vmatpush1.msra.mxu0 %v5613
    %5745 = vmatprep.subr.mxu0 0.0
    %5746 = vmatpush1.msra.mxu0 0.0
    %5747 = vmatprep.subr.mxu0 0.0
    %5748 = vmatpush1.msra.mxu0 0.0
    %5749 = vmatprep.subr.mxu0 0.0
    %5750 = vmatpush1.msra.mxu0 0.0
    %5751 = vmatprep.subr.mxu0 0.0
    %5752 = vmatpush1.msra.mxu0 0.0
    %5753 = vmatprep.subr.mxu0 0.0
    %5754 = vmatpush1.msra.mxu0 0.0
    %5755 = vmatprep.subr.mxu0 0.0
    %5756 = vmatpush1.msra.mxu0 0.0
    %5757 = vmatprep.subr.mxu0 0.0
    %5758 = vmatpush1.msra.mxu0 0.0
    %5759 = vmatprep.subr.mxu0 0.0
    %5760 = vmatpush1.msra.mxu0 0.0
    %5761 = vmatprep.subr.mxu0 0.0
    %5762 = vmatpush1.msra.mxu0 0.0
    %5763 = vmatprep.subr.mxu0 0.0
    %5764 = vmatpush1.msra.mxu0 0.0
    %5765 = vmatprep.subr.mxu0 0.0
    %5766 = vmatpush1.msra.mxu0 0.0
    %5767 = vmatprep.subr.mxu0 0.0
    %5768 = vmatpush1.msra.mxu0 0.0
    %5769 = vmatprep.subr.mxu0 0.0
    %5770 = vmatpush1.msra.mxu0 0.0
    %5771 = vmatprep.subr.mxu0 0.0
    %5772 = vmatpush1.msra.mxu0 0.0
    %5773 = vmatprep.subr.mxu0 0.0
    %5774 = vmatpush1.msra.mxu0 0.0
    %5775 = vmatprep.subr.mxu0 0.0
    %5776 = vmatpush1.msra.mxu0 0.0
    %5777 = vmatprep.mubr.f32.mxu0 0.0
    %5778 = vmatmul.mubr.f32.gmra.mrb[0].mxu0 %v5684
    %v5779 = vpop.f32.mrb[0].mxu0
    %v5780 = vadd.f32 %v5696, %v5779
    %v5781 = vpop.f32.mrb[0].mxu0
    %v5782 = vadd.f32 %v5700, %v5781
    %5783 = vmatprep.mubr.f32.mxu0 0.0
    %5784 = vmatmul.mubr.f32.gmra.mrb[0].mxu0 %v5685
    %v5785 = vpop.f32.mrb[0].mxu0
    %v5786 = vadd.f32 %v5696, %v5785
    %v5787 = vpop.f32.mrb[0].mxu0
    %v5788 = vadd.f32 %v5700, %v5787
    %5789 = vmatprep.mubr.f32.mxu0 0.0
    %5790 = vmatmul.mubr.f32.gmra.mrb[0].mxu0 %v5686
    %v5791 = vpop.f32.mrb[0].mxu0
    %v5792 = vadd.f32 %v5696, %v5791
    %v5793 = vpop.f32.mrb[0].mxu0
    %v5794 = vadd.f32 %v5700, %v5793
    %5795 = vmatprep.mubr.f32.mxu0 0.0
    %5796 = vmatmul.mubr.f32.gmra.mrb[0].mxu0 %v5687
    %v5797 = vpop.f32.mrb[0].mxu0
    %v5798 = vadd.f32 %v5696, %v5797
    %v5799 = vpop.f32.mrb[0].mxu0
    %v5800 = vadd.f32 %v5700, %v5799
    %5801 = vmatprep.mubr.f32.mxu0 0.0
    %5802 = vmatmul.mubr.f32.gmra.mrb[0].mxu0 %v5688
    %v5803 = vpop.f32.mrb[0].mxu0
    %v5804 = vadd.f32 %v5696, %v5803
    %v5805 = vpop.f32.mrb[0].mxu0
    %v5806 = vadd.f32 %v5700, %v5805
    %5807 = vmatprep.mubr.f32.mxu0 0.0
    %5808 = vmatmul.mubr.f32.gmra.mrb[0].mxu0 %v5689
    %v5809 = vpop.f32.mrb[0].mxu0
    %v5810 = vadd.f32 %v5696, %v5809
    %v5811 = vpop.f32.mrb[0].mxu0
    %v5812 = vadd.f32 %v5700, %v5811
    %5813 = vmatprep.mubr.f32.mxu0 0.0
    %5814 = vmatmul.mubr.f32.gmra.mrb[0].mxu0 %v5690
    %v5815 = vpop.f32.mrb[0].mxu0
    %v5816 = vadd.f32 %v5696, %v5815
    %v5817 = vpop.f32.mrb[0].mxu0
    %v5818 = vadd.f32 %v5700, %v5817
    %5819 = vmatprep.mubr.f32.mxu0 0.0
    %5820 = vmatmul.mubr.f32.gmra.mrb[0].mxu0 %v5691
    %v5821 = vpop.f32.mrb[0].mxu0
    %v5822 = vadd.f32 %v5696, %v5821
    %v5823 = vpop.f32.mrb[0].mxu0
    %v5824 = vadd.f32 %v5700, %v5823
    %5825 = vdwg.mxu0
    %5826 = vmatprep.subr.mxu0 %v5556
    %5827 = vmatpush1.msra.mxu0 %v5555
    %5828 = vmatprep.subr.mxu0 %v5560
    %5829 = vmatpush1.msra.mxu0 %v5559
    %5830 = vmatprep.subr.mxu0 %v5564
    %5831 = vmatpush1.msra.mxu0 %v5563
    %5832 = vmatprep.subr.mxu0 %v5568
    %5833 = vmatpush1.msra.mxu0 %v5567
    %5834 = vmatprep.subr.mxu0 %v5572
    %5835 = vmatpush1.msra.mxu0 %v5571
    %5836 = vmatprep.subr.mxu0 %v5576
    %5837 = vmatpush1.msra.mxu0 %v5575
    %5838 = vmatprep.subr.mxu0 %v5580
    %5839 = vmatpush1.msra.mxu0 %v5579
    %5840 = vmatprep.subr.mxu0 %v5584
    %5841 = vmatpush1.msra.mxu0 %v5583
    %5842 = vmatprep.subr.mxu0 %v5588
    %5843 = vmatpush1.msra.mxu0 %v5587
    %5844 = vmatprep.subr.mxu0 %v5592
    %5845 = vmatpush1.msra.mxu0 %v5591
    %5846 = vmatprep.subr.mxu0 %v5596
    %5847 = vmatpush1.msra.mxu0 %v5595
    %5848 = vmatprep.subr.mxu0 %v5600
    %5849 = vmatpush1.msra.mxu0 %v5599
    %5850 = vmatprep.subr.mxu0 %v5604
    %5851 = vmatpush1.msra.mxu0 %v5603
    %5852 = vmatprep.subr.mxu0 %v5608
    %5853 = vmatpush1.msra.mxu0 %v5607
    %5854 = vmatprep.subr.mxu0 %v5612
    %5855 = vmatpush1.msra.mxu0 %v5611
    %5856 = vmatprep.subr.mxu0 %v5616
    %5857 = vmatpush1.msra.mxu0 %v5615
    %5858 = vmatprep.subr.mxu0 0.0
    %5859 = vmatpush1.msra.mxu0 0.0
    %5860 = vmatprep.subr.mxu0 0.0
    %5861 = vmatpush1.msra.mxu0 0.0
    %5862 = vmatprep.subr.mxu0 0.0
    %5863 = vmatpush1.msra.mxu0 0.0
    %5864 = vmatprep.subr.mxu0 0.0
    %5865 = vmatpush1.msra.mxu0 0.0
    %5866 = vmatprep.subr.mxu0 0.0
    %5867 = vmatpush1.msra.mxu0 0.0
    %5868 = vmatprep.subr.mxu0 0.0
    %5869 = vmatpush1.msra.mxu0 0.0
    %5870 = vmatprep.subr.mxu0 0.0
    %5871 = vmatpush1.msra.mxu0 0.0
    %5872 = vmatprep.subr.mxu0 0.0
    %5873 = vmatpush1.msra.mxu0 0.0
    %5874 = vmatprep.subr.mxu0 0.0
    %5875 = vmatpush1.msra.mxu0 0.0
    %5876 = vmatprep.subr.mxu0 0.0
    %5877 = vmatpush1.msra.mxu0 0.0
    %5878 = vmatprep.subr.mxu0 0.0
    %5879 = vmatpush1.msra.mxu0 0.0
    %5880 = vmatprep.subr.mxu0 0.0
    %5881 = vmatpush1.msra.mxu0 0.0
    %5882 = vmatprep.subr.mxu0 0.0
    %5883 = vmatpush1.msra.mxu0 0.0
    %5884 = vmatprep.subr.mxu0 0.0
    %5885 = vmatpush1.msra.mxu0 0.0
    %5886 = vmatprep.subr.mxu0 0.0
    %5887 = vmatpush1.msra.mxu0 0.0
    %5888 = vmatprep.subr.mxu0 0.0
    %5889 = vmatpush1.msra.mxu0 0.0
    %5890 = vmatprep.mubr.f32.mxu0 0.0
    %5891 = vmatmul.mubr.f32.gmra.mrb[0].mxu0 %v5684
    %v5892 = vpop.f32.mrb[0].mxu0
    %v5893 = vadd.f32 %v5704, %v5892
    %v5894 = vpop.f32.mrb[0].mxu0
    %v5895 = vadd.f32 %v5708, %v5894
    %5896 = vmatprep.mubr.f32.mxu0 0.0
    %5897 = vmatmul.mubr.f32.gmra.mrb[0].mxu0 %v5685
    %v5898 = vpop.f32.mrb[0].mxu0
    %v5899 = vadd.f32 %v5704, %v5898
    %v5900 = vpop.f32.mrb[0].mxu0
    %v5901 = vadd.f32 %v5708, %v5900
    %5902 = vmatprep.mubr.f32.mxu0 0.0
    %5903 = vmatmul.mubr.f32.gmra.mrb[0].mxu0 %v5686
    %v5904 = vpop.f32.mrb[0].mxu0
    %v5905 = vadd.f32 %v5704, %v5904
    %v5906 = vpop.f32.mrb[0].mxu0
    %v5907 = vadd.f32 %v5708, %v5906
    %5908 = vmatprep.mubr.f32.mxu0 0.0
    %5909 = vmatmul.mubr.f32.gmra.mrb[0].mxu0 %v5687
    %v5910 = vpop.f32.mrb[0].mxu0
    %v5911 = vadd.f32 %v5704, %v5910
    %v5912 = vpop.f32.mrb[0].mxu0
    %v5913 = vadd.f32 %v5708, %v5912
    %5914 = vmatprep.mubr.f32.mxu0 0.0
    %5915 = vmatmul.mubr.f32.gmra.mrb[0].mxu0 %v5688
    %v5916 = vpop.f32.mrb[0].mxu0
    %v5917 = vadd.f32 %v5704, %v5916
    %v5918 = vpop.f32.mrb[0].mxu0
    %v5919 = vadd.f32 %v5708, %v5918
    %5920 = vmatprep.mubr.f32.mxu0 0.0
    %5921 = vmatmul.mubr.f32.gmra.mrb[0].mxu0 %v5689
    %v5922 = vpop.f32.mrb[0].mxu0
    %v5923 = vadd.f32 %v5704, %v5922
    %v5924 = vpop.f32.mrb[0].mxu0
    %v5925 = vadd.f32 %v5708, %v5924
    %5926 = vmatprep.mubr.f32.mxu0 0.0
    %5927 = vmatmul.mubr.f32.gmra.mrb[0].mxu0 %v5690
    %v5928 = vpop.f32.mrb[0].mxu0
    %v5929 = vadd.f32 %v5704, %v5928
    %v5930 = vpop.f32.mrb[0].mxu0
    %v5931 = vadd.f32 %v5708, %v5930
    %5932 = vmatprep.mubr.f32.mxu0 0.0
    %5933 = vmatmul.mubr.f32.gmra.mrb[0].mxu0 %v5691
    %v5934 = vpop.f32.mrb[0].mxu0
    %v5935 = vadd.f32 %v5704, %v5934
    %v5936 = vpop.f32.mrb[0].mxu0
    %v5937 = vadd.f32 %v5708, %v5936
    %5938 = vdwg.mxu0
    %5939 = vst [vmem:[#allocation3] sm:$0xff] %v5780
    %5940 = vst [vmem:[#allocation3 + $0x8] sm:$0xff] %v5782
    %5941 = vst [vmem:[#allocation3 + $0x10] sm:$0xff] %v5893
    %5942 = vst [vmem:[#allocation3 + $0x18] sm:$0xff] %v5895
    %5943 = vst [vmem:[#allocation3 + $0x20] sm:$0xff] %v5786
    %5944 = vst [vmem:[#allocation3 + $0x28] sm:$0xff] %v5788
    %5945 = vst [vmem:[#allocation3 + $0x30] sm:$0xff] %v5899
    %5946 = vst [vmem:[#allocation3 + $0x38] sm:$0xff] %v5901
    %5947 = vst [vmem:[#allocation3 + $0x40] sm:$0xff] %v5792
    %5948 = vst [vmem:[#allocation3 + $0x48] sm:$0xff] %v5794
    %5949 = vst [vmem:[#allocation3 + $0x50] sm:$0xff] %v5905
    %5950 = vst [vmem:[#allocation3 + $0x58] sm:$0xff] %v5907
    %5951 = vst [vmem:[#allocation3 + $0x60] sm:$0xff] %v5798
    %5952 = vst [vmem:[#allocation3 + $0x68] sm:$0xff] %v5800
    %5953 = vst [vmem:[#allocation3 + $0x70] sm:$0xff] %v5911
    %5954 = vst [vmem:[#allocation3 + $0x78] sm:$0xff] %v5913
    %5955 = vst [vmem:[#allocation3 + $0x80] sm:$0xff] %v5804
    %5956 = vst [vmem:[#allocation3 + $0x88] sm:$0xff] %v5806
    %5957 = vst [vmem:[#allocation3 + $0x90] sm:$0xff] %v5917
    %5958 = vst [vmem:[#allocation3 + $0x98] sm:$0xff] %v5919
    %5959 = vst [vmem:[#allocation3 + $0xa0] sm:$0xff] %v5810
    %5960 = vst [vmem:[#allocation3 + $0xa8] sm:$0xff] %v5812
    %5961 = vst [vmem:[#allocation3 + $0xb0] sm:$0xff] %v5923
    %5962 = vst [vmem:[#allocation3 + $0xb8] sm:$0xff] %v5925
    %5963 = vst [vmem:[#allocation3 + $0xc0] sm:$0xff] %v5816
    %5964 = vst [vmem:[#allocation3 + $0xc8] sm:$0xff] %v5818
    %5965 = vst [vmem:[#allocation3 + $0xd0] sm:$0xff] %v5929
    %5966 = vst [vmem:[#allocation3 + $0xd8] sm:$0xff] %v5931
    %5967 = vst [vmem:[#allocation3 + $0xe0] sm:$0xff] %v5822
    %5968 = vst [vmem:[#allocation3 + $0xe8] sm:$0xff] %v5824
    %5969 = vst [vmem:[#allocation3 + $0xf0] sm:$0xff] %v5935
    %5970 = vst [vmem:[#allocation3 + $0xf8] sm:$0xff] %v5937
    %v5971 = vld [vmem:[#allocation3] sm:$0xff]
    %v5972 = vld [vmem:[#allocation3 + $0x8] sm:$0xff]
    %v5973 = vld [vmem:[#allocation3 + $0x10] sm:$0xff]
    %v5974 = vld [vmem:[#allocation3 + $0x18] sm:$0xff]
    %5975 = vmatprep.subr.mxu0 %v5619
    %5976 = vmatpush1.msra.mxu0 %v5618
    %5977 = vmatprep.subr.mxu0 %v5623
    %5978 = vmatpush1.msra.mxu0 %v5622
    %5979 = vmatprep.subr.mxu0 %v5627
    %5980 = vmatpush1.msra.mxu0 %v5626
    %5981 = vmatprep.subr.mxu0 %v5631
    %5982 = vmatpush1.msra.mxu0 %v5630
    %5983 = vmatprep.subr.mxu0 %v5635
    %5984 = vmatpush1.msra.mxu0 %v5634
    %5985 = vmatprep.subr.mxu0 %v5639
    %5986 = vmatpush1.msra.mxu0 %v5638
    %5987 = vmatprep.subr.mxu0 %v5643
    %5988 = vmatpush1.msra.mxu0 %v5642
    %5989 = vmatprep.subr.mxu0 %v5647
    %5990 = vmatpush1.msra.mxu0 %v5646
    %5991 = vmatprep.subr.mxu0 %v5651
    %5992 = vmatpush1.msra.mxu0 %v5650
    %5993 = vmatprep.subr.mxu0 %v5655
    %5994 = vmatpush1.msra.mxu0 %v5654
    %5995 = vmatprep.subr.mxu0 %v5659
    %5996 = vmatpush1.msra.mxu0 %v5658
    %5997 = vmatprep.subr.mxu0 %v5663
    %5998 = vmatpush1.msra.mxu0 %v5662
    %5999 = vmatprep.subr.mxu0 %v5667
    %6000 = vmatpush1.msra.mxu0 %v5666
    %6001 = vmatprep.subr.mxu0 %v5671
    %6002 = vmatpush1.msra.mxu0 %v5670
    %6003 = vmatprep.subr.mxu0 %v5675
    %6004 = vmatpush1.msra.mxu0 %v5674
    %6005 = vmatprep.subr.mxu0 %v5679
    %6006 = vmatpush1.msra.mxu0 %v5678
    %6007 = vmatprep.subr.mxu0 0.0
    %6008 = vmatpush1.msra.mxu0 0.0
    %6009 = vmatprep.subr.mxu0 0.0
    %6010 = vmatpush1.msra.mxu0 0.0
    %6011 = vmatprep.subr.mxu0 0.0
    %6012 = vmatpush1.msra.mxu0 0.0
    %6013 = vmatprep.subr.mxu0 0.0
    %6014 = vmatpush1.msra.mxu0 0.0
    %6015 = vmatprep.subr.mxu0 0.0
    %6016 = vmatpush1.msra.mxu0 0.0
    %6017 = vmatprep.subr.mxu0 0.0
    %6018 = vmatpush1.msra.mxu0 0.0
    %6019 = vmatprep.subr.mxu0 0.0
    %6020 = vmatpush1.msra.mxu0 0.0
    %6021 = vmatprep.subr.mxu0 0.0
    %6022 = vmatpush1.msra.mxu0 0.0
    %6023 = vmatprep.subr.mxu0 0.0
    %6024 = vmatpush1.msra.mxu0 0.0
    %6025 = vmatprep.subr.mxu0 0.0
    %6026 = vmatpush1.msra.mxu0 0.0
    %6027 = vmatprep.subr.mxu0 0.0
    %6028 = vmatpush1.msra.mxu0 0.0
    %6029 = vmatprep.subr.mxu0 0.0
    %6030 = vmatpush1.msra.mxu0 0.0
    %6031 = vmatprep.subr.mxu0 0.0
    %6032 = vmatpush1.msra.mxu0 0.0
    %6033 = vmatprep.subr.mxu0 0.0
    %6034 = vmatpush1.msra.mxu0 0.0
    %6035 = vmatprep.subr.mxu0 0.0
    %6036 = vmatpush1.msra.mxu0 0.0
    %6037 = vmatprep.subr.mxu0 0.0
    %6038 = vmatpush1.msra.mxu0 0.0
    %6039 = vmatprep.mubr.f32.mxu0 0.0
    %6040 = vmatmul.mubr.f32.gmra.mrb[0].mxu0 0.0
    %v6041 = vpop.f32.mrb[0].mxu0
    %v6042 = vadd.f32 0.0, %v6041
    %v6043 = vpop.f32.mrb[0].mxu0
    %v6044 = vadd.f32 0.0, %v6043
    %6045 = vdwg.mxu0
    %6046 = vmatprep.subr.mxu0 %v5621
    %6047 = vmatpush1.msra.mxu0 %v5620
    %6048 = vmatprep.subr.mxu0 %v5625
    %6049 = vmatpush1.msra.mxu0 %v5624
    %6050 = vmatprep.subr.mxu0 %v5629
    %6051 = vmatpush1.msra.mxu0 %v5628
    %6052 = vmatprep.subr.mxu0 %v5633
    %6053 = vmatpush1.msra.mxu0 %v5632
    %6054 = vmatprep.subr.mxu0 %v5637
    %6055 = vmatpush1.msra.mxu0 %v5636
    %6056 = vmatprep.subr.mxu0 %v5641
    %6057 = vmatpush1.msra.mxu0 %v5640
    %6058 = vmatprep.subr.mxu0 %v5645
    %6059 = vmatpush1.msra.mxu0 %v5644
    %6060 = vmatprep.subr.mxu0 %v5649
    %6061 = vmatpush1.msra.mxu0 %v5648
    %6062 = vmatprep.subr.mxu0 %v5653
    %6063 = vmatpush1.msra.mxu0 %v5652
    %6064 = vmatprep.subr.mxu0 %v5657
    %6065 = vmatpush1.msra.mxu0 %v5656
    %6066 = vmatprep.subr.mxu0 %v5661
    %6067 = vmatpush1.msra.mxu0 %v5660
    %6068 = vmatprep.subr.mxu0 %v5665
    %6069 = vmatpush1.msra.mxu0 %v5664
    %6070 = vmatprep.subr.mxu0 %v5669
    %6071 = vmatpush1.msra.mxu0 %v5668
    %6072 = vmatprep.subr.mxu0 %v5673
    %6073 = vmatpush1.msra.mxu0 %v5672
    %6074 = vmatprep.subr.mxu0 %v5677
    %6075 = vmatpush1.msra.mxu0 %v5676
    %6076 = vmatprep.subr.mxu0 %v5681
    %6077 = vmatpush1.msra.mxu0 %v5680
    %6078 = vmatprep.subr.mxu0 0.0
    %6079 = vmatpush1.msra.mxu0 0.0
    %6080 = vmatprep.subr.mxu0 0.0
    %6081 = vmatpush1.msra.mxu0 0.0
    %6082 = vmatprep.subr.mxu0 0.0
    %6083 = vmatpush1.msra.mxu0 0.0
    %6084 = vmatprep.subr.mxu0 0.0
    %6085 = vmatpush1.msra.mxu0 0.0
    %6086 = vmatprep.subr.mxu0 0.0
    %6087 = vmatpush1.msra.mxu0 0.0
    %6088 = vmatprep.subr.mxu0 0.0
    %6089 = vmatpush1.msra.mxu0 0.0
    %6090 = vmatprep.subr.mxu0 0.0
    %6091 = vmatpush1.msra.mxu0 0.0
    %6092 = vmatprep.subr.mxu0 0.0
    %6093 = vmatpush1.msra.mxu0 0.0
    %6094 = vmatprep.subr.mxu0 0.0
    %6095 = vmatpush1.msra.mxu0 0.0
    %6096 = vmatprep.subr.mxu0 0.0
    %6097 = vmatpush1.msra.mxu0 0.0
    %6098 = vmatprep.subr.mxu0 0.0
    %6099 = vmatpush1.msra.mxu0 0.0
    %6100 = vmatprep.subr.mxu0 0.0
    %6101 = vmatpush1.msra.mxu0 0.0
    %6102 = vmatprep.subr.mxu0 0.0
    %6103 = vmatpush1.msra.mxu0 0.0
    %6104 = vmatprep.subr.mxu0 0.0
    %6105 = vmatpush1.msra.mxu0 0.0
    %6106 = vmatprep.subr.mxu0 0.0
    %6107 = vmatpush1.msra.mxu0 0.0
    %6108 = vmatprep.subr.mxu0 0.0
    %6109 = vmatpush1.msra.mxu0 0.0
    %6110 = vmatprep.mubr.f32.mxu0 0.0
    %6111 = vmatmul.mubr.f32.gmra.mrb[0].mxu0 0.0
    %v6112 = vpop.f32.mrb[0].mxu0
    %v6113 = vadd.f32 0.0, %v6112
    %v6114 = vpop.f32.mrb[0].mxu0
    %v6115 = vadd.f32 0.0, %v6114
    %6116 = vdwg.mxu0
    %v6117 = vadd.f32 %v5971, %v6042
    %v6118 = vadd.f32 %v5972, %v6044
    %v6119 = vadd.f32 %v5973, %v6113
    %v6120 = vadd.f32 %v5974, %v6115
    %v6121 = vxor.u32 %v6117, 2147483648
    %v6122 = vmul.f32 %v6121, 1.442695
    %v6123 = vpow.pop %v6122
    %v6124 = vadd.f32 %v6123, 1.0
    %v6125 = vrcp.pop %v6124
    %v6126 = vmul.f32 1.0, %v6125
    %v6127 = vxor.u32 %v6118, 2147483648
    %v6128 = vmul.f32 %v6127, 1.442695
    %v6129 = vpow.pop %v6128
    %v6130 = vadd.f32 %v6129, 1.0
    %v6131 = vrcp.pop %v6130
    %v6132 = vmul.f32 1.0, %v6131
    %v6133 = vtanh.pop %v6119
    %v6134 = vxor.u32 %v6120, 2147483648
    %v6135 = vmul.f32 %v6134, 1.442695
    %v6136 = vpow.pop %v6135
    %v6137 = vadd.f32 %v6136, 1.0
    %v6138 = vrcp.pop %v6137
    %v6139 = vmul.f32 1.0, %v6138
    %v6140 = vmul.f32 %v6132, 0.0
    %v6141 = vmul.f32 %v6126, %v6133
    %v6142 = vadd.f32 %v6140, %v6141
    %v6143 = vtanh.pop %v6142
    %v6144 = vmul.f32 %v6139, %v6143
    %v6145 = vld [vmem:[%s4] sm:$0xff]
    %vm6146 = vcmp.gt.f32.partialorder %v6145, 0.5
    %v6147 = vsel %vm6146, 1, 0
    %6148 = vset.pattern.permute.xlu0 0
    %6149 = vperm.xlu0 %6148, %v6147
    %v6150 = vpop.permute.xlu0 %6149
    %vm6151 = vcmp.eq.s32.totalorder %v6150, 1
    %v6152 = vsel %vm6151, %v6144, -3.4028235e+38
    %v6153 = vmax.f32 %v6152, -3.4028235e+38
    %v6154 = vld [vmem:[%s675] sm:$0xff]
    %v6155 = vld [vmem:[%s675 + $0x8] sm:$0xff]
    %v6156 = vld [vmem:[%s675 + $0x10] sm:$0xff]
    %v6157 = vld [vmem:[%s675 + $0x18] sm:$0xff]
    %6158 = vmatprep.subr.mxu0 %v5619
    %6159 = vmatpush1.msra.mxu0 %v5618
    %6160 = vmatprep.subr.mxu0 %v5623
    %6161 = vmatpush1.msra.mxu0 %v5622
    %6162 = vmatprep.subr.mxu0 %v5627
    %6163 = vmatpush1.msra.mxu0 %v5626
    %6164 = vmatprep.subr.mxu0 %v5631
    %6165 = vmatpush1.msra.mxu0 %v5630
    %6166 = vmatprep.subr.mxu0 %v5635
    %6167 = vmatpush1.msra.mxu0 %v5634
    %6168 = vmatprep.subr.mxu0 %v5639
    %6169 = vmatpush1.msra.mxu0 %v5638
    %6170 = vmatprep.subr.mxu0 %v5643
    %6171 = vmatpush1.msra.mxu0 %v5642
    %6172 = vmatprep.subr.mxu0 %v5647
    %6173 = vmatpush1.msra.mxu0 %v5646
    %6174 = vmatprep.subr.mxu0 %v5651
    %6175 = vmatpush1.msra.mxu0 %v5650
    %6176 = vmatprep.subr.mxu0 %v5655
    %6177 = vmatpush1.msra.mxu0 %v5654
    %6178 = vmatprep.subr.mxu0 %v5659
    %6179 = vmatpush1.msra.mxu0 %v5658
    %6180 = vmatprep.subr.mxu0 %v5663
    %6181 = vmatpush1.msra.mxu0 %v5662
    %6182 = vmatprep.subr.mxu0 %v5667
    %6183 = vmatpush1.msra.mxu0 %v5666
    %6184 = vmatprep.subr.mxu0 %v5671
    %6185 = vmatpush1.msra.mxu0 %v5670
    %6186 = vmatprep.subr.mxu0 %v5675
    %6187 = vmatpush1.msra.mxu0 %v5674
    %6188 = vmatprep.subr.mxu0 %v5679
    %6189 = vmatpush1.msra.mxu0 %v5678
    %6190 = vmatprep.subr.mxu0 0.0
    %6191 = vmatpush1.msra.mxu0 0.0
    %6192 = vmatprep.subr.mxu0 0.0
    %6193 = vmatpush1.msra.mxu0 0.0
    %6194 = vmatprep.subr.mxu0 0.0
    %6195 = vmatpush1.msra.mxu0 0.0
    %6196 = vmatprep.subr.mxu0 0.0
    %6197 = vmatpush1.msra.mxu0 0.0
    %6198 = vmatprep.subr.mxu0 0.0
    %6199 = vmatpush1.msra.mxu0 0.0
    %6200 = vmatprep.subr.mxu0 0.0
    %6201 = vmatpush1.msra.mxu0 0.0
    %6202 = vmatprep.subr.mxu0 0.0
    %6203 = vmatpush1.msra.mxu0 0.0
    %6204 = vmatprep.subr.mxu0 0.0
    %6205 = vmatpush1.msra.mxu0 0.0
    %6206 = vmatprep.subr.mxu0 0.0
    %6207 = vmatpush1.msra.mxu0 0.0
    %6208 = vmatprep.subr.mxu0 0.0
    %6209 = vmatpush1.msra.mxu0 0.0
    %6210 = vmatprep.subr.mxu0 0.0
    %6211 = vmatpush1.msra.mxu0 0.0
    %6212 = vmatprep.subr.mxu0 0.0
    %6213 = vmatpush1.msra.mxu0 0.0
    %6214 = vmatprep.subr.mxu0 0.0
    %6215 = vmatpush1.msra.mxu0 0.0
    %6216 = vmatprep.subr.mxu0 0.0
    %6217 = vmatpush1.msra.mxu0 0.0
    %6218 = vmatprep.subr.mxu0 0.0
    %6219 = vmatpush1.msra.mxu0 0.0
    %6220 = vmatprep.subr.mxu0 0.0
    %6221 = vmatpush1.msra.mxu0 0.0
    %6222 = vmatprep.mubr.f32.mxu0 0.0
    %6223 = vmatmul.mubr.f32.gmra.mrb[0].mxu0 %v6144
    %v6224 = vpop.f32.mrb[0].mxu0
    %v6225 = vadd.f32 0.0, %v6224
    %v6226 = vpop.f32.mrb[0].mxu0
    %v6227 = vadd.f32 0.0, %v6226
    %6228 = vdwg.mxu0
    %6229 = vmatprep.subr.mxu0 %v5621
    %6230 = vmatpush1.msra.mxu0 %v5620
    %6231 = vmatprep.subr.mxu0 %v5625
    %6232 = vmatpush1.msra.mxu0 %v5624
    %6233 = vmatprep.subr.mxu0 %v5629
    %6234 = vmatpush1.msra.mxu0 %v5628
    %6235 = vmatprep.subr.mxu0 %v5633
    %6236 = vmatpush1.msra.mxu0 %v5632
    %6237 = vmatprep.subr.mxu0 %v5637
    %6238 = vmatpush1.msra.mxu0 %v5636
    %6239 = vmatprep.subr.mxu0 %v5641
    %6240 = vmatpush1.msra.mxu0 %v5640
    %6241 = vmatprep.subr.mxu0 %v5645
    %6242 = vmatpush1.msra.mxu0 %v5644
    %6243 = vmatprep.subr.mxu0 %v5649
    %6244 = vmatpush1.msra.mxu0 %v5648
    %6245 = vmatprep.subr.mxu0 %v5653
    %6246 = vmatpush1.msra.mxu0 %v5652
    %6247 = vmatprep.subr.mxu0 %v5657
    %6248 = vmatpush1.msra.mxu0 %v5656
    %6249 = vmatprep.subr.mxu0 %v5661
    %6250 = vmatpush1.msra.mxu0 %v5660
    %6251 = vmatprep.subr.mxu0 %v5665
    %6252 = vmatpush1.msra.mxu0 %v5664
    %6253 = vmatprep.subr.mxu0 %v5669
    %6254 = vmatpush1.msra.mxu0 %v5668
    %6255 = vmatprep.subr.mxu0 %v5673
    %6256 = vmatpush1.msra.mxu0 %v5672
    %6257 = vmatprep.subr.mxu0 %v5677
    %6258 = vmatpush1.msra.mxu0 %v5676
    %6259 = vmatprep.subr.mxu0 %v5681
    %6260 = vmatpush1.msra.mxu0 %v5680
    %6261 = vmatprep.subr.mxu0 0.0
    %6262 = vmatpush1.msra.mxu0 0.0
    %6263 = vmatprep.subr.mxu0 0.0
    %6264 = vmatpush1.msra.mxu0 0.0
    %6265 = vmatprep.subr.mxu0 0.0
    %6266 = vmatpush1.msra.mxu0 0.0
    %6267 = vmatprep.subr.mxu0 0.0
    %6268 = vmatpush1.msra.mxu0 0.0
    %6269 = vmatprep.subr.mxu0 0.0
    %6270 = vmatpush1.msra.mxu0 0.0
    %6271 = vmatprep.subr.mxu0 0.0
    %6272 = vmatpush1.msra.mxu0 0.0
    %6273 = vmatprep.subr.mxu0 0.0
    %6274 = vmatpush1.msra.mxu0 0.0
    %6275 = vmatprep.subr.mxu0 0.0
    %6276 = vmatpush1.msra.mxu0 0.0
    %6277 = vmatprep.subr.mxu0 0.0
    %6278 = vmatpush1.msra.mxu0 0.0
    %6279 = vmatprep.subr.mxu0 0.0
    %6280 = vmatpush1.msra.mxu0 0.0
    %6281 = vmatprep.subr.mxu0 0.0
    %6282 = vmatpush1.msra.mxu0 0.0
    %6283 = vmatprep.subr.mxu0 0.0
    %6284 = vmatpush1.msra.mxu0 0.0
    %6285 = vmatprep.subr.mxu0 0.0
    %6286 = vmatpush1.msra.mxu0 0.0
    %6287 = vmatprep.subr.mxu0 0.0
    %6288 = vmatpush1.msra.mxu0 0.0
    %6289 = vmatprep.subr.mxu0 0.0
    %6290 = vmatpush1.msra.mxu0 0.0
    %6291 = vmatprep.subr.mxu0 0.0
    %6292 = vmatpush1.msra.mxu0 0.0
    %6293 = vmatprep.mubr.f32.mxu0 0.0
    %6294 = vmatmul.mubr.f32.gmra.mrb[0].mxu0 %v6144
    %v6295 = vpop.f32.mrb[0].mxu0
    %v6296 = vadd.f32 0.0, %v6295
    %v6297 = vpop.f32.mrb[0].mxu0
    %v6298 = vadd.f32 0.0, %v6297
    %6299 = vdwg.mxu0
    %v6300 = vadd.f32 %v6154, %v6225
    %v6301 = vadd.f32 %v6155, %v6227
    %v6302 = vadd.f32 %v6156, %v6296
    %v6303 = vadd.f32 %v6157, %v6298
    %v6304 = vxor.u32 %v6300, 2147483648
    %v6305 = vmul.f32 %v6304, 1.442695
    %v6306 = vpow.pop %v6305
    %v6307 = vadd.f32 %v6306, 1.0
    %v6308 = vrcp.pop %v6307
    %v6309 = vmul.f32 1.0, %v6308
    %v6310 = vxor.u32 %v6301, 2147483648
    %v6311 = vmul.f32 %v6310, 1.442695
    %v6312 = vpow.pop %v6311
    %v6313 = vadd.f32 %v6312, 1.0
    %v6314 = vrcp.pop %v6313
    %v6315 = vmul.f32 1.0, %v6314
    %v6316 = vtanh.pop %v6302
    %v6317 = vxor.u32 %v6303, 2147483648
    %v6318 = vmul.f32 %v6317, 1.442695
    %v6319 = vpow.pop %v6318
    %v6320 = vadd.f32 %v6319, 1.0
    %v6321 = vrcp.pop %v6320
    %v6322 = vmul.f32 1.0, %v6321
    %v6323 = vmul.f32 %v6315, %v6142
    %v6324 = vmul.f32 %v6309, %v6316
    %v6325 = vadd.f32 %v6323, %v6324
    %v6326 = vtanh.pop %v6325
    %v6327 = vmul.f32 %v6322, %v6326
    %s6328 = scalar_lea.vmem %s4, 8
    %v6329 = vld [vmem:[%s6328] sm:$0xff]
    %vm6330 = vcmp.gt.f32.partialorder %v6329, 0.5
    %v6331 = vsel %vm6330, 1, 0
    %6332 = vset.pattern.permute.xlu0 0
    %6333 = vperm.xlu0 %6332, %v6331
    %v6334 = vpop.permute.xlu0 %6333
    %vm6335 = vcmp.eq.s32.totalorder %v6334, 1
    %v6336 = vsel %vm6335, %v6327, -3.4028235e+38
    %v6337 = vmax.f32 %v6153, %v6336
    %v6338 = vld [vmem:[%s852] sm:$0xff]
    %v6339 = vld [vmem:[%s852 + $0x8] sm:$0xff]
    %v6340 = vld [vmem:[%s852 + $0x10] sm:$0xff]
    %v6341 = vld [vmem:[%s852 + $0x18] sm:$0xff]
    %6342 = vmatprep.subr.mxu0 %v5619
    %6343 = vmatpush1.msra.mxu0 %v5618
    %6344 = vmatprep.subr.mxu0 %v5623
    %6345 = vmatpush1.msra.mxu0 %v5622
    %6346 = vmatprep.subr.mxu0 %v5627
    %6347 = vmatpush1.msra.mxu0 %v5626
    %6348 = vmatprep.subr.mxu0 %v5631
    %6349 = vmatpush1.msra.mxu0 %v5630
    %6350 = vmatprep.subr.mxu0 %v5635
    %6351 = vmatpush1.msra.mxu0 %v5634
    %6352 = vmatprep.subr.mxu0 %v5639
    %6353 = vmatpush1.msra.mxu0 %v5638
    %6354 = vmatprep.subr.mxu0 %v5643
    %6355 = vmatpush1.msra.mxu0 %v5642
    %6356 = vmatprep.subr.mxu0 %v5647
    %6357 = vmatpush1.msra.mxu0 %v5646
    %6358 = vmatprep.subr.mxu0 %v5651
    %6359 = vmatpush1.msra.mxu0 %v5650
    %6360 = vmatprep.subr.mxu0 %v5655
    %6361 = vmatpush1.msra.mxu0 %v5654
    %6362 = vmatprep.subr.mxu0 %v5659
    %6363 = vmatpush1.msra.mxu0 %v5658
    %6364 = vmatprep.subr.mxu0 %v5663
    %6365 = vmatpush1.msra.mxu0 %v5662
    %6366 = vmatprep.subr.mxu0 %v5667
    %6367 = vmatpush1.msra.mxu0 %v5666
    %6368 = vmatprep.subr.mxu0 %v5671
    %6369 = vmatpush1.msra.mxu0 %v5670
    %6370 = vmatprep.subr.mxu0 %v5675
    %6371 = vmatpush1.msra.mxu0 %v5674
    %6372 = vmatprep.subr.mxu0 %v5679
    %6373 = vmatpush1.msra.mxu0 %v5678
    %6374 = vmatprep.subr.mxu0 0.0
    %6375 = vmatpush1.msra.mxu0 0.0
    %6376 = vmatprep.subr.mxu0 0.0
    %6377 = vmatpush1.msra.mxu0 0.0
    %6378 = vmatprep.subr.mxu0 0.0
    %6379 = vmatpush1.msra.mxu0 0.0
    %6380 = vmatprep.subr.mxu0 0.0
    %6381 = vmatpush1.msra.mxu0 0.0
    %6382 = vmatprep.subr.mxu0 0.0
    %6383 = vmatpush1.msra.mxu0 0.0
    %6384 = vmatprep.subr.mxu0 0.0
    %6385 = vmatpush1.msra.mxu0 0.0
    %6386 = vmatprep.subr.mxu0 0.0
    %6387 = vmatpush1.msra.mxu0 0.0
    %6388 = vmatprep.subr.mxu0 0.0
    %6389 = vmatpush1.msra.mxu0 0.0
    %6390 = vmatprep.subr.mxu0 0.0
    %6391 = vmatpush1.msra.mxu0 0.0
    %6392 = vmatprep.subr.mxu0 0.0
    %6393 = vmatpush1.msra.mxu0 0.0
    %6394 = vmatprep.subr.mxu0 0.0
    %6395 = vmatpush1.msra.mxu0 0.0
    %6396 = vmatprep.subr.mxu0 0.0
    %6397 = vmatpush1.msra.mxu0 0.0
    %6398 = vmatprep.subr.mxu0 0.0
    %6399 = vmatpush1.msra.mxu0 0.0
    %6400 = vmatprep.subr.mxu0 0.0
    %6401 = vmatpush1.msra.mxu0 0.0
    %6402 = vmatprep.subr.mxu0 0.0
    %6403 = vmatpush1.msra.mxu0 0.0
    %6404 = vmatprep.subr.mxu0 0.0
    %6405 = vmatpush1.msra.mxu0 0.0
    %6406 = vmatprep.mubr.f32.mxu0 0.0
    %6407 = vmatmul.mubr.f32.gmra.mrb[0].mxu0 %v6327
    %v6408 = vpop.f32.mrb[0].mxu0
    %v6409 = vadd.f32 0.0, %v6408
    %v6410 = vpop.f32.mrb[0].mxu0
    %v6411 = vadd.f32 0.0, %v6410
    %6412 = vdwg.mxu0
    %6413 = vmatprep.subr.mxu0 %v5621
    %6414 = vmatpush1.msra.mxu0 %v5620
    %6415 = vmatprep.subr.mxu0 %v5625
    %6416 = vmatpush1.msra.mxu0 %v5624
    %6417 = vmatprep.subr.mxu0 %v5629
    %6418 = vmatpush1.msra.mxu0 %v5628
    %6419 = vmatprep.subr.mxu0 %v5633
    %6420 = vmatpush1.msra.mxu0 %v5632
    %6421 = vmatprep.subr.mxu0 %v5637
    %6422 = vmatpush1.msra.mxu0 %v5636
    %6423 = vmatprep.subr.mxu0 %v5641
    %6424 = vmatpush1.msra.mxu0 %v5640
    %6425 = vmatprep.subr.mxu0 %v5645
    %6426 = vmatpush1.msra.mxu0 %v5644
    %6427 = vmatprep.subr.mxu0 %v5649
    %6428 = vmatpush1.msra.mxu0 %v5648
    %6429 = vmatprep.subr.mxu0 %v5653
    %6430 = vmatpush1.msra.mxu0 %v5652
    %6431 = vmatprep.subr.mxu0 %v5657
    %6432 = vmatpush1.msra.mxu0 %v5656
    %6433 = vmatprep.subr.mxu0 %v5661
    %6434 = vmatpush1.msra.mxu0 %v5660
    %6435 = vmatprep.subr.mxu0 %v5665
    %6436 = vmatpush1.msra.mxu0 %v5664
    %6437 = vmatprep.subr.mxu0 %v5669
    %6438 = vmatpush1.msra.mxu0 %v5668
    %6439 = vmatprep.subr.mxu0 %v5673
    %6440 = vmatpush1.msra.mxu0 %v5672
    %6441 = vmatprep.subr.mxu0 %v5677
    %6442 = vmatpush1.msra.mxu0 %v5676
    %6443 = vmatprep.subr.mxu0 %v5681
    %6444 = vmatpush1.msra.mxu0 %v5680
    %6445 = vmatprep.subr.mxu0 0.0
    %6446 = vmatpush1.msra.mxu0 0.0
    %6447 = vmatprep.subr.mxu0 0.0
    %6448 = vmatpush1.msra.mxu0 0.0
    %6449 = vmatprep.subr.mxu0 0.0
    %6450 = vmatpush1.msra.mxu0 0.0
    %6451 = vmatprep.subr.mxu0 0.0
    %6452 = vmatpush1.msra.mxu0 0.0
    %6453 = vmatprep.subr.mxu0 0.0
    %6454 = vmatpush1.msra.mxu0 0.0
    %6455 = vmatprep.subr.mxu0 0.0
    %6456 = vmatpush1.msra.mxu0 0.0
    %6457 = vmatprep.subr.mxu0 0.0
    %6458 = vmatpush1.msra.mxu0 0.0
    %6459 = vmatprep.subr.mxu0 0.0
    %6460 = vmatpush1.msra.mxu0 0.0
    %6461 = vmatprep.subr.mxu0 0.0
    %6462 = vmatpush1.msra.mxu0 0.0
    %6463 = vmatprep.subr.mxu0 0.0
    %6464 = vmatpush1.msra.mxu0 0.0
    %6465 = vmatprep.subr.mxu0 0.0
    %6466 = vmatpush1.msra.mxu0 0.0
    %6467 = vmatprep.subr.mxu0 0.0
    %6468 = vmatpush1.msra.mxu0 0.0
    %6469 = vmatprep.subr.mxu0 0.0
    %6470 = vmatpush1.msra.mxu0 0.0
    %6471 = vmatprep.subr.mxu0 0.0
    %6472 = vmatpush1.msra.mxu0 0.0
    %6473 = vmatprep.subr.mxu0 0.0
    %6474 = vmatpush1.msra.mxu0 0.0
    %6475 = vmatprep.subr.mxu0 0.0
    %6476 = vmatpush1.msra.mxu0 0.0
    %6477 = vmatprep.mubr.f32.mxu0 0.0
    %6478 = vmatmul.mubr.f32.gmra.mrb[0].mxu0 %v6327
    %v6479 = vpop.f32.mrb[0].mxu0
    %v6480 = vadd.f32 0.0, %v6479
    %v6481 = vpop.f32.mrb[0].mxu0
    %v6482 = vadd.f32 0.0, %v6481
    %6483 = vdwg.mxu0
    %v6484 = vadd.f32 %v6338, %v6409
    %v6485 = vadd.f32 %v6339, %v6411
    %v6486 = vadd.f32 %v6340, %v6480
    %v6487 = vadd.f32 %v6341, %v6482
    %v6488 = vxor.u32 %v6484, 2147483648
    %v6489 = vmul.f32 %v6488, 1.442695
    %v6490 = vpow.pop %v6489
    %v6491 = vadd.f32 %v6490, 1.0
    %v6492 = vrcp.pop %v6491
    %v6493 = vmul.f32 1.0, %v6492
    %v6494 = vxor.u32 %v6485, 2147483648
    %v6495 = vmul.f32 %v6494, 1.442695
    %v6496 = vpow.pop %v6495
    %v6497 = vadd.f32 %v6496, 1.0
    %v6498 = vrcp.pop %v6497
    %v6499 = vmul.f32 1.0, %v6498
    %v6500 = vtanh.pop %v6486
    %v6501 = vxor.u32 %v6487, 2147483648
    %v6502 = vmul.f32 %v6501, 1.442695
    %v6503 = vpow.pop %v6502
    %v6504 = vadd.f32 %v6503, 1.0
    %v6505 = vrcp.pop %v6504
    %v6506 = vmul.f32 1.0, %v6505
    %v6507 = vmul.f32 %v6499, %v6325
    %v6508 = vmul.f32 %v6493, %v6500
    %v6509 = vadd.f32 %v6507, %v6508
    %v6510 = vtanh.pop %v6509
    %v6511 = vmul.f32 %v6506, %v6510
    %s6512 = scalar_lea.vmem %s4, 16
    %v6513 = vld [vmem:[%s6512] sm:$0xff]
    %vm6514 = vcmp.gt.f32.partialorder %v6513, 0.5
    %v6515 = vsel %vm6514, 1, 0
    %6516 = vset.pattern.permute.xlu0 0
    %6517 = vperm.xlu0 %6516, %v6515
    %v6518 = vpop.permute.xlu0 %6517
    %vm6519 = vcmp.eq.s32.totalorder %v6518, 1
    %v6520 = vsel %vm6519, %v6511, -3.4028235e+38
    %v6521 = vmax.f32 %v6337, %v6520
    %v6522 = vld [vmem:[%s1029] sm:$0xff]
    %v6523 = vld [vmem:[%s1029 + $0x8] sm:$0xff]
    %v6524 = vld [vmem:[%s1029 + $0x10] sm:$0xff]
    %v6525 = vld [vmem:[%s1029 + $0x18] sm:$0xff]
    %6526 = vmatprep.subr.mxu0 %v5619
    %6527 = vmatpush1.msra.mxu0 %v5618
    %6528 = vmatprep.subr.mxu0 %v5623
    %6529 = vmatpush1.msra.mxu0 %v5622
    %6530 = vmatprep.subr.mxu0 %v5627
    %6531 = vmatpush1.msra.mxu0 %v5626
    %6532 = vmatprep.subr.mxu0 %v5631
    %6533 = vmatpush1.msra.mxu0 %v5630
    %6534 = vmatprep.subr.mxu0 %v5635
    %6535 = vmatpush1.msra.mxu0 %v5634
    %6536 = vmatprep.subr.mxu0 %v5639
    %6537 = vmatpush1.msra.mxu0 %v5638
    %6538 = vmatprep.subr.mxu0 %v5643
    %6539 = vmatpush1.msra.mxu0 %v5642
    %6540 = vmatprep.subr.mxu0 %v5647
    %6541 = vmatpush1.msra.mxu0 %v5646
    %6542 = vmatprep.subr.mxu0 %v5651
    %6543 = vmatpush1.msra.mxu0 %v5650
    %6544 = vmatprep.subr.mxu0 %v5655
    %6545 = vmatpush1.msra.mxu0 %v5654
    %6546 = vmatprep.subr.mxu0 %v5659
    %6547 = vmatpush1.msra.mxu0 %v5658
    %6548 = vmatprep.subr.mxu0 %v5663
    %6549 = vmatpush1.msra.mxu0 %v5662
    %6550 = vmatprep.subr.mxu0 %v5667
    %6551 = vmatpush1.msra.mxu0 %v5666
    %6552 = vmatprep.subr.mxu0 %v5671
    %6553 = vmatpush1.msra.mxu0 %v5670
    %6554 = vmatprep.subr.mxu0 %v5675
    %6555 = vmatpush1.msra.mxu0 %v5674
    %6556 = vmatprep.subr.mxu0 %v5679
    %6557 = vmatpush1.msra.mxu0 %v5678
    %6558 = vmatprep.subr.mxu0 0.0
    %6559 = vmatpush1.msra.mxu0 0.0
    %6560 = vmatprep.subr.mxu0 0.0
    %6561 = vmatpush1.msra.mxu0 0.0
    %6562 = vmatprep.subr.mxu0 0.0
    %6563 = vmatpush1.msra.mxu0 0.0
    %6564 = vmatprep.subr.mxu0 0.0
    %6565 = vmatpush1.msra.mxu0 0.0
    %6566 = vmatprep.subr.mxu0 0.0
    %6567 = vmatpush1.msra.mxu0 0.0
    %6568 = vmatprep.subr.mxu0 0.0
    %6569 = vmatpush1.msra.mxu0 0.0
    %6570 = vmatprep.subr.mxu0 0.0
    %6571 = vmatpush1.msra.mxu0 0.0
    %6572 = vmatprep.subr.mxu0 0.0
    %6573 = vmatpush1.msra.mxu0 0.0
    %6574 = vmatprep.subr.mxu0 0.0
    %6575 = vmatpush1.msra.mxu0 0.0
    %6576 = vmatprep.subr.mxu0 0.0
    %6577 = vmatpush1.msra.mxu0 0.0
    %6578 = vmatprep.subr.mxu0 0.0
    %6579 = vmatpush1.msra.mxu0 0.0
    %6580 = vmatprep.subr.mxu0 0.0
    %6581 = vmatpush1.msra.mxu0 0.0
    %6582 = vmatprep.subr.mxu0 0.0
    %6583 = vmatpush1.msra.mxu0 0.0
    %6584 = vmatprep.subr.mxu0 0.0
    %6585 = vmatpush1.msra.mxu0 0.0
    %6586 = vmatprep.subr.mxu0 0.0
    %6587 = vmatpush1.msra.mxu0 0.0
    %6588 = vmatprep.subr.mxu0 0.0
    %6589 = vmatpush1.msra.mxu0 0.0
    %6590 = vmatprep.mubr.f32.mxu0 0.0
    %6591 = vmatmul.mubr.f32.gmra.mrb[0].mxu0 %v6511
    %v6592 = vpop.f32.mrb[0].mxu0
    %v6593 = vadd.f32 0.0, %v6592
    %v6594 = vpop.f32.mrb[0].mxu0
    %v6595 = vadd.f32 0.0, %v6594
    %6596 = vdwg.mxu0
    %6597 = vmatprep.subr.mxu0 %v5621
    %6598 = vmatpush1.msra.mxu0 %v5620
    %6599 = vmatprep.subr.mxu0 %v5625
    %6600 = vmatpush1.msra.mxu0 %v5624
    %6601 = vmatprep.subr.mxu0 %v5629
    %6602 = vmatpush1.msra.mxu0 %v5628
    %6603 = vmatprep.subr.mxu0 %v5633
    %6604 = vmatpush1.msra.mxu0 %v5632
    %6605 = vmatprep.subr.mxu0 %v5637
    %6606 = vmatpush1.msra.mxu0 %v5636
    %6607 = vmatprep.subr.mxu0 %v5641
    %6608 = vmatpush1.msra.mxu0 %v5640
    %6609 = vmatprep.subr.mxu0 %v5645
    %6610 = vmatpush1.msra.mxu0 %v5644
    %6611 = vmatprep.subr.mxu0 %v5649
    %6612 = vmatpush1.msra.mxu0 %v5648
    %6613 = vmatprep.subr.mxu0 %v5653
    %6614 = vmatpush1.msra.mxu0 %v5652
    %6615 = vmatprep.subr.mxu0 %v5657
    %6616 = vmatpush1.msra.mxu0 %v5656
    %6617 = vmatprep.subr.mxu0 %v5661
    %6618 = vmatpush1.msra.mxu0 %v5660
    %6619 = vmatprep.subr.mxu0 %v5665
    %6620 = vmatpush1.msra.mxu0 %v5664
    %6621 = vmatprep.subr.mxu0 %v5669
    %6622 = vmatpush1.msra.mxu0 %v5668
    %6623 = vmatprep.subr.mxu0 %v5673
    %6624 = vmatpush1.msra.mxu0 %v5672
    %6625 = vmatprep.subr.mxu0 %v5677
    %6626 = vmatpush1.msra.mxu0 %v5676
    %6627 = vmatprep.subr.mxu0 %v5681
    %6628 = vmatpush1.msra.mxu0 %v5680
    %6629 = vmatprep.subr.mxu0 0.0
    %6630 = vmatpush1.msra.mxu0 0.0
    %6631 = vmatprep.subr.mxu0 0.0
    %6632 = vmatpush1.msra.mxu0 0.0
    %6633 = vmatprep.subr.mxu0 0.0
    %6634 = vmatpush1.msra.mxu0 0.0
    %6635 = vmatprep.subr.mxu0 0.0
    %6636 = vmatpush1.msra.mxu0 0.0
    %6637 = vmatprep.subr.mxu0 0.0
    %6638 = vmatpush1.msra.mxu0 0.0
    %6639 = vmatprep.subr.mxu0 0.0
    %6640 = vmatpush1.msra.mxu0 0.0
    %6641 = vmatprep.subr.mxu0 0.0
    %6642 = vmatpush1.msra.mxu0 0.0
    %6643 = vmatprep.subr.mxu0 0.0
    %6644 = vmatpush1.msra.mxu0 0.0
    %6645 = vmatprep.subr.mxu0 0.0
    %6646 = vmatpush1.msra.mxu0 0.0
    %6647 = vmatprep.subr.mxu0 0.0
    %6648 = vmatpush1.msra.mxu0 0.0
    %6649 = vmatprep.subr.mxu0 0.0
    %6650 = vmatpush1.msra.mxu0 0.0
    %6651 = vmatprep.subr.mxu0 0.0
    %6652 = vmatpush1.msra.mxu0 0.0
    %6653 = vmatprep.subr.mxu0 0.0
    %6654 = vmatpush1.msra.mxu0 0.0
    %6655 = vmatprep.subr.mxu0 0.0
    %6656 = vmatpush1.msra.mxu0 0.0
    %6657 = vmatprep.subr.mxu0 0.0
    %6658 = vmatpush1.msra.mxu0 0.0
    %6659 = vmatprep.subr.mxu0 0.0
    %6660 = vmatpush1.msra.mxu0 0.0
    %6661 = vmatprep.mubr.f32.mxu0 0.0
    %6662 = vmatmul.mubr.f32.gmra.mrb[0].mxu0 %v6511
    %v6663 = vpop.f32.mrb[0].mxu0
    %v6664 = vadd.f32 0.0, %v6663
    %v6665 = vpop.f32.mrb[0].mxu0
    %v6666 = vadd.f32 0.0, %v6665
    %6667 = vdwg.mxu0
    %v6668 = vadd.f32 %v6522, %v6593
    %v6669 = vadd.f32 %v6523, %v6595
    %v6670 = vadd.f32 %v6524, %v6664
    %v6671 = vadd.f32 %v6525, %v6666
    %v6672 = vxor.u32 %v6668, 2147483648
    %v6673 = vmul.f32 %v6672, 1.442695
    %v6674 = vpow.pop %v6673
    %v6675 = vadd.f32 %v6674, 1.0
    %v6676 = vrcp.pop %v6675
    %v6677 = vmul.f32 1.0, %v6676
    %v6678 = vxor.u32 %v6669, 2147483648
    %v6679 = vmul.f32 %v6678, 1.442695
    %v6680 = vpow.pop %v6679
    %v6681 = vadd.f32 %v6680, 1.0
    %v6682 = vrcp.pop %v6681
    %v6683 = vmul.f32 1.0, %v6682
    %v6684 = vtanh.pop %v6670
    %v6685 = vxor.u32 %v6671, 2147483648
    %v6686 = vmul.f32 %v6685, 1.442695
    %v6687 = vpow.pop %v6686
    %v6688 = vadd.f32 %v6687, 1.0
    %v6689 = vrcp.pop %v6688
    %v6690 = vmul.f32 1.0, %v6689
    %v6691 = vmul.f32 %v6683, %v6509
    %v6692 = vmul.f32 %v6677, %v6684
    %v6693 = vadd.f32 %v6691, %v6692
    %v6694 = vtanh.pop %v6693
    %v6695 = vmul.f32 %v6690, %v6694
    %s6696 = scalar_lea.vmem %s4, 24
    %v6697 = vld [vmem:[%s6696] sm:$0xff]
    %vm6698 = vcmp.gt.f32.partialorder %v6697, 0.5
    %v6699 = vsel %vm6698, 1, 0
    %6700 = vset.pattern.permute.xlu0 0
    %6701 = vperm.xlu0 %6700, %v6699
    %v6702 = vpop.permute.xlu0 %6701
    %vm6703 = vcmp.eq.s32.totalorder %v6702, 1
    %v6704 = vsel %vm6703, %v6695, -3.4028235e+38
    %v6705 = vmax.f32 %v6521, %v6704
    %v6706 = vld [vmem:[%s1206] sm:$0xff]
    %v6707 = vld [vmem:[%s1206 + $0x8] sm:$0xff]
    %v6708 = vld [vmem:[%s1206 + $0x10] sm:$0xff]
    %v6709 = vld [vmem:[%s1206 + $0x18] sm:$0xff]
    %6710 = vmatprep.subr.mxu0 %v5619
    %6711 = vmatpush1.msra.mxu0 %v5618
    %6712 = vmatprep.subr.mxu0 %v5623
    %6713 = vmatpush1.msra.mxu0 %v5622
    %6714 = vmatprep.subr.mxu0 %v5627
    %6715 = vmatpush1.msra.mxu0 %v5626
    %6716 = vmatprep.subr.mxu0 %v5631
    %6717 = vmatpush1.msra.mxu0 %v5630
    %6718 = vmatprep.subr.mxu0 %v5635
    %6719 = vmatpush1.msra.mxu0 %v5634
    %6720 = vmatprep.subr.mxu0 %v5639
    %6721 = vmatpush1.msra.mxu0 %v5638
    %6722 = vmatprep.subr.mxu0 %v5643
    %6723 = vmatpush1.msra.mxu0 %v5642
    %6724 = vmatprep.subr.mxu0 %v5647
    %6725 = vmatpush1.msra.mxu0 %v5646
    %6726 = vmatprep.subr.mxu0 %v5651
    %6727 = vmatpush1.msra.mxu0 %v5650
    %6728 = vmatprep.subr.mxu0 %v5655
    %6729 = vmatpush1.msra.mxu0 %v5654
    %6730 = vmatprep.subr.mxu0 %v5659
    %6731 = vmatpush1.msra.mxu0 %v5658
    %6732 = vmatprep.subr.mxu0 %v5663
    %6733 = vmatpush1.msra.mxu0 %v5662
    %6734 = vmatprep.subr.mxu0 %v5667
    %6735 = vmatpush1.msra.mxu0 %v5666
    %6736 = vmatprep.subr.mxu0 %v5671
    %6737 = vmatpush1.msra.mxu0 %v5670
    %6738 = vmatprep.subr.mxu0 %v5675
    %6739 = vmatpush1.msra.mxu0 %v5674
    %6740 = vmatprep.subr.mxu0 %v5679
    %6741 = vmatpush1.msra.mxu0 %v5678
    %6742 = vmatprep.subr.mxu0 0.0
    %6743 = vmatpush1.msra.mxu0 0.0
    %6744 = vmatprep.subr.mxu0 0.0
    %6745 = vmatpush1.msra.mxu0 0.0
    %6746 = vmatprep.subr.mxu0 0.0
    %6747 = vmatpush1.msra.mxu0 0.0
    %6748 = vmatprep.subr.mxu0 0.0
    %6749 = vmatpush1.msra.mxu0 0.0
    %6750 = vmatprep.subr.mxu0 0.0
    %6751 = vmatpush1.msra.mxu0 0.0
    %6752 = vmatprep.subr.mxu0 0.0
    %6753 = vmatpush1.msra.mxu0 0.0
    %6754 = vmatprep.subr.mxu0 0.0
    %6755 = vmatpush1.msra.mxu0 0.0
    %6756 = vmatprep.subr.mxu0 0.0
    %6757 = vmatpush1.msra.mxu0 0.0
    %6758 = vmatprep.subr.mxu0 0.0
    %6759 = vmatpush1.msra.mxu0 0.0
    %6760 = vmatprep.subr.mxu0 0.0
    %6761 = vmatpush1.msra.mxu0 0.0
    %6762 = vmatprep.subr.mxu0 0.0
    %6763 = vmatpush1.msra.mxu0 0.0
    %6764 = vmatprep.subr.mxu0 0.0
    %6765 = vmatpush1.msra.mxu0 0.0
    %6766 = vmatprep.subr.mxu0 0.0
    %6767 = vmatpush1.msra.mxu0 0.0
    %6768 = vmatprep.subr.mxu0 0.0
    %6769 = vmatpush1.msra.mxu0 0.0
    %6770 = vmatprep.subr.mxu0 0.0
    %6771 = vmatpush1.msra.mxu0 0.0
    %6772 = vmatprep.subr.mxu0 0.0
    %6773 = vmatpush1.msra.mxu0 0.0
    %6774 = vmatprep.mubr.f32.mxu0 0.0
    %6775 = vmatmul.mubr.f32.gmra.mrb[0].mxu0 %v6695
    %v6776 = vpop.f32.mrb[0].mxu0
    %v6777 = vadd.f32 0.0, %v6776
    %v6778 = vpop.f32.mrb[0].mxu0
    %v6779 = vadd.f32 0.0, %v6778
    %6780 = vdwg.mxu0
    %6781 = vmatprep.subr.mxu0 %v5621
    %6782 = vmatpush1.msra.mxu0 %v5620
    %6783 = vmatprep.subr.mxu0 %v5625
    %6784 = vmatpush1.msra.mxu0 %v5624
    %6785 = vmatprep.subr.mxu0 %v5629
    %6786 = vmatpush1.msra.mxu0 %v5628
    %6787 = vmatprep.subr.mxu0 %v5633
    %6788 = vmatpush1.msra.mxu0 %v5632
    %6789 = vmatprep.subr.mxu0 %v5637
    %6790 = vmatpush1.msra.mxu0 %v5636
    %6791 = vmatprep.subr.mxu0 %v5641
    %6792 = vmatpush1.msra.mxu0 %v5640
    %6793 = vmatprep.subr.mxu0 %v5645
    %6794 = vmatpush1.msra.mxu0 %v5644
    %6795 = vmatprep.subr.mxu0 %v5649
    %6796 = vmatpush1.msra.mxu0 %v5648
    %6797 = vmatprep.subr.mxu0 %v5653
    %6798 = vmatpush1.msra.mxu0 %v5652
    %6799 = vmatprep.subr.mxu0 %v5657
    %6800 = vmatpush1.msra.mxu0 %v5656
    %6801 = vmatprep.subr.mxu0 %v5661
    %6802 = vmatpush1.msra.mxu0 %v5660
    %6803 = vmatprep.subr.mxu0 %v5665
    %6804 = vmatpush1.msra.mxu0 %v5664
    %6805 = vmatprep.subr.mxu0 %v5669
    %6806 = vmatpush1.msra.mxu0 %v5668
    %6807 = vmatprep.subr.mxu0 %v5673
    %6808 = vmatpush1.msra.mxu0 %v5672
    %6809 = vmatprep.subr.mxu0 %v5677
    %6810 = vmatpush1.msra.mxu0 %v5676
    %6811 = vmatprep.subr.mxu0 %v5681
    %6812 = vmatpush1.msra.mxu0 %v5680
    %6813 = vmatprep.subr.mxu0 0.0
    %6814 = vmatpush1.msra.mxu0 0.0
    %6815 = vmatprep.subr.mxu0 0.0
    %6816 = vmatpush1.msra.mxu0 0.0
    %6817 = vmatprep.subr.mxu0 0.0
    %6818 = vmatpush1.msra.mxu0 0.0
    %6819 = vmatprep.subr.mxu0 0.0
    %6820 = vmatpush1.msra.mxu0 0.0
    %6821 = vmatprep.subr.mxu0 0.0
    %6822 = vmatpush1.msra.mxu0 0.0
    %6823 = vmatprep.subr.mxu0 0.0
    %6824 = vmatpush1.msra.mxu0 0.0
    %6825 = vmatprep.subr.mxu0 0.0
    %6826 = vmatpush1.msra.mxu0 0.0
    %6827 = vmatprep.subr.mxu0 0.0
    %6828 = vmatpush1.msra.mxu0 0.0
    %6829 = vmatprep.subr.mxu0 0.0
    %6830 = vmatpush1.msra.mxu0 0.0
    %6831 = vmatprep.subr.mxu0 0.0
    %6832 = vmatpush1.msra.mxu0 0.0
    %6833 = vmatprep.subr.mxu0 0.0
    %6834 = vmatpush1.msra.mxu0 0.0
    %6835 = vmatprep.subr.mxu0 0.0
    %6836 = vmatpush1.msra.mxu0 0.0
    %6837 = vmatprep.subr.mxu0 0.0
    %6838 = vmatpush1.msra.mxu0 0.0
    %6839 = vmatprep.subr.mxu0 0.0
    %6840 = vmatpush1.msra.mxu0 0.0
    %6841 = vmatprep.subr.mxu0 0.0
    %6842 = vmatpush1.msra.mxu0 0.0
    %6843 = vmatprep.subr.mxu0 0.0
    %6844 = vmatpush1.msra.mxu0 0.0
    %6845 = vmatprep.mubr.f32.mxu0 0.0
    %6846 = vmatmul.mubr.f32.gmra.mrb[0].mxu0 %v6695
    %v6847 = vpop.f32.mrb[0].mxu0
    %v6848 = vadd.f32 0.0, %v6847
    %v6849 = vpop.f32.mrb[0].mxu0
    %v6850 = vadd.f32 0.0, %v6849
    %6851 = vdwg.mxu0
    %v6852 = vadd.f32 %v6706, %v6777
    %v6853 = vadd.f32 %v6707, %v6779
    %v6854 = vadd.f32 %v6708, %v6848
    %v6855 = vadd.f32 %v6709, %v6850
    %v6856 = vxor.u32 %v6852, 2147483648
    %v6857 = vmul.f32 %v6856, 1.442695
    %v6858 = vpow.pop %v6857
    %v6859 = vadd.f32 %v6858, 1.0
    %v6860 = vrcp.pop %v6859
    %v6861 = vmul.f32 1.0, %v6860
    %v6862 = vxor.u32 %v6853, 2147483648
    %v6863 = vmul.f32 %v6862, 1.442695
    %v6864 = vpow.pop %v6863
    %v6865 = vadd.f32 %v6864, 1.0
    %v6866 = vrcp.pop %v6865
    %v6867 = vmul.f32 1.0, %v6866
    %v6868 = vtanh.pop %v6854
    %v6869 = vxor.u32 %v6855, 2147483648
    %v6870 = vmul.f32 %v6869, 1.442695
    %v6871 = vpow.pop %v6870
    %v6872 = vadd.f32 %v6871, 1.0
    %v6873 = vrcp.pop %v6872
    %v6874 = vmul.f32 1.0, %v6873
    %v6875 = vmul.f32 %v6867, %v6693
    %v6876 = vmul.f32 %v6861, %v6868
    %v6877 = vadd.f32 %v6875, %v6876
    %v6878 = vtanh.pop %v6877
    %v6879 = vmul.f32 %v6874, %v6878
    %s6880 = scalar_lea.vmem %s4, 32
    %v6881 = vld [vmem:[%s6880] sm:$0xff]
    %vm6882 = vcmp.gt.f32.partialorder %v6881, 0.5
    %v6883 = vsel %vm6882, 1, 0
    %6884 = vset.pattern.permute.xlu0 0
    %6885 = vperm.xlu0 %6884, %v6883
    %v6886 = vpop.permute.xlu0 %6885
    %vm6887 = vcmp.eq.s32.totalorder %v6886, 1
    %v6888 = vsel %vm6887, %v6879, -3.4028235e+38
    %v6889 = vmax.f32 %v6705, %v6888
    %v6890 = vld [vmem:[%s1383] sm:$0xff]
    %v6891 = vld [vmem:[%s1383 + $0x8] sm:$0xff]
    %v6892 = vld [vmem:[%s1383 + $0x10] sm:$0xff]
    %v6893 = vld [vmem:[%s1383 + $0x18] sm:$0xff]
    %6894 = vmatprep.subr.mxu0 %v5619
    %6895 = vmatpush1.msra.mxu0 %v5618
    %6896 = vmatprep.subr.mxu0 %v5623
    %6897 = vmatpush1.msra.mxu0 %v5622
    %6898 = vmatprep.subr.mxu0 %v5627
    %6899 = vmatpush1.msra.mxu0 %v5626
    %6900 = vmatprep.subr.mxu0 %v5631
    %6901 = vmatpush1.msra.mxu0 %v5630
    %6902 = vmatprep.subr.mxu0 %v5635
    %6903 = vmatpush1.msra.mxu0 %v5634
    %6904 = vmatprep.subr.mxu0 %v5639
    %6905 = vmatpush1.msra.mxu0 %v5638
    %6906 = vmatprep.subr.mxu0 %v5643
    %6907 = vmatpush1.msra.mxu0 %v5642
    %6908 = vmatprep.subr.mxu0 %v5647
    %6909 = vmatpush1.msra.mxu0 %v5646
    %6910 = vmatprep.subr.mxu0 %v5651
    %6911 = vmatpush1.msra.mxu0 %v5650
    %6912 = vmatprep.subr.mxu0 %v5655
    %6913 = vmatpush1.msra.mxu0 %v5654
    %6914 = vmatprep.subr.mxu0 %v5659
    %6915 = vmatpush1.msra.mxu0 %v5658
    %6916 = vmatprep.subr.mxu0 %v5663
    %6917 = vmatpush1.msra.mxu0 %v5662
    %6918 = vmatprep.subr.mxu0 %v5667
    %6919 = vmatpush1.msra.mxu0 %v5666
    %6920 = vmatprep.subr.mxu0 %v5671
    %6921 = vmatpush1.msra.mxu0 %v5670
    %6922 = vmatprep.subr.mxu0 %v5675
    %6923 = vmatpush1.msra.mxu0 %v5674
    %6924 = vmatprep.subr.mxu0 %v5679
    %6925 = vmatpush1.msra.mxu0 %v5678
    %6926 = vmatprep.subr.mxu0 0.0
    %6927 = vmatpush1.msra.mxu0 0.0
    %6928 = vmatprep.subr.mxu0 0.0
    %6929 = vmatpush1.msra.mxu0 0.0
    %6930 = vmatprep.subr.mxu0 0.0
    %6931 = vmatpush1.msra.mxu0 0.0
    %6932 = vmatprep.subr.mxu0 0.0
    %6933 = vmatpush1.msra.mxu0 0.0
    %6934 = vmatprep.subr.mxu0 0.0
    %6935 = vmatpush1.msra.mxu0 0.0
    %6936 = vmatprep.subr.mxu0 0.0
    %6937 = vmatpush1.msra.mxu0 0.0
    %6938 = vmatprep.subr.mxu0 0.0
    %6939 = vmatpush1.msra.mxu0 0.0
    %6940 = vmatprep.subr.mxu0 0.0
    %6941 = vmatpush1.msra.mxu0 0.0
    %6942 = vmatprep.subr.mxu0 0.0
    %6943 = vmatpush1.msra.mxu0 0.0
    %6944 = vmatprep.subr.mxu0 0.0
    %6945 = vmatpush1.msra.mxu0 0.0
    %6946 = vmatprep.subr.mxu0 0.0
    %6947 = vmatpush1.msra.mxu0 0.0
    %6948 = vmatprep.subr.mxu0 0.0
    %6949 = vmatpush1.msra.mxu0 0.0
    %6950 = vmatprep.subr.mxu0 0.0
    %6951 = vmatpush1.msra.mxu0 0.0
    %6952 = vmatprep.subr.mxu0 0.0
    %6953 = vmatpush1.msra.mxu0 0.0
    %6954 = vmatprep.subr.mxu0 0.0
    %6955 = vmatpush1.msra.mxu0 0.0
    %6956 = vmatprep.subr.mxu0 0.0
    %6957 = vmatpush1.msra.mxu0 0.0
    %6958 = vmatprep.mubr.f32.mxu0 0.0
    %6959 = vmatmul.mubr.f32.gmra.mrb[0].mxu0 %v6879
    %v6960 = vpop.f32.mrb[0].mxu0
    %v6961 = vadd.f32 0.0, %v6960
    %v6962 = vpop.f32.mrb[0].mxu0
    %v6963 = vadd.f32 0.0, %v6962
    %6964 = vdwg.mxu0
    %6965 = vmatprep.subr.mxu0 %v5621
    %6966 = vmatpush1.msra.mxu0 %v5620
    %6967 = vmatprep.subr.mxu0 %v5625
    %6968 = vmatpush1.msra.mxu0 %v5624
    %6969 = vmatprep.subr.mxu0 %v5629
    %6970 = vmatpush1.msra.mxu0 %v5628
    %6971 = vmatprep.subr.mxu0 %v5633
    %6972 = vmatpush1.msra.mxu0 %v5632
    %6973 = vmatprep.subr.mxu0 %v5637
    %6974 = vmatpush1.msra.mxu0 %v5636
    %6975 = vmatprep.subr.mxu0 %v5641
    %6976 = vmatpush1.msra.mxu0 %v5640
    %6977 = vmatprep.subr.mxu0 %v5645
    %6978 = vmatpush1.msra.mxu0 %v5644
    %6979 = vmatprep.subr.mxu0 %v5649
    %6980 = vmatpush1.msra.mxu0 %v5648
    %6981 = vmatprep.subr.mxu0 %v5653
    %6982 = vmatpush1.msra.mxu0 %v5652
    %6983 = vmatprep.subr.mxu0 %v5657
    %6984 = vmatpush1.msra.mxu0 %v5656
    %6985 = vmatprep.subr.mxu0 %v5661
    %6986 = vmatpush1.msra.mxu0 %v5660
    %6987 = vmatprep.subr.mxu0 %v5665
    %6988 = vmatpush1.msra.mxu0 %v5664
    %6989 = vmatprep.subr.mxu0 %v5669
    %6990 = vmatpush1.msra.mxu0 %v5668
    %6991 = vmatprep.subr.mxu0 %v5673
    %6992 = vmatpush1.msra.mxu0 %v5672
    %6993 = vmatprep.subr.mxu0 %v5677
    %6994 = vmatpush1.msra.mxu0 %v5676
    %6995 = vmatprep.subr.mxu0 %v5681
    %6996 = vmatpush1.msra.mxu0 %v5680
    %6997 = vmatprep.subr.mxu0 0.0
    %6998 = vmatpush1.msra.mxu0 0.0
    %6999 = vmatprep.subr.mxu0 0.0
    %7000 = vmatpush1.msra.mxu0 0.0
    %7001 = vmatprep.subr.mxu0 0.0
    %7002 = vmatpush1.msra.mxu0 0.0
    %7003 = vmatprep.subr.mxu0 0.0
    %7004 = vmatpush1.msra.mxu0 0.0
    %7005 = vmatprep.subr.mxu0 0.0
    %7006 = vmatpush1.msra.mxu0 0.0
    %7007 = vmatprep.subr.mxu0 0.0
    %7008 = vmatpush1.msra.mxu0 0.0
    %7009 = vmatprep.subr.mxu0 0.0
    %7010 = vmatpush1.msra.mxu0 0.0
    %7011 = vmatprep.subr.mxu0 0.0
    %7012 = vmatpush1.msra.mxu0 0.0
    %7013 = vmatprep.subr.mxu0 0.0
    %7014 = vmatpush1.msra.mxu0 0.0
    %7015 = vmatprep.subr.mxu0 0.0
    %7016 = vmatpush1.msra.mxu0 0.0
    %7017 = vmatprep.subr.mxu0 0.0
    %7018 = vmatpush1.msra.mxu0 0.0
    %7019 = vmatprep.subr.mxu0 0.0
    %7020 = vmatpush1.msra.mxu0 0.0
    %7021 = vmatprep.subr.mxu0 0.0
    %7022 = vmatpush1.msra.mxu0 0.0
    %7023 = vmatprep.subr.mxu0 0.0
    %7024 = vmatpush1.msra.mxu0 0.0
    %7025 = vmatprep.subr.mxu0 0.0
    %7026 = vmatpush1.msra.mxu0 0.0
    %7027 = vmatprep.subr.mxu0 0.0
    %7028 = vmatpush1.msra.mxu0 0.0
    %7029 = vmatprep.mubr.f32.mxu0 0.0
    %7030 = vmatmul.mubr.f32.gmra.mrb[0].mxu0 %v6879
    %v7031 = vpop.f32.mrb[0].mxu0
    %v7032 = vadd.f32 0.0, %v7031
    %v7033 = vpop.f32.mrb[0].mxu0
    %v7034 = vadd.f32 0.0, %v7033
    %7035 = vdwg.mxu0
    %v7036 = vadd.f32 %v6890, %v6961
    %v7037 = vadd.f32 %v6891, %v6963
    %v7038 = vadd.f32 %v6892, %v7032
    %v7039 = vadd.f32 %v6893, %v7034
    %v7040 = vxor.u32 %v7036, 2147483648
    %v7041 = vmul.f32 %v7040, 1.442695
    %v7042 = vpow.pop %v7041
    %v7043 = vadd.f32 %v7042, 1.0
    %v7044 = vrcp.pop %v7043
    %v7045 = vmul.f32 1.0, %v7044
    %v7046 = vxor.u32 %v7037, 2147483648
    %v7047 = vmul.f32 %v7046, 1.442695
    %v7048 = vpow.pop %v7047
    %v7049 = vadd.f32 %v7048, 1.0
    %v7050 = vrcp.pop %v7049
    %v7051 = vmul.f32 1.0, %v7050
    %v7052 = vtanh.pop %v7038
    %v7053 = vxor.u32 %v7039, 2147483648
    %v7054 = vmul.f32 %v7053, 1.442695
    %v7055 = vpow.pop %v7054
    %v7056 = vadd.f32 %v7055, 1.0
    %v7057 = vrcp.pop %v7056
    %v7058 = vmul.f32 1.0, %v7057
    %v7059 = vmul.f32 %v7051, %v6877
    %v7060 = vmul.f32 %v7045, %v7052
    %v7061 = vadd.f32 %v7059, %v7060
    %v7062 = vtanh.pop %v7061
    %v7063 = vmul.f32 %v7058, %v7062
    %s7064 = scalar_lea.vmem %s4, 40
    %v7065 = vld [vmem:[%s7064] sm:$0xff]
    %vm7066 = vcmp.gt.f32.partialorder %v7065, 0.5
    %v7067 = vsel %vm7066, 1, 0
    %7068 = vset.pattern.permute.xlu0 0
    %7069 = vperm.xlu0 %7068, %v7067
    %v7070 = vpop.permute.xlu0 %7069
    %vm7071 = vcmp.eq.s32.totalorder %v7070, 1
    %v7072 = vsel %vm7071, %v7063, -3.4028235e+38
    %v7073 = vmax.f32 %v6889, %v7072
    %v7074 = vld [vmem:[%s1560] sm:$0xff]
    %v7075 = vld [vmem:[%s1560 + $0x8] sm:$0xff]
    %v7076 = vld [vmem:[%s1560 + $0x10] sm:$0xff]
    %v7077 = vld [vmem:[%s1560 + $0x18] sm:$0xff]
    %7078 = vmatprep.subr.mxu0 %v5619
    %7079 = vmatpush1.msra.mxu0 %v5618
    %7080 = vmatprep.subr.mxu0 %v5623
    %7081 = vmatpush1.msra.mxu0 %v5622
    %7082 = vmatprep.subr.mxu0 %v5627
    %7083 = vmatpush1.msra.mxu0 %v5626
    %7084 = vmatprep.subr.mxu0 %v5631
    %7085 = vmatpush1.msra.mxu0 %v5630
    %7086 = vmatprep.subr.mxu0 %v5635
    %7087 = vmatpush1.msra.mxu0 %v5634
    %7088 = vmatprep.subr.mxu0 %v5639
    %7089 = vmatpush1.msra.mxu0 %v5638
    %7090 = vmatprep.subr.mxu0 %v5643
    %7091 = vmatpush1.msra.mxu0 %v5642
    %7092 = vmatprep.subr.mxu0 %v5647
    %7093 = vmatpush1.msra.mxu0 %v5646
    %7094 = vmatprep.subr.mxu0 %v5651
    %7095 = vmatpush1.msra.mxu0 %v5650
    %7096 = vmatprep.subr.mxu0 %v5655
    %7097 = vmatpush1.msra.mxu0 %v5654
    %7098 = vmatprep.subr.mxu0 %v5659
    %7099 = vmatpush1.msra.mxu0 %v5658
    %7100 = vmatprep.subr.mxu0 %v5663
    %7101 = vmatpush1.msra.mxu0 %v5662
    %7102 = vmatprep.subr.mxu0 %v5667
    %7103 = vmatpush1.msra.mxu0 %v5666
    %7104 = vmatprep.subr.mxu0 %v5671
    %7105 = vmatpush1.msra.mxu0 %v5670
    %7106 = vmatprep.subr.mxu0 %v5675
    %7107 = vmatpush1.msra.mxu0 %v5674
    %7108 = vmatprep.subr.mxu0 %v5679
    %7109 = vmatpush1.msra.mxu0 %v5678
    %7110 = vmatprep.subr.mxu0 0.0
    %7111 = vmatpush1.msra.mxu0 0.0
    %7112 = vmatprep.subr.mxu0 0.0
    %7113 = vmatpush1.msra.mxu0 0.0
    %7114 = vmatprep.subr.mxu0 0.0
    %7115 = vmatpush1.msra.mxu0 0.0
    %7116 = vmatprep.subr.mxu0 0.0
    %7117 = vmatpush1.msra.mxu0 0.0
    %7118 = vmatprep.subr.mxu0 0.0
    %7119 = vmatpush1.msra.mxu0 0.0
    %7120 = vmatprep.subr.mxu0 0.0
    %7121 = vmatpush1.msra.mxu0 0.0
    %7122 = vmatprep.subr.mxu0 0.0
    %7123 = vmatpush1.msra.mxu0 0.0
    %7124 = vmatprep.subr.mxu0 0.0
    %7125 = vmatpush1.msra.mxu0 0.0
    %7126 = vmatprep.subr.mxu0 0.0
    %7127 = vmatpush1.msra.mxu0 0.0
    %7128 = vmatprep.subr.mxu0 0.0
    %7129 = vmatpush1.msra.mxu0 0.0
    %7130 = vmatprep.subr.mxu0 0.0
    %7131 = vmatpush1.msra.mxu0 0.0
    %7132 = vmatprep.subr.mxu0 0.0
    %7133 = vmatpush1.msra.mxu0 0.0
    %7134 = vmatprep.subr.mxu0 0.0
    %7135 = vmatpush1.msra.mxu0 0.0
    %7136 = vmatprep.subr.mxu0 0.0
    %7137 = vmatpush1.msra.mxu0 0.0
    %7138 = vmatprep.subr.mxu0 0.0
    %7139 = vmatpush1.msra.mxu0 0.0
    %7140 = vmatprep.subr.mxu0 0.0
    %7141 = vmatpush1.msra.mxu0 0.0
    %7142 = vmatprep.mubr.f32.mxu0 0.0
    %7143 = vmatmul.mubr.f32.gmra.mrb[0].mxu0 %v7063
    %v7144 = vpop.f32.mrb[0].mxu0
    %v7145 = vadd.f32 0.0, %v7144
    %v7146 = vpop.f32.mrb[0].mxu0
    %v7147 = vadd.f32 0.0, %v7146
    %7148 = vdwg.mxu0
    %7149 = vmatprep.subr.mxu0 %v5621
    %7150 = vmatpush1.msra.mxu0 %v5620
    %7151 = vmatprep.subr.mxu0 %v5625
    %7152 = vmatpush1.msra.mxu0 %v5624
    %7153 = vmatprep.subr.mxu0 %v5629
    %7154 = vmatpush1.msra.mxu0 %v5628
    %7155 = vmatprep.subr.mxu0 %v5633
    %7156 = vmatpush1.msra.mxu0 %v5632
    %7157 = vmatprep.subr.mxu0 %v5637
    %7158 = vmatpush1.msra.mxu0 %v5636
    %7159 = vmatprep.subr.mxu0 %v5641
    %7160 = vmatpush1.msra.mxu0 %v5640
    %7161 = vmatprep.subr.mxu0 %v5645
    %7162 = vmatpush1.msra.mxu0 %v5644
    %7163 = vmatprep.subr.mxu0 %v5649
    %7164 = vmatpush1.msra.mxu0 %v5648
    %7165 = vmatprep.subr.mxu0 %v5653
    %7166 = vmatpush1.msra.mxu0 %v5652
    %7167 = vmatprep.subr.mxu0 %v5657
    %7168 = vmatpush1.msra.mxu0 %v5656
    %7169 = vmatprep.subr.mxu0 %v5661
    %7170 = vmatpush1.msra.mxu0 %v5660
    %7171 = vmatprep.subr.mxu0 %v5665
    %7172 = vmatpush1.msra.mxu0 %v5664
    %7173 = vmatprep.subr.mxu0 %v5669
    %7174 = vmatpush1.msra.mxu0 %v5668
    %7175 = vmatprep.subr.mxu0 %v5673
    %7176 = vmatpush1.msra.mxu0 %v5672
    %7177 = vmatprep.subr.mxu0 %v5677
    %7178 = vmatpush1.msra.mxu0 %v5676
    %7179 = vmatprep.subr.mxu0 %v5681
    %7180 = vmatpush1.msra.mxu0 %v5680
    %7181 = vmatprep.subr.mxu0 0.0
    %7182 = vmatpush1.msra.mxu0 0.0
    %7183 = vmatprep.subr.mxu0 0.0
    %7184 = vmatpush1.msra.mxu0 0.0
    %7185 = vmatprep.subr.mxu0 0.0
    %7186 = vmatpush1.msra.mxu0 0.0
    %7187 = vmatprep.subr.mxu0 0.0
    %7188 = vmatpush1.msra.mxu0 0.0
    %7189 = vmatprep.subr.mxu0 0.0
    %7190 = vmatpush1.msra.mxu0 0.0
    %7191 = vmatprep.subr.mxu0 0.0
    %7192 = vmatpush1.msra.mxu0 0.0
    %7193 = vmatprep.subr.mxu0 0.0
    %7194 = vmatpush1.msra.mxu0 0.0
    %7195 = vmatprep.subr.mxu0 0.0
    %7196 = vmatpush1.msra.mxu0 0.0
    %7197 = vmatprep.subr.mxu0 0.0
    %7198 = vmatpush1.msra.mxu0 0.0
    %7199 = vmatprep.subr.mxu0 0.0
    %7200 = vmatpush1.msra.mxu0 0.0
    %7201 = vmatprep.subr.mxu0 0.0
    %7202 = vmatpush1.msra.mxu0 0.0
    %7203 = vmatprep.subr.mxu0 0.0
    %7204 = vmatpush1.msra.mxu0 0.0
    %7205 = vmatprep.subr.mxu0 0.0
    %7206 = vmatpush1.msra.mxu0 0.0
    %7207 = vmatprep.subr.mxu0 0.0
    %7208 = vmatpush1.msra.mxu0 0.0
    %7209 = vmatprep.subr.mxu0 0.0
    %7210 = vmatpush1.msra.mxu0 0.0
    %7211 = vmatprep.subr.mxu0 0.0
    %7212 = vmatpush1.msra.mxu0 0.0
    %7213 = vmatprep.mubr.f32.mxu0 0.0
    %7214 = vmatmul.mubr.f32.gmra.mrb[0].mxu0 %v7063
    %v7215 = vpop.f32.mrb[0].mxu0
    %v7216 = vadd.f32 0.0, %v7215
    %v7217 = vpop.f32.mrb[0].mxu0
    %v7218 = vadd.f32 0.0, %v7217
    %7219 = vdwg.mxu0
    %v7220 = vadd.f32 %v7074, %v7145
    %v7221 = vadd.f32 %v7075, %v7147
    %v7222 = vadd.f32 %v7076, %v7216
    %v7223 = vadd.f32 %v7077, %v7218
    %v7224 = vxor.u32 %v7220, 2147483648
    %v7225 = vmul.f32 %v7224, 1.442695
    %v7226 = vpow.pop %v7225
    %v7227 = vadd.f32 %v7226, 1.0
    %v7228 = vrcp.pop %v7227
    %v7229 = vmul.f32 1.0, %v7228
    %v7230 = vxor.u32 %v7221, 2147483648
    %v7231 = vmul.f32 %v7230, 1.442695
    %v7232 = vpow.pop %v7231
    %v7233 = vadd.f32 %v7232, 1.0
    %v7234 = vrcp.pop %v7233
    %v7235 = vmul.f32 1.0, %v7234
    %v7236 = vtanh.pop %v7222
    %v7237 = vxor.u32 %v7223, 2147483648
    %v7238 = vmul.f32 %v7237, 1.442695
    %v7239 = vpow.pop %v7238
    %v7240 = vadd.f32 %v7239, 1.0
    %v7241 = vrcp.pop %v7240
    %v7242 = vmul.f32 1.0, %v7241
    %v7243 = vmul.f32 %v7235, %v7061
    %v7244 = vmul.f32 %v7229, %v7236
    %v7245 = vadd.f32 %v7243, %v7244
    %v7246 = vtanh.pop %v7245
    %v7247 = vmul.f32 %v7242, %v7246
    %s7248 = scalar_lea.vmem %s4, 48
    %v7249 = vld [vmem:[%s7248] sm:$0xff]
    %vm7250 = vcmp.gt.f32.partialorder %v7249, 0.5
    %v7251 = vsel %vm7250, 1, 0
    %7252 = vset.pattern.permute.xlu0 0
    %7253 = vperm.xlu0 %7252, %v7251
    %v7254 = vpop.permute.xlu0 %7253
    %vm7255 = vcmp.eq.s32.totalorder %v7254, 1
    %v7256 = vsel %vm7255, %v7247, -3.4028235e+38
    %v7257 = vmax.f32 %v7073, %v7256
    %v7258 = vld [vmem:[%s1737] sm:$0xff]
    %v7259 = vld [vmem:[%s1737 + $0x8] sm:$0xff]
    %v7260 = vld [vmem:[%s1737 + $0x10] sm:$0xff]
    %v7261 = vld [vmem:[%s1737 + $0x18] sm:$0xff]
    %7262 = vmatprep.subr.mxu0 %v5619
    %7263 = vmatpush1.msra.mxu0 %v5618
    %7264 = vmatprep.subr.mxu0 %v5623
    %7265 = vmatpush1.msra.mxu0 %v5622
    %7266 = vmatprep.subr.mxu0 %v5627
    %7267 = vmatpush1.msra.mxu0 %v5626
    %7268 = vmatprep.subr.mxu0 %v5631
    %7269 = vmatpush1.msra.mxu0 %v5630
    %7270 = vmatprep.subr.mxu0 %v5635
    %7271 = vmatpush1.msra.mxu0 %v5634
    %7272 = vmatprep.subr.mxu0 %v5639
    %7273 = vmatpush1.msra.mxu0 %v5638
    %7274 = vmatprep.subr.mxu0 %v5643
    %7275 = vmatpush1.msra.mxu0 %v5642
    %7276 = vmatprep.subr.mxu0 %v5647
    %7277 = vmatpush1.msra.mxu0 %v5646
    %7278 = vmatprep.subr.mxu0 %v5651
    %7279 = vmatpush1.msra.mxu0 %v5650
    %7280 = vmatprep.subr.mxu0 %v5655
    %7281 = vmatpush1.msra.mxu0 %v5654
    %7282 = vmatprep.subr.mxu0 %v5659
    %7283 = vmatpush1.msra.mxu0 %v5658
    %7284 = vmatprep.subr.mxu0 %v5663
    %7285 = vmatpush1.msra.mxu0 %v5662
    %7286 = vmatprep.subr.mxu0 %v5667
    %7287 = vmatpush1.msra.mxu0 %v5666
    %7288 = vmatprep.subr.mxu0 %v5671
    %7289 = vmatpush1.msra.mxu0 %v5670
    %7290 = vmatprep.subr.mxu0 %v5675
    %7291 = vmatpush1.msra.mxu0 %v5674
    %7292 = vmatprep.subr.mxu0 %v5679
    %7293 = vmatpush1.msra.mxu0 %v5678
    %7294 = vmatprep.subr.mxu0 0.0
    %7295 = vmatpush1.msra.mxu0 0.0
    %7296 = vmatprep.subr.mxu0 0.0
    %7297 = vmatpush1.msra.mxu0 0.0
    %7298 = vmatprep.subr.mxu0 0.0
    %7299 = vmatpush1.msra.mxu0 0.0
    %7300 = vmatprep.subr.mxu0 0.0
    %7301 = vmatpush1.msra.mxu0 0.0
    %7302 = vmatprep.subr.mxu0 0.0
    %7303 = vmatpush1.msra.mxu0 0.0
    %7304 = vmatprep.subr.mxu0 0.0
    %7305 = vmatpush1.msra.mxu0 0.0
    %7306 = vmatprep.subr.mxu0 0.0
    %7307 = vmatpush1.msra.mxu0 0.0
    %7308 = vmatprep.subr.mxu0 0.0
    %7309 = vmatpush1.msra.mxu0 0.0
    %7310 = vmatprep.subr.mxu0 0.0
    %7311 = vmatpush1.msra.mxu0 0.0
    %7312 = vmatprep.subr.mxu0 0.0
    %7313 = vmatpush1.msra.mxu0 0.0
    %7314 = vmatprep.subr.mxu0 0.0
    %7315 = vmatpush1.msra.mxu0 0.0
    %7316 = vmatprep.subr.mxu0 0.0
    %7317 = vmatpush1.msra.mxu0 0.0
    %7318 = vmatprep.subr.mxu0 0.0
    %7319 = vmatpush1.msra.mxu0 0.0
    %7320 = vmatprep.subr.mxu0 0.0
    %7321 = vmatpush1.msra.mxu0 0.0
    %7322 = vmatprep.subr.mxu0 0.0
    %7323 = vmatpush1.msra.mxu0 0.0
    %7324 = vmatprep.subr.mxu0 0.0
    %7325 = vmatpush1.msra.mxu0 0.0
    %7326 = vmatprep.mubr.f32.mxu0 0.0
    %7327 = vmatmul.mubr.f32.gmra.mrb[0].mxu0 %v7247
    %v7328 = vpop.f32.mrb[0].mxu0
    %v7329 = vadd.f32 0.0, %v7328
    %v7330 = vpop.f32.mrb[0].mxu0
    %v7331 = vadd.f32 0.0, %v7330
    %7332 = vdwg.mxu0
    %7333 = vmatprep.subr.mxu0 %v5621
    %7334 = vmatpush1.msra.mxu0 %v5620
    %7335 = vmatprep.subr.mxu0 %v5625
    %7336 = vmatpush1.msra.mxu0 %v5624
    %7337 = vmatprep.subr.mxu0 %v5629
    %7338 = vmatpush1.msra.mxu0 %v5628
    %7339 = vmatprep.subr.mxu0 %v5633
    %7340 = vmatpush1.msra.mxu0 %v5632
    %7341 = vmatprep.subr.mxu0 %v5637
    %7342 = vmatpush1.msra.mxu0 %v5636
    %7343 = vmatprep.subr.mxu0 %v5641
    %7344 = vmatpush1.msra.mxu0 %v5640
    %7345 = vmatprep.subr.mxu0 %v5645
    %7346 = vmatpush1.msra.mxu0 %v5644
    %7347 = vmatprep.subr.mxu0 %v5649
    %7348 = vmatpush1.msra.mxu0 %v5648
    %7349 = vmatprep.subr.mxu0 %v5653
    %7350 = vmatpush1.msra.mxu0 %v5652
    %7351 = vmatprep.subr.mxu0 %v5657
    %7352 = vmatpush1.msra.mxu0 %v5656
    %7353 = vmatprep.subr.mxu0 %v5661
    %7354 = vmatpush1.msra.mxu0 %v5660
    %7355 = vmatprep.subr.mxu0 %v5665
    %7356 = vmatpush1.msra.mxu0 %v5664
    %7357 = vmatprep.subr.mxu0 %v5669
    %7358 = vmatpush1.msra.mxu0 %v5668
    %7359 = vmatprep.subr.mxu0 %v5673
    %7360 = vmatpush1.msra.mxu0 %v5672
    %7361 = vmatprep.subr.mxu0 %v5677
    %7362 = vmatpush1.msra.mxu0 %v5676
    %7363 = vmatprep.subr.mxu0 %v5681
    %7364 = vmatpush1.msra.mxu0 %v5680
    %7365 = vmatprep.subr.mxu0 0.0
    %7366 = vmatpush1.msra.mxu0 0.0
    %7367 = vmatprep.subr.mxu0 0.0
    %7368 = vmatpush1.msra.mxu0 0.0
    %7369 = vmatprep.subr.mxu0 0.0
    %7370 = vmatpush1.msra.mxu0 0.0
    %7371 = vmatprep.subr.mxu0 0.0
    %7372 = vmatpush1.msra.mxu0 0.0
    %7373 = vmatprep.subr.mxu0 0.0
    %7374 = vmatpush1.msra.mxu0 0.0
    %7375 = vmatprep.subr.mxu0 0.0
    %7376 = vmatpush1.msra.mxu0 0.0
    %7377 = vmatprep.subr.mxu0 0.0
    %7378 = vmatpush1.msra.mxu0 0.0
    %7379 = vmatprep.subr.mxu0 0.0
    %7380 = vmatpush1.msra.mxu0 0.0
    %7381 = vmatprep.subr.mxu0 0.0
    %7382 = vmatpush1.msra.mxu0 0.0
    %7383 = vmatprep.subr.mxu0 0.0
    %7384 = vmatpush1.msra.mxu0 0.0
    %7385 = vmatprep.subr.mxu0 0.0
    %7386 = vmatpush1.msra.mxu0 0.0
    %7387 = vmatprep.subr.mxu0 0.0
    %7388 = vmatpush1.msra.mxu0 0.0
    %7389 = vmatprep.subr.mxu0 0.0
    %7390 = vmatpush1.msra.mxu0 0.0
    %7391 = vmatprep.subr.mxu0 0.0
    %7392 = vmatpush1.msra.mxu0 0.0
    %7393 = vmatprep.subr.mxu0 0.0
    %7394 = vmatpush1.msra.mxu0 0.0
    %7395 = vmatprep.subr.mxu0 0.0
    %7396 = vmatpush1.msra.mxu0 0.0
    %7397 = vmatprep.mubr.f32.mxu0 0.0
    %7398 = vmatmul.mubr.f32.gmra.mrb[0].mxu0 %v7247
    %v7399 = vpop.f32.mrb[0].mxu0
    %v7400 = vadd.f32 0.0, %v7399
    %v7401 = vpop.f32.mrb[0].mxu0
    %v7402 = vadd.f32 0.0, %v7401
    %7403 = vdwg.mxu0
    %v7404 = vadd.f32 %v7258, %v7329
    %v7405 = vadd.f32 %v7259, %v7331
    %v7406 = vadd.f32 %v7260, %v7400
    %v7407 = vadd.f32 %v7261, %v7402
    %v7408 = vxor.u32 %v7404, 2147483648
    %v7409 = vmul.f32 %v7408, 1.442695
    %v7410 = vpow.pop %v7409
    %v7411 = vadd.f32 %v7410, 1.0
    %v7412 = vrcp.pop %v7411
    %v7413 = vmul.f32 1.0, %v7412
    %v7414 = vxor.u32 %v7405, 2147483648
    %v7415 = vmul.f32 %v7414, 1.442695
    %v7416 = vpow.pop %v7415
    %v7417 = vadd.f32 %v7416, 1.0
    %v7418 = vrcp.pop %v7417
    %v7419 = vmul.f32 1.0, %v7418
    %v7420 = vtanh.pop %v7406
    %v7421 = vxor.u32 %v7407, 2147483648
    %v7422 = vmul.f32 %v7421, 1.442695
    %v7423 = vpow.pop %v7422
    %v7424 = vadd.f32 %v7423, 1.0
    %v7425 = vrcp.pop %v7424
    %v7426 = vmul.f32 1.0, %v7425
    %v7427 = vmul.f32 %v7419, %v7245
    %v7428 = vmul.f32 %v7413, %v7420
    %v7429 = vadd.f32 %v7427, %v7428
    %v7430 = vtanh.pop %v7429
    %v7431 = vmul.f32 %v7426, %v7430
    %s7432 = scalar_lea.vmem %s4, 56
    %v7433 = vld [vmem:[%s7432] sm:$0xff]
    %vm7434 = vcmp.gt.f32.partialorder %v7433, 0.5
    %v7435 = vsel %vm7434, 1, 0
    %7436 = vset.pattern.permute.xlu0 0
    %7437 = vperm.xlu0 %7436, %v7435
    %v7438 = vpop.permute.xlu0 %7437
    %vm7439 = vcmp.eq.s32.totalorder %v7438, 1
    %v7440 = vsel %vm7439, %v7431, -3.4028235e+38
    %v7441 = vmax.f32 %v7257, %v7440
    %v7442 = vld [vmem:[#allocation9] sm:$0xff]
    %v7443 = vld [vmem:[#allocation9 + $0x8] sm:$0xff]
    %v7444 = vld [vmem:[#allocation9 + $0x10] sm:$0xff]
    %v7445 = vld [vmem:[#allocation9 + $0x18] sm:$0xff]
    %v7446 = vld [vmem:[#allocation9 + $0x20] sm:$0xff]
    %v7447 = vld [vmem:[#allocation9 + $0x28] sm:$0xff]
    %v7448 = vld [vmem:[#allocation9 + $0x30] sm:$0xff]
    %v7449 = vld [vmem:[#allocation9 + $0x38] sm:$0xff]
    %v7450 = vld [vmem:[#allocation9 + $0x40] sm:$0xff]
    %v7451 = vld [vmem:[#allocation9 + $0x48] sm:$0xff]
    %v7452 = vld [vmem:[#allocation9 + $0x50] sm:$0xff]
    %v7453 = vld [vmem:[#allocation9 + $0x58] sm:$0xff]
    %v7454 = vld [vmem:[#allocation9 + $0x60] sm:$0xff]
    %v7455 = vld [vmem:[#allocation9 + $0x68] sm:$0xff]
    %v7456 = vld [vmem:[#allocation9 + $0x70] sm:$0xff]
    %v7457 = vld [vmem:[#allocation9 + $0x78] sm:$0xff]
    %v7458 = vld [vmem:[%s6] sm:$0x1]
    %v7460 = vlaneseq
    %v7461 = vshrl.u32 %v7460, 7
    %v7462 = vsub.s32 0, %v7461
    %v7463 = vrot.slane %v7458, %v7462
    %7465 = vmatprep.subr.mxu0 0.0
    %7466 = vmatpush1.msra.mxu0 %v7442
    %7467 = vmatprep.subr.mxu0 0.0
    %7468 = vmatpush1.msra.mxu0 %v7443
    %7469 = vmatprep.subr.mxu0 0.0
    %7470 = vmatpush1.msra.mxu0 %v7444
    %7471 = vmatprep.subr.mxu0 0.0
    %7472 = vmatpush1.msra.mxu0 %v7445
    %7473 = vmatprep.subr.mxu0 0.0
    %7474 = vmatpush1.msra.mxu0 %v7446
    %7475 = vmatprep.subr.mxu0 0.0
    %7476 = vmatpush1.msra.mxu0 %v7447
    %7477 = vmatprep.subr.mxu0 0.0
    %7478 = vmatpush1.msra.mxu0 %v7448
    %7479 = vmatprep.subr.mxu0 0.0
    %7480 = vmatpush1.msra.mxu0 %v7449
    %7481 = vmatprep.subr.mxu0 0.0
    %7482 = vmatpush1.msra.mxu0 %v7450
    %7483 = vmatprep.subr.mxu0 0.0
    %7484 = vmatpush1.msra.mxu0 %v7451
    %7485 = vmatprep.subr.mxu0 0.0
    %7486 = vmatpush1.msra.mxu0 %v7452
    %7487 = vmatprep.subr.mxu0 0.0
    %7488 = vmatpush1.msra.mxu0 %v7453
    %7489 = vmatprep.subr.mxu0 0.0
    %7490 = vmatpush1.msra.mxu0 %v7454
    %7491 = vmatprep.subr.mxu0 0.0
    %7492 = vmatpush1.msra.mxu0 %v7455
    %7493 = vmatprep.subr.mxu0 0.0
    %7494 = vmatpush1.msra.mxu0 %v7456
    %7495 = vmatprep.subr.mxu0 0.0
    %7496 = vmatpush1.msra.mxu0 %v7457
    %7497 = vmatprep.subr.mxu0 0.0
    %7498 = vmatpush1.msra.mxu0 0.0
    %7499 = vmatprep.subr.mxu0 0.0
    %7500 = vmatpush1.msra.mxu0 0.0
    %7501 = vmatprep.subr.mxu0 0.0
    %7502 = vmatpush1.msra.mxu0 0.0
    %7503 = vmatprep.subr.mxu0 0.0
    %7504 = vmatpush1.msra.mxu0 0.0
    %7505 = vmatprep.subr.mxu0 0.0
    %7506 = vmatpush1.msra.mxu0 0.0
    %7507 = vmatprep.subr.mxu0 0.0
    %7508 = vmatpush1.msra.mxu0 0.0
    %7509 = vmatprep.subr.mxu0 0.0
    %7510 = vmatpush1.msra.mxu0 0.0
    %7511 = vmatprep.subr.mxu0 0.0
    %7512 = vmatpush1.msra.mxu0 0.0
    %7513 = vmatprep.subr.mxu0 0.0
    %7514 = vmatpush1.msra.mxu0 0.0
    %7515 = vmatprep.subr.mxu0 0.0
    %7516 = vmatpush1.msra.mxu0 0.0
    %7517 = vmatprep.subr.mxu0 0.0
    %7518 = vmatpush1.msra.mxu0 0.0
    %7519 = vmatprep.subr.mxu0 0.0
    %7520 = vmatpush1.msra.mxu0 0.0
    %7521 = vmatprep.subr.mxu0 0.0
    %7522 = vmatpush1.msra.mxu0 0.0
    %7523 = vmatprep.subr.mxu0 0.0
    %7524 = vmatpush1.msra.mxu0 0.0
    %7525 = vmatprep.subr.mxu0 0.0
    %7526 = vmatpush1.msra.mxu0 0.0
    %7527 = vmatprep.subr.mxu0 0.0
    %7528 = vmatpush1.msra.mxu0 0.0
    %7529 = vmatprep.mubr.f32.mxu0 0.0
    %7530 = vmatmul.mubr.f32.gmra.mrb[0].mxu0 %v7441
    %v7531 = vpop.f32.mrb[0].mxu0
    %v7532 = vadd.f32 %v7463, %v7531
    %v7533 = vpop.f32.mrb[0].mxu0
    %7534 = vdwg.mxu0
    %7535 = vst [vmem:[#allocation10] sm:$0xff] %v7532
    // Predicated region
    $region42: #{tpu_custom_call.1} parent=1 // pred_check
      _
    $region43: #{tpu_custom_call.1} parent=1 // pred_check_branch
      %7537 = sbr.rel (0) target = $region45
    $region44: #{tpu_custom_call.1} parent=1 // pred_region
      %s7539 = ssub.s32 128, 128
      %7540 = vsyncadd [#allocation6], %s7539
      %s7542 = sshll.u32 [#allocation10], 4
      %s7543 = int_to_ptr.vmem [resolvable:$true] %s7542
      %7545 = dma.vmem_to_hbm [thread:$0]  %s7543, 128, %s7, [#allocation6]
    $region45: #{tpu_custom_call.1} parent=1 // pred_fallthru
      _
    // Predicated region
    $region46: #{tpu_custom_call.1} parent=1 // pred_check
      _
    $region47: #{tpu_custom_call.1} parent=1 // pred_check_branch
      %7547 = sbr.rel (0) target = $region49
    $region48: #{tpu_custom_call.1} parent=1 // pred_region
      %7548 = dma.done [#allocation6], 128
    $region49: #{tpu_custom_call.1} parent=1 // pred_fallthru
      _
    %7549 = vsyncpa [#allocation5], 1
    %7550 = vsyncpa [#allocation8], 1
    %7551 = vsyncpa [#allocation6], 1

</llo_original>
